<compile_context>
chip_gen: v7x
topology: tpu7x:2x2x1
jax: 0.10.0
libtpu: 0.0.40
codegen_flags: <defaults>
</compile_context>

<pallas_src>
import functools
import math

import jax
import jax.numpy as jnp
from jax.experimental import pallas as pl
from jax.experimental.pallas import tpu as pltpu


def _fused_head_kernel(*refs, H, W, chans, relus):
    """Entire classifier head (all 3x3 'same' convs) for one image, VMEM-resident.

    refs layout (L = number of conv layers):
      refs[0]              : x_ref     (H, W, Cin)        input activation, f32
      refs[1 : 1+L]        : w_refs[i] (9*Cin_i, Cout_i)  im2col weights, bf16
      refs[1+L : 1+2L]     : b_refs[i] (1, Cout_i)        biases, f32
      refs[1+2L]           : o_ref     (H*W, Cout_last)   output logits, f32
      refs[2+2L]           : pad_ref   (H+2, W+2, Cmax)   padded activation scratch, f32
    """
    L = len(chans) - 1
    x_ref = refs[0]
    w_refs = refs[1:1 + L]
    b_refs = refs[1 + L:1 + 2 * L]
    o_ref = refs[1 + 2 * L]
    pad_ref = refs[2 + 2 * L]

    # In-kernel 'same' padding: zero the halo once per image; all intermediate
    # activations stay resident in this padded VMEM scratch between layers.
    pad_ref[...] = jnp.zeros_like(pad_ref)
    pad_ref[1:H + 1, 1:W + 1, :chans[0]] = x_ref[...].astype(pad_ref.dtype)

    for li in range(L):
        cin, cout = chans[li], chans[li + 1]
        # im2col: build one (H*W, 9*Cin) LHS and run a single MXU dot with
        # K = 9*Cin instead of 9 tiny K=Cin dots. Tap order (dy, dx, cin)
        # matches the host-side weight reshape (3,3,Cin,Cout) -> (9*Cin,Cout).
        cols = jnp.concatenate(
            [pad_ref[dy:dy + H, dx:dx + W, :cin]
             for dy in range(3) for dx in range(3)],
            axis=-1).reshape(H * W, 9 * cin)
        acc = jnp.dot(cols.astype(jnp.bfloat16), w_refs[li][...],
                      preferred_element_type=jnp.float32)
        acc = acc + b_refs[li][...]            # (1, Cout) broadcast, f32
        if relus[li]:
            acc = jnp.maximum(acc, 0.0)
        if li == L - 1:
            o_ref[...] = acc.astype(o_ref.dtype)
        else:
            pad_ref[1:H + 1, 1:W + 1, :cout] = (
                acc.reshape(H, W, cout).astype(pad_ref.dtype))


def classifier_head_forward(x_nhwc, weights, biases, relus):
    """Run the full conv stack as one fused pallas_call.

    x_nhwc : (N, H, W, Cin) float32
    weights: list of (9*Cin_i, Cout_i) bfloat16 (im2col layout)
    biases : list of (1, Cout_i) float32
    relus  : list of bool
    returns: (N, H*W, Cout_last) float32
    """
    N, H, W, Cin = x_nhwc.shape
    chans = [Cin] + [int(w.shape[1]) for w in weights]
    cout_last = chans[-1]
    cmax = max(chans[:-1])   # only input + internal activations live in the pad scratch

    kernel = functools.partial(_fused_head_kernel, H=H, W=W,
                               chans=tuple(chans), relus=tuple(relus))

    in_specs = [pl.BlockSpec((pl.Squeezed(), H, W, Cin),
                             lambda n: (n, 0, 0, 0))]
    for w in weights:      # full-array blocks; same block every step -> fetched once
        in_specs.append(pl.BlockSpec(w.shape, lambda n: (0, 0)))
    for b in biases:
        in_specs.append(pl.BlockSpec(b.shape, lambda n: (0, 0)))

    return pl.pallas_call(
        kernel,
        out_shape=jax.ShapeDtypeStruct((N, H * W, cout_last), jnp.float32),
        grid=(N,),
        in_specs=in_specs,
        out_specs=pl.BlockSpec((pl.Squeezed(), H * W, cout_last),
                               lambda n: (n, 0, 0)),
        scratch_shapes=[pltpu.VMEM((H + 2, W + 2, cmax), jnp.float32)],
        compiler_params=pltpu.CompilerParams(
            dimension_semantics=("parallel",)),   # v7x: shard batch over 2 TCs
    )(x_nhwc, *weights, *biases)


class BaseClassifierPallas:
    """JAX/Pallas port of nndet BaseClassifier (dim=2 case)."""

    def __init__(self, key, in_channels, internal_channels, num_classes,
                 anchors_per_pos, num_levels=1, num_convs=3, prior_prob=0.01):
        self.dim = 2
        self.num_levels = num_levels
        self.num_convs = num_convs
        self.num_classes = num_classes
        self.anchors_per_pos = anchors_per_pos
        self.in_channels = in_channels
        self.internal_channels = internal_channels
        out_channels = num_classes * anchors_per_pos

        # channel plan: in -> internal -> (num_convs x internal) -> out
        chans = [in_channels] + [internal_channels] * (num_convs + 1) + [out_channels]
        n_layers = len(chans) - 1
        keys = jax.random.split(key, n_layers)

        self.w_hwio = []    # bf16 HWIO, shared by kernel & reference
        self.weights = []   # bf16 (9*Cin, Cout) im2col layout for the kernel
        self.biases = []
        self.relus = []
        for i in range(n_layers):
            cin, cout = chans[i], chans[i + 1]
            # init_weights(): normal(0, 0.01) weights, zero bias; final conv
            # bias set from the focal-loss prior probability.
            w = 0.01 * jax.random.normal(keys[i], (3, 3, cin, cout), jnp.float32)
            w_bf = w.astype(jnp.bfloat16)
            if i == n_layers - 1:
                bias_value = -math.log((1.0 - prior_prob) / prior_prob)
                b = jnp.full((1, cout), bias_value, jnp.float32)
                relu = False   # add_act=False on conv_out
            else:
                b = jnp.zeros((1, cout), jnp.float32)
                relu = True
            self.w_hwio.append(w_bf)
            self.weights.append(w_bf.reshape(9 * cin, cout))
            self.biases.append(b)
            self.relus.append(relu)

    def forward(self, x_nchw, level: int = 0):
        """x_nchw: (N, C, H, W) -> (N, H*W*anchors_per_pos, num_classes)."""
        x = jnp.transpose(x_nchw, (0, 2, 3, 1))          # NCHW -> NHWC
        out = classifier_head_forward(x, self.weights, self.biases, self.relus)
        n = out.shape[0]
        # == permute(0,2,3,1).contiguous().view(N, -1, num_classes) in PyTorch
        return out.reshape(n, -1, self.num_classes)

    # pure-JAX reference of the same forward (for correctness checking);
    # uses the same bf16 weights / bf16 MXU inputs with f32 accumulation.
    def forward_ref(self, x_nchw):
        x = jnp.transpose(x_nchw, (0, 2, 3, 1)).astype(jnp.float32)
        for w_hwio, b, relu in zip(self.w_hwio, self.biases, self.relus):
            cout = w_hwio.shape[-1]
            y = jax.lax.conv_general_dilated(
                x.astype(jnp.bfloat16), w_hwio,
                window_strides=(1, 1), padding="SAME",
                dimension_numbers=("NHWC", "HWIO", "NHWC"),
                preferred_element_type=jnp.float32)
            y = y + b.reshape(1, 1, 1, cout)
            if relu:
                y = jnp.maximum(y, 0.0)
            x = y
        return x.reshape(x.shape[0], -1, self.num_classes)


if __name__ == "__main__":
    key = jax.random.PRNGKey(0)
    k_param, k_x = jax.random.split(key)

    N, C, H, W = 2, 4, 16, 16
    head = BaseClassifierPallas(
        k_param,
        in_channels=C,
        internal_channels=32,
        num_classes=3,
        anchors_per_pos=3,
        num_levels=1,
        num_convs=3,
    )

    x = jax.random.normal(k_x, (N, C, H, W), jnp.float32)

    out = jax.block_until_ready(head.forward(x, level=0))

    # shape check: (N, H*W*anchors_per_pos, num_classes)
    assert out.shape == (N, H * W * head.anchors_per_pos, head.num_classes), out.shape

    # numerical check against pure-JAX reference (same bf16 operands, f32 accum)
    ref = jax.block_until_ready(head.forward_ref(x))
    assert jnp.allclose(out, ref, atol=1e-3, rtol=1e-3), float(
        jnp.max(jnp.abs(out - ref)))

    print("KERNEL_OK")
</pallas_src>

<mosaic_0001>
module attributes {stable_mosaic.version = 11 : i64} {
  func.func @_fused_head_kernel(%arg0: i32, %arg1: memref<1x16x16x4xf32, #tpu.memory_space<vmem>>, %arg2: memref<36x32xbf16, #tpu.memory_space<vmem>>, %arg3: memref<288x32xbf16, #tpu.memory_space<vmem>>, %arg4: memref<288x32xbf16, #tpu.memory_space<vmem>>, %arg5: memref<288x32xbf16, #tpu.memory_space<vmem>>, %arg6: memref<288x9xbf16, #tpu.memory_space<vmem>>, %arg7: memref<1x32xf32, #tpu.memory_space<vmem>>, %arg8: memref<1x32xf32, #tpu.memory_space<vmem>>, %arg9: memref<1x32xf32, #tpu.memory_space<vmem>>, %arg10: memref<1x32xf32, #tpu.memory_space<vmem>>, %arg11: memref<1x9xf32, #tpu.memory_space<vmem>>, %arg12: memref<1x256x9xf32, #tpu.memory_space<vmem>>, %arg13: memref<18x18x32xf32, #tpu.memory_space<vmem>>) attributes {dimension_semantics = [#tpu.dimension_semantics<parallel>], iteration_bounds = array<i64: 2>, scalar_prefetch = 0 : i64, scratch_operands = 1 : i64, tpu.core_type = #tpu.core_type<tc>, window_params = [{transform_indices = @transform_0, window_bounds = array<i64: 1, 16, 16, 4>}, {pipeline_mode = #tpu.pipeline_mode<synchronous>, transform_indices = @transform_1, window_bounds = array<i64: 36, 32>}, {pipeline_mode = #tpu.pipeline_mode<synchronous>, transform_indices = @transform_2, window_bounds = array<i64: 288, 32>}, {pipeline_mode = #tpu.pipeline_mode<synchronous>, transform_indices = @transform_3, window_bounds = array<i64: 288, 32>}, {pipeline_mode = #tpu.pipeline_mode<synchronous>, transform_indices = @transform_4, window_bounds = array<i64: 288, 32>}, {pipeline_mode = #tpu.pipeline_mode<synchronous>, transform_indices = @transform_5, window_bounds = array<i64: 288, 9>}, {pipeline_mode = #tpu.pipeline_mode<synchronous>, transform_indices = @transform_6, window_bounds = array<i64: 1, 32>}, {pipeline_mode = #tpu.pipeline_mode<synchronous>, transform_indices = @transform_7, window_bounds = array<i64: 1, 32>}, {pipeline_mode = #tpu.pipeline_mode<synchronous>, transform_indices = @transform_8, window_bounds = array<i64: 1, 32>}, {pipeline_mode = #tpu.pipeline_mode<synchronous>, transform_indices = @transform_9, window_bounds = array<i64: 1, 32>}, {pipeline_mode = #tpu.pipeline_mode<synchronous>, transform_indices = @transform_10, window_bounds = array<i64: 1, 9>}, {transform_indices = @transform_11, window_bounds = array<i64: 1, 256, 9>}]} {
    %cst = arith.constant 0.000000e+00 : f32
    %0 = vector.broadcast %cst : f32 to vector<18x18x32xf32>
    %c0 = arith.constant 0 : index
    %c0_0 = arith.constant 0 : index
    %c0_1 = arith.constant 0 : index
    %1 = vector.load %arg13[%c0, %c0_0, %c0_1] : memref<18x18x32xf32, #tpu.memory_space<vmem>>, vector<18x18x32xf32>
    tpu.vector_store %arg13[%c0, %c0_0, %c0_1], %0 {strides = array<i32>} : memref<18x18x32xf32, #tpu.memory_space<vmem>>, vector<18x18x32xf32>,
    %c0_2 = arith.constant 0 : index
    %c0_3 = arith.constant 0 : index
    %c0_4 = arith.constant 0 : index
    %c0_5 = arith.constant 0 : index
    %2 = vector.load %arg1[%c0_2, %c0_3, %c0_4, %c0_5] : memref<1x16x16x4xf32, #tpu.memory_space<vmem>>, vector<1x16x16x4xf32>
    %3 = vector.shape_cast %2 : vector<1x16x16x4xf32> to vector<16x16x4xf32>
    %c1 = arith.constant 1 : index
    %c1_6 = arith.constant 1 : index
    %c0_7 = arith.constant 0 : index
    %4 = vector.load %arg13[%c1, %c1_6, %c0_7] : memref<18x18x32xf32, #tpu.memory_space<vmem>>, vector<16x16x4xf32>
    tpu.vector_store %arg13[%c1, %c1_6, %c0_7], %3 {strides = array<i32>} : memref<18x18x32xf32, #tpu.memory_space<vmem>>, vector<16x16x4xf32>,
    %c0_8 = arith.constant 0 : index
    %c0_9 = arith.constant 0 : index
    %c0_10 = arith.constant 0 : index
    %5 = vector.load %arg13[%c0_8, %c0_9, %c0_10] : memref<18x18x32xf32, #tpu.memory_space<vmem>>, vector<16x16x4xf32>
    %c0_11 = arith.constant 0 : index
    %c1_12 = arith.constant 1 : index
    %c0_13 = arith.constant 0 : index
    %6 = vector.load %arg13[%c0_11, %c1_12, %c0_13] : memref<18x18x32xf32, #tpu.memory_space<vmem>>, vector<16x16x4xf32>
    %c0_14 = arith.constant 0 : index
    %c2 = arith.constant 2 : index
    %c0_15 = arith.constant 0 : index
    %7 = vector.load %arg13[%c0_14, %c2, %c0_15] : memref<18x18x32xf32, #tpu.memory_space<vmem>>, vector<16x16x4xf32>
    %c1_16 = arith.constant 1 : index
    %c0_17 = arith.constant 0 : index
    %c0_18 = arith.constant 0 : index
    %8 = vector.load %arg13[%c1_16, %c0_17, %c0_18] : memref<18x18x32xf32, #tpu.memory_space<vmem>>, vector<16x16x4xf32>
    %c1_19 = arith.constant 1 : index
    %c1_20 = arith.constant 1 : index
    %c0_21 = arith.constant 0 : index
    %9 = vector.load %arg13[%c1_19, %c1_20, %c0_21] : memref<18x18x32xf32, #tpu.memory_space<vmem>>, vector<16x16x4xf32>
    %c1_22 = arith.constant 1 : index
    %c2_23 = arith.constant 2 : index
    %c0_24 = arith.constant 0 : index
    %10 = vector.load %arg13[%c1_22, %c2_23, %c0_24] : memref<18x18x32xf32, #tpu.memory_space<vmem>>, vector<16x16x4xf32>
    %c2_25 = arith.constant 2 : index
    %c0_26 = arith.constant 0 : index
    %c0_27 = arith.constant 0 : index
    %11 = vector.load %arg13[%c2_25, %c0_26, %c0_27] : memref<18x18x32xf32, #tpu.memory_space<vmem>>, vector<16x16x4xf32>
    %c2_28 = arith.constant 2 : index
    %c1_29 = arith.constant 1 : index
    %c0_30 = arith.constant 0 : index
    %12 = vector.load %arg13[%c2_28, %c1_29, %c0_30] : memref<18x18x32xf32, #tpu.memory_space<vmem>>, vector<16x16x4xf32>
    %c2_31 = arith.constant 2 : index
    %c2_32 = arith.constant 2 : index
    %c0_33 = arith.constant 0 : index
    %13 = vector.load %arg13[%c2_31, %c2_32, %c0_33] : memref<18x18x32xf32, #tpu.memory_space<vmem>>, vector<16x16x4xf32>
    %14 = tpu.concatenate %5, %6, %7, %8, %9, %10, %11, %12, %13 in 2 : vector<16x16x4xf32>, vector<16x16x4xf32>, vector<16x16x4xf32>, vector<16x16x4xf32>, vector<16x16x4xf32>, vector<16x16x4xf32>, vector<16x16x4xf32>, vector<16x16x4xf32>, vector<16x16x4xf32> -> vector<16x16x36xf32>
    %15 = vector.shape_cast %14 : vector<16x16x36xf32> to vector<256x36xf32>
    %16 = arith.truncf %15 : vector<256x36xf32> to vector<256x36xbf16>
    %c0_34 = arith.constant 0 : index
    %c0_35 = arith.constant 0 : index
    %17 = vector.load %arg2[%c0_34, %c0_35] : memref<36x32xbf16, #tpu.memory_space<vmem>>, vector<36x32xbf16>
    %cst_36 = arith.constant dense<0.000000e+00> : vector<256x32xf32>
    %18 = tpu.matmul %16, %17, %cst_36 {dimension_numbers = #tpu.dot_dimension_numbers<[1], [0], [0], [1], [0, 0, 1, 1], [], []>} : vector<256x36xbf16>, vector<36x32xbf16>, vector<256x32xf32> -> vector<256x32xf32>
    %c0_37 = arith.constant 0 : index
    %c0_38 = arith.constant 0 : index
    %19 = vector.load %arg7[%c0_37, %c0_38] : memref<1x32xf32, #tpu.memory_space<vmem>>, vector<1x32xf32>
    %20 = vector.broadcast %19 : vector<1x32xf32> to vector<256x32xf32>
    %21 = arith.addf %18, %20 : vector<256x32xf32>
    %cst_39 = arith.constant 0.000000e+00 : f32
    %22 = vector.broadcast %cst_39 : f32 to vector<256x32xf32>
    %23 = arith.maximumf %21, %22 : vector<256x32xf32>
    %24 = vector.shape_cast %23 : vector<256x32xf32> to vector<16x16x32xf32>
    %c1_40 = arith.constant 1 : index
    %c1_41 = arith.constant 1 : index
    %c0_42 = arith.constant 0 : index
    %25 = vector.load %arg13[%c1_40, %c1_41, %c0_42] : memref<18x18x32xf32, #tpu.memory_space<vmem>>, vector<16x16x32xf32>
    tpu.vector_store %arg13[%c1_40, %c1_41, %c0_42], %24 {strides = array<i32>} : memref<18x18x32xf32, #tpu.memory_space<vmem>>, vector<16x16x32xf32>,
    %c0_43 = arith.constant 0 : index
    %c0_44 = arith.constant 0 : index
    %c0_45 = arith.constant 0 : index
    %26 = vector.load %arg13[%c0_43, %c0_44, %c0_45] : memref<18x18x32xf32, #tpu.memory_space<vmem>>, vector<16x16x32xf32>
    %c0_46 = arith.constant 0 : index
    %c1_47 = arith.constant 1 : index
    %c0_48 = arith.constant 0 : index
    %27 = vector.load %arg13[%c0_46, %c1_47, %c0_48] : memref<18x18x32xf32, #tpu.memory_space<vmem>>, vector<16x16x32xf32>
    %c0_49 = arith.constant 0 : index
    %c2_50 = arith.constant 2 : index
    %c0_51 = arith.constant 0 : index
    %28 = vector.load %arg13[%c0_49, %c2_50, %c0_51] : memref<18x18x32xf32, #tpu.memory_space<vmem>>, vector<16x16x32xf32>
    %c1_52 = arith.constant 1 : index
    %c0_53 = arith.constant 0 : index
    %c0_54 = arith.constant 0 : index
    %29 = vector.load %arg13[%c1_52, %c0_53, %c0_54] : memref<18x18x32xf32, #tpu.memory_space<vmem>>, vector<16x16x32xf32>
    %c1_55 = arith.constant 1 : index
    %c1_56 = arith.constant 1 : index
    %c0_57 = arith.constant 0 : index
    %30 = vector.load %arg13[%c1_55, %c1_56, %c0_57] : memref<18x18x32xf32, #tpu.memory_space<vmem>>, vector<16x16x32xf32>
    %c1_58 = arith.constant 1 : index
    %c2_59 = arith.constant 2 : index
    %c0_60 = arith.constant 0 : index
    %31 = vector.load %arg13[%c1_58, %c2_59, %c0_60] : memref<18x18x32xf32, #tpu.memory_space<vmem>>, vector<16x16x32xf32>
    %c2_61 = arith.constant 2 : index
    %c0_62 = arith.constant 0 : index
    %c0_63 = arith.constant 0 : index
    %32 = vector.load %arg13[%c2_61, %c0_62, %c0_63] : memref<18x18x32xf32, #tpu.memory_space<vmem>>, vector<16x16x32xf32>
    %c2_64 = arith.constant 2 : index
    %c1_65 = arith.constant 1 : index
    %c0_66 = arith.constant 0 : index
    %33 = vector.load %arg13[%c2_64, %c1_65, %c0_66] : memref<18x18x32xf32, #tpu.memory_space<vmem>>, vector<16x16x32xf32>
    %c2_67 = arith.constant 2 : index
    %c2_68 = arith.constant 2 : index
    %c0_69 = arith.constant 0 : index
    %34 = vector.load %arg13[%c2_67, %c2_68, %c0_69] : memref<18x18x32xf32, #tpu.memory_space<vmem>>, vector<16x16x32xf32>
    %35 = tpu.concatenate %26, %27, %28, %29, %30, %31, %32, %33, %34 in 2 : vector<16x16x32xf32>, vector<16x16x32xf32>, vector<16x16x32xf32>, vector<16x16x32xf32>, vector<16x16x32xf32>, vector<16x16x32xf32>, vector<16x16x32xf32>, vector<16x16x32xf32>, vector<16x16x32xf32> -> vector<16x16x288xf32>
    %36 = vector.shape_cast %35 : vector<16x16x288xf32> to vector<256x288xf32>
    %37 = arith.truncf %36 : vector<256x288xf32> to vector<256x288xbf16>
    %c0_70 = arith.constant 0 : index
    %c0_71 = arith.constant 0 : index
    %38 = vector.load %arg3[%c0_70, %c0_71] : memref<288x32xbf16, #tpu.memory_space<vmem>>, vector<288x32xbf16>
    %cst_72 = arith.constant dense<0.000000e+00> : vector<256x32xf32>
    %39 = tpu.matmul %37, %38, %cst_72 {dimension_numbers = #tpu.dot_dimension_numbers<[1], [0], [0], [1], [0, 0, 1, 1], [], []>} : vector<256x288xbf16>, vector<288x32xbf16>, vector<256x32xf32> -> vector<256x32xf32>
    %c0_73 = arith.constant 0 : index
    %c0_74 = arith.constant 0 : index
    %40 = vector.load %arg8[%c0_73, %c0_74] : memref<1x32xf32, #tpu.memory_space<vmem>>, vector<1x32xf32>
    %41 = vector.broadcast %40 : vector<1x32xf32> to vector<256x32xf32>
    %42 = arith.addf %39, %41 : vector<256x32xf32>
    %cst_75 = arith.constant 0.000000e+00 : f32
    %43 = vector.broadcast %cst_75 : f32 to vector<256x32xf32>
    %44 = arith.maximumf %42, %43 : vector<256x32xf32>
    %45 = vector.shape_cast %44 : vector<256x32xf32> to vector<16x16x32xf32>
    %c1_76 = arith.constant 1 : index
    %c1_77 = arith.constant 1 : index
    %c0_78 = arith.constant 0 : index
    %46 = vector.load %arg13[%c1_76, %c1_77, %c0_78] : memref<18x18x32xf32, #tpu.memory_space<vmem>>, vector<16x16x32xf32>
    tpu.vector_store %arg13[%c1_76, %c1_77, %c0_78], %45 {strides = array<i32>} : memref<18x18x32xf32, #tpu.memory_space<vmem>>, vector<16x16x32xf32>,
    %c0_79 = arith.constant 0 : index
    %c0_80 = arith.constant 0 : index
    %c0_81 = arith.constant 0 : index
    %47 = vector.load %arg13[%c0_79, %c0_80, %c0_81] : memref<18x18x32xf32, #tpu.memory_space<vmem>>, vector<16x16x32xf32>
    %c0_82 = arith.constant 0 : index
    %c1_83 = arith.constant 1 : index
    %c0_84 = arith.constant 0 : index
    %48 = vector.load %arg13[%c0_82, %c1_83, %c0_84] : memref<18x18x32xf32, #tpu.memory_space<vmem>>, vector<16x16x32xf32>
    %c0_85 = arith.constant 0 : index
    %c2_86 = arith.constant 2 : index
    %c0_87 = arith.constant 0 : index
    %49 = vector.load %arg13[%c0_85, %c2_86, %c0_87] : memref<18x18x32xf32, #tpu.memory_space<vmem>>, vector<16x16x32xf32>
    %c1_88 = arith.constant 1 : index
    %c0_89 = arith.constant 0 : index
    %c0_90 = arith.constant 0 : index
    %50 = vector.load %arg13[%c1_88, %c0_89, %c0_90] : memref<18x18x32xf32, #tpu.memory_space<vmem>>, vector<16x16x32xf32>
    %c1_91 = arith.constant 1 : index
    %c1_92 = arith.constant 1 : index
    %c0_93 = arith.constant 0 : index
    %51 = vector.load %arg13[%c1_91, %c1_92, %c0_93] : memref<18x18x32xf32, #tpu.memory_space<vmem>>, vector<16x16x32xf32>
    %c1_94 = arith.constant 1 : index
    %c2_95 = arith.constant 2 : index
    %c0_96 = arith.constant 0 : index
    %52 = vector.load %arg13[%c1_94, %c2_95, %c0_96] : memref<18x18x32xf32, #tpu.memory_space<vmem>>, vector<16x16x32xf32>
    %c2_97 = arith.constant 2 : index
    %c0_98 = arith.constant 0 : index
    %c0_99 = arith.constant 0 : index
    %53 = vector.load %arg13[%c2_97, %c0_98, %c0_99] : memref<18x18x32xf32, #tpu.memory_space<vmem>>, vector<16x16x32xf32>
    %c2_100 = arith.constant 2 : index
    %c1_101 = arith.constant 1 : index
    %c0_102 = arith.constant 0 : index
    %54 = vector.load %arg13[%c2_100, %c1_101, %c0_102] : memref<18x18x32xf32, #tpu.memory_space<vmem>>, vector<16x16x32xf32>
    %c2_103 = arith.constant 2 : index
    %c2_104 = arith.constant 2 : index
    %c0_105 = arith.constant 0 : index
    %55 = vector.load %arg13[%c2_103, %c2_104, %c0_105] : memref<18x18x32xf32, #tpu.memory_space<vmem>>, vector<16x16x32xf32>
    %56 = tpu.concatenate %47, %48, %49, %50, %51, %52, %53, %54, %55 in 2 : vector<16x16x32xf32>, vector<16x16x32xf32>, vector<16x16x32xf32>, vector<16x16x32xf32>, vector<16x16x32xf32>, vector<16x16x32xf32>, vector<16x16x32xf32>, vector<16x16x32xf32>, vector<16x16x32xf32> -> vector<16x16x288xf32>
    %57 = vector.shape_cast %56 : vector<16x16x288xf32> to vector<256x288xf32>
    %58 = arith.truncf %57 : vector<256x288xf32> to vector<256x288xbf16>
    %c0_106 = arith.constant 0 : index
    %c0_107 = arith.constant 0 : index
    %59 = vector.load %arg4[%c0_106, %c0_107] : memref<288x32xbf16, #tpu.memory_space<vmem>>, vector<288x32xbf16>
    %cst_108 = arith.constant dense<0.000000e+00> : vector<256x32xf32>
    %60 = tpu.matmul %58, %59, %cst_108 {dimension_numbers = #tpu.dot_dimension_numbers<[1], [0], [0], [1], [0, 0, 1, 1], [], []>} : vector<256x288xbf16>, vector<288x32xbf16>, vector<256x32xf32> -> vector<256x32xf32>
    %c0_109 = arith.constant 0 : index
    %c0_110 = arith.constant 0 : index
    %61 = vector.load %arg9[%c0_109, %c0_110] : memref<1x32xf32, #tpu.memory_space<vmem>>, vector<1x32xf32>
    %62 = vector.broadcast %61 : vector<1x32xf32> to vector<256x32xf32>
    %63 = arith.addf %60, %62 : vector<256x32xf32>
    %cst_111 = arith.constant 0.000000e+00 : f32
    %64 = vector.broadcast %cst_111 : f32 to vector<256x32xf32>
    %65 = arith.maximumf %63, %64 : vector<256x32xf32>
    %66 = vector.shape_cast %65 : vector<256x32xf32> to vector<16x16x32xf32>
    %c1_112 = arith.constant 1 : index
    %c1_113 = arith.constant 1 : index
    %c0_114 = arith.constant 0 : index
    %67 = vector.load %arg13[%c1_112, %c1_113, %c0_114] : memref<18x18x32xf32, #tpu.memory_space<vmem>>, vector<16x16x32xf32>
    tpu.vector_store %arg13[%c1_112, %c1_113, %c0_114], %66 {strides = array<i32>} : memref<18x18x32xf32, #tpu.memory_space<vmem>>, vector<16x16x32xf32>,
    %c0_115 = arith.constant 0 : index
    %c0_116 = arith.constant 0 : index
    %c0_117 = arith.constant 0 : index
    %68 = vector.load %arg13[%c0_115, %c0_116, %c0_117] : memref<18x18x32xf32, #tpu.memory_space<vmem>>, vector<16x16x32xf32>
    %c0_118 = arith.constant 0 : index
    %c1_119 = arith.constant 1 : index
    %c0_120 = arith.constant 0 : index
    %69 = vector.load %arg13[%c0_118, %c1_119, %c0_120] : memref<18x18x32xf32, #tpu.memory_space<vmem>>, vector<16x16x32xf32>
    %c0_121 = arith.constant 0 : index
    %c2_122 = arith.constant 2 : index
    %c0_123 = arith.constant 0 : index
    %70 = vector.load %arg13[%c0_121, %c2_122, %c0_123] : memref<18x18x32xf32, #tpu.memory_space<vmem>>, vector<16x16x32xf32>
    %c1_124 = arith.constant 1 : index
    %c0_125 = arith.constant 0 : index
    %c0_126 = arith.constant 0 : index
    %71 = vector.load %arg13[%c1_124, %c0_125, %c0_126] : memref<18x18x32xf32, #tpu.memory_space<vmem>>, vector<16x16x32xf32>
    %c1_127 = arith.constant 1 : index
    %c1_128 = arith.constant 1 : index
    %c0_129 = arith.constant 0 : index
    %72 = vector.load %arg13[%c1_127, %c1_128, %c0_129] : memref<18x18x32xf32, #tpu.memory_space<vmem>>, vector<16x16x32xf32>
    %c1_130 = arith.constant 1 : index
    %c2_131 = arith.constant 2 : index
    %c0_132 = arith.constant 0 : index
    %73 = vector.load %arg13[%c1_130, %c2_131, %c0_132] : memref<18x18x32xf32, #tpu.memory_space<vmem>>, vector<16x16x32xf32>
    %c2_133 = arith.constant 2 : index
    %c0_134 = arith.constant 0 : index
    %c0_135 = arith.constant 0 : index
    %74 = vector.load %arg13[%c2_133, %c0_134, %c0_135] : memref<18x18x32xf32, #tpu.memory_space<vmem>>, vector<16x16x32xf32>
    %c2_136 = arith.constant 2 : index
    %c1_137 = arith.constant 1 : index
    %c0_138 = arith.constant 0 : index
    %75 = vector.load %arg13[%c2_136, %c1_137, %c0_138] : memref<18x18x32xf32, #tpu.memory_space<vmem>>, vector<16x16x32xf32>
    %c2_139 = arith.constant 2 : index
    %c2_140 = arith.constant 2 : index
    %c0_141 = arith.constant 0 : index
    %76 = vector.load %arg13[%c2_139, %c2_140, %c0_141] : memref<18x18x32xf32, #tpu.memory_space<vmem>>, vector<16x16x32xf32>
    %77 = tpu.concatenate %68, %69, %70, %71, %72, %73, %74, %75, %76 in 2 : vector<16x16x32xf32>, vector<16x16x32xf32>, vector<16x16x32xf32>, vector<16x16x32xf32>, vector<16x16x32xf32>, vector<16x16x32xf32>, vector<16x16x32xf32>, vector<16x16x32xf32>, vector<16x16x32xf32> -> vector<16x16x288xf32>
    %78 = vector.shape_cast %77 : vector<16x16x288xf32> to vector<256x288xf32>
    %79 = arith.truncf %78 : vector<256x288xf32> to vector<256x288xbf16>
    %c0_142 = arith.constant 0 : index
    %c0_143 = arith.constant 0 : index
    %80 = vector.load %arg5[%c0_142, %c0_143] : memref<288x32xbf16, #tpu.memory_space<vmem>>, vector<288x32xbf16>
    %cst_144 = arith.constant dense<0.000000e+00> : vector<256x32xf32>
    %81 = tpu.matmul %79, %80, %cst_144 {dimension_numbers = #tpu.dot_dimension_numbers<[1], [0], [0], [1], [0, 0, 1, 1], [], []>} : vector<256x288xbf16>, vector<288x32xbf16>, vector<256x32xf32> -> vector<256x32xf32>
    %c0_145 = arith.constant 0 : index
    %c0_146 = arith.constant 0 : index
    %82 = vector.load %arg10[%c0_145, %c0_146] : memref<1x32xf32, #tpu.memory_space<vmem>>, vector<1x32xf32>
    %83 = vector.broadcast %82 : vector<1x32xf32> to vector<256x32xf32>
    %84 = arith.addf %81, %83 : vector<256x32xf32>
    %cst_147 = arith.constant 0.000000e+00 : f32
    %85 = vector.broadcast %cst_147 : f32 to vector<256x32xf32>
    %86 = arith.maximumf %84, %85 : vector<256x32xf32>
    %87 = vector.shape_cast %86 : vector<256x32xf32> to vector<16x16x32xf32>
    %c1_148 = arith.constant 1 : index
    %c1_149 = arith.constant 1 : index
    %c0_150 = arith.constant 0 : index
    %88 = vector.load %arg13[%c1_148, %c1_149, %c0_150] : memref<18x18x32xf32, #tpu.memory_space<vmem>>, vector<16x16x32xf32>
    tpu.vector_store %arg13[%c1_148, %c1_149, %c0_150], %87 {strides = array<i32>} : memref<18x18x32xf32, #tpu.memory_space<vmem>>, vector<16x16x32xf32>,
    %c0_151 = arith.constant 0 : index
    %c0_152 = arith.constant 0 : index
    %c0_153 = arith.constant 0 : index
    %89 = vector.load %arg13[%c0_151, %c0_152, %c0_153] : memref<18x18x32xf32, #tpu.memory_space<vmem>>, vector<16x16x32xf32>
    %c0_154 = arith.constant 0 : index
    %c1_155 = arith.constant 1 : index
    %c0_156 = arith.constant 0 : index
    %90 = vector.load %arg13[%c0_154, %c1_155, %c0_156] : memref<18x18x32xf32, #tpu.memory_space<vmem>>, vector<16x16x32xf32>
    %c0_157 = arith.constant 0 : index
    %c2_158 = arith.constant 2 : index
    %c0_159 = arith.constant 0 : index
    %91 = vector.load %arg13[%c0_157, %c2_158, %c0_159] : memref<18x18x32xf32, #tpu.memory_space<vmem>>, vector<16x16x32xf32>
    %c1_160 = arith.constant 1 : index
    %c0_161 = arith.constant 0 : index
    %c0_162 = arith.constant 0 : index
    %92 = vector.load %arg13[%c1_160, %c0_161, %c0_162] : memref<18x18x32xf32, #tpu.memory_space<vmem>>, vector<16x16x32xf32>
    %c1_163 = arith.constant 1 : index
    %c1_164 = arith.constant 1 : index
    %c0_165 = arith.constant 0 : index
    %93 = vector.load %arg13[%c1_163, %c1_164, %c0_165] : memref<18x18x32xf32, #tpu.memory_space<vmem>>, vector<16x16x32xf32>
    %c1_166 = arith.constant 1 : index
    %c2_167 = arith.constant 2 : index
    %c0_168 = arith.constant 0 : index
    %94 = vector.load %arg13[%c1_166, %c2_167, %c0_168] : memref<18x18x32xf32, #tpu.memory_space<vmem>>, vector<16x16x32xf32>
    %c2_169 = arith.constant 2 : index
    %c0_170 = arith.constant 0 : index
    %c0_171 = arith.constant 0 : index
    %95 = vector.load %arg13[%c2_169, %c0_170, %c0_171] : memref<18x18x32xf32, #tpu.memory_space<vmem>>, vector<16x16x32xf32>
    %c2_172 = arith.constant 2 : index
    %c1_173 = arith.constant 1 : index
    %c0_174 = arith.constant 0 : index
    %96 = vector.load %arg13[%c2_172, %c1_173, %c0_174] : memref<18x18x32xf32, #tpu.memory_space<vmem>>, vector<16x16x32xf32>
    %c2_175 = arith.constant 2 : index
    %c2_176 = arith.constant 2 : index
    %c0_177 = arith.constant 0 : index
    %97 = vector.load %arg13[%c2_175, %c2_176, %c0_177] : memref<18x18x32xf32, #tpu.memory_space<vmem>>, vector<16x16x32xf32>
    %98 = tpu.concatenate %89, %90, %91, %92, %93, %94, %95, %96, %97 in 2 : vector<16x16x32xf32>, vector<16x16x32xf32>, vector<16x16x32xf32>, vector<16x16x32xf32>, vector<16x16x32xf32>, vector<16x16x32xf32>, vector<16x16x32xf32>, vector<16x16x32xf32>, vector<16x16x32xf32> -> vector<16x16x288xf32>
    %99 = vector.shape_cast %98 : vector<16x16x288xf32> to vector<256x288xf32>
    %100 = arith.truncf %99 : vector<256x288xf32> to vector<256x288xbf16>
    %c0_178 = arith.constant 0 : index
    %c0_179 = arith.constant 0 : index
    %101 = vector.load %arg6[%c0_178, %c0_179] : memref<288x9xbf16, #tpu.memory_space<vmem>>, vector<288x9xbf16>
    %cst_180 = arith.constant dense<0.000000e+00> : vector<256x9xf32>
    %102 = tpu.matmul %100, %101, %cst_180 {dimension_numbers = #tpu.dot_dimension_numbers<[1], [0], [0], [1], [0, 0, 1, 1], [], []>} : vector<256x288xbf16>, vector<288x9xbf16>, vector<256x9xf32> -> vector<256x9xf32>
    %c0_181 = arith.constant 0 : index
    %c0_182 = arith.constant 0 : index
    %103 = vector.load %arg11[%c0_181, %c0_182] : memref<1x9xf32, #tpu.memory_space<vmem>>, vector<1x9xf32>
    %104 = vector.broadcast %103 : vector<1x9xf32> to vector<256x9xf32>
    %105 = arith.addf %102, %104 : vector<256x9xf32>
    %c0_183 = arith.constant 0 : index
    %c0_184 = arith.constant 0 : index
    %c0_185 = arith.constant 0 : index
    %106 = vector.load %arg12[%c0_183, %c0_184, %c0_185] : memref<1x256x9xf32, #tpu.memory_space<vmem>>, vector<1x256x9xf32>
    %107 = vector.shape_cast %106 : vector<1x256x9xf32> to vector<256x9xf32>
    %108 = vector.shape_cast %105 : vector<256x9xf32> to vector<1x256x9xf32>
    tpu.vector_store %arg12[%c0_183, %c0_184, %c0_185], %108 {strides = array<i32>} : memref<1x256x9xf32, #tpu.memory_space<vmem>>, vector<1x256x9xf32>,
    return
  }
  func.func @transform_0(%arg0: i32) -> (i32, i32, i32, i32) {
    %c0_i32 = arith.constant 0 : i32
    %c0_i32_0 = arith.constant 0 : i32
    %c0_i32_1 = arith.constant 0 : i32
    %c0_i32_2 = arith.constant 0 : i32
    return %arg0, %c0_i32, %c0_i32_0, %c0_i32_1 : i32, i32, i32, i32
  }
  func.func @transform_1(%arg0: i32) -> (i32, i32) {
    %c0_i32 = arith.constant 0 : i32
    %c0_i32_0 = arith.constant 0 : i32
    %c0_i32_1 = arith.constant 0 : i32
    return %c0_i32, %c0_i32_0 : i32, i32
  }
  func.func @transform_2(%arg0: i32) -> (i32, i32) {
    %c0_i32 = arith.constant 0 : i32
    %c0_i32_0 = arith.constant 0 : i32
    %c0_i32_1 = arith.constant 0 : i32
    return %c0_i32, %c0_i32_0 : i32, i32
  }
  func.func @transform_3(%arg0: i32) -> (i32, i32) {
    %c0_i32 = arith.constant 0 : i32
    %c0_i32_0 = arith.constant 0 : i32
    %c0_i32_1 = arith.constant 0 : i32
    return %c0_i32, %c0_i32_0 : i32, i32
  }
  func.func @transform_4(%arg0: i32) -> (i32, i32) {
    %c0_i32 = arith.constant 0 : i32
    %c0_i32_0 = arith.constant 0 : i32
    %c0_i32_1 = arith.constant 0 : i32
    return %c0_i32, %c0_i32_0 : i32, i32
  }
  func.func @transform_5(%arg0: i32) -> (i32, i32) {
    %c0_i32 = arith.constant 0 : i32
    %c0_i32_0 = arith.constant 0 : i32
    %c0_i32_1 = arith.constant 0 : i32
    return %c0_i32, %c0_i32_0 : i32, i32
  }
  func.func @transform_6(%arg0: i32) -> (i32, i32) {
    %c0_i32 = arith.constant 0 : i32
    %c0_i32_0 = arith.constant 0 : i32
    %c0_i32_1 = arith.constant 0 : i32
    return %c0_i32, %c0_i32_0 : i32, i32
  }
  func.func @transform_7(%arg0: i32) -> (i32, i32) {
    %c0_i32 = arith.constant 0 : i32
    %c0_i32_0 = arith.constant 0 : i32
    %c0_i32_1 = arith.constant 0 : i32
    return %c0_i32, %c0_i32_0 : i32, i32
  }
  func.func @transform_8(%arg0: i32) -> (i32, i32) {
    %c0_i32 = arith.constant 0 : i32
    %c0_i32_0 = arith.constant 0 : i32
    %c0_i32_1 = arith.constant 0 : i32
    return %c0_i32, %c0_i32_0 : i32, i32
  }
  func.func @transform_9(%arg0: i32) -> (i32, i32) {
    %c0_i32 = arith.constant 0 : i32
    %c0_i32_0 = arith.constant 0 : i32
    %c0_i32_1 = arith.constant 0 : i32
    return %c0_i32, %c0_i32_0 : i32, i32
  }
  func.func @transform_10(%arg0: i32) -> (i32, i32) {
    %c0_i32 = arith.constant 0 : i32
    %c0_i32_0 = arith.constant 0 : i32
    %c0_i32_1 = arith.constant 0 : i32
    return %c0_i32, %c0_i32_0 : i32, i32
  }
  func.func @transform_11(%arg0: i32) -> (i32, i32, i32) {
    %c0_i32 = arith.constant 0 : i32
    %c0_i32_0 = arith.constant 0 : i32
    %c0_i32_1 = arith.constant 0 : i32
    return %arg0, %c0_i32, %c0_i32_0 : i32, i32, i32
  }
}

</mosaic_0001>

<llo_original>
// kernel: tpu_custom_call.1
$region0: #{tpu_custom_call.1}
  #allocation0 [shape = 'u32[]', space=smem, size = 0x4, offset = 0x4, fixed_abs, tag = 'smem constant byte address 0x4 - core index']
  #allocation1 [shape = 'u32[144,128]{1,0:T(1,128)}', space=vmem, size = 0x12000, scoped, tag = 'internal scratch']
  #allocation2 [shape = 'f32[18,18,32]{2,1,0:T(8,128)}', space=vmem, size = 0x36000, scoped, tag = 'scratch operand']
  %s0 = inlined_call_operand.vmem [shape: f32[2,16,16,4], index: 0, kind: input, shape index: {}]
  %s1 = inlined_call_operand.vmem [shape: bf16[36,32], index: 1, kind: input, shape index: {}]
  %s2 = inlined_call_operand.vmem [shape: bf16[288,32], index: 2, kind: input, shape index: {}]
  %s3 = inlined_call_operand.vmem [shape: bf16[288,32], index: 3, kind: input, shape index: {}]
  %s4 = inlined_call_operand.vmem [shape: bf16[288,32], index: 4, kind: input, shape index: {}]
  %s5 = inlined_call_operand.vmem [shape: bf16[288,9], index: 5, kind: input, shape index: {}]
  %s6 = inlined_call_operand.vmem [shape: f32[1,32], index: 6, kind: input, shape index: {}]
  %s7 = inlined_call_operand.vmem [shape: f32[1,32], index: 7, kind: input, shape index: {}]
  %s8 = inlined_call_operand.vmem [shape: f32[1,32], index: 8, kind: input, shape index: {}]
  %s9 = inlined_call_operand.vmem [shape: f32[1,32], index: 9, kind: input, shape index: {}]
  %s10 = inlined_call_operand.vmem [shape: f32[1,9], index: 10, kind: input, shape index: {}]
  %s11 = inlined_call_operand.vmem [shape: f32[2,256,9], index: 11, kind: output, shape index: {}]
  %s12 = sld [smem:[#allocation0]]
  $region77: #{tpu_custom_call.1} parent=0
    _
  %s14 = ssub.s32 1, %s12
  %s15 = scalar_select 0, %s14, %s12
  loop: start=0, step=1, limit=4
  $region2: #{tpu_custom_call.1} parent=0 // loop_pre_header
    _
  $region3: #{tpu_custom_call.1} parent=0 // loop_header
    %s17 = sphi 0, %s21
    %p18 = scmp.ge.s32.totalorder %s17, 4
    %s27 = sphi 0, %s29
    %s30 = sphi 0, %s27
    %s31 = sphi 0, %s30
    %s47 = sphi 0, %s31
    %s51 = sphi 0, %s51
    %s53 = sphi 0, %s51
    %s54 = sphi 0, %s53
    %s68 = sphi 0, %s54
    %s72 = sphi 0, %s72
    %s74 = sphi 0, %s72
    %s75 = sphi 0, %s74
    %s89 = sphi 0, %s75
    %s93 = sphi 0, %s93
    %s95 = sphi 0, %s93
    %s96 = sphi 0, %s95
    %s110 = sphi 0, %s96
    %s114 = sphi 0, %s114
    %s116 = sphi 0, %s114
    %s117 = sphi 0, %s116
    %s131 = sphi 0, %s117
    %s135 = sphi 0, %s135
    %s137 = sphi 0, %s135
    %s138 = sphi 0, %s137
    %s152 = sphi 0, %s138
    %s156 = sphi 0, %s156
    %s158 = sphi 0, %s156
    %s159 = sphi 0, %s158
    %s173 = sphi 0, %s159
    %s177 = sphi 0, %s177
    %s179 = sphi 0, %s177
    %s180 = sphi 0, %s179
    %s194 = sphi 0, %s180
    %s198 = sphi 0, %s198
    %s200 = sphi 0, %s198
    %s201 = sphi 0, %s200
    %s215 = sphi 0, %s201
    %s219 = sphi 0, %s219
    %s221 = sphi 0, %s219
    %s222 = sphi 0, %s221
    %s236 = sphi 0, %s222
    %s240 = sphi 0, %s240
    %s242 = sphi 0, %s240
    %s243 = sphi 0, %s242
    %s257 = sphi 0, %s243
    %s263 = sphi 0, %s265
    %s266 = sphi 0, %s263
    %s267 = sphi 0, %s266
    %s283 = sphi 0, %s267
  $region4: #{tpu_custom_call.1} parent=0 // loop_header_branch
    %20 = sbr.rel (%p18) target = $region8
  $region5: #{tpu_custom_call.1} parent=0 // loop_body
    %s22 = ssub.s32 %s17, 1
    %s23 = ssub.s32 %s17, 2
    %s24 = sadd.s32 %s17, 1
    %s25 = ssub.s32 %s17, %s24
    %p26 = scmp.eq.s32.totalorder %s25, 0
    %s28 = sadd.s32 %s27, 1
    %s29 = scalar_select %p26, %s27, %s28
    %p32 = pneg %p26
    %p33 = scmp.eq.s32.totalorder %s17, 1
    %p34 = por %p32, %p33
    %p35 = scmp.ne.s32.totalorder %s27, %s30
    %p36 = scmp.eq.s32.totalorder %s17, 0
    %p37 = por %p35, %p36
    %p38 = scmp.ne.s32.totalorder %s27, %s30
    %p39 = scmp.eq.s32.totalorder %s22, 1
    %p40 = por %p38, %p39
    %p41 = scmp.ne.s32.totalorder %s30, %s31
    %p42 = scmp.eq.s32.totalorder %s22, 0
    %p43 = por %p41, %p42
    %p44 = scmp.ne.s32.totalorder %s30, %s31
    %p45 = scmp.eq.s32.totalorder %s23, 1
    %p46 = por %p44, %p45
    %p48 = scmp.ne.s32.totalorder %s31, %s47
    %p49 = scmp.eq.s32.totalorder %s23, 0
    %p50 = por %p48, %p49
    %s52 = sadd.s32 %s51, 1
    %p55 = scmp.eq.s32.totalorder %s17, 1
    %p56 = scmp.ne.s32.totalorder %s51, %s53
    %p57 = scmp.eq.s32.totalorder %s17, 0
    %p58 = por %p56, %p57
    %p59 = scmp.ne.s32.totalorder %s51, %s53
    %p60 = scmp.eq.s32.totalorder %s22, 1
    %p61 = por %p59, %p60
    %p62 = scmp.ne.s32.totalorder %s53, %s54
    %p63 = scmp.eq.s32.totalorder %s22, 0
    %p64 = por %p62, %p63
    %p65 = scmp.ne.s32.totalorder %s53, %s54
    %p66 = scmp.eq.s32.totalorder %s23, 1
    %p67 = por %p65, %p66
    %p69 = scmp.ne.s32.totalorder %s54, %s68
    %p70 = scmp.eq.s32.totalorder %s23, 0
    %p71 = por %p69, %p70
    %s73 = sadd.s32 %s72, 1
    %p76 = scmp.eq.s32.totalorder %s17, 1
    %p77 = scmp.ne.s32.totalorder %s72, %s74
    %p78 = scmp.eq.s32.totalorder %s17, 0
    %p79 = por %p77, %p78
    %p80 = scmp.ne.s32.totalorder %s72, %s74
    %p81 = scmp.eq.s32.totalorder %s22, 1
    %p82 = por %p80, %p81
    %p83 = scmp.ne.s32.totalorder %s74, %s75
    %p84 = scmp.eq.s32.totalorder %s22, 0
    %p85 = por %p83, %p84
    %p86 = scmp.ne.s32.totalorder %s74, %s75
    %p87 = scmp.eq.s32.totalorder %s23, 1
    %p88 = por %p86, %p87
    %p90 = scmp.ne.s32.totalorder %s75, %s89
    %p91 = scmp.eq.s32.totalorder %s23, 0
    %p92 = por %p90, %p91
    %s94 = sadd.s32 %s93, 1
    %p97 = scmp.eq.s32.totalorder %s17, 1
    %p98 = scmp.ne.s32.totalorder %s93, %s95
    %p99 = scmp.eq.s32.totalorder %s17, 0
    %p100 = por %p98, %p99
    %p101 = scmp.ne.s32.totalorder %s93, %s95
    %p102 = scmp.eq.s32.totalorder %s22, 1
    %p103 = por %p101, %p102
    %p104 = scmp.ne.s32.totalorder %s95, %s96
    %p105 = scmp.eq.s32.totalorder %s22, 0
    %p106 = por %p104, %p105
    %p107 = scmp.ne.s32.totalorder %s95, %s96
    %p108 = scmp.eq.s32.totalorder %s23, 1
    %p109 = por %p107, %p108
    %p111 = scmp.ne.s32.totalorder %s96, %s110
    %p112 = scmp.eq.s32.totalorder %s23, 0
    %p113 = por %p111, %p112
    %s115 = sadd.s32 %s114, 1
    %p118 = scmp.eq.s32.totalorder %s17, 1
    %p119 = scmp.ne.s32.totalorder %s114, %s116
    %p120 = scmp.eq.s32.totalorder %s17, 0
    %p121 = por %p119, %p120
    %p122 = scmp.ne.s32.totalorder %s114, %s116
    %p123 = scmp.eq.s32.totalorder %s22, 1
    %p124 = por %p122, %p123
    %p125 = scmp.ne.s32.totalorder %s116, %s117
    %p126 = scmp.eq.s32.totalorder %s22, 0
    %p127 = por %p125, %p126
    %p128 = scmp.ne.s32.totalorder %s116, %s117
    %p129 = scmp.eq.s32.totalorder %s23, 1
    %p130 = por %p128, %p129
    %p132 = scmp.ne.s32.totalorder %s117, %s131
    %p133 = scmp.eq.s32.totalorder %s23, 0
    %p134 = por %p132, %p133
    %s136 = sadd.s32 %s135, 1
    %p139 = scmp.eq.s32.totalorder %s17, 1
    %p140 = scmp.ne.s32.totalorder %s135, %s137
    %p141 = scmp.eq.s32.totalorder %s17, 0
    %p142 = por %p140, %p141
    %p143 = scmp.ne.s32.totalorder %s135, %s137
    %p144 = scmp.eq.s32.totalorder %s22, 1
    %p145 = por %p143, %p144
    %p146 = scmp.ne.s32.totalorder %s137, %s138
    %p147 = scmp.eq.s32.totalorder %s22, 0
    %p148 = por %p146, %p147
    %p149 = scmp.ne.s32.totalorder %s137, %s138
    %p150 = scmp.eq.s32.totalorder %s23, 1
    %p151 = por %p149, %p150
    %p153 = scmp.ne.s32.totalorder %s138, %s152
    %p154 = scmp.eq.s32.totalorder %s23, 0
    %p155 = por %p153, %p154
    %s157 = sadd.s32 %s156, 1
    %p160 = scmp.eq.s32.totalorder %s17, 1
    %p161 = scmp.ne.s32.totalorder %s156, %s158
    %p162 = scmp.eq.s32.totalorder %s17, 0
    %p163 = por %p161, %p162
    %p164 = scmp.ne.s32.totalorder %s156, %s158
    %p165 = scmp.eq.s32.totalorder %s22, 1
    %p166 = por %p164, %p165
    %p167 = scmp.ne.s32.totalorder %s158, %s159
    %p168 = scmp.eq.s32.totalorder %s22, 0
    %p169 = por %p167, %p168
    %p170 = scmp.ne.s32.totalorder %s158, %s159
    %p171 = scmp.eq.s32.totalorder %s23, 1
    %p172 = por %p170, %p171
    %p174 = scmp.ne.s32.totalorder %s159, %s173
    %p175 = scmp.eq.s32.totalorder %s23, 0
    %p176 = por %p174, %p175
    %s178 = sadd.s32 %s177, 1
    %p181 = scmp.eq.s32.totalorder %s17, 1
    %p182 = scmp.ne.s32.totalorder %s177, %s179
    %p183 = scmp.eq.s32.totalorder %s17, 0
    %p184 = por %p182, %p183
    %p185 = scmp.ne.s32.totalorder %s177, %s179
    %p186 = scmp.eq.s32.totalorder %s22, 1
    %p187 = por %p185, %p186
    %p188 = scmp.ne.s32.totalorder %s179, %s180
    %p189 = scmp.eq.s32.totalorder %s22, 0
    %p190 = por %p188, %p189
    %p191 = scmp.ne.s32.totalorder %s179, %s180
    %p192 = scmp.eq.s32.totalorder %s23, 1
    %p193 = por %p191, %p192
    %p195 = scmp.ne.s32.totalorder %s180, %s194
    %p196 = scmp.eq.s32.totalorder %s23, 0
    %p197 = por %p195, %p196
    %s199 = sadd.s32 %s198, 1
    %p202 = scmp.eq.s32.totalorder %s17, 1
    %p203 = scmp.ne.s32.totalorder %s198, %s200
    %p204 = scmp.eq.s32.totalorder %s17, 0
    %p205 = por %p203, %p204
    %p206 = scmp.ne.s32.totalorder %s198, %s200
    %p207 = scmp.eq.s32.totalorder %s22, 1
    %p208 = por %p206, %p207
    %p209 = scmp.ne.s32.totalorder %s200, %s201
    %p210 = scmp.eq.s32.totalorder %s22, 0
    %p211 = por %p209, %p210
    %p212 = scmp.ne.s32.totalorder %s200, %s201
    %p213 = scmp.eq.s32.totalorder %s23, 1
    %p214 = por %p212, %p213
    %p216 = scmp.ne.s32.totalorder %s201, %s215
    %p217 = scmp.eq.s32.totalorder %s23, 0
    %p218 = por %p216, %p217
    %s220 = sadd.s32 %s219, 1
    %p223 = scmp.eq.s32.totalorder %s17, 1
    %p224 = scmp.ne.s32.totalorder %s219, %s221
    %p225 = scmp.eq.s32.totalorder %s17, 0
    %p226 = por %p224, %p225
    %p227 = scmp.ne.s32.totalorder %s219, %s221
    %p228 = scmp.eq.s32.totalorder %s22, 1
    %p229 = por %p227, %p228
    %p230 = scmp.ne.s32.totalorder %s221, %s222
    %p231 = scmp.eq.s32.totalorder %s22, 0
    %p232 = por %p230, %p231
    %p233 = scmp.ne.s32.totalorder %s221, %s222
    %p234 = scmp.eq.s32.totalorder %s23, 1
    %p235 = por %p233, %p234
    %p237 = scmp.ne.s32.totalorder %s222, %s236
    %p238 = scmp.eq.s32.totalorder %s23, 0
    %p239 = por %p237, %p238
    %s241 = sadd.s32 %s240, 1
    %p244 = scmp.eq.s32.totalorder %s17, 1
    %p245 = scmp.ne.s32.totalorder %s240, %s242
    %p246 = scmp.eq.s32.totalorder %s17, 0
    %p247 = por %p245, %p246
    %p248 = scmp.ne.s32.totalorder %s240, %s242
    %p249 = scmp.eq.s32.totalorder %s22, 1
    %p250 = por %p248, %p249
    %p251 = scmp.ne.s32.totalorder %s242, %s243
    %p252 = scmp.eq.s32.totalorder %s22, 0
    %p253 = por %p251, %p252
    %p254 = scmp.ne.s32.totalorder %s242, %s243
    %p255 = scmp.eq.s32.totalorder %s23, 1
    %p256 = por %p254, %p255
    %p258 = scmp.ne.s32.totalorder %s243, %s257
    %p259 = scmp.eq.s32.totalorder %s23, 0
    %p260 = por %p258, %p259
    %s261 = ssub.s32 %s17, %s24
    %p262 = scmp.eq.s32.totalorder %s261, 0
    %s264 = sadd.s32 %s263, 1
    %s265 = scalar_select %p262, %s263, %s264
    %p268 = pneg %p262
    %p269 = scmp.eq.s32.totalorder %s17, 1
    %p270 = por %p268, %p269
    %p271 = scmp.ne.s32.totalorder %s263, %s266
    %p272 = scmp.eq.s32.totalorder %s17, 0
    %p273 = por %p271, %p272
    %p274 = scmp.ne.s32.totalorder %s263, %s266
    %p275 = scmp.eq.s32.totalorder %s22, 1
    %p276 = por %p274, %p275
    %p277 = scmp.ne.s32.totalorder %s266, %s267
    %p278 = scmp.eq.s32.totalorder %s22, 0
    %p279 = por %p277, %p278
    %p280 = scmp.ne.s32.totalorder %s266, %s267
    %p281 = scmp.eq.s32.totalorder %s23, 1
    %p282 = por %p280, %p281
    %p284 = scmp.ne.s32.totalorder %s267, %s283
    %p285 = scmp.eq.s32.totalorder %s23, 0
    %p286 = por %p284, %p285
    %p287 = scmp.le.s32.totalorder 1, %s17
    %p288 = scmp.lt.s32.totalorder %s17, 3
    %p289 = pnand %p287, %p288
    %p290 = pneg %p289
    // Predicated region
    $region9: #{tpu_custom_call.1} parent=5 // pred_check
      _
    $region10: #{tpu_custom_call.1} parent=5 // pred_check_branch
      %292 = sbr.rel (%p289) target = $region12
    $region11: #{tpu_custom_call.1} parent=5 // pred_region
      %s293 = ssub.s32 %s17, 1
      // Predicated region
      $region13: #{tpu_custom_call.1} parent=11 // pred_check
        %p294 = pneg %p64
      $region14: #{tpu_custom_call.1} parent=11 // pred_check_branch
        %296 = sbr.rel (%p294) target = $region16
      $region15: #{tpu_custom_call.1} parent=11 // pred_region
        _
      $region16: #{tpu_custom_call.1} parent=11 // pred_fallthru
        _
      // Predicated region
      $region17: #{tpu_custom_call.1} parent=11 // pred_check
        %p297 = pneg %p85
      $region18: #{tpu_custom_call.1} parent=11 // pred_check_branch
        %299 = sbr.rel (%p297) target = $region20
      $region19: #{tpu_custom_call.1} parent=11 // pred_region
        _
      $region20: #{tpu_custom_call.1} parent=11 // pred_fallthru
        _
      // Predicated region
      $region21: #{tpu_custom_call.1} parent=11 // pred_check
        %p300 = pneg %p106
      $region22: #{tpu_custom_call.1} parent=11 // pred_check_branch
        %302 = sbr.rel (%p300) target = $region24
      $region23: #{tpu_custom_call.1} parent=11 // pred_region
        _
      $region24: #{tpu_custom_call.1} parent=11 // pred_fallthru
        _
      // Predicated region
      $region25: #{tpu_custom_call.1} parent=11 // pred_check
        %p303 = pneg %p127
      $region26: #{tpu_custom_call.1} parent=11 // pred_check_branch
        %305 = sbr.rel (%p303) target = $region28
      $region27: #{tpu_custom_call.1} parent=11 // pred_region
        _
      $region28: #{tpu_custom_call.1} parent=11 // pred_fallthru
        _
      // Predicated region
      $region29: #{tpu_custom_call.1} parent=11 // pred_check
        %p306 = pneg %p148
      $region30: #{tpu_custom_call.1} parent=11 // pred_check_branch
        %308 = sbr.rel (%p306) target = $region32
      $region31: #{tpu_custom_call.1} parent=11 // pred_region
        _
      $region32: #{tpu_custom_call.1} parent=11 // pred_fallthru
        _
      // Predicated region
      $region33: #{tpu_custom_call.1} parent=11 // pred_check
        %p309 = pneg %p169
      $region34: #{tpu_custom_call.1} parent=11 // pred_check_branch
        %311 = sbr.rel (%p309) target = $region36
      $region35: #{tpu_custom_call.1} parent=11 // pred_region
        _
      $region36: #{tpu_custom_call.1} parent=11 // pred_fallthru
        _
      // Predicated region
      $region37: #{tpu_custom_call.1} parent=11 // pred_check
        %p312 = pneg %p190
      $region38: #{tpu_custom_call.1} parent=11 // pred_check_branch
        %314 = sbr.rel (%p312) target = $region40
      $region39: #{tpu_custom_call.1} parent=11 // pred_region
        _
      $region40: #{tpu_custom_call.1} parent=11 // pred_fallthru
        _
      // Predicated region
      $region41: #{tpu_custom_call.1} parent=11 // pred_check
        %p315 = pneg %p211
      $region42: #{tpu_custom_call.1} parent=11 // pred_check_branch
        %317 = sbr.rel (%p315) target = $region44
      $region43: #{tpu_custom_call.1} parent=11 // pred_region
        _
      $region44: #{tpu_custom_call.1} parent=11 // pred_fallthru
        _
      // Predicated region
      $region45: #{tpu_custom_call.1} parent=11 // pred_check
        %p318 = pneg %p232
      $region46: #{tpu_custom_call.1} parent=11 // pred_check_branch
        %320 = sbr.rel (%p318) target = $region48
      $region47: #{tpu_custom_call.1} parent=11 // pred_region
        _
      $region48: #{tpu_custom_call.1} parent=11 // pred_fallthru
        _
      // Predicated region
      $region49: #{tpu_custom_call.1} parent=11 // pred_check
        %p321 = pneg %p253
      $region50: #{tpu_custom_call.1} parent=11 // pred_check_branch
        %323 = sbr.rel (%p321) target = $region52
      $region51: #{tpu_custom_call.1} parent=11 // pred_region
        _
      $region52: #{tpu_custom_call.1} parent=11 // pred_fallthru
        _
    $region12: #{tpu_custom_call.1} parent=5 // pred_fallthru
      _
    %p324 = scmp.lt.s32.totalorder %s17, 2
    // Predicated region
    $region53: #{tpu_custom_call.1} parent=5 // pred_check
      %p325 = pneg %p324
    $region54: #{tpu_custom_call.1} parent=5 // pred_check_branch
      %327 = sbr.rel (%p325) target = $region56
    $region55: #{tpu_custom_call.1} parent=5 // pred_region
      // Predicated region
      $region57: #{tpu_custom_call.1} parent=55 // pred_check
        %p328 = pneg %p37
      $region58: #{tpu_custom_call.1} parent=55 // pred_check_branch
        %330 = sbr.rel (%p328) target = $region60
      $region59: #{tpu_custom_call.1} parent=55 // pred_region
        %p331 = scmp.lt.s32.totalorder %s17, 1
        %s332 = scalar_select %p331, %s17, 1
        %s333 = smul.addr %s332, 32
        %s334 = smul.addr %s333, 8
        %s335 = scalar_lea.vmem %s0, %s334
      $region60: #{tpu_custom_call.1} parent=55 // pred_fallthru
        _
    $region56: #{tpu_custom_call.1} parent=5 // pred_fallthru
      _
    %p336 = scmp.le.s32.totalorder 1, %s17
    %p337 = scmp.lt.s32.totalorder %s17, 3
    %p338 = pnand %p336, %p337
    %p339 = pneg %p338
    // Predicated region
    $region61: #{tpu_custom_call.1} parent=5 // pred_check
      _
    $region62: #{tpu_custom_call.1} parent=5 // pred_check_branch
      %341 = sbr.rel (%p338) target = $region64
    $region63: #{tpu_custom_call.1} parent=5 // pred_region
      %s342 = ssub.s32 %s17, 1
      %p343 = scmp.lt.s32.totalorder %s22, 1
      %s344 = scalar_select %p343, %s22, 1
      %s345 = smul.addr %s344, 32
      %s346 = smul.addr %s345, 8
      %s347 = scalar_lea.vmem %s0, %s346
      %p348 = pneg %p43
      %p349 = pneg %p40
      %p350 = pneg %p64
      %p351 = pneg %p61
      %p352 = pneg %p85
      %p353 = pneg %p82
      %p354 = pneg %p106
      %p355 = pneg %p103
      %p356 = pneg %p127
      %p357 = pneg %p124
      %p358 = pneg %p148
      %p359 = pneg %p145
      %p360 = pneg %p169
      %p361 = pneg %p166
      %p362 = pneg %p190
      %p363 = pneg %p187
      %p364 = pneg %p211
      %p365 = pneg %p208
      %p366 = pneg %p232
      %p367 = pneg %p229
      %p368 = pneg %p253
      %p369 = pneg %p250
      %p370 = pneg %p279
      %p371 = pneg %p276
      %p372 = scmp.lt.s32.totalorder %s22, 1
      %s373 = scalar_select %p372, %s22, 1
      %s374 = smul.addr %s373, 32
      %s375 = smul.addr %s374, 8
      %s376 = scalar_lea.vmem %s11, %s375
      %p377 = scmp.lt.s32.totalorder %s22, 1
      %s378 = scalar_select %p377, %s22, 1
      %s379 = smul.addr %s378, 32
      %s380 = smul.addr %s379, 8
      %s381 = scalar_lea.vmem %s0, %s380
      %p382 = scmp.lt.s32.totalorder %s22, 1
      %s383 = scalar_select %p382, %s22, 1
      %s384 = smul.addr %s383, 32
      %s385 = smul.addr %s384, 8
      %s386 = scalar_lea.vmem %s11, %s385
      %vm388 = vcmask 261120
      %389 = vst.msk [vmem:[#allocation2] sm:$0xff] %vm388, 0.0
      %390 = vst.msk [vmem:[#allocation2 + $0x8] sm:$0xff] %vm388, 0.0
      %vm391 = vcmask 254976
      %392 = vst.msk [vmem:[#allocation2 + $0x10] sm:$0x3] %vm391, 0.0
      %393 = vst.msk [vmem:[#allocation2 + $0x18] sm:$0xff] %vm388, 0.0
      %394 = vst.msk [vmem:[#allocation2 + $0x20] sm:$0xff] %vm388, 0.0
      %395 = vst.msk [vmem:[#allocation2 + $0x28] sm:$0x3] %vm391, 0.0
      %396 = vst.msk [vmem:[#allocation2 + $0x30] sm:$0xff] %vm388, 0.0
      %397 = vst.msk [vmem:[#allocation2 + $0x38] sm:$0xff] %vm388, 0.0
      %398 = vst.msk [vmem:[#allocation2 + $0x40] sm:$0x3] %vm391, 0.0
      %399 = vst.msk [vmem:[#allocation2 + $0x48] sm:$0xff] %vm388, 0.0
      %400 = vst.msk [vmem:[#allocation2 + $0x50] sm:$0xff] %vm388, 0.0
      %401 = vst.msk [vmem:[#allocation2 + $0x58] sm:$0x3] %vm391, 0.0
      %402 = vst.msk [vmem:[#allocation2 + $0x60] sm:$0xff] %vm388, 0.0
      %403 = vst.msk [vmem:[#allocation2 + $0x68] sm:$0xff] %vm388, 0.0
      %404 = vst.msk [vmem:[#allocation2 + $0x70] sm:$0x3] %vm391, 0.0
      %405 = vst.msk [vmem:[#allocation2 + $0x78] sm:$0xff] %vm388, 0.0
      %406 = vst.msk [vmem:[#allocation2 + $0x80] sm:$0xff] %vm388, 0.0
      %407 = vst.msk [vmem:[#allocation2 + $0x88] sm:$0x3] %vm391, 0.0
      %408 = vst.msk [vmem:[#allocation2 + $0x90] sm:$0xff] %vm388, 0.0
      %409 = vst.msk [vmem:[#allocation2 + $0x98] sm:$0xff] %vm388, 0.0
      %410 = vst.msk [vmem:[#allocation2 + $0xa0] sm:$0x3] %vm391, 0.0
      %411 = vst.msk [vmem:[#allocation2 + $0xa8] sm:$0xff] %vm388, 0.0
      %412 = vst.msk [vmem:[#allocation2 + $0xb0] sm:$0xff] %vm388, 0.0
      %413 = vst.msk [vmem:[#allocation2 + $0xb8] sm:$0x3] %vm391, 0.0
      %414 = vst.msk [vmem:[#allocation2 + $0xc0] sm:$0xff] %vm388, 0.0
      %415 = vst.msk [vmem:[#allocation2 + $0xc8] sm:$0xff] %vm388, 0.0
      %416 = vst.msk [vmem:[#allocation2 + $0xd0] sm:$0x3] %vm391, 0.0
      %417 = vst.msk [vmem:[#allocation2 + $0xd8] sm:$0xff] %vm388, 0.0
      %418 = vst.msk [vmem:[#allocation2 + $0xe0] sm:$0xff] %vm388, 0.0
      %419 = vst.msk [vmem:[#allocation2 + $0xe8] sm:$0x3] %vm391, 0.0
      %420 = vst.msk [vmem:[#allocation2 + $0xf0] sm:$0xff] %vm388, 0.0
      %421 = vst.msk [vmem:[#allocation2 + $0xf8] sm:$0xff] %vm388, 0.0
      %422 = vst.msk [vmem:[#allocation2 + $0x100] sm:$0x3] %vm391, 0.0
      %423 = vst.msk [vmem:[#allocation2 + $0x108] sm:$0xff] %vm388, 0.0
      %424 = vst.msk [vmem:[#allocation2 + $0x110] sm:$0xff] %vm388, 0.0
      %425 = vst.msk [vmem:[#allocation2 + $0x118] sm:$0x3] %vm391, 0.0
      %426 = vst.msk [vmem:[#allocation2 + $0x120] sm:$0xff] %vm388, 0.0
      %427 = vst.msk [vmem:[#allocation2 + $0x128] sm:$0xff] %vm388, 0.0
      %428 = vst.msk [vmem:[#allocation2 + $0x130] sm:$0x3] %vm391, 0.0
      %429 = vst.msk [vmem:[#allocation2 + $0x138] sm:$0xff] %vm388, 0.0
      %430 = vst.msk [vmem:[#allocation2 + $0x140] sm:$0xff] %vm388, 0.0
      %431 = vst.msk [vmem:[#allocation2 + $0x148] sm:$0x3] %vm391, 0.0
      %432 = vst.msk [vmem:[#allocation2 + $0x150] sm:$0xff] %vm388, 0.0
      %433 = vst.msk [vmem:[#allocation2 + $0x158] sm:$0xff] %vm388, 0.0
      %434 = vst.msk [vmem:[#allocation2 + $0x160] sm:$0x3] %vm391, 0.0
      %435 = vst.msk [vmem:[#allocation2 + $0x168] sm:$0xff] %vm388, 0.0
      %436 = vst.msk [vmem:[#allocation2 + $0x170] sm:$0xff] %vm388, 0.0
      %437 = vst.msk [vmem:[#allocation2 + $0x178] sm:$0x3] %vm391, 0.0
      %438 = vst.msk [vmem:[#allocation2 + $0x180] sm:$0xff] %vm388, 0.0
      %439 = vst.msk [vmem:[#allocation2 + $0x188] sm:$0xff] %vm388, 0.0
      %440 = vst.msk [vmem:[#allocation2 + $0x190] sm:$0x3] %vm391, 0.0
      %441 = vst.msk [vmem:[#allocation2 + $0x198] sm:$0xff] %vm388, 0.0
      %442 = vst.msk [vmem:[#allocation2 + $0x1a0] sm:$0xff] %vm388, 0.0
      %443 = vst.msk [vmem:[#allocation2 + $0x1a8] sm:$0x3] %vm391, 0.0
      %v444 = vld [vmem:[%s381] sm:$0xff]
      %v445 = vld [vmem:[%s381 + $0x8] sm:$0xff]
      %v446 = vld [vmem:[%s381 + $0x10] sm:$0xff]
      %v447 = vld [vmem:[%s381 + $0x18] sm:$0xff]
      %v448 = vld [vmem:[%s381 + $0x20] sm:$0xff]
      %v449 = vld [vmem:[%s381 + $0x28] sm:$0xff]
      %v450 = vld [vmem:[%s381 + $0x30] sm:$0xff]
      %v451 = vld [vmem:[%s381 + $0x38] sm:$0xff]
      %v452 = vld [vmem:[%s381 + $0x40] sm:$0xff]
      %v453 = vld [vmem:[%s381 + $0x48] sm:$0xff]
      %v454 = vld [vmem:[%s381 + $0x50] sm:$0xff]
      %v455 = vld [vmem:[%s381 + $0x58] sm:$0xff]
      %v456 = vld [vmem:[%s381 + $0x60] sm:$0xff]
      %v457 = vld [vmem:[%s381 + $0x68] sm:$0xff]
      %v458 = vld [vmem:[%s381 + $0x70] sm:$0xff]
      %v459 = vld [vmem:[%s381 + $0x78] sm:$0xff]
      %v460 = vld [vmem:[%s381 + $0x80] sm:$0xff]
      %v461 = vld [vmem:[%s381 + $0x88] sm:$0xff]
      %v462 = vld [vmem:[%s381 + $0x90] sm:$0xff]
      %v463 = vld [vmem:[%s381 + $0x98] sm:$0xff]
      %v464 = vld [vmem:[%s381 + $0xa0] sm:$0xff]
      %v465 = vld [vmem:[%s381 + $0xa8] sm:$0xff]
      %v466 = vld [vmem:[%s381 + $0xb0] sm:$0xff]
      %v467 = vld [vmem:[%s381 + $0xb8] sm:$0xff]
      %v468 = vld [vmem:[%s381 + $0xc0] sm:$0xff]
      %v469 = vld [vmem:[%s381 + $0xc8] sm:$0xff]
      %v470 = vld [vmem:[%s381 + $0xd0] sm:$0xff]
      %v471 = vld [vmem:[%s381 + $0xd8] sm:$0xff]
      %v472 = vld [vmem:[%s381 + $0xe0] sm:$0xff]
      %v473 = vld [vmem:[%s381 + $0xe8] sm:$0xff]
      %v474 = vld [vmem:[%s381 + $0xf0] sm:$0xff]
      %v475 = vld [vmem:[%s381 + $0xf8] sm:$0xff]
      %s476 = scalar_lea.vmem [#allocation2], 24
      %vm477 = vcmask 31744
      %478 = vst.msk [vmem:[%s476 + $0x1] sm:$0xff] %vm477, %v444
      %479 = vst.msk [vmem:[%s476 + $0x9] sm:$0xff] %vm477, %v445
      %480 = vst.msk [vmem:[%s476 + $0x19] sm:$0xff] %vm477, %v446
      %481 = vst.msk [vmem:[%s476 + $0x21] sm:$0xff] %vm477, %v447
      %482 = vst.msk [vmem:[%s476 + $0x31] sm:$0xff] %vm477, %v448
      %483 = vst.msk [vmem:[%s476 + $0x39] sm:$0xff] %vm477, %v449
      %484 = vst.msk [vmem:[%s476 + $0x49] sm:$0xff] %vm477, %v450
      %485 = vst.msk [vmem:[%s476 + $0x51] sm:$0xff] %vm477, %v451
      %486 = vst.msk [vmem:[%s476 + $0x61] sm:$0xff] %vm477, %v452
      %487 = vst.msk [vmem:[%s476 + $0x69] sm:$0xff] %vm477, %v453
      %488 = vst.msk [vmem:[%s476 + $0x79] sm:$0xff] %vm477, %v454
      %489 = vst.msk [vmem:[%s476 + $0x81] sm:$0xff] %vm477, %v455
      %490 = vst.msk [vmem:[%s476 + $0x91] sm:$0xff] %vm477, %v456
      %491 = vst.msk [vmem:[%s476 + $0x99] sm:$0xff] %vm477, %v457
      %492 = vst.msk [vmem:[%s476 + $0xa9] sm:$0xff] %vm477, %v458
      %493 = vst.msk [vmem:[%s476 + $0xb1] sm:$0xff] %vm477, %v459
      %494 = vst.msk [vmem:[%s476 + $0xc1] sm:$0xff] %vm477, %v460
      %495 = vst.msk [vmem:[%s476 + $0xc9] sm:$0xff] %vm477, %v461
      %496 = vst.msk [vmem:[%s476 + $0xd9] sm:$0xff] %vm477, %v462
      %497 = vst.msk [vmem:[%s476 + $0xe1] sm:$0xff] %vm477, %v463
      %498 = vst.msk [vmem:[%s476 + $0xf1] sm:$0xff] %vm477, %v464
      %499 = vst.msk [vmem:[%s476 + $0xf9] sm:$0xff] %vm477, %v465
      %500 = vst.msk [vmem:[%s476 + $0x109] sm:$0xff] %vm477, %v466
      %501 = vst.msk [vmem:[%s476 + $0x111] sm:$0xff] %vm477, %v467
      %502 = vst.msk [vmem:[%s476 + $0x121] sm:$0xff] %vm477, %v468
      %503 = vst.msk [vmem:[%s476 + $0x129] sm:$0xff] %vm477, %v469
      %504 = vst.msk [vmem:[%s476 + $0x139] sm:$0xff] %vm477, %v470
      %505 = vst.msk [vmem:[%s476 + $0x141] sm:$0xff] %vm477, %v471
      %506 = vst.msk [vmem:[%s476 + $0x151] sm:$0xff] %vm477, %v472
      %507 = vst.msk [vmem:[%s476 + $0x159] sm:$0xff] %vm477, %v473
      %508 = vst.msk [vmem:[%s476 + $0x169] sm:$0xff] %vm477, %v474
      %509 = vst.msk [vmem:[%s476 + $0x171] sm:$0xff] %vm477, %v475
      %v510 = vld [vmem:[#allocation2] sm:$0xff]
      %v511 = vld [vmem:[#allocation2 + $0x8] sm:$0xff]
      %v512 = vld [vmem:[#allocation2 + $0x18] sm:$0xff]
      %v513 = vld [vmem:[#allocation2 + $0x20] sm:$0xff]
      %v514 = vld [vmem:[#allocation2 + $0x30] sm:$0xff]
      %v515 = vld [vmem:[#allocation2 + $0x38] sm:$0xff]
      %v516 = vld [vmem:[#allocation2 + $0x48] sm:$0xff]
      %v517 = vld [vmem:[#allocation2 + $0x50] sm:$0xff]
      %v518 = vld [vmem:[#allocation2 + $0x60] sm:$0xff]
      %v519 = vld [vmem:[#allocation2 + $0x68] sm:$0xff]
      %v520 = vld [vmem:[#allocation2 + $0x78] sm:$0xff]
      %v521 = vld [vmem:[#allocation2 + $0x80] sm:$0xff]
      %v522 = vld [vmem:[#allocation2 + $0x90] sm:$0xff]
      %v523 = vld [vmem:[#allocation2 + $0x98] sm:$0xff]
      %v524 = vld [vmem:[#allocation2 + $0xa8] sm:$0xff]
      %v525 = vld [vmem:[#allocation2 + $0xb0] sm:$0xff]
      %v526 = vld [vmem:[#allocation2 + $0xc0] sm:$0xff]
      %v527 = vld [vmem:[#allocation2 + $0xc8] sm:$0xff]
      %v528 = vld [vmem:[#allocation2 + $0xd8] sm:$0xff]
      %v529 = vld [vmem:[#allocation2 + $0xe0] sm:$0xff]
      %v530 = vld [vmem:[#allocation2 + $0xf0] sm:$0xff]
      %v531 = vld [vmem:[#allocation2 + $0xf8] sm:$0xff]
      %v532 = vld [vmem:[#allocation2 + $0x108] sm:$0xff]
      %v533 = vld [vmem:[#allocation2 + $0x110] sm:$0xff]
      %v534 = vld [vmem:[#allocation2 + $0x120] sm:$0xff]
      %v535 = vld [vmem:[#allocation2 + $0x128] sm:$0xff]
      %v536 = vld [vmem:[#allocation2 + $0x138] sm:$0xff]
      %v537 = vld [vmem:[#allocation2 + $0x140] sm:$0xff]
      %v538 = vld [vmem:[#allocation2 + $0x150] sm:$0xff]
      %v539 = vld [vmem:[#allocation2 + $0x158] sm:$0xff]
      %v540 = vld [vmem:[#allocation2 + $0x168] sm:$0xff]
      %v541 = vld [vmem:[#allocation2 + $0x170] sm:$0xff]
      %v542 = vld [vmem:[#allocation2 + $0x1] sm:$0xff]
      %v543 = vld [vmem:[#allocation2 + $0x9] sm:$0xff]
      %v544 = vld [vmem:[#allocation2 + $0x19] sm:$0xff]
      %v545 = vld [vmem:[#allocation2 + $0x21] sm:$0xff]
      %v546 = vld [vmem:[#allocation2 + $0x31] sm:$0xff]
      %v547 = vld [vmem:[#allocation2 + $0x39] sm:$0xff]
      %v548 = vld [vmem:[#allocation2 + $0x49] sm:$0xff]
      %v549 = vld [vmem:[#allocation2 + $0x51] sm:$0xff]
      %v550 = vld [vmem:[#allocation2 + $0x61] sm:$0xff]
      %v551 = vld [vmem:[#allocation2 + $0x69] sm:$0xff]
      %v552 = vld [vmem:[#allocation2 + $0x79] sm:$0xff]
      %v553 = vld [vmem:[#allocation2 + $0x81] sm:$0xff]
      %v554 = vld [vmem:[#allocation2 + $0x91] sm:$0xff]
      %v555 = vld [vmem:[#allocation2 + $0x99] sm:$0xff]
      %v556 = vld [vmem:[#allocation2 + $0xa9] sm:$0xff]
      %v557 = vld [vmem:[#allocation2 + $0xb1] sm:$0xff]
      %v558 = vld [vmem:[#allocation2 + $0xc1] sm:$0xff]
      %v559 = vld [vmem:[#allocation2 + $0xc9] sm:$0xff]
      %v560 = vld [vmem:[#allocation2 + $0xd9] sm:$0xff]
      %v561 = vld [vmem:[#allocation2 + $0xe1] sm:$0xff]
      %v562 = vld [vmem:[#allocation2 + $0xf1] sm:$0xff]
      %v563 = vld [vmem:[#allocation2 + $0xf9] sm:$0xff]
      %v564 = vld [vmem:[#allocation2 + $0x109] sm:$0xff]
      %v565 = vld [vmem:[#allocation2 + $0x111] sm:$0xff]
      %v566 = vld [vmem:[#allocation2 + $0x121] sm:$0xff]
      %v567 = vld [vmem:[#allocation2 + $0x129] sm:$0xff]
      %v568 = vld [vmem:[#allocation2 + $0x139] sm:$0xff]
      %v569 = vld [vmem:[#allocation2 + $0x141] sm:$0xff]
      %v570 = vld [vmem:[#allocation2 + $0x151] sm:$0xff]
      %v571 = vld [vmem:[#allocation2 + $0x159] sm:$0xff]
      %v572 = vld [vmem:[#allocation2 + $0x169] sm:$0xff]
      %v573 = vld [vmem:[#allocation2 + $0x171] sm:$0xff]
      %v574 = vld [vmem:[#allocation2 + $0x2] sm:$0xff]
      %v575 = vld [vmem:[#allocation2 + $0xa] sm:$0xff]
      %v576 = vld [vmem:[#allocation2 + $0x1a] sm:$0xff]
      %v577 = vld [vmem:[#allocation2 + $0x22] sm:$0xff]
      %v578 = vld [vmem:[#allocation2 + $0x32] sm:$0xff]
      %v579 = vld [vmem:[#allocation2 + $0x3a] sm:$0xff]
      %v580 = vld [vmem:[#allocation2 + $0x4a] sm:$0xff]
      %v581 = vld [vmem:[#allocation2 + $0x52] sm:$0xff]
      %v582 = vld [vmem:[#allocation2 + $0x62] sm:$0xff]
      %v583 = vld [vmem:[#allocation2 + $0x6a] sm:$0xff]
      %v584 = vld [vmem:[#allocation2 + $0x7a] sm:$0xff]
      %v585 = vld [vmem:[#allocation2 + $0x82] sm:$0xff]
      %v586 = vld [vmem:[#allocation2 + $0x92] sm:$0xff]
      %v587 = vld [vmem:[#allocation2 + $0x9a] sm:$0xff]
      %v588 = vld [vmem:[#allocation2 + $0xaa] sm:$0xff]
      %v589 = vld [vmem:[#allocation2 + $0xb2] sm:$0xff]
      %v590 = vld [vmem:[#allocation2 + $0xc2] sm:$0xff]
      %v591 = vld [vmem:[#allocation2 + $0xca] sm:$0xff]
      %v592 = vld [vmem:[#allocation2 + $0xda] sm:$0xff]
      %v593 = vld [vmem:[#allocation2 + $0xe2] sm:$0xff]
      %v594 = vld [vmem:[#allocation2 + $0xf2] sm:$0xff]
      %v595 = vld [vmem:[#allocation2 + $0xfa] sm:$0xff]
      %v596 = vld [vmem:[#allocation2 + $0x10a] sm:$0xff]
      %v597 = vld [vmem:[#allocation2 + $0x112] sm:$0xff]
      %v598 = vld [vmem:[#allocation2 + $0x122] sm:$0xff]
      %v599 = vld [vmem:[#allocation2 + $0x12a] sm:$0xff]
      %v600 = vld [vmem:[#allocation2 + $0x13a] sm:$0xff]
      %v601 = vld [vmem:[#allocation2 + $0x142] sm:$0xff]
      %v602 = vld [vmem:[#allocation2 + $0x152] sm:$0xff]
      %v603 = vld [vmem:[#allocation2 + $0x15a] sm:$0xff]
      %v604 = vld [vmem:[#allocation2 + $0x16a] sm:$0xff]
      %v605 = vld [vmem:[#allocation2 + $0x172] sm:$0xff]
      %v606 = vld [vmem:[%s476] sm:$0xff]
      %v607 = vld [vmem:[%s476 + $0x8] sm:$0xff]
      %v608 = vld [vmem:[%s476 + $0x18] sm:$0xff]
      %v609 = vld [vmem:[%s476 + $0x20] sm:$0xff]
      %v610 = vld [vmem:[%s476 + $0x30] sm:$0xff]
      %v611 = vld [vmem:[%s476 + $0x38] sm:$0xff]
      %v612 = vld [vmem:[%s476 + $0x48] sm:$0xff]
      %v613 = vld [vmem:[%s476 + $0x50] sm:$0xff]
      %v614 = vld [vmem:[%s476 + $0x60] sm:$0xff]
      %v615 = vld [vmem:[%s476 + $0x68] sm:$0xff]
      %v616 = vld [vmem:[%s476 + $0x78] sm:$0xff]
      %v617 = vld [vmem:[%s476 + $0x80] sm:$0xff]
      %v618 = vld [vmem:[%s476 + $0x90] sm:$0xff]
      %v619 = vld [vmem:[%s476 + $0x98] sm:$0xff]
      %v620 = vld [vmem:[%s476 + $0xa8] sm:$0xff]
      %v621 = vld [vmem:[%s476 + $0xb0] sm:$0xff]
      %v622 = vld [vmem:[%s476 + $0xc0] sm:$0xff]
      %v623 = vld [vmem:[%s476 + $0xc8] sm:$0xff]
      %v624 = vld [vmem:[%s476 + $0xd8] sm:$0xff]
      %v625 = vld [vmem:[%s476 + $0xe0] sm:$0xff]
      %v626 = vld [vmem:[%s476 + $0xf0] sm:$0xff]
      %v627 = vld [vmem:[%s476 + $0xf8] sm:$0xff]
      %v628 = vld [vmem:[%s476 + $0x108] sm:$0xff]
      %v629 = vld [vmem:[%s476 + $0x110] sm:$0xff]
      %v630 = vld [vmem:[%s476 + $0x120] sm:$0xff]
      %v631 = vld [vmem:[%s476 + $0x128] sm:$0xff]
      %v632 = vld [vmem:[%s476 + $0x138] sm:$0xff]
      %v633 = vld [vmem:[%s476 + $0x140] sm:$0xff]
      %v634 = vld [vmem:[%s476 + $0x150] sm:$0xff]
      %v635 = vld [vmem:[%s476 + $0x158] sm:$0xff]
      %v636 = vld [vmem:[%s476 + $0x168] sm:$0xff]
      %v637 = vld [vmem:[%s476 + $0x170] sm:$0xff]
      %v638 = vld [vmem:[%s476 + $0x1] sm:$0xff]
      %v639 = vld [vmem:[%s476 + $0x9] sm:$0xff]
      %v640 = vld [vmem:[%s476 + $0x19] sm:$0xff]
      %v641 = vld [vmem:[%s476 + $0x21] sm:$0xff]
      %v642 = vld [vmem:[%s476 + $0x31] sm:$0xff]
      %v643 = vld [vmem:[%s476 + $0x39] sm:$0xff]
      %v644 = vld [vmem:[%s476 + $0x49] sm:$0xff]
      %v645 = vld [vmem:[%s476 + $0x51] sm:$0xff]
      %v646 = vld [vmem:[%s476 + $0x61] sm:$0xff]
      %v647 = vld [vmem:[%s476 + $0x69] sm:$0xff]
      %v648 = vld [vmem:[%s476 + $0x79] sm:$0xff]
      %v649 = vld [vmem:[%s476 + $0x81] sm:$0xff]
      %v650 = vld [vmem:[%s476 + $0x91] sm:$0xff]
      %v651 = vld [vmem:[%s476 + $0x99] sm:$0xff]
      %v652 = vld [vmem:[%s476 + $0xa9] sm:$0xff]
      %v653 = vld [vmem:[%s476 + $0xb1] sm:$0xff]
      %v654 = vld [vmem:[%s476 + $0xc1] sm:$0xff]
      %v655 = vld [vmem:[%s476 + $0xc9] sm:$0xff]
      %v656 = vld [vmem:[%s476 + $0xd9] sm:$0xff]
      %v657 = vld [vmem:[%s476 + $0xe1] sm:$0xff]
      %v658 = vld [vmem:[%s476 + $0xf1] sm:$0xff]
      %v659 = vld [vmem:[%s476 + $0xf9] sm:$0xff]
      %v660 = vld [vmem:[%s476 + $0x109] sm:$0xff]
      %v661 = vld [vmem:[%s476 + $0x111] sm:$0xff]
      %v662 = vld [vmem:[%s476 + $0x121] sm:$0xff]
      %v663 = vld [vmem:[%s476 + $0x129] sm:$0xff]
      %v664 = vld [vmem:[%s476 + $0x139] sm:$0xff]
      %v665 = vld [vmem:[%s476 + $0x141] sm:$0xff]
      %v666 = vld [vmem:[%s476 + $0x151] sm:$0xff]
      %v667 = vld [vmem:[%s476 + $0x159] sm:$0xff]
      %v668 = vld [vmem:[%s476 + $0x169] sm:$0xff]
      %v669 = vld [vmem:[%s476 + $0x171] sm:$0xff]
      %v670 = vld [vmem:[%s476 + $0x2] sm:$0xff]
      %v671 = vld [vmem:[%s476 + $0xa] sm:$0xff]
      %v672 = vld [vmem:[%s476 + $0x1a] sm:$0xff]
      %v673 = vld [vmem:[%s476 + $0x22] sm:$0xff]
      %v674 = vld [vmem:[%s476 + $0x32] sm:$0xff]
      %v675 = vld [vmem:[%s476 + $0x3a] sm:$0xff]
      %v676 = vld [vmem:[%s476 + $0x4a] sm:$0xff]
      %v677 = vld [vmem:[%s476 + $0x52] sm:$0xff]
      %v678 = vld [vmem:[%s476 + $0x62] sm:$0xff]
      %v679 = vld [vmem:[%s476 + $0x6a] sm:$0xff]
      %v680 = vld [vmem:[%s476 + $0x7a] sm:$0xff]
      %v681 = vld [vmem:[%s476 + $0x82] sm:$0xff]
      %v682 = vld [vmem:[%s476 + $0x92] sm:$0xff]
      %v683 = vld [vmem:[%s476 + $0x9a] sm:$0xff]
      %v684 = vld [vmem:[%s476 + $0xaa] sm:$0xff]
      %v685 = vld [vmem:[%s476 + $0xb2] sm:$0xff]
      %v686 = vld [vmem:[%s476 + $0xc2] sm:$0xff]
      %v687 = vld [vmem:[%s476 + $0xca] sm:$0xff]
      %v688 = vld [vmem:[%s476 + $0xda] sm:$0xff]
      %v689 = vld [vmem:[%s476 + $0xe2] sm:$0xff]
      %v690 = vld [vmem:[%s476 + $0xf2] sm:$0xff]
      %v691 = vld [vmem:[%s476 + $0xfa] sm:$0xff]
      %v692 = vld [vmem:[%s476 + $0x10a] sm:$0xff]
      %v693 = vld [vmem:[%s476 + $0x112] sm:$0xff]
      %v694 = vld [vmem:[%s476 + $0x122] sm:$0xff]
      %v695 = vld [vmem:[%s476 + $0x12a] sm:$0xff]
      %v696 = vld [vmem:[%s476 + $0x13a] sm:$0xff]
      %v697 = vld [vmem:[%s476 + $0x142] sm:$0xff]
      %v698 = vld [vmem:[%s476 + $0x152] sm:$0xff]
      %v699 = vld [vmem:[%s476 + $0x15a] sm:$0xff]
      %v700 = vld [vmem:[%s476 + $0x16a] sm:$0xff]
      %v701 = vld [vmem:[%s476 + $0x172] sm:$0xff]
      %s702 = scalar_lea.vmem [#allocation2], 48
      %v703 = vld [vmem:[%s702] sm:$0xff]
      %v704 = vld [vmem:[%s702 + $0x8] sm:$0xff]
      %v705 = vld [vmem:[%s702 + $0x18] sm:$0xff]
      %v706 = vld [vmem:[%s702 + $0x20] sm:$0xff]
      %v707 = vld [vmem:[%s702 + $0x30] sm:$0xff]
      %v708 = vld [vmem:[%s702 + $0x38] sm:$0xff]
      %v709 = vld [vmem:[%s702 + $0x48] sm:$0xff]
      %v710 = vld [vmem:[%s702 + $0x50] sm:$0xff]
      %v711 = vld [vmem:[%s702 + $0x60] sm:$0xff]
      %v712 = vld [vmem:[%s702 + $0x68] sm:$0xff]
      %v713 = vld [vmem:[%s702 + $0x78] sm:$0xff]
      %v714 = vld [vmem:[%s702 + $0x80] sm:$0xff]
      %v715 = vld [vmem:[%s702 + $0x90] sm:$0xff]
      %v716 = vld [vmem:[%s702 + $0x98] sm:$0xff]
      %v717 = vld [vmem:[%s702 + $0xa8] sm:$0xff]
      %v718 = vld [vmem:[%s702 + $0xb0] sm:$0xff]
      %v719 = vld [vmem:[%s702 + $0xc0] sm:$0xff]
      %v720 = vld [vmem:[%s702 + $0xc8] sm:$0xff]
      %v721 = vld [vmem:[%s702 + $0xd8] sm:$0xff]
      %v722 = vld [vmem:[%s702 + $0xe0] sm:$0xff]
      %v723 = vld [vmem:[%s702 + $0xf0] sm:$0xff]
      %v724 = vld [vmem:[%s702 + $0xf8] sm:$0xff]
      %v725 = vld [vmem:[%s702 + $0x108] sm:$0xff]
      %v726 = vld [vmem:[%s702 + $0x110] sm:$0xff]
      %v727 = vld [vmem:[%s702 + $0x120] sm:$0xff]
      %v728 = vld [vmem:[%s702 + $0x128] sm:$0xff]
      %v729 = vld [vmem:[%s702 + $0x138] sm:$0xff]
      %v730 = vld [vmem:[%s702 + $0x140] sm:$0xff]
      %v731 = vld [vmem:[%s702 + $0x150] sm:$0xff]
      %v732 = vld [vmem:[%s702 + $0x158] sm:$0xff]
      %v733 = vld [vmem:[%s702 + $0x168] sm:$0xff]
      %v734 = vld [vmem:[%s702 + $0x170] sm:$0xff]
      %v735 = vld [vmem:[%s702 + $0x1] sm:$0xff]
      %v736 = vld [vmem:[%s702 + $0x9] sm:$0xff]
      %v737 = vld [vmem:[%s702 + $0x19] sm:$0xff]
      %v738 = vld [vmem:[%s702 + $0x21] sm:$0xff]
      %v739 = vld [vmem:[%s702 + $0x31] sm:$0xff]
      %v740 = vld [vmem:[%s702 + $0x39] sm:$0xff]
      %v741 = vld [vmem:[%s702 + $0x49] sm:$0xff]
      %v742 = vld [vmem:[%s702 + $0x51] sm:$0xff]
      %v743 = vld [vmem:[%s702 + $0x61] sm:$0xff]
      %v744 = vld [vmem:[%s702 + $0x69] sm:$0xff]
      %v745 = vld [vmem:[%s702 + $0x79] sm:$0xff]
      %v746 = vld [vmem:[%s702 + $0x81] sm:$0xff]
      %v747 = vld [vmem:[%s702 + $0x91] sm:$0xff]
      %v748 = vld [vmem:[%s702 + $0x99] sm:$0xff]
      %v749 = vld [vmem:[%s702 + $0xa9] sm:$0xff]
      %v750 = vld [vmem:[%s702 + $0xb1] sm:$0xff]
      %v751 = vld [vmem:[%s702 + $0xc1] sm:$0xff]
      %v752 = vld [vmem:[%s702 + $0xc9] sm:$0xff]
      %v753 = vld [vmem:[%s702 + $0xd9] sm:$0xff]
      %v754 = vld [vmem:[%s702 + $0xe1] sm:$0xff]
      %v755 = vld [vmem:[%s702 + $0xf1] sm:$0xff]
      %v756 = vld [vmem:[%s702 + $0xf9] sm:$0xff]
      %v757 = vld [vmem:[%s702 + $0x109] sm:$0xff]
      %v758 = vld [vmem:[%s702 + $0x111] sm:$0xff]
      %v759 = vld [vmem:[%s702 + $0x121] sm:$0xff]
      %v760 = vld [vmem:[%s702 + $0x129] sm:$0xff]
      %v761 = vld [vmem:[%s702 + $0x139] sm:$0xff]
      %v762 = vld [vmem:[%s702 + $0x141] sm:$0xff]
      %v763 = vld [vmem:[%s702 + $0x151] sm:$0xff]
      %v764 = vld [vmem:[%s702 + $0x159] sm:$0xff]
      %v765 = vld [vmem:[%s702 + $0x169] sm:$0xff]
      %v766 = vld [vmem:[%s702 + $0x171] sm:$0xff]
      %v767 = vld [vmem:[%s702 + $0x2] sm:$0xff]
      %v768 = vld [vmem:[%s702 + $0xa] sm:$0xff]
      %v769 = vld [vmem:[%s702 + $0x1a] sm:$0xff]
      %v770 = vld [vmem:[%s702 + $0x22] sm:$0xff]
      %v771 = vld [vmem:[%s702 + $0x32] sm:$0xff]
      %v772 = vld [vmem:[%s702 + $0x3a] sm:$0xff]
      %v773 = vld [vmem:[%s702 + $0x4a] sm:$0xff]
      %v774 = vld [vmem:[%s702 + $0x52] sm:$0xff]
      %v775 = vld [vmem:[%s702 + $0x62] sm:$0xff]
      %v776 = vld [vmem:[%s702 + $0x6a] sm:$0xff]
      %v777 = vld [vmem:[%s702 + $0x7a] sm:$0xff]
      %v778 = vld [vmem:[%s702 + $0x82] sm:$0xff]
      %v779 = vld [vmem:[%s702 + $0x92] sm:$0xff]
      %v780 = vld [vmem:[%s702 + $0x9a] sm:$0xff]
      %v781 = vld [vmem:[%s702 + $0xaa] sm:$0xff]
      %v782 = vld [vmem:[%s702 + $0xb2] sm:$0xff]
      %v783 = vld [vmem:[%s702 + $0xc2] sm:$0xff]
      %v784 = vld [vmem:[%s702 + $0xca] sm:$0xff]
      %v785 = vld [vmem:[%s702 + $0xda] sm:$0xff]
      %v786 = vld [vmem:[%s702 + $0xe2] sm:$0xff]
      %v787 = vld [vmem:[%s702 + $0xf2] sm:$0xff]
      %v788 = vld [vmem:[%s702 + $0xfa] sm:$0xff]
      %v789 = vld [vmem:[%s702 + $0x10a] sm:$0xff]
      %v790 = vld [vmem:[%s702 + $0x112] sm:$0xff]
      %v791 = vld [vmem:[%s702 + $0x122] sm:$0xff]
      %v792 = vld [vmem:[%s702 + $0x12a] sm:$0xff]
      %v793 = vld [vmem:[%s702 + $0x13a] sm:$0xff]
      %v794 = vld [vmem:[%s702 + $0x142] sm:$0xff]
      %v795 = vld [vmem:[%s702 + $0x152] sm:$0xff]
      %v796 = vld [vmem:[%s702 + $0x15a] sm:$0xff]
      %v797 = vld [vmem:[%s702 + $0x16a] sm:$0xff]
      %v798 = vld [vmem:[%s702 + $0x172] sm:$0xff]
      %831 = vrot.lane.b32.xlu0 %v542, 4
      %v832 = vpop.permute.xlu0 %831
      %833 = vrot.lane.b32.xlu0 %v543, 4
      %v834 = vpop.permute.xlu0 %833
      %835 = vrot.lane.b32.xlu0 %v544, 4
      %v836 = vpop.permute.xlu0 %835
      %837 = vrot.lane.b32.xlu0 %v545, 4
      %v838 = vpop.permute.xlu0 %837
      %839 = vrot.lane.b32.xlu0 %v546, 4
      %v840 = vpop.permute.xlu0 %839
      %841 = vrot.lane.b32.xlu0 %v547, 4
      %v842 = vpop.permute.xlu0 %841
      %843 = vrot.lane.b32.xlu0 %v548, 4
      %v844 = vpop.permute.xlu0 %843
      %845 = vrot.lane.b32.xlu0 %v549, 4
      %v846 = vpop.permute.xlu0 %845
      %847 = vrot.lane.b32.xlu0 %v550, 4
      %v848 = vpop.permute.xlu0 %847
      %849 = vrot.lane.b32.xlu0 %v551, 4
      %v850 = vpop.permute.xlu0 %849
      %851 = vrot.lane.b32.xlu0 %v552, 4
      %v852 = vpop.permute.xlu0 %851
      %853 = vrot.lane.b32.xlu0 %v553, 4
      %v854 = vpop.permute.xlu0 %853
      %855 = vrot.lane.b32.xlu0 %v554, 4
      %v856 = vpop.permute.xlu0 %855
      %857 = vrot.lane.b32.xlu0 %v555, 4
      %v858 = vpop.permute.xlu0 %857
      %859 = vrot.lane.b32.xlu0 %v556, 4
      %v860 = vpop.permute.xlu0 %859
      %861 = vrot.lane.b32.xlu0 %v557, 4
      %v862 = vpop.permute.xlu0 %861
      %863 = vrot.lane.b32.xlu0 %v558, 4
      %v864 = vpop.permute.xlu0 %863
      %865 = vrot.lane.b32.xlu0 %v559, 4
      %v866 = vpop.permute.xlu0 %865
      %867 = vrot.lane.b32.xlu0 %v560, 4
      %v868 = vpop.permute.xlu0 %867
      %869 = vrot.lane.b32.xlu0 %v561, 4
      %v870 = vpop.permute.xlu0 %869
      %871 = vrot.lane.b32.xlu0 %v562, 4
      %v872 = vpop.permute.xlu0 %871
      %873 = vrot.lane.b32.xlu0 %v563, 4
      %v874 = vpop.permute.xlu0 %873
      %875 = vrot.lane.b32.xlu0 %v564, 4
      %v876 = vpop.permute.xlu0 %875
      %877 = vrot.lane.b32.xlu0 %v565, 4
      %v878 = vpop.permute.xlu0 %877
      %879 = vrot.lane.b32.xlu0 %v566, 4
      %v880 = vpop.permute.xlu0 %879
      %881 = vrot.lane.b32.xlu0 %v567, 4
      %v882 = vpop.permute.xlu0 %881
      %883 = vrot.lane.b32.xlu0 %v568, 4
      %v884 = vpop.permute.xlu0 %883
      %885 = vrot.lane.b32.xlu0 %v569, 4
      %v886 = vpop.permute.xlu0 %885
      %887 = vrot.lane.b32.xlu0 %v570, 4
      %v888 = vpop.permute.xlu0 %887
      %889 = vrot.lane.b32.xlu0 %v571, 4
      %v890 = vpop.permute.xlu0 %889
      %891 = vrot.lane.b32.xlu0 %v572, 4
      %v892 = vpop.permute.xlu0 %891
      %893 = vrot.lane.b32.xlu0 %v573, 4
      %v894 = vpop.permute.xlu0 %893
      %959 = vrot.lane.b32.xlu0 %v574, 8
      %v960 = vpop.permute.xlu0 %959
      %961 = vrot.lane.b32.xlu0 %v575, 8
      %v962 = vpop.permute.xlu0 %961
      %963 = vrot.lane.b32.xlu0 %v576, 8
      %v964 = vpop.permute.xlu0 %963
      %965 = vrot.lane.b32.xlu0 %v577, 8
      %v966 = vpop.permute.xlu0 %965
      %967 = vrot.lane.b32.xlu0 %v578, 8
      %v968 = vpop.permute.xlu0 %967
      %969 = vrot.lane.b32.xlu0 %v579, 8
      %v970 = vpop.permute.xlu0 %969
      %971 = vrot.lane.b32.xlu0 %v580, 8
      %v972 = vpop.permute.xlu0 %971
      %973 = vrot.lane.b32.xlu0 %v581, 8
      %v974 = vpop.permute.xlu0 %973
      %975 = vrot.lane.b32.xlu0 %v582, 8
      %v976 = vpop.permute.xlu0 %975
      %977 = vrot.lane.b32.xlu0 %v583, 8
      %v978 = vpop.permute.xlu0 %977
      %979 = vrot.lane.b32.xlu0 %v584, 8
      %v980 = vpop.permute.xlu0 %979
      %981 = vrot.lane.b32.xlu0 %v585, 8
      %v982 = vpop.permute.xlu0 %981
      %983 = vrot.lane.b32.xlu0 %v586, 8
      %v984 = vpop.permute.xlu0 %983
      %985 = vrot.lane.b32.xlu0 %v587, 8
      %v986 = vpop.permute.xlu0 %985
      %987 = vrot.lane.b32.xlu0 %v588, 8
      %v988 = vpop.permute.xlu0 %987
      %989 = vrot.lane.b32.xlu0 %v589, 8
      %v990 = vpop.permute.xlu0 %989
      %991 = vrot.lane.b32.xlu0 %v590, 8
      %v992 = vpop.permute.xlu0 %991
      %993 = vrot.lane.b32.xlu0 %v591, 8
      %v994 = vpop.permute.xlu0 %993
      %995 = vrot.lane.b32.xlu0 %v592, 8
      %v996 = vpop.permute.xlu0 %995
      %997 = vrot.lane.b32.xlu0 %v593, 8
      %v998 = vpop.permute.xlu0 %997
      %999 = vrot.lane.b32.xlu0 %v594, 8
      %v1000 = vpop.permute.xlu0 %999
      %1001 = vrot.lane.b32.xlu0 %v595, 8
      %v1002 = vpop.permute.xlu0 %1001
      %1003 = vrot.lane.b32.xlu0 %v596, 8
      %v1004 = vpop.permute.xlu0 %1003
      %1005 = vrot.lane.b32.xlu0 %v597, 8
      %v1006 = vpop.permute.xlu0 %1005
      %1007 = vrot.lane.b32.xlu0 %v598, 8
      %v1008 = vpop.permute.xlu0 %1007
      %1009 = vrot.lane.b32.xlu0 %v599, 8
      %v1010 = vpop.permute.xlu0 %1009
      %1011 = vrot.lane.b32.xlu0 %v600, 8
      %v1012 = vpop.permute.xlu0 %1011
      %1013 = vrot.lane.b32.xlu0 %v601, 8
      %v1014 = vpop.permute.xlu0 %1013
      %1015 = vrot.lane.b32.xlu0 %v602, 8
      %v1016 = vpop.permute.xlu0 %1015
      %1017 = vrot.lane.b32.xlu0 %v603, 8
      %v1018 = vpop.permute.xlu0 %1017
      %1019 = vrot.lane.b32.xlu0 %v604, 8
      %v1020 = vpop.permute.xlu0 %1019
      %1021 = vrot.lane.b32.xlu0 %v605, 8
      %v1022 = vpop.permute.xlu0 %1021
      %1087 = vrot.lane.b32.xlu0 %v606, 12
      %v1088 = vpop.permute.xlu0 %1087
      %1089 = vrot.lane.b32.xlu0 %v607, 12
      %v1090 = vpop.permute.xlu0 %1089
      %1091 = vrot.lane.b32.xlu0 %v608, 12
      %v1092 = vpop.permute.xlu0 %1091
      %1093 = vrot.lane.b32.xlu0 %v609, 12
      %v1094 = vpop.permute.xlu0 %1093
      %1095 = vrot.lane.b32.xlu0 %v610, 12
      %v1096 = vpop.permute.xlu0 %1095
      %1097 = vrot.lane.b32.xlu0 %v611, 12
      %v1098 = vpop.permute.xlu0 %1097
      %1099 = vrot.lane.b32.xlu0 %v612, 12
      %v1100 = vpop.permute.xlu0 %1099
      %1101 = vrot.lane.b32.xlu0 %v613, 12
      %v1102 = vpop.permute.xlu0 %1101
      %1103 = vrot.lane.b32.xlu0 %v614, 12
      %v1104 = vpop.permute.xlu0 %1103
      %1105 = vrot.lane.b32.xlu0 %v615, 12
      %v1106 = vpop.permute.xlu0 %1105
      %1107 = vrot.lane.b32.xlu0 %v616, 12
      %v1108 = vpop.permute.xlu0 %1107
      %1109 = vrot.lane.b32.xlu0 %v617, 12
      %v1110 = vpop.permute.xlu0 %1109
      %1111 = vrot.lane.b32.xlu0 %v618, 12
      %v1112 = vpop.permute.xlu0 %1111
      %1113 = vrot.lane.b32.xlu0 %v619, 12
      %v1114 = vpop.permute.xlu0 %1113
      %1115 = vrot.lane.b32.xlu0 %v620, 12
      %v1116 = vpop.permute.xlu0 %1115
      %1117 = vrot.lane.b32.xlu0 %v621, 12
      %v1118 = vpop.permute.xlu0 %1117
      %1119 = vrot.lane.b32.xlu0 %v622, 12
      %v1120 = vpop.permute.xlu0 %1119
      %1121 = vrot.lane.b32.xlu0 %v623, 12
      %v1122 = vpop.permute.xlu0 %1121
      %1123 = vrot.lane.b32.xlu0 %v624, 12
      %v1124 = vpop.permute.xlu0 %1123
      %1125 = vrot.lane.b32.xlu0 %v625, 12
      %v1126 = vpop.permute.xlu0 %1125
      %1127 = vrot.lane.b32.xlu0 %v626, 12
      %v1128 = vpop.permute.xlu0 %1127
      %1129 = vrot.lane.b32.xlu0 %v627, 12
      %v1130 = vpop.permute.xlu0 %1129
      %1131 = vrot.lane.b32.xlu0 %v628, 12
      %v1132 = vpop.permute.xlu0 %1131
      %1133 = vrot.lane.b32.xlu0 %v629, 12
      %v1134 = vpop.permute.xlu0 %1133
      %1135 = vrot.lane.b32.xlu0 %v630, 12
      %v1136 = vpop.permute.xlu0 %1135
      %1137 = vrot.lane.b32.xlu0 %v631, 12
      %v1138 = vpop.permute.xlu0 %1137
      %1139 = vrot.lane.b32.xlu0 %v632, 12
      %v1140 = vpop.permute.xlu0 %1139
      %1141 = vrot.lane.b32.xlu0 %v633, 12
      %v1142 = vpop.permute.xlu0 %1141
      %1143 = vrot.lane.b32.xlu0 %v634, 12
      %v1144 = vpop.permute.xlu0 %1143
      %1145 = vrot.lane.b32.xlu0 %v635, 12
      %v1146 = vpop.permute.xlu0 %1145
      %1147 = vrot.lane.b32.xlu0 %v636, 12
      %v1148 = vpop.permute.xlu0 %1147
      %1149 = vrot.lane.b32.xlu0 %v637, 12
      %v1150 = vpop.permute.xlu0 %1149
      %1215 = vrot.lane.b32.xlu0 %v638, 16
      %v1216 = vpop.permute.xlu0 %1215
      %1217 = vrot.lane.b32.xlu0 %v639, 16
      %v1218 = vpop.permute.xlu0 %1217
      %1219 = vrot.lane.b32.xlu0 %v640, 16
      %v1220 = vpop.permute.xlu0 %1219
      %1221 = vrot.lane.b32.xlu0 %v641, 16
      %v1222 = vpop.permute.xlu0 %1221
      %1223 = vrot.lane.b32.xlu0 %v642, 16
      %v1224 = vpop.permute.xlu0 %1223
      %1225 = vrot.lane.b32.xlu0 %v643, 16
      %v1226 = vpop.permute.xlu0 %1225
      %1227 = vrot.lane.b32.xlu0 %v644, 16
      %v1228 = vpop.permute.xlu0 %1227
      %1229 = vrot.lane.b32.xlu0 %v645, 16
      %v1230 = vpop.permute.xlu0 %1229
      %1231 = vrot.lane.b32.xlu0 %v646, 16
      %v1232 = vpop.permute.xlu0 %1231
      %1233 = vrot.lane.b32.xlu0 %v647, 16
      %v1234 = vpop.permute.xlu0 %1233
      %1235 = vrot.lane.b32.xlu0 %v648, 16
      %v1236 = vpop.permute.xlu0 %1235
      %1237 = vrot.lane.b32.xlu0 %v649, 16
      %v1238 = vpop.permute.xlu0 %1237
      %1239 = vrot.lane.b32.xlu0 %v650, 16
      %v1240 = vpop.permute.xlu0 %1239
      %1241 = vrot.lane.b32.xlu0 %v651, 16
      %v1242 = vpop.permute.xlu0 %1241
      %1243 = vrot.lane.b32.xlu0 %v652, 16
      %v1244 = vpop.permute.xlu0 %1243
      %1245 = vrot.lane.b32.xlu0 %v653, 16
      %v1246 = vpop.permute.xlu0 %1245
      %1247 = vrot.lane.b32.xlu0 %v654, 16
      %v1248 = vpop.permute.xlu0 %1247
      %1249 = vrot.lane.b32.xlu0 %v655, 16
      %v1250 = vpop.permute.xlu0 %1249
      %1251 = vrot.lane.b32.xlu0 %v656, 16
      %v1252 = vpop.permute.xlu0 %1251
      %1253 = vrot.lane.b32.xlu0 %v657, 16
      %v1254 = vpop.permute.xlu0 %1253
      %1255 = vrot.lane.b32.xlu0 %v658, 16
      %v1256 = vpop.permute.xlu0 %1255
      %1257 = vrot.lane.b32.xlu0 %v659, 16
      %v1258 = vpop.permute.xlu0 %1257
      %1259 = vrot.lane.b32.xlu0 %v660, 16
      %v1260 = vpop.permute.xlu0 %1259
      %1261 = vrot.lane.b32.xlu0 %v661, 16
      %v1262 = vpop.permute.xlu0 %1261
      %1263 = vrot.lane.b32.xlu0 %v662, 16
      %v1264 = vpop.permute.xlu0 %1263
      %1265 = vrot.lane.b32.xlu0 %v663, 16
      %v1266 = vpop.permute.xlu0 %1265
      %1267 = vrot.lane.b32.xlu0 %v664, 16
      %v1268 = vpop.permute.xlu0 %1267
      %1269 = vrot.lane.b32.xlu0 %v665, 16
      %v1270 = vpop.permute.xlu0 %1269
      %1271 = vrot.lane.b32.xlu0 %v666, 16
      %v1272 = vpop.permute.xlu0 %1271
      %1273 = vrot.lane.b32.xlu0 %v667, 16
      %v1274 = vpop.permute.xlu0 %1273
      %1275 = vrot.lane.b32.xlu0 %v668, 16
      %v1276 = vpop.permute.xlu0 %1275
      %1277 = vrot.lane.b32.xlu0 %v669, 16
      %v1278 = vpop.permute.xlu0 %1277
      %1343 = vrot.lane.b32.xlu0 %v670, 20
      %v1344 = vpop.permute.xlu0 %1343
      %1345 = vrot.lane.b32.xlu0 %v671, 20
      %v1346 = vpop.permute.xlu0 %1345
      %1347 = vrot.lane.b32.xlu0 %v672, 20
      %v1348 = vpop.permute.xlu0 %1347
      %1349 = vrot.lane.b32.xlu0 %v673, 20
      %v1350 = vpop.permute.xlu0 %1349
      %1351 = vrot.lane.b32.xlu0 %v674, 20
      %v1352 = vpop.permute.xlu0 %1351
      %1353 = vrot.lane.b32.xlu0 %v675, 20
      %v1354 = vpop.permute.xlu0 %1353
      %1355 = vrot.lane.b32.xlu0 %v676, 20
      %v1356 = vpop.permute.xlu0 %1355
      %1357 = vrot.lane.b32.xlu0 %v677, 20
      %v1358 = vpop.permute.xlu0 %1357
      %1359 = vrot.lane.b32.xlu0 %v678, 20
      %v1360 = vpop.permute.xlu0 %1359
      %1361 = vrot.lane.b32.xlu0 %v679, 20
      %v1362 = vpop.permute.xlu0 %1361
      %1363 = vrot.lane.b32.xlu0 %v680, 20
      %v1364 = vpop.permute.xlu0 %1363
      %1365 = vrot.lane.b32.xlu0 %v681, 20
      %v1366 = vpop.permute.xlu0 %1365
      %1367 = vrot.lane.b32.xlu0 %v682, 20
      %v1368 = vpop.permute.xlu0 %1367
      %1369 = vrot.lane.b32.xlu0 %v683, 20
      %v1370 = vpop.permute.xlu0 %1369
      %1371 = vrot.lane.b32.xlu0 %v684, 20
      %v1372 = vpop.permute.xlu0 %1371
      %1373 = vrot.lane.b32.xlu0 %v685, 20
      %v1374 = vpop.permute.xlu0 %1373
      %1375 = vrot.lane.b32.xlu0 %v686, 20
      %v1376 = vpop.permute.xlu0 %1375
      %1377 = vrot.lane.b32.xlu0 %v687, 20
      %v1378 = vpop.permute.xlu0 %1377
      %1379 = vrot.lane.b32.xlu0 %v688, 20
      %v1380 = vpop.permute.xlu0 %1379
      %1381 = vrot.lane.b32.xlu0 %v689, 20
      %v1382 = vpop.permute.xlu0 %1381
      %1383 = vrot.lane.b32.xlu0 %v690, 20
      %v1384 = vpop.permute.xlu0 %1383
      %1385 = vrot.lane.b32.xlu0 %v691, 20
      %v1386 = vpop.permute.xlu0 %1385
      %1387 = vrot.lane.b32.xlu0 %v692, 20
      %v1388 = vpop.permute.xlu0 %1387
      %1389 = vrot.lane.b32.xlu0 %v693, 20
      %v1390 = vpop.permute.xlu0 %1389
      %1391 = vrot.lane.b32.xlu0 %v694, 20
      %v1392 = vpop.permute.xlu0 %1391
      %1393 = vrot.lane.b32.xlu0 %v695, 20
      %v1394 = vpop.permute.xlu0 %1393
      %1395 = vrot.lane.b32.xlu0 %v696, 20
      %v1396 = vpop.permute.xlu0 %1395
      %1397 = vrot.lane.b32.xlu0 %v697, 20
      %v1398 = vpop.permute.xlu0 %1397
      %1399 = vrot.lane.b32.xlu0 %v698, 20
      %v1400 = vpop.permute.xlu0 %1399
      %1401 = vrot.lane.b32.xlu0 %v699, 20
      %v1402 = vpop.permute.xlu0 %1401
      %1403 = vrot.lane.b32.xlu0 %v700, 20
      %v1404 = vpop.permute.xlu0 %1403
      %1405 = vrot.lane.b32.xlu0 %v701, 20
      %v1406 = vpop.permute.xlu0 %1405
      %1471 = vrot.lane.b32.xlu0 %v703, 24
      %v1472 = vpop.permute.xlu0 %1471
      %1473 = vrot.lane.b32.xlu0 %v704, 24
      %v1474 = vpop.permute.xlu0 %1473
      %1475 = vrot.lane.b32.xlu0 %v705, 24
      %v1476 = vpop.permute.xlu0 %1475
      %1477 = vrot.lane.b32.xlu0 %v706, 24
      %v1478 = vpop.permute.xlu0 %1477
      %1479 = vrot.lane.b32.xlu0 %v707, 24
      %v1480 = vpop.permute.xlu0 %1479
      %1481 = vrot.lane.b32.xlu0 %v708, 24
      %v1482 = vpop.permute.xlu0 %1481
      %1483 = vrot.lane.b32.xlu0 %v709, 24
      %v1484 = vpop.permute.xlu0 %1483
      %1485 = vrot.lane.b32.xlu0 %v710, 24
      %v1486 = vpop.permute.xlu0 %1485
      %1487 = vrot.lane.b32.xlu0 %v711, 24
      %v1488 = vpop.permute.xlu0 %1487
      %1489 = vrot.lane.b32.xlu0 %v712, 24
      %v1490 = vpop.permute.xlu0 %1489
      %1491 = vrot.lane.b32.xlu0 %v713, 24
      %v1492 = vpop.permute.xlu0 %1491
      %1493 = vrot.lane.b32.xlu0 %v714, 24
      %v1494 = vpop.permute.xlu0 %1493
      %1495 = vrot.lane.b32.xlu0 %v715, 24
      %v1496 = vpop.permute.xlu0 %1495
      %1497 = vrot.lane.b32.xlu0 %v716, 24
      %v1498 = vpop.permute.xlu0 %1497
      %1499 = vrot.lane.b32.xlu0 %v717, 24
      %v1500 = vpop.permute.xlu0 %1499
      %1501 = vrot.lane.b32.xlu0 %v718, 24
      %v1502 = vpop.permute.xlu0 %1501
      %1503 = vrot.lane.b32.xlu0 %v719, 24
      %v1504 = vpop.permute.xlu0 %1503
      %1505 = vrot.lane.b32.xlu0 %v720, 24
      %v1506 = vpop.permute.xlu0 %1505
      %1507 = vrot.lane.b32.xlu0 %v721, 24
      %v1508 = vpop.permute.xlu0 %1507
      %1509 = vrot.lane.b32.xlu0 %v722, 24
      %v1510 = vpop.permute.xlu0 %1509
      %1511 = vrot.lane.b32.xlu0 %v723, 24
      %v1512 = vpop.permute.xlu0 %1511
      %1513 = vrot.lane.b32.xlu0 %v724, 24
      %v1514 = vpop.permute.xlu0 %1513
      %1515 = vrot.lane.b32.xlu0 %v725, 24
      %v1516 = vpop.permute.xlu0 %1515
      %1517 = vrot.lane.b32.xlu0 %v726, 24
      %v1518 = vpop.permute.xlu0 %1517
      %1519 = vrot.lane.b32.xlu0 %v727, 24
      %v1520 = vpop.permute.xlu0 %1519
      %1521 = vrot.lane.b32.xlu0 %v728, 24
      %v1522 = vpop.permute.xlu0 %1521
      %1523 = vrot.lane.b32.xlu0 %v729, 24
      %v1524 = vpop.permute.xlu0 %1523
      %1525 = vrot.lane.b32.xlu0 %v730, 24
      %v1526 = vpop.permute.xlu0 %1525
      %1527 = vrot.lane.b32.xlu0 %v731, 24
      %v1528 = vpop.permute.xlu0 %1527
      %1529 = vrot.lane.b32.xlu0 %v732, 24
      %v1530 = vpop.permute.xlu0 %1529
      %1531 = vrot.lane.b32.xlu0 %v733, 24
      %v1532 = vpop.permute.xlu0 %1531
      %1533 = vrot.lane.b32.xlu0 %v734, 24
      %v1534 = vpop.permute.xlu0 %1533
      %1599 = vrot.lane.b32.xlu0 %v735, 28
      %v1600 = vpop.permute.xlu0 %1599
      %1601 = vrot.lane.b32.xlu0 %v736, 28
      %v1602 = vpop.permute.xlu0 %1601
      %1603 = vrot.lane.b32.xlu0 %v737, 28
      %v1604 = vpop.permute.xlu0 %1603
      %1605 = vrot.lane.b32.xlu0 %v738, 28
      %v1606 = vpop.permute.xlu0 %1605
      %1607 = vrot.lane.b32.xlu0 %v739, 28
      %v1608 = vpop.permute.xlu0 %1607
      %1609 = vrot.lane.b32.xlu0 %v740, 28
      %v1610 = vpop.permute.xlu0 %1609
      %1611 = vrot.lane.b32.xlu0 %v741, 28
      %v1612 = vpop.permute.xlu0 %1611
      %1613 = vrot.lane.b32.xlu0 %v742, 28
      %v1614 = vpop.permute.xlu0 %1613
      %1615 = vrot.lane.b32.xlu0 %v743, 28
      %v1616 = vpop.permute.xlu0 %1615
      %1617 = vrot.lane.b32.xlu0 %v744, 28
      %v1618 = vpop.permute.xlu0 %1617
      %1619 = vrot.lane.b32.xlu0 %v745, 28
      %v1620 = vpop.permute.xlu0 %1619
      %1621 = vrot.lane.b32.xlu0 %v746, 28
      %v1622 = vpop.permute.xlu0 %1621
      %1623 = vrot.lane.b32.xlu0 %v747, 28
      %v1624 = vpop.permute.xlu0 %1623
      %1625 = vrot.lane.b32.xlu0 %v748, 28
      %v1626 = vpop.permute.xlu0 %1625
      %1627 = vrot.lane.b32.xlu0 %v749, 28
      %v1628 = vpop.permute.xlu0 %1627
      %1629 = vrot.lane.b32.xlu0 %v750, 28
      %v1630 = vpop.permute.xlu0 %1629
      %1631 = vrot.lane.b32.xlu0 %v751, 28
      %v1632 = vpop.permute.xlu0 %1631
      %1633 = vrot.lane.b32.xlu0 %v752, 28
      %v1634 = vpop.permute.xlu0 %1633
      %1635 = vrot.lane.b32.xlu0 %v753, 28
      %v1636 = vpop.permute.xlu0 %1635
      %1637 = vrot.lane.b32.xlu0 %v754, 28
      %v1638 = vpop.permute.xlu0 %1637
      %1639 = vrot.lane.b32.xlu0 %v755, 28
      %v1640 = vpop.permute.xlu0 %1639
      %1641 = vrot.lane.b32.xlu0 %v756, 28
      %v1642 = vpop.permute.xlu0 %1641
      %1643 = vrot.lane.b32.xlu0 %v757, 28
      %v1644 = vpop.permute.xlu0 %1643
      %1645 = vrot.lane.b32.xlu0 %v758, 28
      %v1646 = vpop.permute.xlu0 %1645
      %1647 = vrot.lane.b32.xlu0 %v759, 28
      %v1648 = vpop.permute.xlu0 %1647
      %1649 = vrot.lane.b32.xlu0 %v760, 28
      %v1650 = vpop.permute.xlu0 %1649
      %1651 = vrot.lane.b32.xlu0 %v761, 28
      %v1652 = vpop.permute.xlu0 %1651
      %1653 = vrot.lane.b32.xlu0 %v762, 28
      %v1654 = vpop.permute.xlu0 %1653
      %1655 = vrot.lane.b32.xlu0 %v763, 28
      %v1656 = vpop.permute.xlu0 %1655
      %1657 = vrot.lane.b32.xlu0 %v764, 28
      %v1658 = vpop.permute.xlu0 %1657
      %1659 = vrot.lane.b32.xlu0 %v765, 28
      %v1660 = vpop.permute.xlu0 %1659
      %1661 = vrot.lane.b32.xlu0 %v766, 28
      %v1662 = vpop.permute.xlu0 %1661
      %1727 = vrot.lane.b32.xlu0 %v767, 32
      %v1728 = vpop.permute.xlu0 %1727
      %1729 = vrot.lane.b32.xlu0 %v768, 32
      %v1730 = vpop.permute.xlu0 %1729
      %1731 = vrot.lane.b32.xlu0 %v769, 32
      %v1732 = vpop.permute.xlu0 %1731
      %1733 = vrot.lane.b32.xlu0 %v770, 32
      %v1734 = vpop.permute.xlu0 %1733
      %1735 = vrot.lane.b32.xlu0 %v771, 32
      %v1736 = vpop.permute.xlu0 %1735
      %1737 = vrot.lane.b32.xlu0 %v772, 32
      %v1738 = vpop.permute.xlu0 %1737
      %1739 = vrot.lane.b32.xlu0 %v773, 32
      %v1740 = vpop.permute.xlu0 %1739
      %1741 = vrot.lane.b32.xlu0 %v774, 32
      %v1742 = vpop.permute.xlu0 %1741
      %1743 = vrot.lane.b32.xlu0 %v775, 32
      %v1744 = vpop.permute.xlu0 %1743
      %1745 = vrot.lane.b32.xlu0 %v776, 32
      %v1746 = vpop.permute.xlu0 %1745
      %1747 = vrot.lane.b32.xlu0 %v777, 32
      %v1748 = vpop.permute.xlu0 %1747
      %1749 = vrot.lane.b32.xlu0 %v778, 32
      %v1750 = vpop.permute.xlu0 %1749
      %1751 = vrot.lane.b32.xlu0 %v779, 32
      %v1752 = vpop.permute.xlu0 %1751
      %1753 = vrot.lane.b32.xlu0 %v780, 32
      %v1754 = vpop.permute.xlu0 %1753
      %1755 = vrot.lane.b32.xlu0 %v781, 32
      %v1756 = vpop.permute.xlu0 %1755
      %1757 = vrot.lane.b32.xlu0 %v782, 32
      %v1758 = vpop.permute.xlu0 %1757
      %1759 = vrot.lane.b32.xlu0 %v783, 32
      %v1760 = vpop.permute.xlu0 %1759
      %1761 = vrot.lane.b32.xlu0 %v784, 32
      %v1762 = vpop.permute.xlu0 %1761
      %1763 = vrot.lane.b32.xlu0 %v785, 32
      %v1764 = vpop.permute.xlu0 %1763
      %1765 = vrot.lane.b32.xlu0 %v786, 32
      %v1766 = vpop.permute.xlu0 %1765
      %1767 = vrot.lane.b32.xlu0 %v787, 32
      %v1768 = vpop.permute.xlu0 %1767
      %1769 = vrot.lane.b32.xlu0 %v788, 32
      %v1770 = vpop.permute.xlu0 %1769
      %1771 = vrot.lane.b32.xlu0 %v789, 32
      %v1772 = vpop.permute.xlu0 %1771
      %1773 = vrot.lane.b32.xlu0 %v790, 32
      %v1774 = vpop.permute.xlu0 %1773
      %1775 = vrot.lane.b32.xlu0 %v791, 32
      %v1776 = vpop.permute.xlu0 %1775
      %1777 = vrot.lane.b32.xlu0 %v792, 32
      %v1778 = vpop.permute.xlu0 %1777
      %1779 = vrot.lane.b32.xlu0 %v793, 32
      %v1780 = vpop.permute.xlu0 %1779
      %1781 = vrot.lane.b32.xlu0 %v794, 32
      %v1782 = vpop.permute.xlu0 %1781
      %1783 = vrot.lane.b32.xlu0 %v795, 32
      %v1784 = vpop.permute.xlu0 %1783
      %1785 = vrot.lane.b32.xlu0 %v796, 32
      %v1786 = vpop.permute.xlu0 %1785
      %1787 = vrot.lane.b32.xlu0 %v797, 32
      %v1788 = vpop.permute.xlu0 %1787
      %1789 = vrot.lane.b32.xlu0 %v798, 32
      %v1790 = vpop.permute.xlu0 %1789
      %v1823 = vsel %vm477, %v510, %v832
      %v1824 = vsel %vm477, %v511, %v834
      %v1825 = vsel %vm477, %v512, %v836
      %v1826 = vsel %vm477, %v513, %v838
      %v1827 = vsel %vm477, %v514, %v840
      %v1828 = vsel %vm477, %v515, %v842
      %v1829 = vsel %vm477, %v516, %v844
      %v1830 = vsel %vm477, %v517, %v846
      %v1831 = vsel %vm477, %v518, %v848
      %v1832 = vsel %vm477, %v519, %v850
      %v1833 = vsel %vm477, %v520, %v852
      %v1834 = vsel %vm477, %v521, %v854
      %v1835 = vsel %vm477, %v522, %v856
      %v1836 = vsel %vm477, %v523, %v858
      %v1837 = vsel %vm477, %v524, %v860
      %v1838 = vsel %vm477, %v525, %v862
      %v1839 = vsel %vm477, %v526, %v864
      %v1840 = vsel %vm477, %v527, %v866
      %v1841 = vsel %vm477, %v528, %v868
      %v1842 = vsel %vm477, %v529, %v870
      %v1843 = vsel %vm477, %v530, %v872
      %v1844 = vsel %vm477, %v531, %v874
      %v1845 = vsel %vm477, %v532, %v876
      %v1846 = vsel %vm477, %v533, %v878
      %v1847 = vsel %vm477, %v534, %v880
      %v1848 = vsel %vm477, %v535, %v882
      %v1849 = vsel %vm477, %v536, %v884
      %v1850 = vsel %vm477, %v537, %v886
      %v1851 = vsel %vm477, %v538, %v888
      %v1852 = vsel %vm477, %v539, %v890
      %v1853 = vsel %vm477, %v540, %v892
      %v1854 = vsel %vm477, %v541, %v894
      %vm1855 = vcmask 64512
      %v1856 = vsel %vm1855, %v1823, %v960
      %v1857 = vsel %vm1855, %v1824, %v962
      %v1858 = vsel %vm1855, %v1825, %v964
      %v1859 = vsel %vm1855, %v1826, %v966
      %v1860 = vsel %vm1855, %v1827, %v968
      %v1861 = vsel %vm1855, %v1828, %v970
      %v1862 = vsel %vm1855, %v1829, %v972
      %v1863 = vsel %vm1855, %v1830, %v974
      %v1864 = vsel %vm1855, %v1831, %v976
      %v1865 = vsel %vm1855, %v1832, %v978
      %v1866 = vsel %vm1855, %v1833, %v980
      %v1867 = vsel %vm1855, %v1834, %v982
      %v1868 = vsel %vm1855, %v1835, %v984
      %v1869 = vsel %vm1855, %v1836, %v986
      %v1870 = vsel %vm1855, %v1837, %v988
      %v1871 = vsel %vm1855, %v1838, %v990
      %v1872 = vsel %vm1855, %v1839, %v992
      %v1873 = vsel %vm1855, %v1840, %v994
      %v1874 = vsel %vm1855, %v1841, %v996
      %v1875 = vsel %vm1855, %v1842, %v998
      %v1876 = vsel %vm1855, %v1843, %v1000
      %v1877 = vsel %vm1855, %v1844, %v1002
      %v1878 = vsel %vm1855, %v1845, %v1004
      %v1879 = vsel %vm1855, %v1846, %v1006
      %v1880 = vsel %vm1855, %v1847, %v1008
      %v1881 = vsel %vm1855, %v1848, %v1010
      %v1882 = vsel %vm1855, %v1849, %v1012
      %v1883 = vsel %vm1855, %v1850, %v1014
      %v1884 = vsel %vm1855, %v1851, %v1016
      %v1885 = vsel %vm1855, %v1852, %v1018
      %v1886 = vsel %vm1855, %v1853, %v1020
      %v1887 = vsel %vm1855, %v1854, %v1022
      %vm1888 = vcmask 97280
      %v1889 = vsel %vm1888, %v1856, %v1088
      %v1890 = vsel %vm1888, %v1857, %v1090
      %v1891 = vsel %vm1888, %v1858, %v1092
      %v1892 = vsel %vm1888, %v1859, %v1094
      %v1893 = vsel %vm1888, %v1860, %v1096
      %v1894 = vsel %vm1888, %v1861, %v1098
      %v1895 = vsel %vm1888, %v1862, %v1100
      %v1896 = vsel %vm1888, %v1863, %v1102
      %v1897 = vsel %vm1888, %v1864, %v1104
      %v1898 = vsel %vm1888, %v1865, %v1106
      %v1899 = vsel %vm1888, %v1866, %v1108
      %v1900 = vsel %vm1888, %v1867, %v1110
      %v1901 = vsel %vm1888, %v1868, %v1112
      %v1902 = vsel %vm1888, %v1869, %v1114
      %v1903 = vsel %vm1888, %v1870, %v1116
      %v1904 = vsel %vm1888, %v1871, %v1118
      %v1905 = vsel %vm1888, %v1872, %v1120
      %v1906 = vsel %vm1888, %v1873, %v1122
      %v1907 = vsel %vm1888, %v1874, %v1124
      %v1908 = vsel %vm1888, %v1875, %v1126
      %v1909 = vsel %vm1888, %v1876, %v1128
      %v1910 = vsel %vm1888, %v1877, %v1130
      %v1911 = vsel %vm1888, %v1878, %v1132
      %v1912 = vsel %vm1888, %v1879, %v1134
      %v1913 = vsel %vm1888, %v1880, %v1136
      %v1914 = vsel %vm1888, %v1881, %v1138
      %v1915 = vsel %vm1888, %v1882, %v1140
      %v1916 = vsel %vm1888, %v1883, %v1142
      %v1917 = vsel %vm1888, %v1884, %v1144
      %v1918 = vsel %vm1888, %v1885, %v1146
      %v1919 = vsel %vm1888, %v1886, %v1148
      %v1920 = vsel %vm1888, %v1887, %v1150
      %vm1921 = vcmask 130048
      %v1922 = vsel %vm1921, %v1889, %v1216
      %v1923 = vsel %vm1921, %v1890, %v1218
      %v1924 = vsel %vm1921, %v1891, %v1220
      %v1925 = vsel %vm1921, %v1892, %v1222
      %v1926 = vsel %vm1921, %v1893, %v1224
      %v1927 = vsel %vm1921, %v1894, %v1226
      %v1928 = vsel %vm1921, %v1895, %v1228
      %v1929 = vsel %vm1921, %v1896, %v1230
      %v1930 = vsel %vm1921, %v1897, %v1232
      %v1931 = vsel %vm1921, %v1898, %v1234
      %v1932 = vsel %vm1921, %v1899, %v1236
      %v1933 = vsel %vm1921, %v1900, %v1238
      %v1934 = vsel %vm1921, %v1901, %v1240
      %v1935 = vsel %vm1921, %v1902, %v1242
      %v1936 = vsel %vm1921, %v1903, %v1244
      %v1937 = vsel %vm1921, %v1904, %v1246
      %v1938 = vsel %vm1921, %v1905, %v1248
      %v1939 = vsel %vm1921, %v1906, %v1250
      %v1940 = vsel %vm1921, %v1907, %v1252
      %v1941 = vsel %vm1921, %v1908, %v1254
      %v1942 = vsel %vm1921, %v1909, %v1256
      %v1943 = vsel %vm1921, %v1910, %v1258
      %v1944 = vsel %vm1921, %v1911, %v1260
      %v1945 = vsel %vm1921, %v1912, %v1262
      %v1946 = vsel %vm1921, %v1913, %v1264
      %v1947 = vsel %vm1921, %v1914, %v1266
      %v1948 = vsel %vm1921, %v1915, %v1268
      %v1949 = vsel %vm1921, %v1916, %v1270
      %v1950 = vsel %vm1921, %v1917, %v1272
      %v1951 = vsel %vm1921, %v1918, %v1274
      %v1952 = vsel %vm1921, %v1919, %v1276
      %v1953 = vsel %vm1921, %v1920, %v1278
      %vm1954 = vcmask 162816
      %v1955 = vsel %vm1954, %v1922, %v1344
      %v1956 = vsel %vm1954, %v1923, %v1346
      %v1957 = vsel %vm1954, %v1924, %v1348
      %v1958 = vsel %vm1954, %v1925, %v1350
      %v1959 = vsel %vm1954, %v1926, %v1352
      %v1960 = vsel %vm1954, %v1927, %v1354
      %v1961 = vsel %vm1954, %v1928, %v1356
      %v1962 = vsel %vm1954, %v1929, %v1358
      %v1963 = vsel %vm1954, %v1930, %v1360
      %v1964 = vsel %vm1954, %v1931, %v1362
      %v1965 = vsel %vm1954, %v1932, %v1364
      %v1966 = vsel %vm1954, %v1933, %v1366
      %v1967 = vsel %vm1954, %v1934, %v1368
      %v1968 = vsel %vm1954, %v1935, %v1370
      %v1969 = vsel %vm1954, %v1936, %v1372
      %v1970 = vsel %vm1954, %v1937, %v1374
      %v1971 = vsel %vm1954, %v1938, %v1376
      %v1972 = vsel %vm1954, %v1939, %v1378
      %v1973 = vsel %vm1954, %v1940, %v1380
      %v1974 = vsel %vm1954, %v1941, %v1382
      %v1975 = vsel %vm1954, %v1942, %v1384
      %v1976 = vsel %vm1954, %v1943, %v1386
      %v1977 = vsel %vm1954, %v1944, %v1388
      %v1978 = vsel %vm1954, %v1945, %v1390
      %v1979 = vsel %vm1954, %v1946, %v1392
      %v1980 = vsel %vm1954, %v1947, %v1394
      %v1981 = vsel %vm1954, %v1948, %v1396
      %v1982 = vsel %vm1954, %v1949, %v1398
      %v1983 = vsel %vm1954, %v1950, %v1400
      %v1984 = vsel %vm1954, %v1951, %v1402
      %v1985 = vsel %vm1954, %v1952, %v1404
      %v1986 = vsel %vm1954, %v1953, %v1406
      %vm1987 = vcmask 195584
      %v1988 = vsel %vm1987, %v1955, %v1472
      %v1989 = vsel %vm1987, %v1956, %v1474
      %v1990 = vsel %vm1987, %v1957, %v1476
      %v1991 = vsel %vm1987, %v1958, %v1478
      %v1992 = vsel %vm1987, %v1959, %v1480
      %v1993 = vsel %vm1987, %v1960, %v1482
      %v1994 = vsel %vm1987, %v1961, %v1484
      %v1995 = vsel %vm1987, %v1962, %v1486
      %v1996 = vsel %vm1987, %v1963, %v1488
      %v1997 = vsel %vm1987, %v1964, %v1490
      %v1998 = vsel %vm1987, %v1965, %v1492
      %v1999 = vsel %vm1987, %v1966, %v1494
      %v2000 = vsel %vm1987, %v1967, %v1496
      %v2001 = vsel %vm1987, %v1968, %v1498
      %v2002 = vsel %vm1987, %v1969, %v1500
      %v2003 = vsel %vm1987, %v1970, %v1502
      %v2004 = vsel %vm1987, %v1971, %v1504
      %v2005 = vsel %vm1987, %v1972, %v1506
      %v2006 = vsel %vm1987, %v1973, %v1508
      %v2007 = vsel %vm1987, %v1974, %v1510
      %v2008 = vsel %vm1987, %v1975, %v1512
      %v2009 = vsel %vm1987, %v1976, %v1514
      %v2010 = vsel %vm1987, %v1977, %v1516
      %v2011 = vsel %vm1987, %v1978, %v1518
      %v2012 = vsel %vm1987, %v1979, %v1520
      %v2013 = vsel %vm1987, %v1980, %v1522
      %v2014 = vsel %vm1987, %v1981, %v1524
      %v2015 = vsel %vm1987, %v1982, %v1526
      %v2016 = vsel %vm1987, %v1983, %v1528
      %v2017 = vsel %vm1987, %v1984, %v1530
      %v2018 = vsel %vm1987, %v1985, %v1532
      %v2019 = vsel %vm1987, %v1986, %v1534
      %vm2020 = vcmask 228352
      %v2021 = vsel %vm2020, %v1988, %v1600
      %v2022 = vsel %vm2020, %v1989, %v1602
      %v2023 = vsel %vm2020, %v1990, %v1604
      %v2024 = vsel %vm2020, %v1991, %v1606
      %v2025 = vsel %vm2020, %v1992, %v1608
      %v2026 = vsel %vm2020, %v1993, %v1610
      %v2027 = vsel %vm2020, %v1994, %v1612
      %v2028 = vsel %vm2020, %v1995, %v1614
      %v2029 = vsel %vm2020, %v1996, %v1616
      %v2030 = vsel %vm2020, %v1997, %v1618
      %v2031 = vsel %vm2020, %v1998, %v1620
      %v2032 = vsel %vm2020, %v1999, %v1622
      %v2033 = vsel %vm2020, %v2000, %v1624
      %v2034 = vsel %vm2020, %v2001, %v1626
      %v2035 = vsel %vm2020, %v2002, %v1628
      %v2036 = vsel %vm2020, %v2003, %v1630
      %v2037 = vsel %vm2020, %v2004, %v1632
      %v2038 = vsel %vm2020, %v2005, %v1634
      %v2039 = vsel %vm2020, %v2006, %v1636
      %v2040 = vsel %vm2020, %v2007, %v1638
      %v2041 = vsel %vm2020, %v2008, %v1640
      %v2042 = vsel %vm2020, %v2009, %v1642
      %v2043 = vsel %vm2020, %v2010, %v1644
      %v2044 = vsel %vm2020, %v2011, %v1646
      %v2045 = vsel %vm2020, %v2012, %v1648
      %v2046 = vsel %vm2020, %v2013, %v1650
      %v2047 = vsel %vm2020, %v2014, %v1652
      %v2048 = vsel %vm2020, %v2015, %v1654
      %v2049 = vsel %vm2020, %v2016, %v1656
      %v2050 = vsel %vm2020, %v2017, %v1658
      %v2051 = vsel %vm2020, %v2018, %v1660
      %v2052 = vsel %vm2020, %v2019, %v1662
      %v2053 = vsel %vm388, %v2021, %v1728
      %v2054 = vsel %vm388, %v2022, %v1730
      %v2055 = vsel %vm388, %v2023, %v1732
      %v2056 = vsel %vm388, %v2024, %v1734
      %v2057 = vsel %vm388, %v2025, %v1736
      %v2058 = vsel %vm388, %v2026, %v1738
      %v2059 = vsel %vm388, %v2027, %v1740
      %v2060 = vsel %vm388, %v2028, %v1742
      %v2061 = vsel %vm388, %v2029, %v1744
      %v2062 = vsel %vm388, %v2030, %v1746
      %v2063 = vsel %vm388, %v2031, %v1748
      %v2064 = vsel %vm388, %v2032, %v1750
      %v2065 = vsel %vm388, %v2033, %v1752
      %v2066 = vsel %vm388, %v2034, %v1754
      %v2067 = vsel %vm388, %v2035, %v1756
      %v2068 = vsel %vm388, %v2036, %v1758
      %v2069 = vsel %vm388, %v2037, %v1760
      %v2070 = vsel %vm388, %v2038, %v1762
      %v2071 = vsel %vm388, %v2039, %v1764
      %v2072 = vsel %vm388, %v2040, %v1766
      %v2073 = vsel %vm388, %v2041, %v1768
      %v2074 = vsel %vm388, %v2042, %v1770
      %v2075 = vsel %vm388, %v2043, %v1772
      %v2076 = vsel %vm388, %v2044, %v1774
      %v2077 = vsel %vm388, %v2045, %v1776
      %v2078 = vsel %vm388, %v2046, %v1778
      %v2079 = vsel %vm388, %v2047, %v1780
      %v2080 = vsel %vm388, %v2048, %v1782
      %v2081 = vsel %vm388, %v2049, %v1784
      %v2082 = vsel %vm388, %v2050, %v1786
      %v2083 = vsel %vm388, %v2051, %v1788
      %v2084 = vsel %vm388, %v2052, %v1790
      %v2085 = vpack.c.bf16 %v2054, %v2053
      %v2086 = vpack.c.bf16 %v2056, %v2055
      %v2087 = vpack.c.bf16 %v2058, %v2057
      %v2088 = vpack.c.bf16 %v2060, %v2059
      %v2089 = vpack.c.bf16 %v2062, %v2061
      %v2090 = vpack.c.bf16 %v2064, %v2063
      %v2091 = vpack.c.bf16 %v2066, %v2065
      %v2092 = vpack.c.bf16 %v2068, %v2067
      %v2093 = vpack.c.bf16 %v2070, %v2069
      %v2094 = vpack.c.bf16 %v2072, %v2071
      %v2095 = vpack.c.bf16 %v2074, %v2073
      %v2096 = vpack.c.bf16 %v2076, %v2075
      %v2097 = vpack.c.bf16 %v2078, %v2077
      %v2098 = vpack.c.bf16 %v2080, %v2079
      %v2099 = vpack.c.bf16 %v2082, %v2081
      %v2100 = vpack.c.bf16 %v2084, %v2083
      %v2101 = vld [vmem:[%s1] sm:$0xf]
      %v2102 = vld [vmem:[%s1 + $0x4] sm:$0xf]
      %v2103 = vld [vmem:[%s1 + $0x8] sm:$0xf]
      %v2104 = vld [vmem:[%s1 + $0xc] sm:$0xf]
      %v2105 = vld [vmem:[%s1 + $0x10] sm:$0x3]
      %v2106 = vld [vmem:[%s6] sm:$0x1]
      %v2108 = vlaneseq
      %v2109 = vshrl.u32 %v2108, 7
      %v2110 = vsub.s32 0, %v2109
      %v2111 = vrot.slane %v2106, %v2110
      %v2118 = vunpack.c.l.b16 %v2101
      %v2119 = vunpack.c.l.b16 %v2102
      %v2120 = vunpack.c.l.b16 %v2103
      %v2121 = vunpack.c.l.b16 %v2104
      %v2122 = vunpack.c.l.b16 %v2105
      %v2123 = vpack.c.b16 %v2119, %v2118
      %v2124 = vpack.c.b16 %v2121, %v2120
      %v2125 = vpack.c.b16 %v2122, %v2122
      %vm2128 = vcmask 293888
      %v2130 = vsel %vm2128, %v2085, 0
      %v2133 = vsel %vm2128, %v2086, 0
      %v2136 = vsel %vm2128, %v2087, 0
      %v2139 = vsel %vm2128, %v2088, 0
      %v2142 = vsel %vm2128, %v2089, 0
      %v2145 = vsel %vm2128, %v2090, 0
      %v2148 = vsel %vm2128, %v2091, 0
      %v2151 = vsel %vm2128, %v2092, 0
      %v2154 = vsel %vm2128, %v2093, 0
      %v2157 = vsel %vm2128, %v2094, 0
      %v2160 = vsel %vm2128, %v2095, 0
      %v2163 = vsel %vm2128, %v2096, 0
      %v2166 = vsel %vm2128, %v2097, 0
      %v2169 = vsel %vm2128, %v2098, 0
      %v2172 = vsel %vm2128, %v2099, 0
      %v2175 = vsel %vm2128, %v2100, 0
      %vm2177 = vcmask 1041408
      %v2179 = vsel %vm2177, %v2125, 0
      %2181 = vmatprep.subr.bf16.mxu0 0
      %2182 = vmatpush1.bf16.msra.mxu0 %v2123
      %2183 = vmatprep.subr.bf16.mxu0 0
      %2184 = vmatpush1.bf16.msra.mxu0 %v2124
      %2185 = vmatprep.subr.bf16.mxu0 0
      %2186 = vmatpush1.bf16.msra.mxu0 %v2179
      %2187 = vmatprep.subr.bf16.mxu0 0
      %2188 = vmatpush1.bf16.msra.mxu0 0
      %2189 = vmatprep.subr.bf16.mxu0 0
      %2190 = vmatpush1.bf16.msra.mxu0 0
      %2191 = vmatprep.subr.bf16.mxu0 0
      %2192 = vmatpush1.bf16.msra.mxu0 0
      %2193 = vmatprep.subr.bf16.mxu0 0
      %2194 = vmatpush1.bf16.msra.mxu0 0
      %2195 = vmatprep.subr.bf16.mxu0 0
      %2196 = vmatpush1.bf16.msra.mxu0 0
      %2197 = vmatprep.subr.bf16.mxu0 0
      %2198 = vmatpush1.bf16.msra.mxu0 0
      %2199 = vmatprep.subr.bf16.mxu0 0
      %2200 = vmatpush1.bf16.msra.mxu0 0
      %2201 = vmatprep.subr.bf16.mxu0 0
      %2202 = vmatpush1.bf16.msra.mxu0 0
      %2203 = vmatprep.subr.bf16.mxu0 0
      %2204 = vmatpush1.bf16.msra.mxu0 0
      %2205 = vmatprep.subr.bf16.mxu0 0
      %2206 = vmatpush1.bf16.msra.mxu0 0
      %2207 = vmatprep.subr.bf16.mxu0 0
      %2208 = vmatpush1.bf16.msra.mxu0 0
      %2209 = vmatprep.subr.bf16.mxu0 0
      %2210 = vmatpush1.bf16.msra.mxu0 0
      %2211 = vmatprep.subr.bf16.mxu0 0
      %2212 = vmatpush1.bf16.msra.mxu0 0
      %2213 = vmatprep.mubr.bf16.mxu0 0
      %2214 = vmatmul.mubr.bf16.gmra.mrb[0].mxu0 %v2130
      %v2215 = vpop.f32.mrb[0].mxu0
      %v2216 = vadd.f32 %v2111, %v2215
      %v2217 = vpop.f32.mrb[0].mxu0
      %v2218 = vpop.f32.mrb[0].mxu0
      %v2219 = vadd.f32 %v2111, %v2218
      %v2220 = vpop.f32.mrb[0].mxu0
      %2221 = vmatprep.mubr.bf16.mxu0 0
      %2222 = vmatmul.mubr.bf16.gmra.mrb[0].mxu0 %v2133
      %v2223 = vpop.f32.mrb[0].mxu0
      %v2224 = vadd.f32 %v2111, %v2223
      %v2225 = vpop.f32.mrb[0].mxu0
      %v2226 = vpop.f32.mrb[0].mxu0
      %v2227 = vadd.f32 %v2111, %v2226
      %v2228 = vpop.f32.mrb[0].mxu0
      %2229 = vmatprep.mubr.bf16.mxu0 0
      %2230 = vmatmul.mubr.bf16.gmra.mrb[0].mxu0 %v2136
      %v2231 = vpop.f32.mrb[0].mxu0
      %v2232 = vadd.f32 %v2111, %v2231
      %v2233 = vpop.f32.mrb[0].mxu0
      %v2234 = vpop.f32.mrb[0].mxu0
      %v2235 = vadd.f32 %v2111, %v2234
      %v2236 = vpop.f32.mrb[0].mxu0
      %2237 = vmatprep.mubr.bf16.mxu0 0
      %2238 = vmatmul.mubr.bf16.gmra.mrb[0].mxu0 %v2139
      %v2239 = vpop.f32.mrb[0].mxu0
      %v2240 = vadd.f32 %v2111, %v2239
      %v2241 = vpop.f32.mrb[0].mxu0
      %v2242 = vpop.f32.mrb[0].mxu0
      %v2243 = vadd.f32 %v2111, %v2242
      %v2244 = vpop.f32.mrb[0].mxu0
      %2245 = vmatprep.mubr.bf16.mxu0 0
      %2246 = vmatmul.mubr.bf16.gmra.mrb[0].mxu0 %v2142
      %v2247 = vpop.f32.mrb[0].mxu0
      %v2248 = vadd.f32 %v2111, %v2247
      %v2249 = vpop.f32.mrb[0].mxu0
      %v2250 = vpop.f32.mrb[0].mxu0
      %v2251 = vadd.f32 %v2111, %v2250
      %v2252 = vpop.f32.mrb[0].mxu0
      %2253 = vmatprep.mubr.bf16.mxu0 0
      %2254 = vmatmul.mubr.bf16.gmra.mrb[0].mxu0 %v2145
      %v2255 = vpop.f32.mrb[0].mxu0
      %v2256 = vadd.f32 %v2111, %v2255
      %v2257 = vpop.f32.mrb[0].mxu0
      %v2258 = vpop.f32.mrb[0].mxu0
      %v2259 = vadd.f32 %v2111, %v2258
      %v2260 = vpop.f32.mrb[0].mxu0
      %2261 = vmatprep.mubr.bf16.mxu0 0
      %2262 = vmatmul.mubr.bf16.gmra.mrb[0].mxu0 %v2148
      %v2263 = vpop.f32.mrb[0].mxu0
      %v2264 = vadd.f32 %v2111, %v2263
      %v2265 = vpop.f32.mrb[0].mxu0
      %v2266 = vpop.f32.mrb[0].mxu0
      %v2267 = vadd.f32 %v2111, %v2266
      %v2268 = vpop.f32.mrb[0].mxu0
      %2269 = vmatprep.mubr.bf16.mxu0 0
      %2270 = vmatmul.mubr.bf16.gmra.mrb[0].mxu0 %v2151
      %v2271 = vpop.f32.mrb[0].mxu0
      %v2272 = vadd.f32 %v2111, %v2271
      %v2273 = vpop.f32.mrb[0].mxu0
      %v2274 = vpop.f32.mrb[0].mxu0
      %v2275 = vadd.f32 %v2111, %v2274
      %v2276 = vpop.f32.mrb[0].mxu0
      %2277 = vmatprep.mubr.bf16.mxu0 0
      %2278 = vmatmul.mubr.bf16.gmra.mrb[0].mxu0 %v2154
      %v2279 = vpop.f32.mrb[0].mxu0
      %v2280 = vadd.f32 %v2111, %v2279
      %v2281 = vpop.f32.mrb[0].mxu0
      %v2282 = vpop.f32.mrb[0].mxu0
      %v2283 = vadd.f32 %v2111, %v2282
      %v2284 = vpop.f32.mrb[0].mxu0
      %2285 = vmatprep.mubr.bf16.mxu0 0
      %2286 = vmatmul.mubr.bf16.gmra.mrb[0].mxu0 %v2157
      %v2287 = vpop.f32.mrb[0].mxu0
      %v2288 = vadd.f32 %v2111, %v2287
      %v2289 = vpop.f32.mrb[0].mxu0
      %v2290 = vpop.f32.mrb[0].mxu0
      %v2291 = vadd.f32 %v2111, %v2290
      %v2292 = vpop.f32.mrb[0].mxu0
      %2293 = vmatprep.mubr.bf16.mxu0 0
      %2294 = vmatmul.mubr.bf16.gmra.mrb[0].mxu0 %v2160
      %v2295 = vpop.f32.mrb[0].mxu0
      %v2296 = vadd.f32 %v2111, %v2295
      %v2297 = vpop.f32.mrb[0].mxu0
      %v2298 = vpop.f32.mrb[0].mxu0
      %v2299 = vadd.f32 %v2111, %v2298
      %v2300 = vpop.f32.mrb[0].mxu0
      %2301 = vmatprep.mubr.bf16.mxu0 0
      %2302 = vmatmul.mubr.bf16.gmra.mrb[0].mxu0 %v2163
      %v2303 = vpop.f32.mrb[0].mxu0
      %v2304 = vadd.f32 %v2111, %v2303
      %v2305 = vpop.f32.mrb[0].mxu0
      %v2306 = vpop.f32.mrb[0].mxu0
      %v2307 = vadd.f32 %v2111, %v2306
      %v2308 = vpop.f32.mrb[0].mxu0
      %2309 = vmatprep.mubr.bf16.mxu0 0
      %2310 = vmatmul.mubr.bf16.gmra.mrb[0].mxu0 %v2166
      %v2311 = vpop.f32.mrb[0].mxu0
      %v2312 = vadd.f32 %v2111, %v2311
      %v2313 = vpop.f32.mrb[0].mxu0
      %v2314 = vpop.f32.mrb[0].mxu0
      %v2315 = vadd.f32 %v2111, %v2314
      %v2316 = vpop.f32.mrb[0].mxu0
      %2317 = vmatprep.mubr.bf16.mxu0 0
      %2318 = vmatmul.mubr.bf16.gmra.mrb[0].mxu0 %v2169
      %v2319 = vpop.f32.mrb[0].mxu0
      %v2320 = vadd.f32 %v2111, %v2319
      %v2321 = vpop.f32.mrb[0].mxu0
      %v2322 = vpop.f32.mrb[0].mxu0
      %v2323 = vadd.f32 %v2111, %v2322
      %v2324 = vpop.f32.mrb[0].mxu0
      %2325 = vmatprep.mubr.bf16.mxu0 0
      %2326 = vmatmul.mubr.bf16.gmra.mrb[0].mxu0 %v2172
      %v2327 = vpop.f32.mrb[0].mxu0
      %v2328 = vadd.f32 %v2111, %v2327
      %v2329 = vpop.f32.mrb[0].mxu0
      %v2330 = vpop.f32.mrb[0].mxu0
      %v2331 = vadd.f32 %v2111, %v2330
      %v2332 = vpop.f32.mrb[0].mxu0
      %2333 = vmatprep.mubr.bf16.mxu0 0
      %2334 = vmatmul.mubr.bf16.gmra.mrb[0].mxu0 %v2175
      %v2335 = vpop.f32.mrb[0].mxu0
      %v2336 = vadd.f32 %v2111, %v2335
      %v2337 = vpop.f32.mrb[0].mxu0
      %v2338 = vpop.f32.mrb[0].mxu0
      %v2339 = vadd.f32 %v2111, %v2338
      %v2340 = vpop.f32.mrb[0].mxu0
      %2341 = vdwg.mxu0
      %v2342 = vmax.f32 %v2216, 0.0
      %v2343 = vmax.f32 %v2219, 0.0
      %v2344 = vmax.f32 %v2224, 0.0
      %v2345 = vmax.f32 %v2227, 0.0
      %v2346 = vmax.f32 %v2232, 0.0
      %v2347 = vmax.f32 %v2235, 0.0
      %v2348 = vmax.f32 %v2240, 0.0
      %v2349 = vmax.f32 %v2243, 0.0
      %v2350 = vmax.f32 %v2248, 0.0
      %v2351 = vmax.f32 %v2251, 0.0
      %v2352 = vmax.f32 %v2256, 0.0
      %v2353 = vmax.f32 %v2259, 0.0
      %v2354 = vmax.f32 %v2264, 0.0
      %v2355 = vmax.f32 %v2267, 0.0
      %v2356 = vmax.f32 %v2272, 0.0
      %v2357 = vmax.f32 %v2275, 0.0
      %v2358 = vmax.f32 %v2280, 0.0
      %v2359 = vmax.f32 %v2283, 0.0
      %v2360 = vmax.f32 %v2288, 0.0
      %v2361 = vmax.f32 %v2291, 0.0
      %v2362 = vmax.f32 %v2296, 0.0
      %v2363 = vmax.f32 %v2299, 0.0
      %v2364 = vmax.f32 %v2304, 0.0
      %v2365 = vmax.f32 %v2307, 0.0
      %v2366 = vmax.f32 %v2312, 0.0
      %v2367 = vmax.f32 %v2315, 0.0
      %v2368 = vmax.f32 %v2320, 0.0
      %v2369 = vmax.f32 %v2323, 0.0
      %v2370 = vmax.f32 %v2328, 0.0
      %v2371 = vmax.f32 %v2331, 0.0
      %v2372 = vmax.f32 %v2336, 0.0
      %v2373 = vmax.f32 %v2339, 0.0
      %2374 = vst.msk [vmem:[%s476 + $0x1] sm:$0xff] %vm388, %v2342
      %2375 = vst.msk [vmem:[%s476 + $0x9] sm:$0xff] %vm388, %v2343
      %2376 = vst.msk [vmem:[%s476 + $0x19] sm:$0xff] %vm388, %v2344
      %2377 = vst.msk [vmem:[%s476 + $0x21] sm:$0xff] %vm388, %v2345
      %2378 = vst.msk [vmem:[%s476 + $0x31] sm:$0xff] %vm388, %v2346
      %2379 = vst.msk [vmem:[%s476 + $0x39] sm:$0xff] %vm388, %v2347
      %2380 = vst.msk [vmem:[%s476 + $0x49] sm:$0xff] %vm388, %v2348
      %2381 = vst.msk [vmem:[%s476 + $0x51] sm:$0xff] %vm388, %v2349
      %2382 = vst.msk [vmem:[%s476 + $0x61] sm:$0xff] %vm388, %v2350
      %2383 = vst.msk [vmem:[%s476 + $0x69] sm:$0xff] %vm388, %v2351
      %2384 = vst.msk [vmem:[%s476 + $0x79] sm:$0xff] %vm388, %v2352
      %2385 = vst.msk [vmem:[%s476 + $0x81] sm:$0xff] %vm388, %v2353
      %2386 = vst.msk [vmem:[%s476 + $0x91] sm:$0xff] %vm388, %v2354
      %2387 = vst.msk [vmem:[%s476 + $0x99] sm:$0xff] %vm388, %v2355
      %2388 = vst.msk [vmem:[%s476 + $0xa9] sm:$0xff] %vm388, %v2356
      %2389 = vst.msk [vmem:[%s476 + $0xb1] sm:$0xff] %vm388, %v2357
      %2390 = vst.msk [vmem:[%s476 + $0xc1] sm:$0xff] %vm388, %v2358
      %2391 = vst.msk [vmem:[%s476 + $0xc9] sm:$0xff] %vm388, %v2359
      %2392 = vst.msk [vmem:[%s476 + $0xd9] sm:$0xff] %vm388, %v2360
      %2393 = vst.msk [vmem:[%s476 + $0xe1] sm:$0xff] %vm388, %v2361
      %2394 = vst.msk [vmem:[%s476 + $0xf1] sm:$0xff] %vm388, %v2362
      %2395 = vst.msk [vmem:[%s476 + $0xf9] sm:$0xff] %vm388, %v2363
      %2396 = vst.msk [vmem:[%s476 + $0x109] sm:$0xff] %vm388, %v2364
      %2397 = vst.msk [vmem:[%s476 + $0x111] sm:$0xff] %vm388, %v2365
      %2398 = vst.msk [vmem:[%s476 + $0x121] sm:$0xff] %vm388, %v2366
      %2399 = vst.msk [vmem:[%s476 + $0x129] sm:$0xff] %vm388, %v2367
      %2400 = vst.msk [vmem:[%s476 + $0x139] sm:$0xff] %vm388, %v2368
      %2401 = vst.msk [vmem:[%s476 + $0x141] sm:$0xff] %vm388, %v2369
      %2402 = vst.msk [vmem:[%s476 + $0x151] sm:$0xff] %vm388, %v2370
      %2403 = vst.msk [vmem:[%s476 + $0x159] sm:$0xff] %vm388, %v2371
      %2404 = vst.msk [vmem:[%s476 + $0x169] sm:$0xff] %vm388, %v2372
      %2405 = vst.msk [vmem:[%s476 + $0x171] sm:$0xff] %vm388, %v2373
      %v2406 = vld [vmem:[#allocation2] sm:$0xff]
      %v2407 = vld [vmem:[#allocation2 + $0x8] sm:$0xff]
      %v2408 = vld [vmem:[#allocation2 + $0x18] sm:$0xff]
      %v2409 = vld [vmem:[#allocation2 + $0x20] sm:$0xff]
      %v2410 = vld [vmem:[#allocation2 + $0x30] sm:$0xff]
      %v2411 = vld [vmem:[#allocation2 + $0x38] sm:$0xff]
      %v2412 = vld [vmem:[#allocation2 + $0x48] sm:$0xff]
      %v2413 = vld [vmem:[#allocation2 + $0x50] sm:$0xff]
      %v2414 = vld [vmem:[#allocation2 + $0x60] sm:$0xff]
      %v2415 = vld [vmem:[#allocation2 + $0x68] sm:$0xff]
      %v2416 = vld [vmem:[#allocation2 + $0x78] sm:$0xff]
      %v2417 = vld [vmem:[#allocation2 + $0x80] sm:$0xff]
      %v2418 = vld [vmem:[#allocation2 + $0x90] sm:$0xff]
      %v2419 = vld [vmem:[#allocation2 + $0x98] sm:$0xff]
      %v2420 = vld [vmem:[#allocation2 + $0xa8] sm:$0xff]
      %v2421 = vld [vmem:[#allocation2 + $0xb0] sm:$0xff]
      %v2422 = vld [vmem:[#allocation2 + $0xc0] sm:$0xff]
      %v2423 = vld [vmem:[#allocation2 + $0xc8] sm:$0xff]
      %v2424 = vld [vmem:[#allocation2 + $0xd8] sm:$0xff]
      %v2425 = vld [vmem:[#allocation2 + $0xe0] sm:$0xff]
      %v2426 = vld [vmem:[#allocation2 + $0xf0] sm:$0xff]
      %v2427 = vld [vmem:[#allocation2 + $0xf8] sm:$0xff]
      %v2428 = vld [vmem:[#allocation2 + $0x108] sm:$0xff]
      %v2429 = vld [vmem:[#allocation2 + $0x110] sm:$0xff]
      %v2430 = vld [vmem:[#allocation2 + $0x120] sm:$0xff]
      %v2431 = vld [vmem:[#allocation2 + $0x128] sm:$0xff]
      %v2432 = vld [vmem:[#allocation2 + $0x138] sm:$0xff]
      %v2433 = vld [vmem:[#allocation2 + $0x140] sm:$0xff]
      %v2434 = vld [vmem:[#allocation2 + $0x150] sm:$0xff]
      %v2435 = vld [vmem:[#allocation2 + $0x158] sm:$0xff]
      %v2436 = vld [vmem:[#allocation2 + $0x168] sm:$0xff]
      %v2437 = vld [vmem:[#allocation2 + $0x170] sm:$0xff]
      %v2438 = vld [vmem:[#allocation2 + $0x1] sm:$0xff]
      %v2439 = vld [vmem:[#allocation2 + $0x9] sm:$0xff]
      %v2440 = vld [vmem:[#allocation2 + $0x19] sm:$0xff]
      %v2441 = vld [vmem:[#allocation2 + $0x21] sm:$0xff]
      %v2442 = vld [vmem:[#allocation2 + $0x31] sm:$0xff]
      %v2443 = vld [vmem:[#allocation2 + $0x39] sm:$0xff]
      %v2444 = vld [vmem:[#allocation2 + $0x49] sm:$0xff]
      %v2445 = vld [vmem:[#allocation2 + $0x51] sm:$0xff]
      %v2446 = vld [vmem:[#allocation2 + $0x61] sm:$0xff]
      %v2447 = vld [vmem:[#allocation2 + $0x69] sm:$0xff]
      %v2448 = vld [vmem:[#allocation2 + $0x79] sm:$0xff]
      %v2449 = vld [vmem:[#allocation2 + $0x81] sm:$0xff]
      %v2450 = vld [vmem:[#allocation2 + $0x91] sm:$0xff]
      %v2451 = vld [vmem:[#allocation2 + $0x99] sm:$0xff]
      %v2452 = vld [vmem:[#allocation2 + $0xa9] sm:$0xff]
      %v2453 = vld [vmem:[#allocation2 + $0xb1] sm:$0xff]
      %v2454 = vld [vmem:[#allocation2 + $0xc1] sm:$0xff]
      %v2455 = vld [vmem:[#allocation2 + $0xc9] sm:$0xff]
      %v2456 = vld [vmem:[#allocation2 + $0xd9] sm:$0xff]
      %v2457 = vld [vmem:[#allocation2 + $0xe1] sm:$0xff]
      %v2458 = vld [vmem:[#allocation2 + $0xf1] sm:$0xff]
      %v2459 = vld [vmem:[#allocation2 + $0xf9] sm:$0xff]
      %v2460 = vld [vmem:[#allocation2 + $0x109] sm:$0xff]
      %v2461 = vld [vmem:[#allocation2 + $0x111] sm:$0xff]
      %v2462 = vld [vmem:[#allocation2 + $0x121] sm:$0xff]
      %v2463 = vld [vmem:[#allocation2 + $0x129] sm:$0xff]
      %v2464 = vld [vmem:[#allocation2 + $0x139] sm:$0xff]
      %v2465 = vld [vmem:[#allocation2 + $0x141] sm:$0xff]
      %v2466 = vld [vmem:[#allocation2 + $0x151] sm:$0xff]
      %v2467 = vld [vmem:[#allocation2 + $0x159] sm:$0xff]
      %v2468 = vld [vmem:[#allocation2 + $0x169] sm:$0xff]
      %v2469 = vld [vmem:[#allocation2 + $0x171] sm:$0xff]
      %v2470 = vld [vmem:[#allocation2 + $0x2] sm:$0xff]
      %v2471 = vld [vmem:[#allocation2 + $0xa] sm:$0xff]
      %v2472 = vld [vmem:[#allocation2 + $0x1a] sm:$0xff]
      %v2473 = vld [vmem:[#allocation2 + $0x22] sm:$0xff]
      %v2474 = vld [vmem:[#allocation2 + $0x32] sm:$0xff]
      %v2475 = vld [vmem:[#allocation2 + $0x3a] sm:$0xff]
      %v2476 = vld [vmem:[#allocation2 + $0x4a] sm:$0xff]
      %v2477 = vld [vmem:[#allocation2 + $0x52] sm:$0xff]
      %v2478 = vld [vmem:[#allocation2 + $0x62] sm:$0xff]
      %v2479 = vld [vmem:[#allocation2 + $0x6a] sm:$0xff]
      %v2480 = vld [vmem:[#allocation2 + $0x7a] sm:$0xff]
      %v2481 = vld [vmem:[#allocation2 + $0x82] sm:$0xff]
      %v2482 = vld [vmem:[#allocation2 + $0x92] sm:$0xff]
      %v2483 = vld [vmem:[#allocation2 + $0x9a] sm:$0xff]
      %v2484 = vld [vmem:[#allocation2 + $0xaa] sm:$0xff]
      %v2485 = vld [vmem:[#allocation2 + $0xb2] sm:$0xff]
      %v2486 = vld [vmem:[#allocation2 + $0xc2] sm:$0xff]
      %v2487 = vld [vmem:[#allocation2 + $0xca] sm:$0xff]
      %v2488 = vld [vmem:[#allocation2 + $0xda] sm:$0xff]
      %v2489 = vld [vmem:[#allocation2 + $0xe2] sm:$0xff]
      %v2490 = vld [vmem:[#allocation2 + $0xf2] sm:$0xff]
      %v2491 = vld [vmem:[#allocation2 + $0xfa] sm:$0xff]
      %v2492 = vld [vmem:[#allocation2 + $0x10a] sm:$0xff]
      %v2493 = vld [vmem:[#allocation2 + $0x112] sm:$0xff]
      %v2494 = vld [vmem:[#allocation2 + $0x122] sm:$0xff]
      %v2495 = vld [vmem:[#allocation2 + $0x12a] sm:$0xff]
      %v2496 = vld [vmem:[#allocation2 + $0x13a] sm:$0xff]
      %v2497 = vld [vmem:[#allocation2 + $0x142] sm:$0xff]
      %v2498 = vld [vmem:[#allocation2 + $0x152] sm:$0xff]
      %v2499 = vld [vmem:[#allocation2 + $0x15a] sm:$0xff]
      %v2500 = vld [vmem:[#allocation2 + $0x16a] sm:$0xff]
      %v2501 = vld [vmem:[#allocation2 + $0x172] sm:$0xff]
      %v2502 = vld [vmem:[%s476] sm:$0xff]
      %v2503 = vld [vmem:[%s476 + $0x8] sm:$0xff]
      %v2504 = vld [vmem:[%s476 + $0x18] sm:$0xff]
      %v2505 = vld [vmem:[%s476 + $0x20] sm:$0xff]
      %v2506 = vld [vmem:[%s476 + $0x30] sm:$0xff]
      %v2507 = vld [vmem:[%s476 + $0x38] sm:$0xff]
      %v2508 = vld [vmem:[%s476 + $0x48] sm:$0xff]
      %v2509 = vld [vmem:[%s476 + $0x50] sm:$0xff]
      %v2510 = vld [vmem:[%s476 + $0x60] sm:$0xff]
      %v2511 = vld [vmem:[%s476 + $0x68] sm:$0xff]
      %v2512 = vld [vmem:[%s476 + $0x78] sm:$0xff]
      %v2513 = vld [vmem:[%s476 + $0x80] sm:$0xff]
      %v2514 = vld [vmem:[%s476 + $0x90] sm:$0xff]
      %v2515 = vld [vmem:[%s476 + $0x98] sm:$0xff]
      %v2516 = vld [vmem:[%s476 + $0xa8] sm:$0xff]
      %v2517 = vld [vmem:[%s476 + $0xb0] sm:$0xff]
      %v2518 = vld [vmem:[%s476 + $0xc0] sm:$0xff]
      %v2519 = vld [vmem:[%s476 + $0xc8] sm:$0xff]
      %v2520 = vld [vmem:[%s476 + $0xd8] sm:$0xff]
      %v2521 = vld [vmem:[%s476 + $0xe0] sm:$0xff]
      %v2522 = vld [vmem:[%s476 + $0xf0] sm:$0xff]
      %v2523 = vld [vmem:[%s476 + $0xf8] sm:$0xff]
      %v2524 = vld [vmem:[%s476 + $0x108] sm:$0xff]
      %v2525 = vld [vmem:[%s476 + $0x110] sm:$0xff]
      %v2526 = vld [vmem:[%s476 + $0x120] sm:$0xff]
      %v2527 = vld [vmem:[%s476 + $0x128] sm:$0xff]
      %v2528 = vld [vmem:[%s476 + $0x138] sm:$0xff]
      %v2529 = vld [vmem:[%s476 + $0x140] sm:$0xff]
      %v2530 = vld [vmem:[%s476 + $0x150] sm:$0xff]
      %v2531 = vld [vmem:[%s476 + $0x158] sm:$0xff]
      %v2532 = vld [vmem:[%s476 + $0x168] sm:$0xff]
      %v2533 = vld [vmem:[%s476 + $0x170] sm:$0xff]
      %v2534 = vld [vmem:[%s476 + $0x1] sm:$0xff]
      %v2535 = vld [vmem:[%s476 + $0x9] sm:$0xff]
      %v2536 = vld [vmem:[%s476 + $0x19] sm:$0xff]
      %v2537 = vld [vmem:[%s476 + $0x21] sm:$0xff]
      %v2538 = vld [vmem:[%s476 + $0x31] sm:$0xff]
      %v2539 = vld [vmem:[%s476 + $0x39] sm:$0xff]
      %v2540 = vld [vmem:[%s476 + $0x49] sm:$0xff]
      %v2541 = vld [vmem:[%s476 + $0x51] sm:$0xff]
      %v2542 = vld [vmem:[%s476 + $0x61] sm:$0xff]
      %v2543 = vld [vmem:[%s476 + $0x69] sm:$0xff]
      %v2544 = vld [vmem:[%s476 + $0x79] sm:$0xff]
      %v2545 = vld [vmem:[%s476 + $0x81] sm:$0xff]
      %v2546 = vld [vmem:[%s476 + $0x91] sm:$0xff]
      %v2547 = vld [vmem:[%s476 + $0x99] sm:$0xff]
      %v2548 = vld [vmem:[%s476 + $0xa9] sm:$0xff]
      %v2549 = vld [vmem:[%s476 + $0xb1] sm:$0xff]
      %v2550 = vld [vmem:[%s476 + $0xc1] sm:$0xff]
      %v2551 = vld [vmem:[%s476 + $0xc9] sm:$0xff]
      %v2552 = vld [vmem:[%s476 + $0xd9] sm:$0xff]
      %v2553 = vld [vmem:[%s476 + $0xe1] sm:$0xff]
      %v2554 = vld [vmem:[%s476 + $0xf1] sm:$0xff]
      %v2555 = vld [vmem:[%s476 + $0xf9] sm:$0xff]
      %v2556 = vld [vmem:[%s476 + $0x109] sm:$0xff]
      %v2557 = vld [vmem:[%s476 + $0x111] sm:$0xff]
      %v2558 = vld [vmem:[%s476 + $0x121] sm:$0xff]
      %v2559 = vld [vmem:[%s476 + $0x129] sm:$0xff]
      %v2560 = vld [vmem:[%s476 + $0x139] sm:$0xff]
      %v2561 = vld [vmem:[%s476 + $0x141] sm:$0xff]
      %v2562 = vld [vmem:[%s476 + $0x151] sm:$0xff]
      %v2563 = vld [vmem:[%s476 + $0x159] sm:$0xff]
      %v2564 = vld [vmem:[%s476 + $0x169] sm:$0xff]
      %v2565 = vld [vmem:[%s476 + $0x171] sm:$0xff]
      %v2566 = vld [vmem:[%s476 + $0x2] sm:$0xff]
      %v2567 = vld [vmem:[%s476 + $0xa] sm:$0xff]
      %v2568 = vld [vmem:[%s476 + $0x1a] sm:$0xff]
      %v2569 = vld [vmem:[%s476 + $0x22] sm:$0xff]
      %v2570 = vld [vmem:[%s476 + $0x32] sm:$0xff]
      %v2571 = vld [vmem:[%s476 + $0x3a] sm:$0xff]
      %v2572 = vld [vmem:[%s476 + $0x4a] sm:$0xff]
      %v2573 = vld [vmem:[%s476 + $0x52] sm:$0xff]
      %v2574 = vld [vmem:[%s476 + $0x62] sm:$0xff]
      %v2575 = vld [vmem:[%s476 + $0x6a] sm:$0xff]
      %v2576 = vld [vmem:[%s476 + $0x7a] sm:$0xff]
      %v2577 = vld [vmem:[%s476 + $0x82] sm:$0xff]
      %v2578 = vld [vmem:[%s476 + $0x92] sm:$0xff]
      %v2579 = vld [vmem:[%s476 + $0x9a] sm:$0xff]
      %v2580 = vld [vmem:[%s476 + $0xaa] sm:$0xff]
      %v2581 = vld [vmem:[%s476 + $0xb2] sm:$0xff]
      %v2582 = vld [vmem:[%s476 + $0xc2] sm:$0xff]
      %v2583 = vld [vmem:[%s476 + $0xca] sm:$0xff]
      %v2584 = vld [vmem:[%s476 + $0xda] sm:$0xff]
      %v2585 = vld [vmem:[%s476 + $0xe2] sm:$0xff]
      %v2586 = vld [vmem:[%s476 + $0xf2] sm:$0xff]
      %v2587 = vld [vmem:[%s476 + $0xfa] sm:$0xff]
      %v2588 = vld [vmem:[%s476 + $0x10a] sm:$0xff]
      %v2589 = vld [vmem:[%s476 + $0x112] sm:$0xff]
      %v2590 = vld [vmem:[%s476 + $0x122] sm:$0xff]
      %v2591 = vld [vmem:[%s476 + $0x12a] sm:$0xff]
      %v2592 = vld [vmem:[%s476 + $0x13a] sm:$0xff]
      %v2593 = vld [vmem:[%s476 + $0x142] sm:$0xff]
      %v2594 = vld [vmem:[%s476 + $0x152] sm:$0xff]
      %v2595 = vld [vmem:[%s476 + $0x15a] sm:$0xff]
      %v2596 = vld [vmem:[%s476 + $0x16a] sm:$0xff]
      %v2597 = vld [vmem:[%s476 + $0x172] sm:$0xff]
      %v2598 = vld [vmem:[%s702] sm:$0xff]
      %v2599 = vld [vmem:[%s702 + $0x8] sm:$0xff]
      %v2600 = vld [vmem:[%s702 + $0x18] sm:$0xff]
      %v2601 = vld [vmem:[%s702 + $0x20] sm:$0xff]
      %v2602 = vld [vmem:[%s702 + $0x30] sm:$0xff]
      %v2603 = vld [vmem:[%s702 + $0x38] sm:$0xff]
      %v2604 = vld [vmem:[%s702 + $0x48] sm:$0xff]
      %v2605 = vld [vmem:[%s702 + $0x50] sm:$0xff]
      %v2606 = vld [vmem:[%s702 + $0x60] sm:$0xff]
      %v2607 = vld [vmem:[%s702 + $0x68] sm:$0xff]
      %v2608 = vld [vmem:[%s702 + $0x78] sm:$0xff]
      %v2609 = vld [vmem:[%s702 + $0x80] sm:$0xff]
      %v2610 = vld [vmem:[%s702 + $0x90] sm:$0xff]
      %v2611 = vld [vmem:[%s702 + $0x98] sm:$0xff]
      %v2612 = vld [vmem:[%s702 + $0xa8] sm:$0xff]
      %v2613 = vld [vmem:[%s702 + $0xb0] sm:$0xff]
      %v2614 = vld [vmem:[%s702 + $0xc0] sm:$0xff]
      %v2615 = vld [vmem:[%s702 + $0xc8] sm:$0xff]
      %v2616 = vld [vmem:[%s702 + $0xd8] sm:$0xff]
      %v2617 = vld [vmem:[%s702 + $0xe0] sm:$0xff]
      %v2618 = vld [vmem:[%s702 + $0xf0] sm:$0xff]
      %v2619 = vld [vmem:[%s702 + $0xf8] sm:$0xff]
      %v2620 = vld [vmem:[%s702 + $0x108] sm:$0xff]
      %v2621 = vld [vmem:[%s702 + $0x110] sm:$0xff]
      %v2622 = vld [vmem:[%s702 + $0x120] sm:$0xff]
      %v2623 = vld [vmem:[%s702 + $0x128] sm:$0xff]
      %v2624 = vld [vmem:[%s702 + $0x138] sm:$0xff]
      %v2625 = vld [vmem:[%s702 + $0x140] sm:$0xff]
      %v2626 = vld [vmem:[%s702 + $0x150] sm:$0xff]
      %v2627 = vld [vmem:[%s702 + $0x158] sm:$0xff]
      %v2628 = vld [vmem:[%s702 + $0x168] sm:$0xff]
      %v2629 = vld [vmem:[%s702 + $0x170] sm:$0xff]
      %v2630 = vld [vmem:[%s702 + $0x1] sm:$0xff]
      %v2631 = vld [vmem:[%s702 + $0x9] sm:$0xff]
      %v2632 = vld [vmem:[%s702 + $0x19] sm:$0xff]
      %v2633 = vld [vmem:[%s702 + $0x21] sm:$0xff]
      %v2634 = vld [vmem:[%s702 + $0x31] sm:$0xff]
      %v2635 = vld [vmem:[%s702 + $0x39] sm:$0xff]
      %v2636 = vld [vmem:[%s702 + $0x49] sm:$0xff]
      %v2637 = vld [vmem:[%s702 + $0x51] sm:$0xff]
      %v2638 = vld [vmem:[%s702 + $0x61] sm:$0xff]
      %v2639 = vld [vmem:[%s702 + $0x69] sm:$0xff]
      %v2640 = vld [vmem:[%s702 + $0x79] sm:$0xff]
      %v2641 = vld [vmem:[%s702 + $0x81] sm:$0xff]
      %v2642 = vld [vmem:[%s702 + $0x91] sm:$0xff]
      %v2643 = vld [vmem:[%s702 + $0x99] sm:$0xff]
      %v2644 = vld [vmem:[%s702 + $0xa9] sm:$0xff]
      %v2645 = vld [vmem:[%s702 + $0xb1] sm:$0xff]
      %v2646 = vld [vmem:[%s702 + $0xc1] sm:$0xff]
      %v2647 = vld [vmem:[%s702 + $0xc9] sm:$0xff]
      %v2648 = vld [vmem:[%s702 + $0xd9] sm:$0xff]
      %v2649 = vld [vmem:[%s702 + $0xe1] sm:$0xff]
      %v2650 = vld [vmem:[%s702 + $0xf1] sm:$0xff]
      %v2651 = vld [vmem:[%s702 + $0xf9] sm:$0xff]
      %v2652 = vld [vmem:[%s702 + $0x109] sm:$0xff]
      %v2653 = vld [vmem:[%s702 + $0x111] sm:$0xff]
      %v2654 = vld [vmem:[%s702 + $0x121] sm:$0xff]
      %v2655 = vld [vmem:[%s702 + $0x129] sm:$0xff]
      %v2656 = vld [vmem:[%s702 + $0x139] sm:$0xff]
      %v2657 = vld [vmem:[%s702 + $0x141] sm:$0xff]
      %v2658 = vld [vmem:[%s702 + $0x151] sm:$0xff]
      %v2659 = vld [vmem:[%s702 + $0x159] sm:$0xff]
      %v2660 = vld [vmem:[%s702 + $0x169] sm:$0xff]
      %v2661 = vld [vmem:[%s702 + $0x171] sm:$0xff]
      %v2662 = vld [vmem:[%s702 + $0x2] sm:$0xff]
      %v2663 = vld [vmem:[%s702 + $0xa] sm:$0xff]
      %v2664 = vld [vmem:[%s702 + $0x1a] sm:$0xff]
      %v2665 = vld [vmem:[%s702 + $0x22] sm:$0xff]
      %v2666 = vld [vmem:[%s702 + $0x32] sm:$0xff]
      %v2667 = vld [vmem:[%s702 + $0x3a] sm:$0xff]
      %v2668 = vld [vmem:[%s702 + $0x4a] sm:$0xff]
      %v2669 = vld [vmem:[%s702 + $0x52] sm:$0xff]
      %v2670 = vld [vmem:[%s702 + $0x62] sm:$0xff]
      %v2671 = vld [vmem:[%s702 + $0x6a] sm:$0xff]
      %v2672 = vld [vmem:[%s702 + $0x7a] sm:$0xff]
      %v2673 = vld [vmem:[%s702 + $0x82] sm:$0xff]
      %v2674 = vld [vmem:[%s702 + $0x92] sm:$0xff]
      %v2675 = vld [vmem:[%s702 + $0x9a] sm:$0xff]
      %v2676 = vld [vmem:[%s702 + $0xaa] sm:$0xff]
      %v2677 = vld [vmem:[%s702 + $0xb2] sm:$0xff]
      %v2678 = vld [vmem:[%s702 + $0xc2] sm:$0xff]
      %v2679 = vld [vmem:[%s702 + $0xca] sm:$0xff]
      %v2680 = vld [vmem:[%s702 + $0xda] sm:$0xff]
      %v2681 = vld [vmem:[%s702 + $0xe2] sm:$0xff]
      %v2682 = vld [vmem:[%s702 + $0xf2] sm:$0xff]
      %v2683 = vld [vmem:[%s702 + $0xfa] sm:$0xff]
      %v2684 = vld [vmem:[%s702 + $0x10a] sm:$0xff]
      %v2685 = vld [vmem:[%s702 + $0x112] sm:$0xff]
      %v2686 = vld [vmem:[%s702 + $0x122] sm:$0xff]
      %v2687 = vld [vmem:[%s702 + $0x12a] sm:$0xff]
      %v2688 = vld [vmem:[%s702 + $0x13a] sm:$0xff]
      %v2689 = vld [vmem:[%s702 + $0x142] sm:$0xff]
      %v2690 = vld [vmem:[%s702 + $0x152] sm:$0xff]
      %v2691 = vld [vmem:[%s702 + $0x15a] sm:$0xff]
      %v2692 = vld [vmem:[%s702 + $0x16a] sm:$0xff]
      %v2693 = vld [vmem:[%s702 + $0x172] sm:$0xff]
      %2726 = vrot.lane.b32.xlu0 %v2438, 32
      %v2727 = vpop.permute.xlu0 %2726
      %2728 = vrot.lane.b32.xlu0 %v2439, 32
      %v2729 = vpop.permute.xlu0 %2728
      %2730 = vrot.lane.b32.xlu0 %v2440, 32
      %v2731 = vpop.permute.xlu0 %2730
      %2732 = vrot.lane.b32.xlu0 %v2441, 32
      %v2733 = vpop.permute.xlu0 %2732
      %2734 = vrot.lane.b32.xlu0 %v2442, 32
      %v2735 = vpop.permute.xlu0 %2734
      %2736 = vrot.lane.b32.xlu0 %v2443, 32
      %v2737 = vpop.permute.xlu0 %2736
      %2738 = vrot.lane.b32.xlu0 %v2444, 32
      %v2739 = vpop.permute.xlu0 %2738
      %2740 = vrot.lane.b32.xlu0 %v2445, 32
      %v2741 = vpop.permute.xlu0 %2740
      %2742 = vrot.lane.b32.xlu0 %v2446, 32
      %v2743 = vpop.permute.xlu0 %2742
      %2744 = vrot.lane.b32.xlu0 %v2447, 32
      %v2745 = vpop.permute.xlu0 %2744
      %2746 = vrot.lane.b32.xlu0 %v2448, 32
      %v2747 = vpop.permute.xlu0 %2746
      %2748 = vrot.lane.b32.xlu0 %v2449, 32
      %v2749 = vpop.permute.xlu0 %2748
      %2750 = vrot.lane.b32.xlu0 %v2450, 32
      %v2751 = vpop.permute.xlu0 %2750
      %2752 = vrot.lane.b32.xlu0 %v2451, 32
      %v2753 = vpop.permute.xlu0 %2752
      %2754 = vrot.lane.b32.xlu0 %v2452, 32
      %v2755 = vpop.permute.xlu0 %2754
      %2756 = vrot.lane.b32.xlu0 %v2453, 32
      %v2757 = vpop.permute.xlu0 %2756
      %2758 = vrot.lane.b32.xlu0 %v2454, 32
      %v2759 = vpop.permute.xlu0 %2758
      %2760 = vrot.lane.b32.xlu0 %v2455, 32
      %v2761 = vpop.permute.xlu0 %2760
      %2762 = vrot.lane.b32.xlu0 %v2456, 32
      %v2763 = vpop.permute.xlu0 %2762
      %2764 = vrot.lane.b32.xlu0 %v2457, 32
      %v2765 = vpop.permute.xlu0 %2764
      %2766 = vrot.lane.b32.xlu0 %v2458, 32
      %v2767 = vpop.permute.xlu0 %2766
      %2768 = vrot.lane.b32.xlu0 %v2459, 32
      %v2769 = vpop.permute.xlu0 %2768
      %2770 = vrot.lane.b32.xlu0 %v2460, 32
      %v2771 = vpop.permute.xlu0 %2770
      %2772 = vrot.lane.b32.xlu0 %v2461, 32
      %v2773 = vpop.permute.xlu0 %2772
      %2774 = vrot.lane.b32.xlu0 %v2462, 32
      %v2775 = vpop.permute.xlu0 %2774
      %2776 = vrot.lane.b32.xlu0 %v2463, 32
      %v2777 = vpop.permute.xlu0 %2776
      %2778 = vrot.lane.b32.xlu0 %v2464, 32
      %v2779 = vpop.permute.xlu0 %2778
      %2780 = vrot.lane.b32.xlu0 %v2465, 32
      %v2781 = vpop.permute.xlu0 %2780
      %2782 = vrot.lane.b32.xlu0 %v2466, 32
      %v2783 = vpop.permute.xlu0 %2782
      %2784 = vrot.lane.b32.xlu0 %v2467, 32
      %v2785 = vpop.permute.xlu0 %2784
      %2786 = vrot.lane.b32.xlu0 %v2468, 32
      %v2787 = vpop.permute.xlu0 %2786
      %2788 = vrot.lane.b32.xlu0 %v2469, 32
      %v2789 = vpop.permute.xlu0 %2788
      %2854 = vrot.lane.b32.xlu0 %v2470, 64
      %v2855 = vpop.permute.xlu0 %2854
      %2856 = vrot.lane.b32.xlu0 %v2471, 64
      %v2857 = vpop.permute.xlu0 %2856
      %2858 = vrot.lane.b32.xlu0 %v2472, 64
      %v2859 = vpop.permute.xlu0 %2858
      %2860 = vrot.lane.b32.xlu0 %v2473, 64
      %v2861 = vpop.permute.xlu0 %2860
      %2862 = vrot.lane.b32.xlu0 %v2474, 64
      %v2863 = vpop.permute.xlu0 %2862
      %2864 = vrot.lane.b32.xlu0 %v2475, 64
      %v2865 = vpop.permute.xlu0 %2864
      %2866 = vrot.lane.b32.xlu0 %v2476, 64
      %v2867 = vpop.permute.xlu0 %2866
      %2868 = vrot.lane.b32.xlu0 %v2477, 64
      %v2869 = vpop.permute.xlu0 %2868
      %2870 = vrot.lane.b32.xlu0 %v2478, 64
      %v2871 = vpop.permute.xlu0 %2870
      %2872 = vrot.lane.b32.xlu0 %v2479, 64
      %v2873 = vpop.permute.xlu0 %2872
      %2874 = vrot.lane.b32.xlu0 %v2480, 64
      %v2875 = vpop.permute.xlu0 %2874
      %2876 = vrot.lane.b32.xlu0 %v2481, 64
      %v2877 = vpop.permute.xlu0 %2876
      %2878 = vrot.lane.b32.xlu0 %v2482, 64
      %v2879 = vpop.permute.xlu0 %2878
      %2880 = vrot.lane.b32.xlu0 %v2483, 64
      %v2881 = vpop.permute.xlu0 %2880
      %2882 = vrot.lane.b32.xlu0 %v2484, 64
      %v2883 = vpop.permute.xlu0 %2882
      %2884 = vrot.lane.b32.xlu0 %v2485, 64
      %v2885 = vpop.permute.xlu0 %2884
      %2886 = vrot.lane.b32.xlu0 %v2486, 64
      %v2887 = vpop.permute.xlu0 %2886
      %2888 = vrot.lane.b32.xlu0 %v2487, 64
      %v2889 = vpop.permute.xlu0 %2888
      %2890 = vrot.lane.b32.xlu0 %v2488, 64
      %v2891 = vpop.permute.xlu0 %2890
      %2892 = vrot.lane.b32.xlu0 %v2489, 64
      %v2893 = vpop.permute.xlu0 %2892
      %2894 = vrot.lane.b32.xlu0 %v2490, 64
      %v2895 = vpop.permute.xlu0 %2894
      %2896 = vrot.lane.b32.xlu0 %v2491, 64
      %v2897 = vpop.permute.xlu0 %2896
      %2898 = vrot.lane.b32.xlu0 %v2492, 64
      %v2899 = vpop.permute.xlu0 %2898
      %2900 = vrot.lane.b32.xlu0 %v2493, 64
      %v2901 = vpop.permute.xlu0 %2900
      %2902 = vrot.lane.b32.xlu0 %v2494, 64
      %v2903 = vpop.permute.xlu0 %2902
      %2904 = vrot.lane.b32.xlu0 %v2495, 64
      %v2905 = vpop.permute.xlu0 %2904
      %2906 = vrot.lane.b32.xlu0 %v2496, 64
      %v2907 = vpop.permute.xlu0 %2906
      %2908 = vrot.lane.b32.xlu0 %v2497, 64
      %v2909 = vpop.permute.xlu0 %2908
      %2910 = vrot.lane.b32.xlu0 %v2498, 64
      %v2911 = vpop.permute.xlu0 %2910
      %2912 = vrot.lane.b32.xlu0 %v2499, 64
      %v2913 = vpop.permute.xlu0 %2912
      %2914 = vrot.lane.b32.xlu0 %v2500, 64
      %v2915 = vpop.permute.xlu0 %2914
      %2916 = vrot.lane.b32.xlu0 %v2501, 64
      %v2917 = vpop.permute.xlu0 %2916
      %2982 = vrot.lane.b32.xlu0 %v2502, 96
      %v2983 = vpop.permute.xlu0 %2982
      %2984 = vrot.lane.b32.xlu0 %v2503, 96
      %v2985 = vpop.permute.xlu0 %2984
      %2986 = vrot.lane.b32.xlu0 %v2504, 96
      %v2987 = vpop.permute.xlu0 %2986
      %2988 = vrot.lane.b32.xlu0 %v2505, 96
      %v2989 = vpop.permute.xlu0 %2988
      %2990 = vrot.lane.b32.xlu0 %v2506, 96
      %v2991 = vpop.permute.xlu0 %2990
      %2992 = vrot.lane.b32.xlu0 %v2507, 96
      %v2993 = vpop.permute.xlu0 %2992
      %2994 = vrot.lane.b32.xlu0 %v2508, 96
      %v2995 = vpop.permute.xlu0 %2994
      %2996 = vrot.lane.b32.xlu0 %v2509, 96
      %v2997 = vpop.permute.xlu0 %2996
      %2998 = vrot.lane.b32.xlu0 %v2510, 96
      %v2999 = vpop.permute.xlu0 %2998
      %3000 = vrot.lane.b32.xlu0 %v2511, 96
      %v3001 = vpop.permute.xlu0 %3000
      %3002 = vrot.lane.b32.xlu0 %v2512, 96
      %v3003 = vpop.permute.xlu0 %3002
      %3004 = vrot.lane.b32.xlu0 %v2513, 96
      %v3005 = vpop.permute.xlu0 %3004
      %3006 = vrot.lane.b32.xlu0 %v2514, 96
      %v3007 = vpop.permute.xlu0 %3006
      %3008 = vrot.lane.b32.xlu0 %v2515, 96
      %v3009 = vpop.permute.xlu0 %3008
      %3010 = vrot.lane.b32.xlu0 %v2516, 96
      %v3011 = vpop.permute.xlu0 %3010
      %3012 = vrot.lane.b32.xlu0 %v2517, 96
      %v3013 = vpop.permute.xlu0 %3012
      %3014 = vrot.lane.b32.xlu0 %v2518, 96
      %v3015 = vpop.permute.xlu0 %3014
      %3016 = vrot.lane.b32.xlu0 %v2519, 96
      %v3017 = vpop.permute.xlu0 %3016
      %3018 = vrot.lane.b32.xlu0 %v2520, 96
      %v3019 = vpop.permute.xlu0 %3018
      %3020 = vrot.lane.b32.xlu0 %v2521, 96
      %v3021 = vpop.permute.xlu0 %3020
      %3022 = vrot.lane.b32.xlu0 %v2522, 96
      %v3023 = vpop.permute.xlu0 %3022
      %3024 = vrot.lane.b32.xlu0 %v2523, 96
      %v3025 = vpop.permute.xlu0 %3024
      %3026 = vrot.lane.b32.xlu0 %v2524, 96
      %v3027 = vpop.permute.xlu0 %3026
      %3028 = vrot.lane.b32.xlu0 %v2525, 96
      %v3029 = vpop.permute.xlu0 %3028
      %3030 = vrot.lane.b32.xlu0 %v2526, 96
      %v3031 = vpop.permute.xlu0 %3030
      %3032 = vrot.lane.b32.xlu0 %v2527, 96
      %v3033 = vpop.permute.xlu0 %3032
      %3034 = vrot.lane.b32.xlu0 %v2528, 96
      %v3035 = vpop.permute.xlu0 %3034
      %3036 = vrot.lane.b32.xlu0 %v2529, 96
      %v3037 = vpop.permute.xlu0 %3036
      %3038 = vrot.lane.b32.xlu0 %v2530, 96
      %v3039 = vpop.permute.xlu0 %3038
      %3040 = vrot.lane.b32.xlu0 %v2531, 96
      %v3041 = vpop.permute.xlu0 %3040
      %3042 = vrot.lane.b32.xlu0 %v2532, 96
      %v3043 = vpop.permute.xlu0 %3042
      %3044 = vrot.lane.b32.xlu0 %v2533, 96
      %v3045 = vpop.permute.xlu0 %3044
      %3110 = vrot.lane.b32.xlu0 %v2566, 32
      %v3111 = vpop.permute.xlu0 %3110
      %3112 = vrot.lane.b32.xlu0 %v2567, 32
      %v3113 = vpop.permute.xlu0 %3112
      %3114 = vrot.lane.b32.xlu0 %v2568, 32
      %v3115 = vpop.permute.xlu0 %3114
      %3116 = vrot.lane.b32.xlu0 %v2569, 32
      %v3117 = vpop.permute.xlu0 %3116
      %3118 = vrot.lane.b32.xlu0 %v2570, 32
      %v3119 = vpop.permute.xlu0 %3118
      %3120 = vrot.lane.b32.xlu0 %v2571, 32
      %v3121 = vpop.permute.xlu0 %3120
      %3122 = vrot.lane.b32.xlu0 %v2572, 32
      %v3123 = vpop.permute.xlu0 %3122
      %3124 = vrot.lane.b32.xlu0 %v2573, 32
      %v3125 = vpop.permute.xlu0 %3124
      %3126 = vrot.lane.b32.xlu0 %v2574, 32
      %v3127 = vpop.permute.xlu0 %3126
      %3128 = vrot.lane.b32.xlu0 %v2575, 32
      %v3129 = vpop.permute.xlu0 %3128
      %3130 = vrot.lane.b32.xlu0 %v2576, 32
      %v3131 = vpop.permute.xlu0 %3130
      %3132 = vrot.lane.b32.xlu0 %v2577, 32
      %v3133 = vpop.permute.xlu0 %3132
      %3134 = vrot.lane.b32.xlu0 %v2578, 32
      %v3135 = vpop.permute.xlu0 %3134
      %3136 = vrot.lane.b32.xlu0 %v2579, 32
      %v3137 = vpop.permute.xlu0 %3136
      %3138 = vrot.lane.b32.xlu0 %v2580, 32
      %v3139 = vpop.permute.xlu0 %3138
      %3140 = vrot.lane.b32.xlu0 %v2581, 32
      %v3141 = vpop.permute.xlu0 %3140
      %3142 = vrot.lane.b32.xlu0 %v2582, 32
      %v3143 = vpop.permute.xlu0 %3142
      %3144 = vrot.lane.b32.xlu0 %v2583, 32
      %v3145 = vpop.permute.xlu0 %3144
      %3146 = vrot.lane.b32.xlu0 %v2584, 32
      %v3147 = vpop.permute.xlu0 %3146
      %3148 = vrot.lane.b32.xlu0 %v2585, 32
      %v3149 = vpop.permute.xlu0 %3148
      %3150 = vrot.lane.b32.xlu0 %v2586, 32
      %v3151 = vpop.permute.xlu0 %3150
      %3152 = vrot.lane.b32.xlu0 %v2587, 32
      %v3153 = vpop.permute.xlu0 %3152
      %3154 = vrot.lane.b32.xlu0 %v2588, 32
      %v3155 = vpop.permute.xlu0 %3154
      %3156 = vrot.lane.b32.xlu0 %v2589, 32
      %v3157 = vpop.permute.xlu0 %3156
      %3158 = vrot.lane.b32.xlu0 %v2590, 32
      %v3159 = vpop.permute.xlu0 %3158
      %3160 = vrot.lane.b32.xlu0 %v2591, 32
      %v3161 = vpop.permute.xlu0 %3160
      %3162 = vrot.lane.b32.xlu0 %v2592, 32
      %v3163 = vpop.permute.xlu0 %3162
      %3164 = vrot.lane.b32.xlu0 %v2593, 32
      %v3165 = vpop.permute.xlu0 %3164
      %3166 = vrot.lane.b32.xlu0 %v2594, 32
      %v3167 = vpop.permute.xlu0 %3166
      %3168 = vrot.lane.b32.xlu0 %v2595, 32
      %v3169 = vpop.permute.xlu0 %3168
      %3170 = vrot.lane.b32.xlu0 %v2596, 32
      %v3171 = vpop.permute.xlu0 %3170
      %3172 = vrot.lane.b32.xlu0 %v2597, 32
      %v3173 = vpop.permute.xlu0 %3172
      %3238 = vrot.lane.b32.xlu0 %v2598, 64
      %v3239 = vpop.permute.xlu0 %3238
      %3240 = vrot.lane.b32.xlu0 %v2599, 64
      %v3241 = vpop.permute.xlu0 %3240
      %3242 = vrot.lane.b32.xlu0 %v2600, 64
      %v3243 = vpop.permute.xlu0 %3242
      %3244 = vrot.lane.b32.xlu0 %v2601, 64
      %v3245 = vpop.permute.xlu0 %3244
      %3246 = vrot.lane.b32.xlu0 %v2602, 64
      %v3247 = vpop.permute.xlu0 %3246
      %3248 = vrot.lane.b32.xlu0 %v2603, 64
      %v3249 = vpop.permute.xlu0 %3248
      %3250 = vrot.lane.b32.xlu0 %v2604, 64
      %v3251 = vpop.permute.xlu0 %3250
      %3252 = vrot.lane.b32.xlu0 %v2605, 64
      %v3253 = vpop.permute.xlu0 %3252
      %3254 = vrot.lane.b32.xlu0 %v2606, 64
      %v3255 = vpop.permute.xlu0 %3254
      %3256 = vrot.lane.b32.xlu0 %v2607, 64
      %v3257 = vpop.permute.xlu0 %3256
      %3258 = vrot.lane.b32.xlu0 %v2608, 64
      %v3259 = vpop.permute.xlu0 %3258
      %3260 = vrot.lane.b32.xlu0 %v2609, 64
      %v3261 = vpop.permute.xlu0 %3260
      %3262 = vrot.lane.b32.xlu0 %v2610, 64
      %v3263 = vpop.permute.xlu0 %3262
      %3264 = vrot.lane.b32.xlu0 %v2611, 64
      %v3265 = vpop.permute.xlu0 %3264
      %3266 = vrot.lane.b32.xlu0 %v2612, 64
      %v3267 = vpop.permute.xlu0 %3266
      %3268 = vrot.lane.b32.xlu0 %v2613, 64
      %v3269 = vpop.permute.xlu0 %3268
      %3270 = vrot.lane.b32.xlu0 %v2614, 64
      %v3271 = vpop.permute.xlu0 %3270
      %3272 = vrot.lane.b32.xlu0 %v2615, 64
      %v3273 = vpop.permute.xlu0 %3272
      %3274 = vrot.lane.b32.xlu0 %v2616, 64
      %v3275 = vpop.permute.xlu0 %3274
      %3276 = vrot.lane.b32.xlu0 %v2617, 64
      %v3277 = vpop.permute.xlu0 %3276
      %3278 = vrot.lane.b32.xlu0 %v2618, 64
      %v3279 = vpop.permute.xlu0 %3278
      %3280 = vrot.lane.b32.xlu0 %v2619, 64
      %v3281 = vpop.permute.xlu0 %3280
      %3282 = vrot.lane.b32.xlu0 %v2620, 64
      %v3283 = vpop.permute.xlu0 %3282
      %3284 = vrot.lane.b32.xlu0 %v2621, 64
      %v3285 = vpop.permute.xlu0 %3284
      %3286 = vrot.lane.b32.xlu0 %v2622, 64
      %v3287 = vpop.permute.xlu0 %3286
      %3288 = vrot.lane.b32.xlu0 %v2623, 64
      %v3289 = vpop.permute.xlu0 %3288
      %3290 = vrot.lane.b32.xlu0 %v2624, 64
      %v3291 = vpop.permute.xlu0 %3290
      %3292 = vrot.lane.b32.xlu0 %v2625, 64
      %v3293 = vpop.permute.xlu0 %3292
      %3294 = vrot.lane.b32.xlu0 %v2626, 64
      %v3295 = vpop.permute.xlu0 %3294
      %3296 = vrot.lane.b32.xlu0 %v2627, 64
      %v3297 = vpop.permute.xlu0 %3296
      %3298 = vrot.lane.b32.xlu0 %v2628, 64
      %v3299 = vpop.permute.xlu0 %3298
      %3300 = vrot.lane.b32.xlu0 %v2629, 64
      %v3301 = vpop.permute.xlu0 %3300
      %3366 = vrot.lane.b32.xlu0 %v2630, 96
      %v3367 = vpop.permute.xlu0 %3366
      %3368 = vrot.lane.b32.xlu0 %v2631, 96
      %v3369 = vpop.permute.xlu0 %3368
      %3370 = vrot.lane.b32.xlu0 %v2632, 96
      %v3371 = vpop.permute.xlu0 %3370
      %3372 = vrot.lane.b32.xlu0 %v2633, 96
      %v3373 = vpop.permute.xlu0 %3372
      %3374 = vrot.lane.b32.xlu0 %v2634, 96
      %v3375 = vpop.permute.xlu0 %3374
      %3376 = vrot.lane.b32.xlu0 %v2635, 96
      %v3377 = vpop.permute.xlu0 %3376
      %3378 = vrot.lane.b32.xlu0 %v2636, 96
      %v3379 = vpop.permute.xlu0 %3378
      %3380 = vrot.lane.b32.xlu0 %v2637, 96
      %v3381 = vpop.permute.xlu0 %3380
      %3382 = vrot.lane.b32.xlu0 %v2638, 96
      %v3383 = vpop.permute.xlu0 %3382
      %3384 = vrot.lane.b32.xlu0 %v2639, 96
      %v3385 = vpop.permute.xlu0 %3384
      %3386 = vrot.lane.b32.xlu0 %v2640, 96
      %v3387 = vpop.permute.xlu0 %3386
      %3388 = vrot.lane.b32.xlu0 %v2641, 96
      %v3389 = vpop.permute.xlu0 %3388
      %3390 = vrot.lane.b32.xlu0 %v2642, 96
      %v3391 = vpop.permute.xlu0 %3390
      %3392 = vrot.lane.b32.xlu0 %v2643, 96
      %v3393 = vpop.permute.xlu0 %3392
      %3394 = vrot.lane.b32.xlu0 %v2644, 96
      %v3395 = vpop.permute.xlu0 %3394
      %3396 = vrot.lane.b32.xlu0 %v2645, 96
      %v3397 = vpop.permute.xlu0 %3396
      %3398 = vrot.lane.b32.xlu0 %v2646, 96
      %v3399 = vpop.permute.xlu0 %3398
      %3400 = vrot.lane.b32.xlu0 %v2647, 96
      %v3401 = vpop.permute.xlu0 %3400
      %3402 = vrot.lane.b32.xlu0 %v2648, 96
      %v3403 = vpop.permute.xlu0 %3402
      %3404 = vrot.lane.b32.xlu0 %v2649, 96
      %v3405 = vpop.permute.xlu0 %3404
      %3406 = vrot.lane.b32.xlu0 %v2650, 96
      %v3407 = vpop.permute.xlu0 %3406
      %3408 = vrot.lane.b32.xlu0 %v2651, 96
      %v3409 = vpop.permute.xlu0 %3408
      %3410 = vrot.lane.b32.xlu0 %v2652, 96
      %v3411 = vpop.permute.xlu0 %3410
      %3412 = vrot.lane.b32.xlu0 %v2653, 96
      %v3413 = vpop.permute.xlu0 %3412
      %3414 = vrot.lane.b32.xlu0 %v2654, 96
      %v3415 = vpop.permute.xlu0 %3414
      %3416 = vrot.lane.b32.xlu0 %v2655, 96
      %v3417 = vpop.permute.xlu0 %3416
      %3418 = vrot.lane.b32.xlu0 %v2656, 96
      %v3419 = vpop.permute.xlu0 %3418
      %3420 = vrot.lane.b32.xlu0 %v2657, 96
      %v3421 = vpop.permute.xlu0 %3420
      %3422 = vrot.lane.b32.xlu0 %v2658, 96
      %v3423 = vpop.permute.xlu0 %3422
      %3424 = vrot.lane.b32.xlu0 %v2659, 96
      %v3425 = vpop.permute.xlu0 %3424
      %3426 = vrot.lane.b32.xlu0 %v2660, 96
      %v3427 = vpop.permute.xlu0 %3426
      %3428 = vrot.lane.b32.xlu0 %v2661, 96
      %v3429 = vpop.permute.xlu0 %3428
      %v3462 = vsel %vm388, %v2406, %v2727
      %v3463 = vsel %vm388, %v2407, %v2729
      %v3464 = vsel %vm388, %v2408, %v2731
      %v3465 = vsel %vm388, %v2409, %v2733
      %v3466 = vsel %vm388, %v2410, %v2735
      %v3467 = vsel %vm388, %v2411, %v2737
      %v3468 = vsel %vm388, %v2412, %v2739
      %v3469 = vsel %vm388, %v2413, %v2741
      %v3470 = vsel %vm388, %v2414, %v2743
      %v3471 = vsel %vm388, %v2415, %v2745
      %v3472 = vsel %vm388, %v2416, %v2747
      %v3473 = vsel %vm388, %v2417, %v2749
      %v3474 = vsel %vm388, %v2418, %v2751
      %v3475 = vsel %vm388, %v2419, %v2753
      %v3476 = vsel %vm388, %v2420, %v2755
      %v3477 = vsel %vm388, %v2421, %v2757
      %v3478 = vsel %vm388, %v2422, %v2759
      %v3479 = vsel %vm388, %v2423, %v2761
      %v3480 = vsel %vm388, %v2424, %v2763
      %v3481 = vsel %vm388, %v2425, %v2765
      %v3482 = vsel %vm388, %v2426, %v2767
      %v3483 = vsel %vm388, %v2427, %v2769
      %v3484 = vsel %vm388, %v2428, %v2771
      %v3485 = vsel %vm388, %v2429, %v2773
      %v3486 = vsel %vm388, %v2430, %v2775
      %v3487 = vsel %vm388, %v2431, %v2777
      %v3488 = vsel %vm388, %v2432, %v2779
      %v3489 = vsel %vm388, %v2433, %v2781
      %v3490 = vsel %vm388, %v2434, %v2783
      %v3491 = vsel %vm388, %v2435, %v2785
      %v3492 = vsel %vm388, %v2436, %v2787
      %v3493 = vsel %vm388, %v2437, %v2789
      %vm3494 = vcmask 523264
      %v3495 = vsel %vm3494, %v3462, %v2855
      %v3496 = vsel %vm3494, %v3463, %v2857
      %v3497 = vsel %vm3494, %v3464, %v2859
      %v3498 = vsel %vm3494, %v3465, %v2861
      %v3499 = vsel %vm3494, %v3466, %v2863
      %v3500 = vsel %vm3494, %v3467, %v2865
      %v3501 = vsel %vm3494, %v3468, %v2867
      %v3502 = vsel %vm3494, %v3469, %v2869
      %v3503 = vsel %vm3494, %v3470, %v2871
      %v3504 = vsel %vm3494, %v3471, %v2873
      %v3505 = vsel %vm3494, %v3472, %v2875
      %v3506 = vsel %vm3494, %v3473, %v2877
      %v3507 = vsel %vm3494, %v3474, %v2879
      %v3508 = vsel %vm3494, %v3475, %v2881
      %v3509 = vsel %vm3494, %v3476, %v2883
      %v3510 = vsel %vm3494, %v3477, %v2885
      %v3511 = vsel %vm3494, %v3478, %v2887
      %v3512 = vsel %vm3494, %v3479, %v2889
      %v3513 = vsel %vm3494, %v3480, %v2891
      %v3514 = vsel %vm3494, %v3481, %v2893
      %v3515 = vsel %vm3494, %v3482, %v2895
      %v3516 = vsel %vm3494, %v3483, %v2897
      %v3517 = vsel %vm3494, %v3484, %v2899
      %v3518 = vsel %vm3494, %v3485, %v2901
      %v3519 = vsel %vm3494, %v3486, %v2903
      %v3520 = vsel %vm3494, %v3487, %v2905
      %v3521 = vsel %vm3494, %v3488, %v2907
      %v3522 = vsel %vm3494, %v3489, %v2909
      %v3523 = vsel %vm3494, %v3490, %v2911
      %v3524 = vsel %vm3494, %v3491, %v2913
      %v3525 = vsel %vm3494, %v3492, %v2915
      %v3526 = vsel %vm3494, %v3493, %v2917
      %vm3527 = vcmask 785408
      %v3528 = vsel %vm3527, %v3495, %v2983
      %v3529 = vsel %vm3527, %v3496, %v2985
      %v3530 = vsel %vm3527, %v3497, %v2987
      %v3531 = vsel %vm3527, %v3498, %v2989
      %v3532 = vsel %vm3527, %v3499, %v2991
      %v3533 = vsel %vm3527, %v3500, %v2993
      %v3534 = vsel %vm3527, %v3501, %v2995
      %v3535 = vsel %vm3527, %v3502, %v2997
      %v3536 = vsel %vm3527, %v3503, %v2999
      %v3537 = vsel %vm3527, %v3504, %v3001
      %v3538 = vsel %vm3527, %v3505, %v3003
      %v3539 = vsel %vm3527, %v3506, %v3005
      %v3540 = vsel %vm3527, %v3507, %v3007
      %v3541 = vsel %vm3527, %v3508, %v3009
      %v3542 = vsel %vm3527, %v3509, %v3011
      %v3543 = vsel %vm3527, %v3510, %v3013
      %v3544 = vsel %vm3527, %v3511, %v3015
      %v3545 = vsel %vm3527, %v3512, %v3017
      %v3546 = vsel %vm3527, %v3513, %v3019
      %v3547 = vsel %vm3527, %v3514, %v3021
      %v3548 = vsel %vm3527, %v3515, %v3023
      %v3549 = vsel %vm3527, %v3516, %v3025
      %v3550 = vsel %vm3527, %v3517, %v3027
      %v3551 = vsel %vm3527, %v3518, %v3029
      %v3552 = vsel %vm3527, %v3519, %v3031
      %v3553 = vsel %vm3527, %v3520, %v3033
      %v3554 = vsel %vm3527, %v3521, %v3035
      %v3555 = vsel %vm3527, %v3522, %v3037
      %v3556 = vsel %vm3527, %v3523, %v3039
      %v3557 = vsel %vm3527, %v3524, %v3041
      %v3558 = vsel %vm3527, %v3525, %v3043
      %v3559 = vsel %vm3527, %v3526, %v3045
      %v3560 = vsel %vm388, %v2534, %v3111
      %v3561 = vsel %vm388, %v2535, %v3113
      %v3562 = vsel %vm388, %v2536, %v3115
      %v3563 = vsel %vm388, %v2537, %v3117
      %v3564 = vsel %vm388, %v2538, %v3119
      %v3565 = vsel %vm388, %v2539, %v3121
      %v3566 = vsel %vm388, %v2540, %v3123
      %v3567 = vsel %vm388, %v2541, %v3125
      %v3568 = vsel %vm388, %v2542, %v3127
      %v3569 = vsel %vm388, %v2543, %v3129
      %v3570 = vsel %vm388, %v2544, %v3131
      %v3571 = vsel %vm388, %v2545, %v3133
      %v3572 = vsel %vm388, %v2546, %v3135
      %v3573 = vsel %vm388, %v2547, %v3137
      %v3574 = vsel %vm388, %v2548, %v3139
      %v3575 = vsel %vm388, %v2549, %v3141
      %v3576 = vsel %vm388, %v2550, %v3143
      %v3577 = vsel %vm388, %v2551, %v3145
      %v3578 = vsel %vm388, %v2552, %v3147
      %v3579 = vsel %vm388, %v2553, %v3149
      %v3580 = vsel %vm388, %v2554, %v3151
      %v3581 = vsel %vm388, %v2555, %v3153
      %v3582 = vsel %vm388, %v2556, %v3155
      %v3583 = vsel %vm388, %v2557, %v3157
      %v3584 = vsel %vm388, %v2558, %v3159
      %v3585 = vsel %vm388, %v2559, %v3161
      %v3586 = vsel %vm388, %v2560, %v3163
      %v3587 = vsel %vm388, %v2561, %v3165
      %v3588 = vsel %vm388, %v2562, %v3167
      %v3589 = vsel %vm388, %v2563, %v3169
      %v3590 = vsel %vm388, %v2564, %v3171
      %v3591 = vsel %vm388, %v2565, %v3173
      %v3592 = vsel %vm3494, %v3560, %v3239
      %v3593 = vsel %vm3494, %v3561, %v3241
      %v3594 = vsel %vm3494, %v3562, %v3243
      %v3595 = vsel %vm3494, %v3563, %v3245
      %v3596 = vsel %vm3494, %v3564, %v3247
      %v3597 = vsel %vm3494, %v3565, %v3249
      %v3598 = vsel %vm3494, %v3566, %v3251
      %v3599 = vsel %vm3494, %v3567, %v3253
      %v3600 = vsel %vm3494, %v3568, %v3255
      %v3601 = vsel %vm3494, %v3569, %v3257
      %v3602 = vsel %vm3494, %v3570, %v3259
      %v3603 = vsel %vm3494, %v3571, %v3261
      %v3604 = vsel %vm3494, %v3572, %v3263
      %v3605 = vsel %vm3494, %v3573, %v3265
      %v3606 = vsel %vm3494, %v3574, %v3267
      %v3607 = vsel %vm3494, %v3575, %v3269
      %v3608 = vsel %vm3494, %v3576, %v3271
      %v3609 = vsel %vm3494, %v3577, %v3273
      %v3610 = vsel %vm3494, %v3578, %v3275
      %v3611 = vsel %vm3494, %v3579, %v3277
      %v3612 = vsel %vm3494, %v3580, %v3279
      %v3613 = vsel %vm3494, %v3581, %v3281
      %v3614 = vsel %vm3494, %v3582, %v3283
      %v3615 = vsel %vm3494, %v3583, %v3285
      %v3616 = vsel %vm3494, %v3584, %v3287
      %v3617 = vsel %vm3494, %v3585, %v3289
      %v3618 = vsel %vm3494, %v3586, %v3291
      %v3619 = vsel %vm3494, %v3587, %v3293
      %v3620 = vsel %vm3494, %v3588, %v3295
      %v3621 = vsel %vm3494, %v3589, %v3297
      %v3622 = vsel %vm3494, %v3590, %v3299
      %v3623 = vsel %vm3494, %v3591, %v3301
      %v3624 = vsel %vm3527, %v3592, %v3367
      %v3625 = vsel %vm3527, %v3593, %v3369
      %v3626 = vsel %vm3527, %v3594, %v3371
      %v3627 = vsel %vm3527, %v3595, %v3373
      %v3628 = vsel %vm3527, %v3596, %v3375
      %v3629 = vsel %vm3527, %v3597, %v3377
      %v3630 = vsel %vm3527, %v3598, %v3379
      %v3631 = vsel %vm3527, %v3599, %v3381
      %v3632 = vsel %vm3527, %v3600, %v3383
      %v3633 = vsel %vm3527, %v3601, %v3385
      %v3634 = vsel %vm3527, %v3602, %v3387
      %v3635 = vsel %vm3527, %v3603, %v3389
      %v3636 = vsel %vm3527, %v3604, %v3391
      %v3637 = vsel %vm3527, %v3605, %v3393
      %v3638 = vsel %vm3527, %v3606, %v3395
      %v3639 = vsel %vm3527, %v3607, %v3397
      %v3640 = vsel %vm3527, %v3608, %v3399
      %v3641 = vsel %vm3527, %v3609, %v3401
      %v3642 = vsel %vm3527, %v3610, %v3403
      %v3643 = vsel %vm3527, %v3611, %v3405
      %v3644 = vsel %vm3527, %v3612, %v3407
      %v3645 = vsel %vm3527, %v3613, %v3409
      %v3646 = vsel %vm3527, %v3614, %v3411
      %v3647 = vsel %vm3527, %v3615, %v3413
      %v3648 = vsel %vm3527, %v3616, %v3415
      %v3649 = vsel %vm3527, %v3617, %v3417
      %v3650 = vsel %vm3527, %v3618, %v3419
      %v3651 = vsel %vm3527, %v3619, %v3421
      %v3652 = vsel %vm3527, %v3620, %v3423
      %v3653 = vsel %vm3527, %v3621, %v3425
      %v3654 = vsel %vm3527, %v3622, %v3427
      %v3655 = vsel %vm3527, %v3623, %v3429
      %v3656 = vpack.c.bf16 %v3529, %v3528
      %v3657 = vpack.c.bf16 %v3625, %v3624
      %v3658 = vpack.c.bf16 %v2663, %v2662
      %v3659 = vpack.c.bf16 %v3531, %v3530
      %v3660 = vpack.c.bf16 %v3627, %v3626
      %v3661 = vpack.c.bf16 %v2665, %v2664
      %v3662 = vpack.c.bf16 %v3533, %v3532
      %v3663 = vpack.c.bf16 %v3629, %v3628
      %v3664 = vpack.c.bf16 %v2667, %v2666
      %v3665 = vpack.c.bf16 %v3535, %v3534
      %v3666 = vpack.c.bf16 %v3631, %v3630
      %v3667 = vpack.c.bf16 %v2669, %v2668
      %v3668 = vpack.c.bf16 %v3537, %v3536
      %v3669 = vpack.c.bf16 %v3633, %v3632
      %v3670 = vpack.c.bf16 %v2671, %v2670
      %v3671 = vpack.c.bf16 %v3539, %v3538
      %v3672 = vpack.c.bf16 %v3635, %v3634
      %v3673 = vpack.c.bf16 %v2673, %v2672
      %v3674 = vpack.c.bf16 %v3541, %v3540
      %v3675 = vpack.c.bf16 %v3637, %v3636
      %v3676 = vpack.c.bf16 %v2675, %v2674
      %v3677 = vpack.c.bf16 %v3543, %v3542
      %v3678 = vpack.c.bf16 %v3639, %v3638
      %v3679 = vpack.c.bf16 %v2677, %v2676
      %v3680 = vpack.c.bf16 %v3545, %v3544
      %v3681 = vpack.c.bf16 %v3641, %v3640
      %v3682 = vpack.c.bf16 %v2679, %v2678
      %v3683 = vpack.c.bf16 %v3547, %v3546
      %v3684 = vpack.c.bf16 %v3643, %v3642
      %v3685 = vpack.c.bf16 %v2681, %v2680
      %v3686 = vpack.c.bf16 %v3549, %v3548
      %v3687 = vpack.c.bf16 %v3645, %v3644
      %v3688 = vpack.c.bf16 %v2683, %v2682
      %v3689 = vpack.c.bf16 %v3551, %v3550
      %v3690 = vpack.c.bf16 %v3647, %v3646
      %v3691 = vpack.c.bf16 %v2685, %v2684
      %v3692 = vpack.c.bf16 %v3553, %v3552
      %v3693 = vpack.c.bf16 %v3649, %v3648
      %v3694 = vpack.c.bf16 %v2687, %v2686
      %v3695 = vpack.c.bf16 %v3555, %v3554
      %v3696 = vpack.c.bf16 %v3651, %v3650
      %v3697 = vpack.c.bf16 %v2689, %v2688
      %v3698 = vpack.c.bf16 %v3557, %v3556
      %v3699 = vpack.c.bf16 %v3653, %v3652
      %v3700 = vpack.c.bf16 %v2691, %v2690
      %v3701 = vpack.c.bf16 %v3559, %v3558
      %v3702 = vpack.c.bf16 %v3655, %v3654
      %v3703 = vpack.c.bf16 %v2693, %v2692
      %v3704 = vld [vmem:[%s2] sm:$0xf]
      %v3705 = vld [vmem:[%s2 + $0x4] sm:$0xf]
      %v3706 = vld [vmem:[%s2 + $0x8] sm:$0xf]
      %v3707 = vld [vmem:[%s2 + $0xc] sm:$0xf]
      %v3708 = vld [vmem:[%s2 + $0x10] sm:$0xf]
      %v3709 = vld [vmem:[%s2 + $0x14] sm:$0xf]
      %v3710 = vld [vmem:[%s2 + $0x18] sm:$0xf]
      %v3711 = vld [vmem:[%s2 + $0x1c] sm:$0xf]
      %v3712 = vld [vmem:[%s2 + $0x20] sm:$0xf]
      %v3713 = vld [vmem:[%s2 + $0x24] sm:$0xf]
      %v3714 = vld [vmem:[%s2 + $0x28] sm:$0xf]
      %v3715 = vld [vmem:[%s2 + $0x2c] sm:$0xf]
      %v3716 = vld [vmem:[%s2 + $0x30] sm:$0xf]
      %v3717 = vld [vmem:[%s2 + $0x34] sm:$0xf]
      %v3718 = vld [vmem:[%s2 + $0x38] sm:$0xf]
      %v3719 = vld [vmem:[%s2 + $0x3c] sm:$0xf]
      %v3720 = vld [vmem:[%s2 + $0x40] sm:$0xf]
      %v3721 = vld [vmem:[%s2 + $0x44] sm:$0xf]
      %v3722 = vld [vmem:[%s2 + $0x48] sm:$0xf]
      %v3723 = vld [vmem:[%s2 + $0x4c] sm:$0xf]
      %v3724 = vld [vmem:[%s2 + $0x50] sm:$0xf]
      %v3725 = vld [vmem:[%s2 + $0x54] sm:$0xf]
      %v3726 = vld [vmem:[%s2 + $0x58] sm:$0xf]
      %v3727 = vld [vmem:[%s2 + $0x5c] sm:$0xf]
      %v3728 = vld [vmem:[%s2 + $0x60] sm:$0xf]
      %v3729 = vld [vmem:[%s2 + $0x64] sm:$0xf]
      %v3730 = vld [vmem:[%s2 + $0x68] sm:$0xf]
      %v3731 = vld [vmem:[%s2 + $0x6c] sm:$0xf]
      %v3732 = vld [vmem:[%s2 + $0x70] sm:$0xf]
      %v3733 = vld [vmem:[%s2 + $0x74] sm:$0xf]
      %v3734 = vld [vmem:[%s2 + $0x78] sm:$0xf]
      %v3735 = vld [vmem:[%s2 + $0x7c] sm:$0xf]
      %v3736 = vld [vmem:[%s2 + $0x80] sm:$0xf]
      %v3737 = vld [vmem:[%s2 + $0x84] sm:$0xf]
      %v3738 = vld [vmem:[%s2 + $0x88] sm:$0xf]
      %v3739 = vld [vmem:[%s2 + $0x8c] sm:$0xf]
      %v3740 = vld [vmem:[%s7] sm:$0x1]
      %v3742 = vlaneseq
      %v3743 = vshrl.u32 %v3742, 7
      %v3744 = vsub.s32 0, %v3743
      %v3745 = vrot.slane %v3740, %v3744
      %v3783 = vunpack.c.l.b16 %v3704
      %v3784 = vunpack.c.l.b16 %v3705
      %v3785 = vunpack.c.l.b16 %v3706
      %v3786 = vunpack.c.l.b16 %v3707
      %v3787 = vunpack.c.l.b16 %v3708
      %v3788 = vunpack.c.l.b16 %v3709
      %v3789 = vunpack.c.l.b16 %v3710
      %v3790 = vunpack.c.l.b16 %v3711
      %v3791 = vunpack.c.l.b16 %v3712
      %v3792 = vunpack.c.l.b16 %v3713
      %v3793 = vunpack.c.l.b16 %v3714
      %v3794 = vunpack.c.l.b16 %v3715
      %v3795 = vunpack.c.l.b16 %v3716
      %v3796 = vunpack.c.l.b16 %v3717
      %v3797 = vunpack.c.l.b16 %v3718
      %v3798 = vunpack.c.l.b16 %v3719
      %v3799 = vunpack.c.l.b16 %v3720
      %v3800 = vunpack.c.l.b16 %v3721
      %v3801 = vunpack.c.l.b16 %v3722
      %v3802 = vunpack.c.l.b16 %v3723
      %v3803 = vunpack.c.l.b16 %v3724
      %v3804 = vunpack.c.l.b16 %v3725
      %v3805 = vunpack.c.l.b16 %v3726
      %v3806 = vunpack.c.l.b16 %v3727
      %v3807 = vunpack.c.l.b16 %v3728
      %v3808 = vunpack.c.l.b16 %v3729
      %v3809 = vunpack.c.l.b16 %v3730
      %v3810 = vunpack.c.l.b16 %v3731
      %v3811 = vunpack.c.l.b16 %v3732
      %v3812 = vunpack.c.l.b16 %v3733
      %v3813 = vunpack.c.l.b16 %v3734
      %v3814 = vunpack.c.l.b16 %v3735
      %v3815 = vunpack.c.l.b16 %v3736
      %v3816 = vunpack.c.l.b16 %v3737
      %v3817 = vunpack.c.l.b16 %v3738
      %v3818 = vunpack.c.l.b16 %v3739
      %v3819 = vpack.c.b16 %v3784, %v3783
      %v3820 = vpack.c.b16 %v3786, %v3785
      %v3821 = vpack.c.b16 %v3788, %v3787
      %v3822 = vpack.c.b16 %v3790, %v3789
      %v3823 = vpack.c.b16 %v3792, %v3791
      %v3824 = vpack.c.b16 %v3794, %v3793
      %v3825 = vpack.c.b16 %v3796, %v3795
      %v3826 = vpack.c.b16 %v3798, %v3797
      %v3827 = vpack.c.b16 %v3800, %v3799
      %v3828 = vpack.c.b16 %v3802, %v3801
      %v3829 = vpack.c.b16 %v3804, %v3803
      %v3830 = vpack.c.b16 %v3806, %v3805
      %v3831 = vpack.c.b16 %v3808, %v3807
      %v3832 = vpack.c.b16 %v3810, %v3809
      %v3833 = vpack.c.b16 %v3812, %v3811
      %v3834 = vpack.c.b16 %v3814, %v3813
      %v3835 = vpack.c.b16 %v3816, %v3815
      %v3836 = vpack.c.b16 %v3818, %v3817
      %v3856 = vsel %vm388, %v3658, 0
      %v3859 = vsel %vm388, %v3661, 0
      %v3862 = vsel %vm388, %v3664, 0
      %v3865 = vsel %vm388, %v3667, 0
      %v3868 = vsel %vm388, %v3670, 0
      %v3871 = vsel %vm388, %v3673, 0
      %v3874 = vsel %vm388, %v3676, 0
      %v3877 = vsel %vm388, %v3679, 0
      %v3880 = vsel %vm388, %v3682, 0
      %v3883 = vsel %vm388, %v3685, 0
      %v3886 = vsel %vm388, %v3688, 0
      %v3889 = vsel %vm388, %v3691, 0
      %v3892 = vsel %vm388, %v3694, 0
      %v3895 = vsel %vm388, %v3697, 0
      %v3898 = vsel %vm388, %v3700, 0
      %v3901 = vsel %vm388, %v3703, 0
      %3903 = vmatprep.subr.bf16.mxu0 0
      %3904 = vmatpush1.bf16.msra.mxu0 %v3819
      %3905 = vmatprep.subr.bf16.mxu0 0
      %3906 = vmatpush1.bf16.msra.mxu0 %v3820
      %3907 = vmatprep.subr.bf16.mxu0 0
      %3908 = vmatpush1.bf16.msra.mxu0 %v3821
      %3909 = vmatprep.subr.bf16.mxu0 0
      %3910 = vmatpush1.bf16.msra.mxu0 %v3822
      %3911 = vmatprep.subr.bf16.mxu0 0
      %3912 = vmatpush1.bf16.msra.mxu0 %v3823
      %3913 = vmatprep.subr.bf16.mxu0 0
      %3914 = vmatpush1.bf16.msra.mxu0 %v3824
      %3915 = vmatprep.subr.bf16.mxu0 0
      %3916 = vmatpush1.bf16.msra.mxu0 %v3825
      %3917 = vmatprep.subr.bf16.mxu0 0
      %3918 = vmatpush1.bf16.msra.mxu0 %v3826
      %3919 = vmatprep.subr.bf16.mxu0 0
      %3920 = vmatpush1.bf16.msra.mxu0 %v3827
      %3921 = vmatprep.subr.bf16.mxu0 0
      %3922 = vmatpush1.bf16.msra.mxu0 %v3828
      %3923 = vmatprep.subr.bf16.mxu0 0
      %3924 = vmatpush1.bf16.msra.mxu0 %v3829
      %3925 = vmatprep.subr.bf16.mxu0 0
      %3926 = vmatpush1.bf16.msra.mxu0 %v3830
      %3927 = vmatprep.subr.bf16.mxu0 0
      %3928 = vmatpush1.bf16.msra.mxu0 %v3831
      %3929 = vmatprep.subr.bf16.mxu0 0
      %3930 = vmatpush1.bf16.msra.mxu0 %v3832
      %3931 = vmatprep.subr.bf16.mxu0 0
      %3932 = vmatpush1.bf16.msra.mxu0 %v3833
      %3933 = vmatprep.subr.bf16.mxu0 0
      %3934 = vmatpush1.bf16.msra.mxu0 %v3834
      %3935 = vmatprep.mubr.bf16.mxu0 %v3657
      %3936 = vmatmul.mubr.bf16.gmra.mrb[0].mxu0 %v3656
      %v3937 = vpop.f32.mrb[0].mxu0
      %v3938 = vadd.f32 %v3745, %v3937
      %v3939 = vpop.f32.mrb[0].mxu0
      %v3940 = vpop.f32.mrb[0].mxu0
      %v3941 = vadd.f32 %v3745, %v3940
      %v3942 = vpop.f32.mrb[0].mxu0
      %3943 = vmatprep.mubr.bf16.mxu0 %v3660
      %3944 = vmatmul.mubr.bf16.gmra.mrb[0].mxu0 %v3659
      %v3945 = vpop.f32.mrb[0].mxu0
      %v3946 = vadd.f32 %v3745, %v3945
      %v3947 = vpop.f32.mrb[0].mxu0
      %v3948 = vpop.f32.mrb[0].mxu0
      %v3949 = vadd.f32 %v3745, %v3948
      %v3950 = vpop.f32.mrb[0].mxu0
      %3951 = vmatprep.mubr.bf16.mxu0 %v3663
      %3952 = vmatmul.mubr.bf16.gmra.mrb[0].mxu0 %v3662
      %v3953 = vpop.f32.mrb[0].mxu0
      %v3954 = vadd.f32 %v3745, %v3953
      %v3955 = vpop.f32.mrb[0].mxu0
      %v3956 = vpop.f32.mrb[0].mxu0
      %v3957 = vadd.f32 %v3745, %v3956
      %v3958 = vpop.f32.mrb[0].mxu0
      %3959 = vmatprep.mubr.bf16.mxu0 %v3666
      %3960 = vmatmul.mubr.bf16.gmra.mrb[0].mxu0 %v3665
      %v3961 = vpop.f32.mrb[0].mxu0
      %v3962 = vadd.f32 %v3745, %v3961
      %v3963 = vpop.f32.mrb[0].mxu0
      %v3964 = vpop.f32.mrb[0].mxu0
      %v3965 = vadd.f32 %v3745, %v3964
      %v3966 = vpop.f32.mrb[0].mxu0
      %3967 = vmatprep.mubr.bf16.mxu0 %v3669
      %3968 = vmatmul.mubr.bf16.gmra.mrb[0].mxu0 %v3668
      %v3969 = vpop.f32.mrb[0].mxu0
      %v3970 = vadd.f32 %v3745, %v3969
      %v3971 = vpop.f32.mrb[0].mxu0
      %v3972 = vpop.f32.mrb[0].mxu0
      %v3973 = vadd.f32 %v3745, %v3972
      %v3974 = vpop.f32.mrb[0].mxu0
      %3975 = vmatprep.mubr.bf16.mxu0 %v3672
      %3976 = vmatmul.mubr.bf16.gmra.mrb[0].mxu0 %v3671
      %v3977 = vpop.f32.mrb[0].mxu0
      %v3978 = vadd.f32 %v3745, %v3977
      %v3979 = vpop.f32.mrb[0].mxu0
      %v3980 = vpop.f32.mrb[0].mxu0
      %v3981 = vadd.f32 %v3745, %v3980
      %v3982 = vpop.f32.mrb[0].mxu0
      %3983 = vmatprep.mubr.bf16.mxu0 %v3675
      %3984 = vmatmul.mubr.bf16.gmra.mrb[0].mxu0 %v3674
      %v3985 = vpop.f32.mrb[0].mxu0
      %v3986 = vadd.f32 %v3745, %v3985
      %v3987 = vpop.f32.mrb[0].mxu0
      %v3988 = vpop.f32.mrb[0].mxu0
      %v3989 = vadd.f32 %v3745, %v3988
      %v3990 = vpop.f32.mrb[0].mxu0
      %3991 = vmatprep.mubr.bf16.mxu0 %v3678
      %3992 = vmatmul.mubr.bf16.gmra.mrb[0].mxu0 %v3677
      %v3993 = vpop.f32.mrb[0].mxu0
      %v3994 = vadd.f32 %v3745, %v3993
      %v3995 = vpop.f32.mrb[0].mxu0
      %v3996 = vpop.f32.mrb[0].mxu0
      %v3997 = vadd.f32 %v3745, %v3996
      %v3998 = vpop.f32.mrb[0].mxu0
      %3999 = vmatprep.mubr.bf16.mxu0 %v3681
      %4000 = vmatmul.mubr.bf16.gmra.mrb[0].mxu0 %v3680
      %v4001 = vpop.f32.mrb[0].mxu0
      %v4002 = vadd.f32 %v3745, %v4001
      %v4003 = vpop.f32.mrb[0].mxu0
      %v4004 = vpop.f32.mrb[0].mxu0
      %v4005 = vadd.f32 %v3745, %v4004
      %v4006 = vpop.f32.mrb[0].mxu0
      %4007 = vmatprep.mubr.bf16.mxu0 %v3684
      %4008 = vmatmul.mubr.bf16.gmra.mrb[0].mxu0 %v3683
      %v4009 = vpop.f32.mrb[0].mxu0
      %v4010 = vadd.f32 %v3745, %v4009
      %v4011 = vpop.f32.mrb[0].mxu0
      %v4012 = vpop.f32.mrb[0].mxu0
      %v4013 = vadd.f32 %v3745, %v4012
      %v4014 = vpop.f32.mrb[0].mxu0
      %4015 = vmatprep.mubr.bf16.mxu0 %v3687
      %4016 = vmatmul.mubr.bf16.gmra.mrb[0].mxu0 %v3686
      %v4017 = vpop.f32.mrb[0].mxu0
      %v4018 = vadd.f32 %v3745, %v4017
      %v4019 = vpop.f32.mrb[0].mxu0
      %v4020 = vpop.f32.mrb[0].mxu0
      %v4021 = vadd.f32 %v3745, %v4020
      %v4022 = vpop.f32.mrb[0].mxu0
      %4023 = vmatprep.mubr.bf16.mxu0 %v3690
      %4024 = vmatmul.mubr.bf16.gmra.mrb[0].mxu0 %v3689
      %v4025 = vpop.f32.mrb[0].mxu0
      %v4026 = vadd.f32 %v3745, %v4025
      %v4027 = vpop.f32.mrb[0].mxu0
      %v4028 = vpop.f32.mrb[0].mxu0
      %v4029 = vadd.f32 %v3745, %v4028
      %v4030 = vpop.f32.mrb[0].mxu0
      %4031 = vmatprep.mubr.bf16.mxu0 %v3693
      %4032 = vmatmul.mubr.bf16.gmra.mrb[0].mxu0 %v3692
      %v4033 = vpop.f32.mrb[0].mxu0
      %v4034 = vadd.f32 %v3745, %v4033
      %v4035 = vpop.f32.mrb[0].mxu0
      %v4036 = vpop.f32.mrb[0].mxu0
      %v4037 = vadd.f32 %v3745, %v4036
      %v4038 = vpop.f32.mrb[0].mxu0
      %4039 = vmatprep.mubr.bf16.mxu0 %v3696
      %4040 = vmatmul.mubr.bf16.gmra.mrb[0].mxu0 %v3695
      %v4041 = vpop.f32.mrb[0].mxu0
      %v4042 = vadd.f32 %v3745, %v4041
      %v4043 = vpop.f32.mrb[0].mxu0
      %v4044 = vpop.f32.mrb[0].mxu0
      %v4045 = vadd.f32 %v3745, %v4044
      %v4046 = vpop.f32.mrb[0].mxu0
      %4047 = vmatprep.mubr.bf16.mxu0 %v3699
      %4048 = vmatmul.mubr.bf16.gmra.mrb[0].mxu0 %v3698
      %v4049 = vpop.f32.mrb[0].mxu0
      %v4050 = vadd.f32 %v3745, %v4049
      %v4051 = vpop.f32.mrb[0].mxu0
      %v4052 = vpop.f32.mrb[0].mxu0
      %v4053 = vadd.f32 %v3745, %v4052
      %v4054 = vpop.f32.mrb[0].mxu0
      %4055 = vmatprep.mubr.bf16.mxu0 %v3702
      %4056 = vmatmul.mubr.bf16.gmra.mrb[0].mxu0 %v3701
      %v4057 = vpop.f32.mrb[0].mxu0
      %v4058 = vadd.f32 %v3745, %v4057
      %v4059 = vpop.f32.mrb[0].mxu0
      %v4060 = vpop.f32.mrb[0].mxu0
      %v4061 = vadd.f32 %v3745, %v4060
      %v4062 = vpop.f32.mrb[0].mxu0
      %4063 = vdwg.mxu0
      %4064 = vmatprep.subr.bf16.mxu0 0
      %4065 = vmatpush1.bf16.msra.mxu0 %v3835
      %4066 = vmatprep.subr.bf16.mxu0 0
      %4067 = vmatpush1.bf16.msra.mxu0 %v3836
      %4068 = vmatprep.subr.bf16.mxu0 0
      %4069 = vmatpush1.bf16.msra.mxu0 0
      %4070 = vmatprep.subr.bf16.mxu0 0
      %4071 = vmatpush1.bf16.msra.mxu0 0
      %4072 = vmatprep.subr.bf16.mxu0 0
      %4073 = vmatpush1.bf16.msra.mxu0 0
      %4074 = vmatprep.subr.bf16.mxu0 0
      %4075 = vmatpush1.bf16.msra.mxu0 0
      %4076 = vmatprep.subr.bf16.mxu0 0
      %4077 = vmatpush1.bf16.msra.mxu0 0
      %4078 = vmatprep.subr.bf16.mxu0 0
      %4079 = vmatpush1.bf16.msra.mxu0 0
      %4080 = vmatprep.subr.bf16.mxu0 0
      %4081 = vmatpush1.bf16.msra.mxu0 0
      %4082 = vmatprep.subr.bf16.mxu0 0
      %4083 = vmatpush1.bf16.msra.mxu0 0
      %4084 = vmatprep.subr.bf16.mxu0 0
      %4085 = vmatpush1.bf16.msra.mxu0 0
      %4086 = vmatprep.subr.bf16.mxu0 0
      %4087 = vmatpush1.bf16.msra.mxu0 0
      %4088 = vmatprep.subr.bf16.mxu0 0
      %4089 = vmatpush1.bf16.msra.mxu0 0
      %4090 = vmatprep.subr.bf16.mxu0 0
      %4091 = vmatpush1.bf16.msra.mxu0 0
      %4092 = vmatprep.subr.bf16.mxu0 0
      %4093 = vmatpush1.bf16.msra.mxu0 0
      %4094 = vmatprep.subr.bf16.mxu0 0
      %4095 = vmatpush1.bf16.msra.mxu0 0
      %4096 = vmatprep.mubr.bf16.mxu0 0
      %4097 = vmatmul.mubr.bf16.gmra.mrb[0].mxu0 %v3856
      %v4098 = vpop.f32.mrb[0].mxu0
      %v4099 = vadd.f32 %v3938, %v4098
      %v4100 = vpop.f32.mrb[0].mxu0
      %v4101 = vpop.f32.mrb[0].mxu0
      %v4102 = vadd.f32 %v3941, %v4101
      %v4103 = vpop.f32.mrb[0].mxu0
      %4104 = vmatprep.mubr.bf16.mxu0 0
      %4105 = vmatmul.mubr.bf16.gmra.mrb[0].mxu0 %v3859
      %v4106 = vpop.f32.mrb[0].mxu0
      %v4107 = vadd.f32 %v3946, %v4106
      %v4108 = vpop.f32.mrb[0].mxu0
      %v4109 = vpop.f32.mrb[0].mxu0
      %v4110 = vadd.f32 %v3949, %v4109
      %v4111 = vpop.f32.mrb[0].mxu0
      %4112 = vmatprep.mubr.bf16.mxu0 0
      %4113 = vmatmul.mubr.bf16.gmra.mrb[0].mxu0 %v3862
      %v4114 = vpop.f32.mrb[0].mxu0
      %v4115 = vadd.f32 %v3954, %v4114
      %v4116 = vpop.f32.mrb[0].mxu0
      %v4117 = vpop.f32.mrb[0].mxu0
      %v4118 = vadd.f32 %v3957, %v4117
      %v4119 = vpop.f32.mrb[0].mxu0
      %4120 = vmatprep.mubr.bf16.mxu0 0
      %4121 = vmatmul.mubr.bf16.gmra.mrb[0].mxu0 %v3865
      %v4122 = vpop.f32.mrb[0].mxu0
      %v4123 = vadd.f32 %v3962, %v4122
      %v4124 = vpop.f32.mrb[0].mxu0
      %v4125 = vpop.f32.mrb[0].mxu0
      %v4126 = vadd.f32 %v3965, %v4125
      %v4127 = vpop.f32.mrb[0].mxu0
      %4128 = vmatprep.mubr.bf16.mxu0 0
      %4129 = vmatmul.mubr.bf16.gmra.mrb[0].mxu0 %v3868
      %v4130 = vpop.f32.mrb[0].mxu0
      %v4131 = vadd.f32 %v3970, %v4130
      %v4132 = vpop.f32.mrb[0].mxu0
      %v4133 = vpop.f32.mrb[0].mxu0
      %v4134 = vadd.f32 %v3973, %v4133
      %v4135 = vpop.f32.mrb[0].mxu0
      %4136 = vmatprep.mubr.bf16.mxu0 0
      %4137 = vmatmul.mubr.bf16.gmra.mrb[0].mxu0 %v3871
      %v4138 = vpop.f32.mrb[0].mxu0
      %v4139 = vadd.f32 %v3978, %v4138
      %v4140 = vpop.f32.mrb[0].mxu0
      %v4141 = vpop.f32.mrb[0].mxu0
      %v4142 = vadd.f32 %v3981, %v4141
      %v4143 = vpop.f32.mrb[0].mxu0
      %4144 = vmatprep.mubr.bf16.mxu0 0
      %4145 = vmatmul.mubr.bf16.gmra.mrb[0].mxu0 %v3874
      %v4146 = vpop.f32.mrb[0].mxu0
      %v4147 = vadd.f32 %v3986, %v4146
      %v4148 = vpop.f32.mrb[0].mxu0
      %v4149 = vpop.f32.mrb[0].mxu0
      %v4150 = vadd.f32 %v3989, %v4149
      %v4151 = vpop.f32.mrb[0].mxu0
      %4152 = vmatprep.mubr.bf16.mxu0 0
      %4153 = vmatmul.mubr.bf16.gmra.mrb[0].mxu0 %v3877
      %v4154 = vpop.f32.mrb[0].mxu0
      %v4155 = vadd.f32 %v3994, %v4154
      %v4156 = vpop.f32.mrb[0].mxu0
      %v4157 = vpop.f32.mrb[0].mxu0
      %v4158 = vadd.f32 %v3997, %v4157
      %v4159 = vpop.f32.mrb[0].mxu0
      %4160 = vmatprep.mubr.bf16.mxu0 0
      %4161 = vmatmul.mubr.bf16.gmra.mrb[0].mxu0 %v3880
      %v4162 = vpop.f32.mrb[0].mxu0
      %v4163 = vadd.f32 %v4002, %v4162
      %v4164 = vpop.f32.mrb[0].mxu0
      %v4165 = vpop.f32.mrb[0].mxu0
      %v4166 = vadd.f32 %v4005, %v4165
      %v4167 = vpop.f32.mrb[0].mxu0
      %4168 = vmatprep.mubr.bf16.mxu0 0
      %4169 = vmatmul.mubr.bf16.gmra.mrb[0].mxu0 %v3883
      %v4170 = vpop.f32.mrb[0].mxu0
      %v4171 = vadd.f32 %v4010, %v4170
      %v4172 = vpop.f32.mrb[0].mxu0
      %v4173 = vpop.f32.mrb[0].mxu0
      %v4174 = vadd.f32 %v4013, %v4173
      %v4175 = vpop.f32.mrb[0].mxu0
      %4176 = vmatprep.mubr.bf16.mxu0 0
      %4177 = vmatmul.mubr.bf16.gmra.mrb[0].mxu0 %v3886
      %v4178 = vpop.f32.mrb[0].mxu0
      %v4179 = vadd.f32 %v4018, %v4178
      %v4180 = vpop.f32.mrb[0].mxu0
      %v4181 = vpop.f32.mrb[0].mxu0
      %v4182 = vadd.f32 %v4021, %v4181
      %v4183 = vpop.f32.mrb[0].mxu0
      %4184 = vmatprep.mubr.bf16.mxu0 0
      %4185 = vmatmul.mubr.bf16.gmra.mrb[0].mxu0 %v3889
      %v4186 = vpop.f32.mrb[0].mxu0
      %v4187 = vadd.f32 %v4026, %v4186
      %v4188 = vpop.f32.mrb[0].mxu0
      %v4189 = vpop.f32.mrb[0].mxu0
      %v4190 = vadd.f32 %v4029, %v4189
      %v4191 = vpop.f32.mrb[0].mxu0
      %4192 = vmatprep.mubr.bf16.mxu0 0
      %4193 = vmatmul.mubr.bf16.gmra.mrb[0].mxu0 %v3892
      %v4194 = vpop.f32.mrb[0].mxu0
      %v4195 = vadd.f32 %v4034, %v4194
      %v4196 = vpop.f32.mrb[0].mxu0
      %v4197 = vpop.f32.mrb[0].mxu0
      %v4198 = vadd.f32 %v4037, %v4197
      %v4199 = vpop.f32.mrb[0].mxu0
      %4200 = vmatprep.mubr.bf16.mxu0 0
      %4201 = vmatmul.mubr.bf16.gmra.mrb[0].mxu0 %v3895
      %v4202 = vpop.f32.mrb[0].mxu0
      %v4203 = vadd.f32 %v4042, %v4202
      %v4204 = vpop.f32.mrb[0].mxu0
      %v4205 = vpop.f32.mrb[0].mxu0
      %v4206 = vadd.f32 %v4045, %v4205
      %v4207 = vpop.f32.mrb[0].mxu0
      %4208 = vmatprep.mubr.bf16.mxu0 0
      %4209 = vmatmul.mubr.bf16.gmra.mrb[0].mxu0 %v3898
      %v4210 = vpop.f32.mrb[0].mxu0
      %v4211 = vadd.f32 %v4050, %v4210
      %v4212 = vpop.f32.mrb[0].mxu0
      %v4213 = vpop.f32.mrb[0].mxu0
      %v4214 = vadd.f32 %v4053, %v4213
      %v4215 = vpop.f32.mrb[0].mxu0
      %4216 = vmatprep.mubr.bf16.mxu0 0
      %4217 = vmatmul.mubr.bf16.gmra.mrb[0].mxu0 %v3901
      %v4218 = vpop.f32.mrb[0].mxu0
      %v4219 = vadd.f32 %v4058, %v4218
      %v4220 = vpop.f32.mrb[0].mxu0
      %v4221 = vpop.f32.mrb[0].mxu0
      %v4222 = vadd.f32 %v4061, %v4221
      %v4223 = vpop.f32.mrb[0].mxu0
      %4224 = vdwg.mxu0
      %v4225 = vmax.f32 %v4099, 0.0
      %v4226 = vmax.f32 %v4102, 0.0
      %v4227 = vmax.f32 %v4107, 0.0
      %v4228 = vmax.f32 %v4110, 0.0
      %v4229 = vmax.f32 %v4115, 0.0
      %v4230 = vmax.f32 %v4118, 0.0
      %v4231 = vmax.f32 %v4123, 0.0
      %v4232 = vmax.f32 %v4126, 0.0
      %v4233 = vmax.f32 %v4131, 0.0
      %v4234 = vmax.f32 %v4134, 0.0
      %v4235 = vmax.f32 %v4139, 0.0
      %v4236 = vmax.f32 %v4142, 0.0
      %v4237 = vmax.f32 %v4147, 0.0
      %v4238 = vmax.f32 %v4150, 0.0
      %v4239 = vmax.f32 %v4155, 0.0
      %v4240 = vmax.f32 %v4158, 0.0
      %v4241 = vmax.f32 %v4163, 0.0
      %v4242 = vmax.f32 %v4166, 0.0
      %v4243 = vmax.f32 %v4171, 0.0
      %v4244 = vmax.f32 %v4174, 0.0
      %v4245 = vmax.f32 %v4179, 0.0
      %v4246 = vmax.f32 %v4182, 0.0
      %v4247 = vmax.f32 %v4187, 0.0
      %v4248 = vmax.f32 %v4190, 0.0
      %v4249 = vmax.f32 %v4195, 0.0
      %v4250 = vmax.f32 %v4198, 0.0
      %v4251 = vmax.f32 %v4203, 0.0
      %v4252 = vmax.f32 %v4206, 0.0
      %v4253 = vmax.f32 %v4211, 0.0
      %v4254 = vmax.f32 %v4214, 0.0
      %v4255 = vmax.f32 %v4219, 0.0
      %v4256 = vmax.f32 %v4222, 0.0
      %4257 = vst.msk [vmem:[%s476 + $0x1] sm:$0xff] %vm388, %v4225
      %4258 = vst.msk [vmem:[%s476 + $0x9] sm:$0xff] %vm388, %v4226
      %4259 = vst.msk [vmem:[%s476 + $0x19] sm:$0xff] %vm388, %v4227
      %4260 = vst.msk [vmem:[%s476 + $0x21] sm:$0xff] %vm388, %v4228
      %4261 = vst.msk [vmem:[%s476 + $0x31] sm:$0xff] %vm388, %v4229
      %4262 = vst.msk [vmem:[%s476 + $0x39] sm:$0xff] %vm388, %v4230
      %4263 = vst.msk [vmem:[%s476 + $0x49] sm:$0xff] %vm388, %v4231
      %4264 = vst.msk [vmem:[%s476 + $0x51] sm:$0xff] %vm388, %v4232
      %4265 = vst.msk [vmem:[%s476 + $0x61] sm:$0xff] %vm388, %v4233
      %4266 = vst.msk [vmem:[%s476 + $0x69] sm:$0xff] %vm388, %v4234
      %4267 = vst.msk [vmem:[%s476 + $0x79] sm:$0xff] %vm388, %v4235
      %4268 = vst.msk [vmem:[%s476 + $0x81] sm:$0xff] %vm388, %v4236
      %4269 = vst.msk [vmem:[%s476 + $0x91] sm:$0xff] %vm388, %v4237
      %4270 = vst.msk [vmem:[%s476 + $0x99] sm:$0xff] %vm388, %v4238
      %4271 = vst.msk [vmem:[%s476 + $0xa9] sm:$0xff] %vm388, %v4239
      %4272 = vst.msk [vmem:[%s476 + $0xb1] sm:$0xff] %vm388, %v4240
      %4273 = vst.msk [vmem:[%s476 + $0xc1] sm:$0xff] %vm388, %v4241
      %4274 = vst.msk [vmem:[%s476 + $0xc9] sm:$0xff] %vm388, %v4242
      %4275 = vst.msk [vmem:[%s476 + $0xd9] sm:$0xff] %vm388, %v4243
      %4276 = vst.msk [vmem:[%s476 + $0xe1] sm:$0xff] %vm388, %v4244
      %4277 = vst.msk [vmem:[%s476 + $0xf1] sm:$0xff] %vm388, %v4245
      %4278 = vst.msk [vmem:[%s476 + $0xf9] sm:$0xff] %vm388, %v4246
      %4279 = vst.msk [vmem:[%s476 + $0x109] sm:$0xff] %vm388, %v4247
      %4280 = vst.msk [vmem:[%s476 + $0x111] sm:$0xff] %vm388, %v4248
      %4281 = vst.msk [vmem:[%s476 + $0x121] sm:$0xff] %vm388, %v4249
      %4282 = vst.msk [vmem:[%s476 + $0x129] sm:$0xff] %vm388, %v4250
      %4283 = vst.msk [vmem:[%s476 + $0x139] sm:$0xff] %vm388, %v4251
      %4284 = vst.msk [vmem:[%s476 + $0x141] sm:$0xff] %vm388, %v4252
      %4285 = vst.msk [vmem:[%s476 + $0x151] sm:$0xff] %vm388, %v4253
      %4286 = vst.msk [vmem:[%s476 + $0x159] sm:$0xff] %vm388, %v4254
      %4287 = vst.msk [vmem:[%s476 + $0x169] sm:$0xff] %vm388, %v4255
      %4288 = vst.msk [vmem:[%s476 + $0x171] sm:$0xff] %vm388, %v4256
      %v4289 = vld [vmem:[#allocation2] sm:$0xff]
      %v4290 = vld [vmem:[#allocation2 + $0x8] sm:$0xff]
      %v4291 = vld [vmem:[#allocation2 + $0x18] sm:$0xff]
      %v4292 = vld [vmem:[#allocation2 + $0x20] sm:$0xff]
      %v4293 = vld [vmem:[#allocation2 + $0x30] sm:$0xff]
      %v4294 = vld [vmem:[#allocation2 + $0x38] sm:$0xff]
      %v4295 = vld [vmem:[#allocation2 + $0x48] sm:$0xff]
      %v4296 = vld [vmem:[#allocation2 + $0x50] sm:$0xff]
      %v4297 = vld [vmem:[#allocation2 + $0x60] sm:$0xff]
      %v4298 = vld [vmem:[#allocation2 + $0x68] sm:$0xff]
      %v4299 = vld [vmem:[#allocation2 + $0x78] sm:$0xff]
      %v4300 = vld [vmem:[#allocation2 + $0x80] sm:$0xff]
      %v4301 = vld [vmem:[#allocation2 + $0x90] sm:$0xff]
      %v4302 = vld [vmem:[#allocation2 + $0x98] sm:$0xff]
      %v4303 = vld [vmem:[#allocation2 + $0xa8] sm:$0xff]
      %v4304 = vld [vmem:[#allocation2 + $0xb0] sm:$0xff]
      %v4305 = vld [vmem:[#allocation2 + $0xc0] sm:$0xff]
      %v4306 = vld [vmem:[#allocation2 + $0xc8] sm:$0xff]
      %v4307 = vld [vmem:[#allocation2 + $0xd8] sm:$0xff]
      %v4308 = vld [vmem:[#allocation2 + $0xe0] sm:$0xff]
      %v4309 = vld [vmem:[#allocation2 + $0xf0] sm:$0xff]
      %v4310 = vld [vmem:[#allocation2 + $0xf8] sm:$0xff]
      %v4311 = vld [vmem:[#allocation2 + $0x108] sm:$0xff]
      %v4312 = vld [vmem:[#allocation2 + $0x110] sm:$0xff]
      %v4313 = vld [vmem:[#allocation2 + $0x120] sm:$0xff]
      %v4314 = vld [vmem:[#allocation2 + $0x128] sm:$0xff]
      %v4315 = vld [vmem:[#allocation2 + $0x138] sm:$0xff]
      %v4316 = vld [vmem:[#allocation2 + $0x140] sm:$0xff]
      %v4317 = vld [vmem:[#allocation2 + $0x150] sm:$0xff]
      %v4318 = vld [vmem:[#allocation2 + $0x158] sm:$0xff]
      %v4319 = vld [vmem:[#allocation2 + $0x168] sm:$0xff]
      %v4320 = vld [vmem:[#allocation2 + $0x170] sm:$0xff]
      %v4321 = vld [vmem:[#allocation2 + $0x1] sm:$0xff]
      %v4322 = vld [vmem:[#allocation2 + $0x9] sm:$0xff]
      %v4323 = vld [vmem:[#allocation2 + $0x19] sm:$0xff]
      %v4324 = vld [vmem:[#allocation2 + $0x21] sm:$0xff]
      %v4325 = vld [vmem:[#allocation2 + $0x31] sm:$0xff]
      %v4326 = vld [vmem:[#allocation2 + $0x39] sm:$0xff]
      %v4327 = vld [vmem:[#allocation2 + $0x49] sm:$0xff]
      %v4328 = vld [vmem:[#allocation2 + $0x51] sm:$0xff]
      %v4329 = vld [vmem:[#allocation2 + $0x61] sm:$0xff]
      %v4330 = vld [vmem:[#allocation2 + $0x69] sm:$0xff]
      %v4331 = vld [vmem:[#allocation2 + $0x79] sm:$0xff]
      %v4332 = vld [vmem:[#allocation2 + $0x81] sm:$0xff]
      %v4333 = vld [vmem:[#allocation2 + $0x91] sm:$0xff]
      %v4334 = vld [vmem:[#allocation2 + $0x99] sm:$0xff]
      %v4335 = vld [vmem:[#allocation2 + $0xa9] sm:$0xff]
      %v4336 = vld [vmem:[#allocation2 + $0xb1] sm:$0xff]
      %v4337 = vld [vmem:[#allocation2 + $0xc1] sm:$0xff]
      %v4338 = vld [vmem:[#allocation2 + $0xc9] sm:$0xff]
      %v4339 = vld [vmem:[#allocation2 + $0xd9] sm:$0xff]
      %v4340 = vld [vmem:[#allocation2 + $0xe1] sm:$0xff]
      %v4341 = vld [vmem:[#allocation2 + $0xf1] sm:$0xff]
      %v4342 = vld [vmem:[#allocation2 + $0xf9] sm:$0xff]
      %v4343 = vld [vmem:[#allocation2 + $0x109] sm:$0xff]
      %v4344 = vld [vmem:[#allocation2 + $0x111] sm:$0xff]
      %v4345 = vld [vmem:[#allocation2 + $0x121] sm:$0xff]
      %v4346 = vld [vmem:[#allocation2 + $0x129] sm:$0xff]
      %v4347 = vld [vmem:[#allocation2 + $0x139] sm:$0xff]
      %v4348 = vld [vmem:[#allocation2 + $0x141] sm:$0xff]
      %v4349 = vld [vmem:[#allocation2 + $0x151] sm:$0xff]
      %v4350 = vld [vmem:[#allocation2 + $0x159] sm:$0xff]
      %v4351 = vld [vmem:[#allocation2 + $0x169] sm:$0xff]
      %v4352 = vld [vmem:[#allocation2 + $0x171] sm:$0xff]
      %v4353 = vld [vmem:[#allocation2 + $0x2] sm:$0xff]
      %v4354 = vld [vmem:[#allocation2 + $0xa] sm:$0xff]
      %v4355 = vld [vmem:[#allocation2 + $0x1a] sm:$0xff]
      %v4356 = vld [vmem:[#allocation2 + $0x22] sm:$0xff]
      %v4357 = vld [vmem:[#allocation2 + $0x32] sm:$0xff]
      %v4358 = vld [vmem:[#allocation2 + $0x3a] sm:$0xff]
      %v4359 = vld [vmem:[#allocation2 + $0x4a] sm:$0xff]
      %v4360 = vld [vmem:[#allocation2 + $0x52] sm:$0xff]
      %v4361 = vld [vmem:[#allocation2 + $0x62] sm:$0xff]
      %v4362 = vld [vmem:[#allocation2 + $0x6a] sm:$0xff]
      %v4363 = vld [vmem:[#allocation2 + $0x7a] sm:$0xff]
      %v4364 = vld [vmem:[#allocation2 + $0x82] sm:$0xff]
      %v4365 = vld [vmem:[#allocation2 + $0x92] sm:$0xff]
      %v4366 = vld [vmem:[#allocation2 + $0x9a] sm:$0xff]
      %v4367 = vld [vmem:[#allocation2 + $0xaa] sm:$0xff]
      %v4368 = vld [vmem:[#allocation2 + $0xb2] sm:$0xff]
      %v4369 = vld [vmem:[#allocation2 + $0xc2] sm:$0xff]
      %v4370 = vld [vmem:[#allocation2 + $0xca] sm:$0xff]
      %v4371 = vld [vmem:[#allocation2 + $0xda] sm:$0xff]
      %v4372 = vld [vmem:[#allocation2 + $0xe2] sm:$0xff]
      %v4373 = vld [vmem:[#allocation2 + $0xf2] sm:$0xff]
      %v4374 = vld [vmem:[#allocation2 + $0xfa] sm:$0xff]
      %v4375 = vld [vmem:[#allocation2 + $0x10a] sm:$0xff]
      %v4376 = vld [vmem:[#allocation2 + $0x112] sm:$0xff]
      %v4377 = vld [vmem:[#allocation2 + $0x122] sm:$0xff]
      %v4378 = vld [vmem:[#allocation2 + $0x12a] sm:$0xff]
      %v4379 = vld [vmem:[#allocation2 + $0x13a] sm:$0xff]
      %v4380 = vld [vmem:[#allocation2 + $0x142] sm:$0xff]
      %v4381 = vld [vmem:[#allocation2 + $0x152] sm:$0xff]
      %v4382 = vld [vmem:[#allocation2 + $0x15a] sm:$0xff]
      %v4383 = vld [vmem:[#allocation2 + $0x16a] sm:$0xff]
      %v4384 = vld [vmem:[#allocation2 + $0x172] sm:$0xff]
      %v4385 = vld [vmem:[%s476] sm:$0xff]
      %v4386 = vld [vmem:[%s476 + $0x8] sm:$0xff]
      %v4387 = vld [vmem:[%s476 + $0x18] sm:$0xff]
      %v4388 = vld [vmem:[%s476 + $0x20] sm:$0xff]
      %v4389 = vld [vmem:[%s476 + $0x30] sm:$0xff]
      %v4390 = vld [vmem:[%s476 + $0x38] sm:$0xff]
      %v4391 = vld [vmem:[%s476 + $0x48] sm:$0xff]
      %v4392 = vld [vmem:[%s476 + $0x50] sm:$0xff]
      %v4393 = vld [vmem:[%s476 + $0x60] sm:$0xff]
      %v4394 = vld [vmem:[%s476 + $0x68] sm:$0xff]
      %v4395 = vld [vmem:[%s476 + $0x78] sm:$0xff]
      %v4396 = vld [vmem:[%s476 + $0x80] sm:$0xff]
      %v4397 = vld [vmem:[%s476 + $0x90] sm:$0xff]
      %v4398 = vld [vmem:[%s476 + $0x98] sm:$0xff]
      %v4399 = vld [vmem:[%s476 + $0xa8] sm:$0xff]
      %v4400 = vld [vmem:[%s476 + $0xb0] sm:$0xff]
      %v4401 = vld [vmem:[%s476 + $0xc0] sm:$0xff]
      %v4402 = vld [vmem:[%s476 + $0xc8] sm:$0xff]
      %v4403 = vld [vmem:[%s476 + $0xd8] sm:$0xff]
      %v4404 = vld [vmem:[%s476 + $0xe0] sm:$0xff]
      %v4405 = vld [vmem:[%s476 + $0xf0] sm:$0xff]
      %v4406 = vld [vmem:[%s476 + $0xf8] sm:$0xff]
      %v4407 = vld [vmem:[%s476 + $0x108] sm:$0xff]
      %v4408 = vld [vmem:[%s476 + $0x110] sm:$0xff]
      %v4409 = vld [vmem:[%s476 + $0x120] sm:$0xff]
      %v4410 = vld [vmem:[%s476 + $0x128] sm:$0xff]
      %v4411 = vld [vmem:[%s476 + $0x138] sm:$0xff]
      %v4412 = vld [vmem:[%s476 + $0x140] sm:$0xff]
      %v4413 = vld [vmem:[%s476 + $0x150] sm:$0xff]
      %v4414 = vld [vmem:[%s476 + $0x158] sm:$0xff]
      %v4415 = vld [vmem:[%s476 + $0x168] sm:$0xff]
      %v4416 = vld [vmem:[%s476 + $0x170] sm:$0xff]
      %v4417 = vld [vmem:[%s476 + $0x1] sm:$0xff]
      %v4418 = vld [vmem:[%s476 + $0x9] sm:$0xff]
      %v4419 = vld [vmem:[%s476 + $0x19] sm:$0xff]
      %v4420 = vld [vmem:[%s476 + $0x21] sm:$0xff]
      %v4421 = vld [vmem:[%s476 + $0x31] sm:$0xff]
      %v4422 = vld [vmem:[%s476 + $0x39] sm:$0xff]
      %v4423 = vld [vmem:[%s476 + $0x49] sm:$0xff]
      %v4424 = vld [vmem:[%s476 + $0x51] sm:$0xff]
      %v4425 = vld [vmem:[%s476 + $0x61] sm:$0xff]
      %v4426 = vld [vmem:[%s476 + $0x69] sm:$0xff]
      %v4427 = vld [vmem:[%s476 + $0x79] sm:$0xff]
      %v4428 = vld [vmem:[%s476 + $0x81] sm:$0xff]
      %v4429 = vld [vmem:[%s476 + $0x91] sm:$0xff]
      %v4430 = vld [vmem:[%s476 + $0x99] sm:$0xff]
      %v4431 = vld [vmem:[%s476 + $0xa9] sm:$0xff]
      %v4432 = vld [vmem:[%s476 + $0xb1] sm:$0xff]
      %v4433 = vld [vmem:[%s476 + $0xc1] sm:$0xff]
      %v4434 = vld [vmem:[%s476 + $0xc9] sm:$0xff]
      %v4435 = vld [vmem:[%s476 + $0xd9] sm:$0xff]
      %v4436 = vld [vmem:[%s476 + $0xe1] sm:$0xff]
      %v4437 = vld [vmem:[%s476 + $0xf1] sm:$0xff]
      %v4438 = vld [vmem:[%s476 + $0xf9] sm:$0xff]
      %v4439 = vld [vmem:[%s476 + $0x109] sm:$0xff]
      %v4440 = vld [vmem:[%s476 + $0x111] sm:$0xff]
      %v4441 = vld [vmem:[%s476 + $0x121] sm:$0xff]
      %v4442 = vld [vmem:[%s476 + $0x129] sm:$0xff]
      %v4443 = vld [vmem:[%s476 + $0x139] sm:$0xff]
      %v4444 = vld [vmem:[%s476 + $0x141] sm:$0xff]
      %v4445 = vld [vmem:[%s476 + $0x151] sm:$0xff]
      %v4446 = vld [vmem:[%s476 + $0x159] sm:$0xff]
      %v4447 = vld [vmem:[%s476 + $0x169] sm:$0xff]
      %v4448 = vld [vmem:[%s476 + $0x171] sm:$0xff]
      %v4449 = vld [vmem:[%s476 + $0x2] sm:$0xff]
      %v4450 = vld [vmem:[%s476 + $0xa] sm:$0xff]
      %v4451 = vld [vmem:[%s476 + $0x1a] sm:$0xff]
      %v4452 = vld [vmem:[%s476 + $0x22] sm:$0xff]
      %v4453 = vld [vmem:[%s476 + $0x32] sm:$0xff]
      %v4454 = vld [vmem:[%s476 + $0x3a] sm:$0xff]
      %v4455 = vld [vmem:[%s476 + $0x4a] sm:$0xff]
      %v4456 = vld [vmem:[%s476 + $0x52] sm:$0xff]
      %v4457 = vld [vmem:[%s476 + $0x62] sm:$0xff]
      %v4458 = vld [vmem:[%s476 + $0x6a] sm:$0xff]
      %v4459 = vld [vmem:[%s476 + $0x7a] sm:$0xff]
      %v4460 = vld [vmem:[%s476 + $0x82] sm:$0xff]
      %v4461 = vld [vmem:[%s476 + $0x92] sm:$0xff]
      %v4462 = vld [vmem:[%s476 + $0x9a] sm:$0xff]
      %v4463 = vld [vmem:[%s476 + $0xaa] sm:$0xff]
      %v4464 = vld [vmem:[%s476 + $0xb2] sm:$0xff]
      %v4465 = vld [vmem:[%s476 + $0xc2] sm:$0xff]
      %v4466 = vld [vmem:[%s476 + $0xca] sm:$0xff]
      %v4467 = vld [vmem:[%s476 + $0xda] sm:$0xff]
      %v4468 = vld [vmem:[%s476 + $0xe2] sm:$0xff]
      %v4469 = vld [vmem:[%s476 + $0xf2] sm:$0xff]
      %v4470 = vld [vmem:[%s476 + $0xfa] sm:$0xff]
      %v4471 = vld [vmem:[%s476 + $0x10a] sm:$0xff]
      %v4472 = vld [vmem:[%s476 + $0x112] sm:$0xff]
      %v4473 = vld [vmem:[%s476 + $0x122] sm:$0xff]
      %v4474 = vld [vmem:[%s476 + $0x12a] sm:$0xff]
      %v4475 = vld [vmem:[%s476 + $0x13a] sm:$0xff]
      %v4476 = vld [vmem:[%s476 + $0x142] sm:$0xff]
      %v4477 = vld [vmem:[%s476 + $0x152] sm:$0xff]
      %v4478 = vld [vmem:[%s476 + $0x15a] sm:$0xff]
      %v4479 = vld [vmem:[%s476 + $0x16a] sm:$0xff]
      %v4480 = vld [vmem:[%s476 + $0x172] sm:$0xff]
      %v4481 = vld [vmem:[%s702] sm:$0xff]
      %v4482 = vld [vmem:[%s702 + $0x8] sm:$0xff]
      %v4483 = vld [vmem:[%s702 + $0x18] sm:$0xff]
      %v4484 = vld [vmem:[%s702 + $0x20] sm:$0xff]
      %v4485 = vld [vmem:[%s702 + $0x30] sm:$0xff]
      %v4486 = vld [vmem:[%s702 + $0x38] sm:$0xff]
      %v4487 = vld [vmem:[%s702 + $0x48] sm:$0xff]
      %v4488 = vld [vmem:[%s702 + $0x50] sm:$0xff]
      %v4489 = vld [vmem:[%s702 + $0x60] sm:$0xff]
      %v4490 = vld [vmem:[%s702 + $0x68] sm:$0xff]
      %v4491 = vld [vmem:[%s702 + $0x78] sm:$0xff]
      %v4492 = vld [vmem:[%s702 + $0x80] sm:$0xff]
      %v4493 = vld [vmem:[%s702 + $0x90] sm:$0xff]
      %v4494 = vld [vmem:[%s702 + $0x98] sm:$0xff]
      %v4495 = vld [vmem:[%s702 + $0xa8] sm:$0xff]
      %v4496 = vld [vmem:[%s702 + $0xb0] sm:$0xff]
      %v4497 = vld [vmem:[%s702 + $0xc0] sm:$0xff]
      %v4498 = vld [vmem:[%s702 + $0xc8] sm:$0xff]
      %v4499 = vld [vmem:[%s702 + $0xd8] sm:$0xff]
      %v4500 = vld [vmem:[%s702 + $0xe0] sm:$0xff]
      %v4501 = vld [vmem:[%s702 + $0xf0] sm:$0xff]
      %v4502 = vld [vmem:[%s702 + $0xf8] sm:$0xff]
      %v4503 = vld [vmem:[%s702 + $0x108] sm:$0xff]
      %v4504 = vld [vmem:[%s702 + $0x110] sm:$0xff]
      %v4505 = vld [vmem:[%s702 + $0x120] sm:$0xff]
      %v4506 = vld [vmem:[%s702 + $0x128] sm:$0xff]
      %v4507 = vld [vmem:[%s702 + $0x138] sm:$0xff]
      %v4508 = vld [vmem:[%s702 + $0x140] sm:$0xff]
      %v4509 = vld [vmem:[%s702 + $0x150] sm:$0xff]
      %v4510 = vld [vmem:[%s702 + $0x158] sm:$0xff]
      %v4511 = vld [vmem:[%s702 + $0x168] sm:$0xff]
      %v4512 = vld [vmem:[%s702 + $0x170] sm:$0xff]
      %v4513 = vld [vmem:[%s702 + $0x1] sm:$0xff]
      %v4514 = vld [vmem:[%s702 + $0x9] sm:$0xff]
      %v4515 = vld [vmem:[%s702 + $0x19] sm:$0xff]
      %v4516 = vld [vmem:[%s702 + $0x21] sm:$0xff]
      %v4517 = vld [vmem:[%s702 + $0x31] sm:$0xff]
      %v4518 = vld [vmem:[%s702 + $0x39] sm:$0xff]
      %v4519 = vld [vmem:[%s702 + $0x49] sm:$0xff]
      %v4520 = vld [vmem:[%s702 + $0x51] sm:$0xff]
      %v4521 = vld [vmem:[%s702 + $0x61] sm:$0xff]
      %v4522 = vld [vmem:[%s702 + $0x69] sm:$0xff]
      %v4523 = vld [vmem:[%s702 + $0x79] sm:$0xff]
      %v4524 = vld [vmem:[%s702 + $0x81] sm:$0xff]
      %v4525 = vld [vmem:[%s702 + $0x91] sm:$0xff]
      %v4526 = vld [vmem:[%s702 + $0x99] sm:$0xff]
      %v4527 = vld [vmem:[%s702 + $0xa9] sm:$0xff]
      %v4528 = vld [vmem:[%s702 + $0xb1] sm:$0xff]
      %v4529 = vld [vmem:[%s702 + $0xc1] sm:$0xff]
      %v4530 = vld [vmem:[%s702 + $0xc9] sm:$0xff]
      %v4531 = vld [vmem:[%s702 + $0xd9] sm:$0xff]
      %v4532 = vld [vmem:[%s702 + $0xe1] sm:$0xff]
      %v4533 = vld [vmem:[%s702 + $0xf1] sm:$0xff]
      %v4534 = vld [vmem:[%s702 + $0xf9] sm:$0xff]
      %v4535 = vld [vmem:[%s702 + $0x109] sm:$0xff]
      %v4536 = vld [vmem:[%s702 + $0x111] sm:$0xff]
      %v4537 = vld [vmem:[%s702 + $0x121] sm:$0xff]
      %v4538 = vld [vmem:[%s702 + $0x129] sm:$0xff]
      %v4539 = vld [vmem:[%s702 + $0x139] sm:$0xff]
      %v4540 = vld [vmem:[%s702 + $0x141] sm:$0xff]
      %v4541 = vld [vmem:[%s702 + $0x151] sm:$0xff]
      %v4542 = vld [vmem:[%s702 + $0x159] sm:$0xff]
      %v4543 = vld [vmem:[%s702 + $0x169] sm:$0xff]
      %v4544 = vld [vmem:[%s702 + $0x171] sm:$0xff]
      %v4545 = vld [vmem:[%s702 + $0x2] sm:$0xff]
      %v4546 = vld [vmem:[%s702 + $0xa] sm:$0xff]
      %v4547 = vld [vmem:[%s702 + $0x1a] sm:$0xff]
      %v4548 = vld [vmem:[%s702 + $0x22] sm:$0xff]
      %v4549 = vld [vmem:[%s702 + $0x32] sm:$0xff]
      %v4550 = vld [vmem:[%s702 + $0x3a] sm:$0xff]
      %v4551 = vld [vmem:[%s702 + $0x4a] sm:$0xff]
      %v4552 = vld [vmem:[%s702 + $0x52] sm:$0xff]
      %v4553 = vld [vmem:[%s702 + $0x62] sm:$0xff]
      %v4554 = vld [vmem:[%s702 + $0x6a] sm:$0xff]
      %v4555 = vld [vmem:[%s702 + $0x7a] sm:$0xff]
      %v4556 = vld [vmem:[%s702 + $0x82] sm:$0xff]
      %v4557 = vld [vmem:[%s702 + $0x92] sm:$0xff]
      %v4558 = vld [vmem:[%s702 + $0x9a] sm:$0xff]
      %v4559 = vld [vmem:[%s702 + $0xaa] sm:$0xff]
      %v4560 = vld [vmem:[%s702 + $0xb2] sm:$0xff]
      %v4561 = vld [vmem:[%s702 + $0xc2] sm:$0xff]
      %v4562 = vld [vmem:[%s702 + $0xca] sm:$0xff]
      %v4563 = vld [vmem:[%s702 + $0xda] sm:$0xff]
      %v4564 = vld [vmem:[%s702 + $0xe2] sm:$0xff]
      %v4565 = vld [vmem:[%s702 + $0xf2] sm:$0xff]
      %v4566 = vld [vmem:[%s702 + $0xfa] sm:$0xff]
      %v4567 = vld [vmem:[%s702 + $0x10a] sm:$0xff]
      %v4568 = vld [vmem:[%s702 + $0x112] sm:$0xff]
      %v4569 = vld [vmem:[%s702 + $0x122] sm:$0xff]
      %v4570 = vld [vmem:[%s702 + $0x12a] sm:$0xff]
      %v4571 = vld [vmem:[%s702 + $0x13a] sm:$0xff]
      %v4572 = vld [vmem:[%s702 + $0x142] sm:$0xff]
      %v4573 = vld [vmem:[%s702 + $0x152] sm:$0xff]
      %v4574 = vld [vmem:[%s702 + $0x15a] sm:$0xff]
      %v4575 = vld [vmem:[%s702 + $0x16a] sm:$0xff]
      %v4576 = vld [vmem:[%s702 + $0x172] sm:$0xff]
      %4609 = vrot.lane.b32.xlu0 %v4321, 32
      %v4610 = vpop.permute.xlu0 %4609
      %4611 = vrot.lane.b32.xlu0 %v4322, 32
      %v4612 = vpop.permute.xlu0 %4611
      %4613 = vrot.lane.b32.xlu0 %v4323, 32
      %v4614 = vpop.permute.xlu0 %4613
      %4615 = vrot.lane.b32.xlu0 %v4324, 32
      %v4616 = vpop.permute.xlu0 %4615
      %4617 = vrot.lane.b32.xlu0 %v4325, 32
      %v4618 = vpop.permute.xlu0 %4617
      %4619 = vrot.lane.b32.xlu0 %v4326, 32
      %v4620 = vpop.permute.xlu0 %4619
      %4621 = vrot.lane.b32.xlu0 %v4327, 32
      %v4622 = vpop.permute.xlu0 %4621
      %4623 = vrot.lane.b32.xlu0 %v4328, 32
      %v4624 = vpop.permute.xlu0 %4623
      %4625 = vrot.lane.b32.xlu0 %v4329, 32
      %v4626 = vpop.permute.xlu0 %4625
      %4627 = vrot.lane.b32.xlu0 %v4330, 32
      %v4628 = vpop.permute.xlu0 %4627
      %4629 = vrot.lane.b32.xlu0 %v4331, 32
      %v4630 = vpop.permute.xlu0 %4629
      %4631 = vrot.lane.b32.xlu0 %v4332, 32
      %v4632 = vpop.permute.xlu0 %4631
      %4633 = vrot.lane.b32.xlu0 %v4333, 32
      %v4634 = vpop.permute.xlu0 %4633
      %4635 = vrot.lane.b32.xlu0 %v4334, 32
      %v4636 = vpop.permute.xlu0 %4635
      %4637 = vrot.lane.b32.xlu0 %v4335, 32
      %v4638 = vpop.permute.xlu0 %4637
      %4639 = vrot.lane.b32.xlu0 %v4336, 32
      %v4640 = vpop.permute.xlu0 %4639
      %4641 = vrot.lane.b32.xlu0 %v4337, 32
      %v4642 = vpop.permute.xlu0 %4641
      %4643 = vrot.lane.b32.xlu0 %v4338, 32
      %v4644 = vpop.permute.xlu0 %4643
      %4645 = vrot.lane.b32.xlu0 %v4339, 32
      %v4646 = vpop.permute.xlu0 %4645
      %4647 = vrot.lane.b32.xlu0 %v4340, 32
      %v4648 = vpop.permute.xlu0 %4647
      %4649 = vrot.lane.b32.xlu0 %v4341, 32
      %v4650 = vpop.permute.xlu0 %4649
      %4651 = vrot.lane.b32.xlu0 %v4342, 32
      %v4652 = vpop.permute.xlu0 %4651
      %4653 = vrot.lane.b32.xlu0 %v4343, 32
      %v4654 = vpop.permute.xlu0 %4653
      %4655 = vrot.lane.b32.xlu0 %v4344, 32
      %v4656 = vpop.permute.xlu0 %4655
      %4657 = vrot.lane.b32.xlu0 %v4345, 32
      %v4658 = vpop.permute.xlu0 %4657
      %4659 = vrot.lane.b32.xlu0 %v4346, 32
      %v4660 = vpop.permute.xlu0 %4659
      %4661 = vrot.lane.b32.xlu0 %v4347, 32
      %v4662 = vpop.permute.xlu0 %4661
      %4663 = vrot.lane.b32.xlu0 %v4348, 32
      %v4664 = vpop.permute.xlu0 %4663
      %4665 = vrot.lane.b32.xlu0 %v4349, 32
      %v4666 = vpop.permute.xlu0 %4665
      %4667 = vrot.lane.b32.xlu0 %v4350, 32
      %v4668 = vpop.permute.xlu0 %4667
      %4669 = vrot.lane.b32.xlu0 %v4351, 32
      %v4670 = vpop.permute.xlu0 %4669
      %4671 = vrot.lane.b32.xlu0 %v4352, 32
      %v4672 = vpop.permute.xlu0 %4671
      %4737 = vrot.lane.b32.xlu0 %v4353, 64
      %v4738 = vpop.permute.xlu0 %4737
      %4739 = vrot.lane.b32.xlu0 %v4354, 64
      %v4740 = vpop.permute.xlu0 %4739
      %4741 = vrot.lane.b32.xlu0 %v4355, 64
      %v4742 = vpop.permute.xlu0 %4741
      %4743 = vrot.lane.b32.xlu0 %v4356, 64
      %v4744 = vpop.permute.xlu0 %4743
      %4745 = vrot.lane.b32.xlu0 %v4357, 64
      %v4746 = vpop.permute.xlu0 %4745
      %4747 = vrot.lane.b32.xlu0 %v4358, 64
      %v4748 = vpop.permute.xlu0 %4747
      %4749 = vrot.lane.b32.xlu0 %v4359, 64
      %v4750 = vpop.permute.xlu0 %4749
      %4751 = vrot.lane.b32.xlu0 %v4360, 64
      %v4752 = vpop.permute.xlu0 %4751
      %4753 = vrot.lane.b32.xlu0 %v4361, 64
      %v4754 = vpop.permute.xlu0 %4753
      %4755 = vrot.lane.b32.xlu0 %v4362, 64
      %v4756 = vpop.permute.xlu0 %4755
      %4757 = vrot.lane.b32.xlu0 %v4363, 64
      %v4758 = vpop.permute.xlu0 %4757
      %4759 = vrot.lane.b32.xlu0 %v4364, 64
      %v4760 = vpop.permute.xlu0 %4759
      %4761 = vrot.lane.b32.xlu0 %v4365, 64
      %v4762 = vpop.permute.xlu0 %4761
      %4763 = vrot.lane.b32.xlu0 %v4366, 64
      %v4764 = vpop.permute.xlu0 %4763
      %4765 = vrot.lane.b32.xlu0 %v4367, 64
      %v4766 = vpop.permute.xlu0 %4765
      %4767 = vrot.lane.b32.xlu0 %v4368, 64
      %v4768 = vpop.permute.xlu0 %4767
      %4769 = vrot.lane.b32.xlu0 %v4369, 64
      %v4770 = vpop.permute.xlu0 %4769
      %4771 = vrot.lane.b32.xlu0 %v4370, 64
      %v4772 = vpop.permute.xlu0 %4771
      %4773 = vrot.lane.b32.xlu0 %v4371, 64
      %v4774 = vpop.permute.xlu0 %4773
      %4775 = vrot.lane.b32.xlu0 %v4372, 64
      %v4776 = vpop.permute.xlu0 %4775
      %4777 = vrot.lane.b32.xlu0 %v4373, 64
      %v4778 = vpop.permute.xlu0 %4777
      %4779 = vrot.lane.b32.xlu0 %v4374, 64
      %v4780 = vpop.permute.xlu0 %4779
      %4781 = vrot.lane.b32.xlu0 %v4375, 64
      %v4782 = vpop.permute.xlu0 %4781
      %4783 = vrot.lane.b32.xlu0 %v4376, 64
      %v4784 = vpop.permute.xlu0 %4783
      %4785 = vrot.lane.b32.xlu0 %v4377, 64
      %v4786 = vpop.permute.xlu0 %4785
      %4787 = vrot.lane.b32.xlu0 %v4378, 64
      %v4788 = vpop.permute.xlu0 %4787
      %4789 = vrot.lane.b32.xlu0 %v4379, 64
      %v4790 = vpop.permute.xlu0 %4789
      %4791 = vrot.lane.b32.xlu0 %v4380, 64
      %v4792 = vpop.permute.xlu0 %4791
      %4793 = vrot.lane.b32.xlu0 %v4381, 64
      %v4794 = vpop.permute.xlu0 %4793
      %4795 = vrot.lane.b32.xlu0 %v4382, 64
      %v4796 = vpop.permute.xlu0 %4795
      %4797 = vrot.lane.b32.xlu0 %v4383, 64
      %v4798 = vpop.permute.xlu0 %4797
      %4799 = vrot.lane.b32.xlu0 %v4384, 64
      %v4800 = vpop.permute.xlu0 %4799
      %4865 = vrot.lane.b32.xlu0 %v4385, 96
      %v4866 = vpop.permute.xlu0 %4865
      %4867 = vrot.lane.b32.xlu0 %v4386, 96
      %v4868 = vpop.permute.xlu0 %4867
      %4869 = vrot.lane.b32.xlu0 %v4387, 96
      %v4870 = vpop.permute.xlu0 %4869
      %4871 = vrot.lane.b32.xlu0 %v4388, 96
      %v4872 = vpop.permute.xlu0 %4871
      %4873 = vrot.lane.b32.xlu0 %v4389, 96
      %v4874 = vpop.permute.xlu0 %4873
      %4875 = vrot.lane.b32.xlu0 %v4390, 96
      %v4876 = vpop.permute.xlu0 %4875
      %4877 = vrot.lane.b32.xlu0 %v4391, 96
      %v4878 = vpop.permute.xlu0 %4877
      %4879 = vrot.lane.b32.xlu0 %v4392, 96
      %v4880 = vpop.permute.xlu0 %4879
      %4881 = vrot.lane.b32.xlu0 %v4393, 96
      %v4882 = vpop.permute.xlu0 %4881
      %4883 = vrot.lane.b32.xlu0 %v4394, 96
      %v4884 = vpop.permute.xlu0 %4883
      %4885 = vrot.lane.b32.xlu0 %v4395, 96
      %v4886 = vpop.permute.xlu0 %4885
      %4887 = vrot.lane.b32.xlu0 %v4396, 96
      %v4888 = vpop.permute.xlu0 %4887
      %4889 = vrot.lane.b32.xlu0 %v4397, 96
      %v4890 = vpop.permute.xlu0 %4889
      %4891 = vrot.lane.b32.xlu0 %v4398, 96
      %v4892 = vpop.permute.xlu0 %4891
      %4893 = vrot.lane.b32.xlu0 %v4399, 96
      %v4894 = vpop.permute.xlu0 %4893
      %4895 = vrot.lane.b32.xlu0 %v4400, 96
      %v4896 = vpop.permute.xlu0 %4895
      %4897 = vrot.lane.b32.xlu0 %v4401, 96
      %v4898 = vpop.permute.xlu0 %4897
      %4899 = vrot.lane.b32.xlu0 %v4402, 96
      %v4900 = vpop.permute.xlu0 %4899
      %4901 = vrot.lane.b32.xlu0 %v4403, 96
      %v4902 = vpop.permute.xlu0 %4901
      %4903 = vrot.lane.b32.xlu0 %v4404, 96
      %v4904 = vpop.permute.xlu0 %4903
      %4905 = vrot.lane.b32.xlu0 %v4405, 96
      %v4906 = vpop.permute.xlu0 %4905
      %4907 = vrot.lane.b32.xlu0 %v4406, 96
      %v4908 = vpop.permute.xlu0 %4907
      %4909 = vrot.lane.b32.xlu0 %v4407, 96
      %v4910 = vpop.permute.xlu0 %4909
      %4911 = vrot.lane.b32.xlu0 %v4408, 96
      %v4912 = vpop.permute.xlu0 %4911
      %4913 = vrot.lane.b32.xlu0 %v4409, 96
      %v4914 = vpop.permute.xlu0 %4913
      %4915 = vrot.lane.b32.xlu0 %v4410, 96
      %v4916 = vpop.permute.xlu0 %4915
      %4917 = vrot.lane.b32.xlu0 %v4411, 96
      %v4918 = vpop.permute.xlu0 %4917
      %4919 = vrot.lane.b32.xlu0 %v4412, 96
      %v4920 = vpop.permute.xlu0 %4919
      %4921 = vrot.lane.b32.xlu0 %v4413, 96
      %v4922 = vpop.permute.xlu0 %4921
      %4923 = vrot.lane.b32.xlu0 %v4414, 96
      %v4924 = vpop.permute.xlu0 %4923
      %4925 = vrot.lane.b32.xlu0 %v4415, 96
      %v4926 = vpop.permute.xlu0 %4925
      %4927 = vrot.lane.b32.xlu0 %v4416, 96
      %v4928 = vpop.permute.xlu0 %4927
      %4993 = vrot.lane.b32.xlu0 %v4449, 32
      %v4994 = vpop.permute.xlu0 %4993
      %4995 = vrot.lane.b32.xlu0 %v4450, 32
      %v4996 = vpop.permute.xlu0 %4995
      %4997 = vrot.lane.b32.xlu0 %v4451, 32
      %v4998 = vpop.permute.xlu0 %4997
      %4999 = vrot.lane.b32.xlu0 %v4452, 32
      %v5000 = vpop.permute.xlu0 %4999
      %5001 = vrot.lane.b32.xlu0 %v4453, 32
      %v5002 = vpop.permute.xlu0 %5001
      %5003 = vrot.lane.b32.xlu0 %v4454, 32
      %v5004 = vpop.permute.xlu0 %5003
      %5005 = vrot.lane.b32.xlu0 %v4455, 32
      %v5006 = vpop.permute.xlu0 %5005
      %5007 = vrot.lane.b32.xlu0 %v4456, 32
      %v5008 = vpop.permute.xlu0 %5007
      %5009 = vrot.lane.b32.xlu0 %v4457, 32
      %v5010 = vpop.permute.xlu0 %5009
      %5011 = vrot.lane.b32.xlu0 %v4458, 32
      %v5012 = vpop.permute.xlu0 %5011
      %5013 = vrot.lane.b32.xlu0 %v4459, 32
      %v5014 = vpop.permute.xlu0 %5013
      %5015 = vrot.lane.b32.xlu0 %v4460, 32
      %v5016 = vpop.permute.xlu0 %5015
      %5017 = vrot.lane.b32.xlu0 %v4461, 32
      %v5018 = vpop.permute.xlu0 %5017
      %5019 = vrot.lane.b32.xlu0 %v4462, 32
      %v5020 = vpop.permute.xlu0 %5019
      %5021 = vrot.lane.b32.xlu0 %v4463, 32
      %v5022 = vpop.permute.xlu0 %5021
      %5023 = vrot.lane.b32.xlu0 %v4464, 32
      %v5024 = vpop.permute.xlu0 %5023
      %5025 = vrot.lane.b32.xlu0 %v4465, 32
      %v5026 = vpop.permute.xlu0 %5025
      %5027 = vrot.lane.b32.xlu0 %v4466, 32
      %v5028 = vpop.permute.xlu0 %5027
      %5029 = vrot.lane.b32.xlu0 %v4467, 32
      %v5030 = vpop.permute.xlu0 %5029
      %5031 = vrot.lane.b32.xlu0 %v4468, 32
      %v5032 = vpop.permute.xlu0 %5031
      %5033 = vrot.lane.b32.xlu0 %v4469, 32
      %v5034 = vpop.permute.xlu0 %5033
      %5035 = vrot.lane.b32.xlu0 %v4470, 32
      %v5036 = vpop.permute.xlu0 %5035
      %5037 = vrot.lane.b32.xlu0 %v4471, 32
      %v5038 = vpop.permute.xlu0 %5037
      %5039 = vrot.lane.b32.xlu0 %v4472, 32
      %v5040 = vpop.permute.xlu0 %5039
      %5041 = vrot.lane.b32.xlu0 %v4473, 32
      %v5042 = vpop.permute.xlu0 %5041
      %5043 = vrot.lane.b32.xlu0 %v4474, 32
      %v5044 = vpop.permute.xlu0 %5043
      %5045 = vrot.lane.b32.xlu0 %v4475, 32
      %v5046 = vpop.permute.xlu0 %5045
      %5047 = vrot.lane.b32.xlu0 %v4476, 32
      %v5048 = vpop.permute.xlu0 %5047
      %5049 = vrot.lane.b32.xlu0 %v4477, 32
      %v5050 = vpop.permute.xlu0 %5049
      %5051 = vrot.lane.b32.xlu0 %v4478, 32
      %v5052 = vpop.permute.xlu0 %5051
      %5053 = vrot.lane.b32.xlu0 %v4479, 32
      %v5054 = vpop.permute.xlu0 %5053
      %5055 = vrot.lane.b32.xlu0 %v4480, 32
      %v5056 = vpop.permute.xlu0 %5055
      %5121 = vrot.lane.b32.xlu0 %v4481, 64
      %v5122 = vpop.permute.xlu0 %5121
      %5123 = vrot.lane.b32.xlu0 %v4482, 64
      %v5124 = vpop.permute.xlu0 %5123
      %5125 = vrot.lane.b32.xlu0 %v4483, 64
      %v5126 = vpop.permute.xlu0 %5125
      %5127 = vrot.lane.b32.xlu0 %v4484, 64
      %v5128 = vpop.permute.xlu0 %5127
      %5129 = vrot.lane.b32.xlu0 %v4485, 64
      %v5130 = vpop.permute.xlu0 %5129
      %5131 = vrot.lane.b32.xlu0 %v4486, 64
      %v5132 = vpop.permute.xlu0 %5131
      %5133 = vrot.lane.b32.xlu0 %v4487, 64
      %v5134 = vpop.permute.xlu0 %5133
      %5135 = vrot.lane.b32.xlu0 %v4488, 64
      %v5136 = vpop.permute.xlu0 %5135
      %5137 = vrot.lane.b32.xlu0 %v4489, 64
      %v5138 = vpop.permute.xlu0 %5137
      %5139 = vrot.lane.b32.xlu0 %v4490, 64
      %v5140 = vpop.permute.xlu0 %5139
      %5141 = vrot.lane.b32.xlu0 %v4491, 64
      %v5142 = vpop.permute.xlu0 %5141
      %5143 = vrot.lane.b32.xlu0 %v4492, 64
      %v5144 = vpop.permute.xlu0 %5143
      %5145 = vrot.lane.b32.xlu0 %v4493, 64
      %v5146 = vpop.permute.xlu0 %5145
      %5147 = vrot.lane.b32.xlu0 %v4494, 64
      %v5148 = vpop.permute.xlu0 %5147
      %5149 = vrot.lane.b32.xlu0 %v4495, 64
      %v5150 = vpop.permute.xlu0 %5149
      %5151 = vrot.lane.b32.xlu0 %v4496, 64
      %v5152 = vpop.permute.xlu0 %5151
      %5153 = vrot.lane.b32.xlu0 %v4497, 64
      %v5154 = vpop.permute.xlu0 %5153
      %5155 = vrot.lane.b32.xlu0 %v4498, 64
      %v5156 = vpop.permute.xlu0 %5155
      %5157 = vrot.lane.b32.xlu0 %v4499, 64
      %v5158 = vpop.permute.xlu0 %5157
      %5159 = vrot.lane.b32.xlu0 %v4500, 64
      %v5160 = vpop.permute.xlu0 %5159
      %5161 = vrot.lane.b32.xlu0 %v4501, 64
      %v5162 = vpop.permute.xlu0 %5161
      %5163 = vrot.lane.b32.xlu0 %v4502, 64
      %v5164 = vpop.permute.xlu0 %5163
      %5165 = vrot.lane.b32.xlu0 %v4503, 64
      %v5166 = vpop.permute.xlu0 %5165
      %5167 = vrot.lane.b32.xlu0 %v4504, 64
      %v5168 = vpop.permute.xlu0 %5167
      %5169 = vrot.lane.b32.xlu0 %v4505, 64
      %v5170 = vpop.permute.xlu0 %5169
      %5171 = vrot.lane.b32.xlu0 %v4506, 64
      %v5172 = vpop.permute.xlu0 %5171
      %5173 = vrot.lane.b32.xlu0 %v4507, 64
      %v5174 = vpop.permute.xlu0 %5173
      %5175 = vrot.lane.b32.xlu0 %v4508, 64
      %v5176 = vpop.permute.xlu0 %5175
      %5177 = vrot.lane.b32.xlu0 %v4509, 64
      %v5178 = vpop.permute.xlu0 %5177
      %5179 = vrot.lane.b32.xlu0 %v4510, 64
      %v5180 = vpop.permute.xlu0 %5179
      %5181 = vrot.lane.b32.xlu0 %v4511, 64
      %v5182 = vpop.permute.xlu0 %5181
      %5183 = vrot.lane.b32.xlu0 %v4512, 64
      %v5184 = vpop.permute.xlu0 %5183
      %5249 = vrot.lane.b32.xlu0 %v4513, 96
      %v5250 = vpop.permute.xlu0 %5249
      %5251 = vrot.lane.b32.xlu0 %v4514, 96
      %v5252 = vpop.permute.xlu0 %5251
      %5253 = vrot.lane.b32.xlu0 %v4515, 96
      %v5254 = vpop.permute.xlu0 %5253
      %5255 = vrot.lane.b32.xlu0 %v4516, 96
      %v5256 = vpop.permute.xlu0 %5255
      %5257 = vrot.lane.b32.xlu0 %v4517, 96
      %v5258 = vpop.permute.xlu0 %5257
      %5259 = vrot.lane.b32.xlu0 %v4518, 96
      %v5260 = vpop.permute.xlu0 %5259
      %5261 = vrot.lane.b32.xlu0 %v4519, 96
      %v5262 = vpop.permute.xlu0 %5261
      %5263 = vrot.lane.b32.xlu0 %v4520, 96
      %v5264 = vpop.permute.xlu0 %5263
      %5265 = vrot.lane.b32.xlu0 %v4521, 96
      %v5266 = vpop.permute.xlu0 %5265
      %5267 = vrot.lane.b32.xlu0 %v4522, 96
      %v5268 = vpop.permute.xlu0 %5267
      %5269 = vrot.lane.b32.xlu0 %v4523, 96
      %v5270 = vpop.permute.xlu0 %5269
      %5271 = vrot.lane.b32.xlu0 %v4524, 96
      %v5272 = vpop.permute.xlu0 %5271
      %5273 = vrot.lane.b32.xlu0 %v4525, 96
      %v5274 = vpop.permute.xlu0 %5273
      %5275 = vrot.lane.b32.xlu0 %v4526, 96
      %v5276 = vpop.permute.xlu0 %5275
      %5277 = vrot.lane.b32.xlu0 %v4527, 96
      %v5278 = vpop.permute.xlu0 %5277
      %5279 = vrot.lane.b32.xlu0 %v4528, 96
      %v5280 = vpop.permute.xlu0 %5279
      %5281 = vrot.lane.b32.xlu0 %v4529, 96
      %v5282 = vpop.permute.xlu0 %5281
      %5283 = vrot.lane.b32.xlu0 %v4530, 96
      %v5284 = vpop.permute.xlu0 %5283
      %5285 = vrot.lane.b32.xlu0 %v4531, 96
      %v5286 = vpop.permute.xlu0 %5285
      %5287 = vrot.lane.b32.xlu0 %v4532, 96
      %v5288 = vpop.permute.xlu0 %5287
      %5289 = vrot.lane.b32.xlu0 %v4533, 96
      %v5290 = vpop.permute.xlu0 %5289
      %5291 = vrot.lane.b32.xlu0 %v4534, 96
      %v5292 = vpop.permute.xlu0 %5291
      %5293 = vrot.lane.b32.xlu0 %v4535, 96
      %v5294 = vpop.permute.xlu0 %5293
      %5295 = vrot.lane.b32.xlu0 %v4536, 96
      %v5296 = vpop.permute.xlu0 %5295
      %5297 = vrot.lane.b32.xlu0 %v4537, 96
      %v5298 = vpop.permute.xlu0 %5297
      %5299 = vrot.lane.b32.xlu0 %v4538, 96
      %v5300 = vpop.permute.xlu0 %5299
      %5301 = vrot.lane.b32.xlu0 %v4539, 96
      %v5302 = vpop.permute.xlu0 %5301
      %5303 = vrot.lane.b32.xlu0 %v4540, 96
      %v5304 = vpop.permute.xlu0 %5303
      %5305 = vrot.lane.b32.xlu0 %v4541, 96
      %v5306 = vpop.permute.xlu0 %5305
      %5307 = vrot.lane.b32.xlu0 %v4542, 96
      %v5308 = vpop.permute.xlu0 %5307
      %5309 = vrot.lane.b32.xlu0 %v4543, 96
      %v5310 = vpop.permute.xlu0 %5309
      %5311 = vrot.lane.b32.xlu0 %v4544, 96
      %v5312 = vpop.permute.xlu0 %5311
      %v5345 = vsel %vm388, %v4289, %v4610
      %v5346 = vsel %vm388, %v4290, %v4612
      %v5347 = vsel %vm388, %v4291, %v4614
      %v5348 = vsel %vm388, %v4292, %v4616
      %v5349 = vsel %vm388, %v4293, %v4618
      %v5350 = vsel %vm388, %v4294, %v4620
      %v5351 = vsel %vm388, %v4295, %v4622
      %v5352 = vsel %vm388, %v4296, %v4624
      %v5353 = vsel %vm388, %v4297, %v4626
      %v5354 = vsel %vm388, %v4298, %v4628
      %v5355 = vsel %vm388, %v4299, %v4630
      %v5356 = vsel %vm388, %v4300, %v4632
      %v5357 = vsel %vm388, %v4301, %v4634
      %v5358 = vsel %vm388, %v4302, %v4636
      %v5359 = vsel %vm388, %v4303, %v4638
      %v5360 = vsel %vm388, %v4304, %v4640
      %v5361 = vsel %vm388, %v4305, %v4642
      %v5362 = vsel %vm388, %v4306, %v4644
      %v5363 = vsel %vm388, %v4307, %v4646
      %v5364 = vsel %vm388, %v4308, %v4648
      %v5365 = vsel %vm388, %v4309, %v4650
      %v5366 = vsel %vm388, %v4310, %v4652
      %v5367 = vsel %vm388, %v4311, %v4654
      %v5368 = vsel %vm388, %v4312, %v4656
      %v5369 = vsel %vm388, %v4313, %v4658
      %v5370 = vsel %vm388, %v4314, %v4660
      %v5371 = vsel %vm388, %v4315, %v4662
      %v5372 = vsel %vm388, %v4316, %v4664
      %v5373 = vsel %vm388, %v4317, %v4666
      %v5374 = vsel %vm388, %v4318, %v4668
      %v5375 = vsel %vm388, %v4319, %v4670
      %v5376 = vsel %vm388, %v4320, %v4672
      %v5377 = vsel %vm3494, %v5345, %v4738
      %v5378 = vsel %vm3494, %v5346, %v4740
      %v5379 = vsel %vm3494, %v5347, %v4742
      %v5380 = vsel %vm3494, %v5348, %v4744
      %v5381 = vsel %vm3494, %v5349, %v4746
      %v5382 = vsel %vm3494, %v5350, %v4748
      %v5383 = vsel %vm3494, %v5351, %v4750
      %v5384 = vsel %vm3494, %v5352, %v4752
      %v5385 = vsel %vm3494, %v5353, %v4754
      %v5386 = vsel %vm3494, %v5354, %v4756
      %v5387 = vsel %vm3494, %v5355, %v4758
      %v5388 = vsel %vm3494, %v5356, %v4760
      %v5389 = vsel %vm3494, %v5357, %v4762
      %v5390 = vsel %vm3494, %v5358, %v4764
      %v5391 = vsel %vm3494, %v5359, %v4766
      %v5392 = vsel %vm3494, %v5360, %v4768
      %v5393 = vsel %vm3494, %v5361, %v4770
      %v5394 = vsel %vm3494, %v5362, %v4772
      %v5395 = vsel %vm3494, %v5363, %v4774
      %v5396 = vsel %vm3494, %v5364, %v4776
      %v5397 = vsel %vm3494, %v5365, %v4778
      %v5398 = vsel %vm3494, %v5366, %v4780
      %v5399 = vsel %vm3494, %v5367, %v4782
      %v5400 = vsel %vm3494, %v5368, %v4784
      %v5401 = vsel %vm3494, %v5369, %v4786
      %v5402 = vsel %vm3494, %v5370, %v4788
      %v5403 = vsel %vm3494, %v5371, %v4790
      %v5404 = vsel %vm3494, %v5372, %v4792
      %v5405 = vsel %vm3494, %v5373, %v4794
      %v5406 = vsel %vm3494, %v5374, %v4796
      %v5407 = vsel %vm3494, %v5375, %v4798
      %v5408 = vsel %vm3494, %v5376, %v4800
      %v5409 = vsel %vm3527, %v5377, %v4866
      %v5410 = vsel %vm3527, %v5378, %v4868
      %v5411 = vsel %vm3527, %v5379, %v4870
      %v5412 = vsel %vm3527, %v5380, %v4872
      %v5413 = vsel %vm3527, %v5381, %v4874
      %v5414 = vsel %vm3527, %v5382, %v4876
      %v5415 = vsel %vm3527, %v5383, %v4878
      %v5416 = vsel %vm3527, %v5384, %v4880
      %v5417 = vsel %vm3527, %v5385, %v4882
      %v5418 = vsel %vm3527, %v5386, %v4884
      %v5419 = vsel %vm3527, %v5387, %v4886
      %v5420 = vsel %vm3527, %v5388, %v4888
      %v5421 = vsel %vm3527, %v5389, %v4890
      %v5422 = vsel %vm3527, %v5390, %v4892
      %v5423 = vsel %vm3527, %v5391, %v4894
      %v5424 = vsel %vm3527, %v5392, %v4896
      %v5425 = vsel %vm3527, %v5393, %v4898
      %v5426 = vsel %vm3527, %v5394, %v4900
      %v5427 = vsel %vm3527, %v5395, %v4902
      %v5428 = vsel %vm3527, %v5396, %v4904
      %v5429 = vsel %vm3527, %v5397, %v4906
      %v5430 = vsel %vm3527, %v5398, %v4908
      %v5431 = vsel %vm3527, %v5399, %v4910
      %v5432 = vsel %vm3527, %v5400, %v4912
      %v5433 = vsel %vm3527, %v5401, %v4914
      %v5434 = vsel %vm3527, %v5402, %v4916
      %v5435 = vsel %vm3527, %v5403, %v4918
      %v5436 = vsel %vm3527, %v5404, %v4920
      %v5437 = vsel %vm3527, %v5405, %v4922
      %v5438 = vsel %vm3527, %v5406, %v4924
      %v5439 = vsel %vm3527, %v5407, %v4926
      %v5440 = vsel %vm3527, %v5408, %v4928
      %v5441 = vsel %vm388, %v4417, %v4994
      %v5442 = vsel %vm388, %v4418, %v4996
      %v5443 = vsel %vm388, %v4419, %v4998
      %v5444 = vsel %vm388, %v4420, %v5000
      %v5445 = vsel %vm388, %v4421, %v5002
      %v5446 = vsel %vm388, %v4422, %v5004
      %v5447 = vsel %vm388, %v4423, %v5006
      %v5448 = vsel %vm388, %v4424, %v5008
      %v5449 = vsel %vm388, %v4425, %v5010
      %v5450 = vsel %vm388, %v4426, %v5012
      %v5451 = vsel %vm388, %v4427, %v5014
      %v5452 = vsel %vm388, %v4428, %v5016
      %v5453 = vsel %vm388, %v4429, %v5018
      %v5454 = vsel %vm388, %v4430, %v5020
      %v5455 = vsel %vm388, %v4431, %v5022
      %v5456 = vsel %vm388, %v4432, %v5024
      %v5457 = vsel %vm388, %v4433, %v5026
      %v5458 = vsel %vm388, %v4434, %v5028
      %v5459 = vsel %vm388, %v4435, %v5030
      %v5460 = vsel %vm388, %v4436, %v5032
      %v5461 = vsel %vm388, %v4437, %v5034
      %v5462 = vsel %vm388, %v4438, %v5036
      %v5463 = vsel %vm388, %v4439, %v5038
      %v5464 = vsel %vm388, %v4440, %v5040
      %v5465 = vsel %vm388, %v4441, %v5042
      %v5466 = vsel %vm388, %v4442, %v5044
      %v5467 = vsel %vm388, %v4443, %v5046
      %v5468 = vsel %vm388, %v4444, %v5048
      %v5469 = vsel %vm388, %v4445, %v5050
      %v5470 = vsel %vm388, %v4446, %v5052
      %v5471 = vsel %vm388, %v4447, %v5054
      %v5472 = vsel %vm388, %v4448, %v5056
      %v5473 = vsel %vm3494, %v5441, %v5122
      %v5474 = vsel %vm3494, %v5442, %v5124
      %v5475 = vsel %vm3494, %v5443, %v5126
      %v5476 = vsel %vm3494, %v5444, %v5128
      %v5477 = vsel %vm3494, %v5445, %v5130
      %v5478 = vsel %vm3494, %v5446, %v5132
      %v5479 = vsel %vm3494, %v5447, %v5134
      %v5480 = vsel %vm3494, %v5448, %v5136
      %v5481 = vsel %vm3494, %v5449, %v5138
      %v5482 = vsel %vm3494, %v5450, %v5140
      %v5483 = vsel %vm3494, %v5451, %v5142
      %v5484 = vsel %vm3494, %v5452, %v5144
      %v5485 = vsel %vm3494, %v5453, %v5146
      %v5486 = vsel %vm3494, %v5454, %v5148
      %v5487 = vsel %vm3494, %v5455, %v5150
      %v5488 = vsel %vm3494, %v5456, %v5152
      %v5489 = vsel %vm3494, %v5457, %v5154
      %v5490 = vsel %vm3494, %v5458, %v5156
      %v5491 = vsel %vm3494, %v5459, %v5158
      %v5492 = vsel %vm3494, %v5460, %v5160
      %v5493 = vsel %vm3494, %v5461, %v5162
      %v5494 = vsel %vm3494, %v5462, %v5164
      %v5495 = vsel %vm3494, %v5463, %v5166
      %v5496 = vsel %vm3494, %v5464, %v5168
      %v5497 = vsel %vm3494, %v5465, %v5170
      %v5498 = vsel %vm3494, %v5466, %v5172
      %v5499 = vsel %vm3494, %v5467, %v5174
      %v5500 = vsel %vm3494, %v5468, %v5176
      %v5501 = vsel %vm3494, %v5469, %v5178
      %v5502 = vsel %vm3494, %v5470, %v5180
      %v5503 = vsel %vm3494, %v5471, %v5182
      %v5504 = vsel %vm3494, %v5472, %v5184
      %v5505 = vsel %vm3527, %v5473, %v5250
      %v5506 = vsel %vm3527, %v5474, %v5252
      %v5507 = vsel %vm3527, %v5475, %v5254
      %v5508 = vsel %vm3527, %v5476, %v5256
      %v5509 = vsel %vm3527, %v5477, %v5258
      %v5510 = vsel %vm3527, %v5478, %v5260
      %v5511 = vsel %vm3527, %v5479, %v5262
      %v5512 = vsel %vm3527, %v5480, %v5264
      %v5513 = vsel %vm3527, %v5481, %v5266
      %v5514 = vsel %vm3527, %v5482, %v5268
      %v5515 = vsel %vm3527, %v5483, %v5270
      %v5516 = vsel %vm3527, %v5484, %v5272
      %v5517 = vsel %vm3527, %v5485, %v5274
      %v5518 = vsel %vm3527, %v5486, %v5276
      %v5519 = vsel %vm3527, %v5487, %v5278
      %v5520 = vsel %vm3527, %v5488, %v5280
      %v5521 = vsel %vm3527, %v5489, %v5282
      %v5522 = vsel %vm3527, %v5490, %v5284
      %v5523 = vsel %vm3527, %v5491, %v5286
      %v5524 = vsel %vm3527, %v5492, %v5288
      %v5525 = vsel %vm3527, %v5493, %v5290
      %v5526 = vsel %vm3527, %v5494, %v5292
      %v5527 = vsel %vm3527, %v5495, %v5294
      %v5528 = vsel %vm3527, %v5496, %v5296
      %v5529 = vsel %vm3527, %v5497, %v5298
      %v5530 = vsel %vm3527, %v5498, %v5300
      %v5531 = vsel %vm3527, %v5499, %v5302
      %v5532 = vsel %vm3527, %v5500, %v5304
      %v5533 = vsel %vm3527, %v5501, %v5306
      %v5534 = vsel %vm3527, %v5502, %v5308
      %v5535 = vsel %vm3527, %v5503, %v5310
      %v5536 = vsel %vm3527, %v5504, %v5312
      %v5537 = vpack.c.bf16 %v5410, %v5409
      %v5538 = vpack.c.bf16 %v5506, %v5505
      %v5539 = vpack.c.bf16 %v4546, %v4545
      %v5540 = vpack.c.bf16 %v5412, %v5411
      %v5541 = vpack.c.bf16 %v5508, %v5507
      %v5542 = vpack.c.bf16 %v4548, %v4547
      %v5543 = vpack.c.bf16 %v5414, %v5413
      %v5544 = vpack.c.bf16 %v5510, %v5509
      %v5545 = vpack.c.bf16 %v4550, %v4549
      %v5546 = vpack.c.bf16 %v5416, %v5415
      %v5547 = vpack.c.bf16 %v5512, %v5511
      %v5548 = vpack.c.bf16 %v4552, %v4551
      %v5549 = vpack.c.bf16 %v5418, %v5417
      %v5550 = vpack.c.bf16 %v5514, %v5513
      %v5551 = vpack.c.bf16 %v4554, %v4553
      %v5552 = vpack.c.bf16 %v5420, %v5419
      %v5553 = vpack.c.bf16 %v5516, %v5515
      %v5554 = vpack.c.bf16 %v4556, %v4555
      %v5555 = vpack.c.bf16 %v5422, %v5421
      %v5556 = vpack.c.bf16 %v5518, %v5517
      %v5557 = vpack.c.bf16 %v4558, %v4557
      %v5558 = vpack.c.bf16 %v5424, %v5423
      %v5559 = vpack.c.bf16 %v5520, %v5519
      %v5560 = vpack.c.bf16 %v4560, %v4559
      %v5561 = vpack.c.bf16 %v5426, %v5425
      %v5562 = vpack.c.bf16 %v5522, %v5521
      %v5563 = vpack.c.bf16 %v4562, %v4561
      %v5564 = vpack.c.bf16 %v5428, %v5427
      %v5565 = vpack.c.bf16 %v5524, %v5523
      %v5566 = vpack.c.bf16 %v4564, %v4563
      %v5567 = vpack.c.bf16 %v5430, %v5429
      %v5568 = vpack.c.bf16 %v5526, %v5525
      %v5569 = vpack.c.bf16 %v4566, %v4565
      %v5570 = vpack.c.bf16 %v5432, %v5431
      %v5571 = vpack.c.bf16 %v5528, %v5527
      %v5572 = vpack.c.bf16 %v4568, %v4567
      %v5573 = vpack.c.bf16 %v5434, %v5433
      %v5574 = vpack.c.bf16 %v5530, %v5529
      %v5575 = vpack.c.bf16 %v4570, %v4569
      %v5576 = vpack.c.bf16 %v5436, %v5435
      %v5577 = vpack.c.bf16 %v5532, %v5531
      %v5578 = vpack.c.bf16 %v4572, %v4571
      %v5579 = vpack.c.bf16 %v5438, %v5437
      %v5580 = vpack.c.bf16 %v5534, %v5533
      %v5581 = vpack.c.bf16 %v4574, %v4573
      %v5582 = vpack.c.bf16 %v5440, %v5439
      %v5583 = vpack.c.bf16 %v5536, %v5535
      %v5584 = vpack.c.bf16 %v4576, %v4575
      %v5585 = vld [vmem:[%s3] sm:$0xf]
      %v5586 = vld [vmem:[%s3 + $0x4] sm:$0xf]
      %v5587 = vld [vmem:[%s3 + $0x8] sm:$0xf]
      %v5588 = vld [vmem:[%s3 + $0xc] sm:$0xf]
      %v5589 = vld [vmem:[%s3 + $0x10] sm:$0xf]
      %v5590 = vld [vmem:[%s3 + $0x14] sm:$0xf]
      %v5591 = vld [vmem:[%s3 + $0x18] sm:$0xf]
      %v5592 = vld [vmem:[%s3 + $0x1c] sm:$0xf]
      %v5593 = vld [vmem:[%s3 + $0x20] sm:$0xf]
      %v5594 = vld [vmem:[%s3 + $0x24] sm:$0xf]
      %v5595 = vld [vmem:[%s3 + $0x28] sm:$0xf]
      %v5596 = vld [vmem:[%s3 + $0x2c] sm:$0xf]
      %v5597 = vld [vmem:[%s3 + $0x30] sm:$0xf]
      %v5598 = vld [vmem:[%s3 + $0x34] sm:$0xf]
      %v5599 = vld [vmem:[%s3 + $0x38] sm:$0xf]
      %v5600 = vld [vmem:[%s3 + $0x3c] sm:$0xf]
      %v5601 = vld [vmem:[%s3 + $0x40] sm:$0xf]
      %v5602 = vld [vmem:[%s3 + $0x44] sm:$0xf]
      %v5603 = vld [vmem:[%s3 + $0x48] sm:$0xf]
      %v5604 = vld [vmem:[%s3 + $0x4c] sm:$0xf]
      %v5605 = vld [vmem:[%s3 + $0x50] sm:$0xf]
      %v5606 = vld [vmem:[%s3 + $0x54] sm:$0xf]
      %v5607 = vld [vmem:[%s3 + $0x58] sm:$0xf]
      %v5608 = vld [vmem:[%s3 + $0x5c] sm:$0xf]
      %v5609 = vld [vmem:[%s3 + $0x60] sm:$0xf]
      %v5610 = vld [vmem:[%s3 + $0x64] sm:$0xf]
      %v5611 = vld [vmem:[%s3 + $0x68] sm:$0xf]
      %v5612 = vld [vmem:[%s3 + $0x6c] sm:$0xf]
      %v5613 = vld [vmem:[%s3 + $0x70] sm:$0xf]
      %v5614 = vld [vmem:[%s3 + $0x74] sm:$0xf]
      %v5615 = vld [vmem:[%s3 + $0x78] sm:$0xf]
      %v5616 = vld [vmem:[%s3 + $0x7c] sm:$0xf]
      %v5617 = vld [vmem:[%s3 + $0x80] sm:$0xf]
      %v5618 = vld [vmem:[%s3 + $0x84] sm:$0xf]
      %v5619 = vld [vmem:[%s3 + $0x88] sm:$0xf]
      %v5620 = vld [vmem:[%s3 + $0x8c] sm:$0xf]
      %v5621 = vld [vmem:[%s8] sm:$0x1]
      %v5623 = vlaneseq
      %v5624 = vshrl.u32 %v5623, 7
      %v5625 = vsub.s32 0, %v5624
      %v5626 = vrot.slane %v5621, %v5625
      %v5664 = vunpack.c.l.b16 %v5585
      %v5665 = vunpack.c.l.b16 %v5586
      %v5666 = vunpack.c.l.b16 %v5587
      %v5667 = vunpack.c.l.b16 %v5588
      %v5668 = vunpack.c.l.b16 %v5589
      %v5669 = vunpack.c.l.b16 %v5590
      %v5670 = vunpack.c.l.b16 %v5591
      %v5671 = vunpack.c.l.b16 %v5592
      %v5672 = vunpack.c.l.b16 %v5593
      %v5673 = vunpack.c.l.b16 %v5594
      %v5674 = vunpack.c.l.b16 %v5595
      %v5675 = vunpack.c.l.b16 %v5596
      %v5676 = vunpack.c.l.b16 %v5597
      %v5677 = vunpack.c.l.b16 %v5598
      %v5678 = vunpack.c.l.b16 %v5599
      %v5679 = vunpack.c.l.b16 %v5600
      %v5680 = vunpack.c.l.b16 %v5601
      %v5681 = vunpack.c.l.b16 %v5602
      %v5682 = vunpack.c.l.b16 %v5603
      %v5683 = vunpack.c.l.b16 %v5604
      %v5684 = vunpack.c.l.b16 %v5605
      %v5685 = vunpack.c.l.b16 %v5606
      %v5686 = vunpack.c.l.b16 %v5607
      %v5687 = vunpack.c.l.b16 %v5608
      %v5688 = vunpack.c.l.b16 %v5609
      %v5689 = vunpack.c.l.b16 %v5610
      %v5690 = vunpack.c.l.b16 %v5611
      %v5691 = vunpack.c.l.b16 %v5612
      %v5692 = vunpack.c.l.b16 %v5613
      %v5693 = vunpack.c.l.b16 %v5614
      %v5694 = vunpack.c.l.b16 %v5615
      %v5695 = vunpack.c.l.b16 %v5616
      %v5696 = vunpack.c.l.b16 %v5617
      %v5697 = vunpack.c.l.b16 %v5618
      %v5698 = vunpack.c.l.b16 %v5619
      %v5699 = vunpack.c.l.b16 %v5620
      %v5700 = vpack.c.b16 %v5665, %v5664
      %v5701 = vpack.c.b16 %v5667, %v5666
      %v5702 = vpack.c.b16 %v5669, %v5668
      %v5703 = vpack.c.b16 %v5671, %v5670
      %v5704 = vpack.c.b16 %v5673, %v5672
      %v5705 = vpack.c.b16 %v5675, %v5674
      %v5706 = vpack.c.b16 %v5677, %v5676
      %v5707 = vpack.c.b16 %v5679, %v5678
      %v5708 = vpack.c.b16 %v5681, %v5680
      %v5709 = vpack.c.b16 %v5683, %v5682
      %v5710 = vpack.c.b16 %v5685, %v5684
      %v5711 = vpack.c.b16 %v5687, %v5686
      %v5712 = vpack.c.b16 %v5689, %v5688
      %v5713 = vpack.c.b16 %v5691, %v5690
      %v5714 = vpack.c.b16 %v5693, %v5692
      %v5715 = vpack.c.b16 %v5695, %v5694
      %v5716 = vpack.c.b16 %v5697, %v5696
      %v5717 = vpack.c.b16 %v5699, %v5698
      %v5737 = vsel %vm388, %v5539, 0
      %v5740 = vsel %vm388, %v5542, 0
      %v5743 = vsel %vm388, %v5545, 0
      %v5746 = vsel %vm388, %v5548, 0
      %v5749 = vsel %vm388, %v5551, 0
      %v5752 = vsel %vm388, %v5554, 0
      %v5755 = vsel %vm388, %v5557, 0
      %v5758 = vsel %vm388, %v5560, 0
      %v5761 = vsel %vm388, %v5563, 0
      %v5764 = vsel %vm388, %v5566, 0
      %v5767 = vsel %vm388, %v5569, 0
      %v5770 = vsel %vm388, %v5572, 0
      %v5773 = vsel %vm388, %v5575, 0
      %v5776 = vsel %vm388, %v5578, 0
      %v5779 = vsel %vm388, %v5581, 0
      %v5782 = vsel %vm388, %v5584, 0
      %5784 = vmatprep.subr.bf16.mxu0 0
      %5785 = vmatpush1.bf16.msra.mxu0 %v5700
      %5786 = vmatprep.subr.bf16.mxu0 0
      %5787 = vmatpush1.bf16.msra.mxu0 %v5701
      %5788 = vmatprep.subr.bf16.mxu0 0
      %5789 = vmatpush1.bf16.msra.mxu0 %v5702
      %5790 = vmatprep.subr.bf16.mxu0 0
      %5791 = vmatpush1.bf16.msra.mxu0 %v5703
      %5792 = vmatprep.subr.bf16.mxu0 0
      %5793 = vmatpush1.bf16.msra.mxu0 %v5704
      %5794 = vmatprep.subr.bf16.mxu0 0
      %5795 = vmatpush1.bf16.msra.mxu0 %v5705
      %5796 = vmatprep.subr.bf16.mxu0 0
      %5797 = vmatpush1.bf16.msra.mxu0 %v5706
      %5798 = vmatprep.subr.bf16.mxu0 0
      %5799 = vmatpush1.bf16.msra.mxu0 %v5707
      %5800 = vmatprep.subr.bf16.mxu0 0
      %5801 = vmatpush1.bf16.msra.mxu0 %v5708
      %5802 = vmatprep.subr.bf16.mxu0 0
      %5803 = vmatpush1.bf16.msra.mxu0 %v5709
      %5804 = vmatprep.subr.bf16.mxu0 0
      %5805 = vmatpush1.bf16.msra.mxu0 %v5710
      %5806 = vmatprep.subr.bf16.mxu0 0
      %5807 = vmatpush1.bf16.msra.mxu0 %v5711
      %5808 = vmatprep.subr.bf16.mxu0 0
      %5809 = vmatpush1.bf16.msra.mxu0 %v5712
      %5810 = vmatprep.subr.bf16.mxu0 0
      %5811 = vmatpush1.bf16.msra.mxu0 %v5713
      %5812 = vmatprep.subr.bf16.mxu0 0
      %5813 = vmatpush1.bf16.msra.mxu0 %v5714
      %5814 = vmatprep.subr.bf16.mxu0 0
      %5815 = vmatpush1.bf16.msra.mxu0 %v5715
      %5816 = vmatprep.mubr.bf16.mxu0 %v5538
      %5817 = vmatmul.mubr.bf16.gmra.mrb[0].mxu0 %v5537
      %v5818 = vpop.f32.mrb[0].mxu0
      %v5819 = vadd.f32 %v5626, %v5818
      %v5820 = vpop.f32.mrb[0].mxu0
      %v5821 = vpop.f32.mrb[0].mxu0
      %v5822 = vadd.f32 %v5626, %v5821
      %v5823 = vpop.f32.mrb[0].mxu0
      %5824 = vmatprep.mubr.bf16.mxu0 %v5541
      %5825 = vmatmul.mubr.bf16.gmra.mrb[0].mxu0 %v5540
      %v5826 = vpop.f32.mrb[0].mxu0
      %v5827 = vadd.f32 %v5626, %v5826
      %v5828 = vpop.f32.mrb[0].mxu0
      %v5829 = vpop.f32.mrb[0].mxu0
      %v5830 = vadd.f32 %v5626, %v5829
      %v5831 = vpop.f32.mrb[0].mxu0
      %5832 = vmatprep.mubr.bf16.mxu0 %v5544
      %5833 = vmatmul.mubr.bf16.gmra.mrb[0].mxu0 %v5543
      %v5834 = vpop.f32.mrb[0].mxu0
      %v5835 = vadd.f32 %v5626, %v5834
      %v5836 = vpop.f32.mrb[0].mxu0
      %v5837 = vpop.f32.mrb[0].mxu0
      %v5838 = vadd.f32 %v5626, %v5837
      %v5839 = vpop.f32.mrb[0].mxu0
      %5840 = vmatprep.mubr.bf16.mxu0 %v5547
      %5841 = vmatmul.mubr.bf16.gmra.mrb[0].mxu0 %v5546
      %v5842 = vpop.f32.mrb[0].mxu0
      %v5843 = vadd.f32 %v5626, %v5842
      %v5844 = vpop.f32.mrb[0].mxu0
      %v5845 = vpop.f32.mrb[0].mxu0
      %v5846 = vadd.f32 %v5626, %v5845
      %v5847 = vpop.f32.mrb[0].mxu0
      %5848 = vmatprep.mubr.bf16.mxu0 %v5550
      %5849 = vmatmul.mubr.bf16.gmra.mrb[0].mxu0 %v5549
      %v5850 = vpop.f32.mrb[0].mxu0
      %v5851 = vadd.f32 %v5626, %v5850
      %v5852 = vpop.f32.mrb[0].mxu0
      %v5853 = vpop.f32.mrb[0].mxu0
      %v5854 = vadd.f32 %v5626, %v5853
      %v5855 = vpop.f32.mrb[0].mxu0
      %5856 = vmatprep.mubr.bf16.mxu0 %v5553
      %5857 = vmatmul.mubr.bf16.gmra.mrb[0].mxu0 %v5552
      %v5858 = vpop.f32.mrb[0].mxu0
      %v5859 = vadd.f32 %v5626, %v5858
      %v5860 = vpop.f32.mrb[0].mxu0
      %v5861 = vpop.f32.mrb[0].mxu0
      %v5862 = vadd.f32 %v5626, %v5861
      %v5863 = vpop.f32.mrb[0].mxu0
      %5864 = vmatprep.mubr.bf16.mxu0 %v5556
      %5865 = vmatmul.mubr.bf16.gmra.mrb[0].mxu0 %v5555
      %v5866 = vpop.f32.mrb[0].mxu0
      %v5867 = vadd.f32 %v5626, %v5866
      %v5868 = vpop.f32.mrb[0].mxu0
      %v5869 = vpop.f32.mrb[0].mxu0
      %v5870 = vadd.f32 %v5626, %v5869
      %v5871 = vpop.f32.mrb[0].mxu0
      %5872 = vmatprep.mubr.bf16.mxu0 %v5559
      %5873 = vmatmul.mubr.bf16.gmra.mrb[0].mxu0 %v5558
      %v5874 = vpop.f32.mrb[0].mxu0
      %v5875 = vadd.f32 %v5626, %v5874
      %v5876 = vpop.f32.mrb[0].mxu0
      %v5877 = vpop.f32.mrb[0].mxu0
      %v5878 = vadd.f32 %v5626, %v5877
      %v5879 = vpop.f32.mrb[0].mxu0
      %5880 = vmatprep.mubr.bf16.mxu0 %v5562
      %5881 = vmatmul.mubr.bf16.gmra.mrb[0].mxu0 %v5561
      %v5882 = vpop.f32.mrb[0].mxu0
      %v5883 = vadd.f32 %v5626, %v5882
      %v5884 = vpop.f32.mrb[0].mxu0
      %v5885 = vpop.f32.mrb[0].mxu0
      %v5886 = vadd.f32 %v5626, %v5885
      %v5887 = vpop.f32.mrb[0].mxu0
      %5888 = vmatprep.mubr.bf16.mxu0 %v5565
      %5889 = vmatmul.mubr.bf16.gmra.mrb[0].mxu0 %v5564
      %v5890 = vpop.f32.mrb[0].mxu0
      %v5891 = vadd.f32 %v5626, %v5890
      %v5892 = vpop.f32.mrb[0].mxu0
      %v5893 = vpop.f32.mrb[0].mxu0
      %v5894 = vadd.f32 %v5626, %v5893
      %v5895 = vpop.f32.mrb[0].mxu0
      %5896 = vmatprep.mubr.bf16.mxu0 %v5568
      %5897 = vmatmul.mubr.bf16.gmra.mrb[0].mxu0 %v5567
      %v5898 = vpop.f32.mrb[0].mxu0
      %v5899 = vadd.f32 %v5626, %v5898
      %v5900 = vpop.f32.mrb[0].mxu0
      %v5901 = vpop.f32.mrb[0].mxu0
      %v5902 = vadd.f32 %v5626, %v5901
      %v5903 = vpop.f32.mrb[0].mxu0
      %5904 = vmatprep.mubr.bf16.mxu0 %v5571
      %5905 = vmatmul.mubr.bf16.gmra.mrb[0].mxu0 %v5570
      %v5906 = vpop.f32.mrb[0].mxu0
      %v5907 = vadd.f32 %v5626, %v5906
      %v5908 = vpop.f32.mrb[0].mxu0
      %v5909 = vpop.f32.mrb[0].mxu0
      %v5910 = vadd.f32 %v5626, %v5909
      %v5911 = vpop.f32.mrb[0].mxu0
      %5912 = vmatprep.mubr.bf16.mxu0 %v5574
      %5913 = vmatmul.mubr.bf16.gmra.mrb[0].mxu0 %v5573
      %v5914 = vpop.f32.mrb[0].mxu0
      %v5915 = vadd.f32 %v5626, %v5914
      %v5916 = vpop.f32.mrb[0].mxu0
      %v5917 = vpop.f32.mrb[0].mxu0
      %v5918 = vadd.f32 %v5626, %v5917
      %v5919 = vpop.f32.mrb[0].mxu0
      %5920 = vmatprep.mubr.bf16.mxu0 %v5577
      %5921 = vmatmul.mubr.bf16.gmra.mrb[0].mxu0 %v5576
      %v5922 = vpop.f32.mrb[0].mxu0
      %v5923 = vadd.f32 %v5626, %v5922
      %v5924 = vpop.f32.mrb[0].mxu0
      %v5925 = vpop.f32.mrb[0].mxu0
      %v5926 = vadd.f32 %v5626, %v5925
      %v5927 = vpop.f32.mrb[0].mxu0
      %5928 = vmatprep.mubr.bf16.mxu0 %v5580
      %5929 = vmatmul.mubr.bf16.gmra.mrb[0].mxu0 %v5579
      %v5930 = vpop.f32.mrb[0].mxu0
      %v5931 = vadd.f32 %v5626, %v5930
      %v5932 = vpop.f32.mrb[0].mxu0
      %v5933 = vpop.f32.mrb[0].mxu0
      %v5934 = vadd.f32 %v5626, %v5933
      %v5935 = vpop.f32.mrb[0].mxu0
      %5936 = vmatprep.mubr.bf16.mxu0 %v5583
      %5937 = vmatmul.mubr.bf16.gmra.mrb[0].mxu0 %v5582
      %v5938 = vpop.f32.mrb[0].mxu0
      %v5939 = vadd.f32 %v5626, %v5938
      %v5940 = vpop.f32.mrb[0].mxu0
      %v5941 = vpop.f32.mrb[0].mxu0
      %v5942 = vadd.f32 %v5626, %v5941
      %v5943 = vpop.f32.mrb[0].mxu0
      %5944 = vdwg.mxu0
      %5945 = vmatprep.subr.bf16.mxu0 0
      %5946 = vmatpush1.bf16.msra.mxu0 %v5716
      %5947 = vmatprep.subr.bf16.mxu0 0
      %5948 = vmatpush1.bf16.msra.mxu0 %v5717
      %5949 = vmatprep.subr.bf16.mxu0 0
      %5950 = vmatpush1.bf16.msra.mxu0 0
      %5951 = vmatprep.subr.bf16.mxu0 0
      %5952 = vmatpush1.bf16.msra.mxu0 0
      %5953 = vmatprep.subr.bf16.mxu0 0
      %5954 = vmatpush1.bf16.msra.mxu0 0
      %5955 = vmatprep.subr.bf16.mxu0 0
      %5956 = vmatpush1.bf16.msra.mxu0 0
      %5957 = vmatprep.subr.bf16.mxu0 0
      %5958 = vmatpush1.bf16.msra.mxu0 0
      %5959 = vmatprep.subr.bf16.mxu0 0
      %5960 = vmatpush1.bf16.msra.mxu0 0
      %5961 = vmatprep.subr.bf16.mxu0 0
      %5962 = vmatpush1.bf16.msra.mxu0 0
      %5963 = vmatprep.subr.bf16.mxu0 0
      %5964 = vmatpush1.bf16.msra.mxu0 0
      %5965 = vmatprep.subr.bf16.mxu0 0
      %5966 = vmatpush1.bf16.msra.mxu0 0
      %5967 = vmatprep.subr.bf16.mxu0 0
      %5968 = vmatpush1.bf16.msra.mxu0 0
      %5969 = vmatprep.subr.bf16.mxu0 0
      %5970 = vmatpush1.bf16.msra.mxu0 0
      %5971 = vmatprep.subr.bf16.mxu0 0
      %5972 = vmatpush1.bf16.msra.mxu0 0
      %5973 = vmatprep.subr.bf16.mxu0 0
      %5974 = vmatpush1.bf16.msra.mxu0 0
      %5975 = vmatprep.subr.bf16.mxu0 0
      %5976 = vmatpush1.bf16.msra.mxu0 0
      %5977 = vmatprep.mubr.bf16.mxu0 0
      %5978 = vmatmul.mubr.bf16.gmra.mrb[0].mxu0 %v5737
      %v5979 = vpop.f32.mrb[0].mxu0
      %v5980 = vadd.f32 %v5819, %v5979
      %v5981 = vpop.f32.mrb[0].mxu0
      %v5982 = vpop.f32.mrb[0].mxu0
      %v5983 = vadd.f32 %v5822, %v5982
      %v5984 = vpop.f32.mrb[0].mxu0
      %5985 = vmatprep.mubr.bf16.mxu0 0
      %5986 = vmatmul.mubr.bf16.gmra.mrb[0].mxu0 %v5740
      %v5987 = vpop.f32.mrb[0].mxu0
      %v5988 = vadd.f32 %v5827, %v5987
      %v5989 = vpop.f32.mrb[0].mxu0
      %v5990 = vpop.f32.mrb[0].mxu0
      %v5991 = vadd.f32 %v5830, %v5990
      %v5992 = vpop.f32.mrb[0].mxu0
      %5993 = vmatprep.mubr.bf16.mxu0 0
      %5994 = vmatmul.mubr.bf16.gmra.mrb[0].mxu0 %v5743
      %v5995 = vpop.f32.mrb[0].mxu0
      %v5996 = vadd.f32 %v5835, %v5995
      %v5997 = vpop.f32.mrb[0].mxu0
      %v5998 = vpop.f32.mrb[0].mxu0
      %v5999 = vadd.f32 %v5838, %v5998
      %v6000 = vpop.f32.mrb[0].mxu0
      %6001 = vmatprep.mubr.bf16.mxu0 0
      %6002 = vmatmul.mubr.bf16.gmra.mrb[0].mxu0 %v5746
      %v6003 = vpop.f32.mrb[0].mxu0
      %v6004 = vadd.f32 %v5843, %v6003
      %v6005 = vpop.f32.mrb[0].mxu0
      %v6006 = vpop.f32.mrb[0].mxu0
      %v6007 = vadd.f32 %v5846, %v6006
      %v6008 = vpop.f32.mrb[0].mxu0
      %6009 = vmatprep.mubr.bf16.mxu0 0
      %6010 = vmatmul.mubr.bf16.gmra.mrb[0].mxu0 %v5749
      %v6011 = vpop.f32.mrb[0].mxu0
      %v6012 = vadd.f32 %v5851, %v6011
      %v6013 = vpop.f32.mrb[0].mxu0
      %v6014 = vpop.f32.mrb[0].mxu0
      %v6015 = vadd.f32 %v5854, %v6014
      %v6016 = vpop.f32.mrb[0].mxu0
      %6017 = vmatprep.mubr.bf16.mxu0 0
      %6018 = vmatmul.mubr.bf16.gmra.mrb[0].mxu0 %v5752
      %v6019 = vpop.f32.mrb[0].mxu0
      %v6020 = vadd.f32 %v5859, %v6019
      %v6021 = vpop.f32.mrb[0].mxu0
      %v6022 = vpop.f32.mrb[0].mxu0
      %v6023 = vadd.f32 %v5862, %v6022
      %v6024 = vpop.f32.mrb[0].mxu0
      %6025 = vmatprep.mubr.bf16.mxu0 0
      %6026 = vmatmul.mubr.bf16.gmra.mrb[0].mxu0 %v5755
      %v6027 = vpop.f32.mrb[0].mxu0
      %v6028 = vadd.f32 %v5867, %v6027
      %v6029 = vpop.f32.mrb[0].mxu0
      %v6030 = vpop.f32.mrb[0].mxu0
      %v6031 = vadd.f32 %v5870, %v6030
      %v6032 = vpop.f32.mrb[0].mxu0
      %6033 = vmatprep.mubr.bf16.mxu0 0
      %6034 = vmatmul.mubr.bf16.gmra.mrb[0].mxu0 %v5758
      %v6035 = vpop.f32.mrb[0].mxu0
      %v6036 = vadd.f32 %v5875, %v6035
      %v6037 = vpop.f32.mrb[0].mxu0
      %v6038 = vpop.f32.mrb[0].mxu0
      %v6039 = vadd.f32 %v5878, %v6038
      %v6040 = vpop.f32.mrb[0].mxu0
      %6041 = vmatprep.mubr.bf16.mxu0 0
      %6042 = vmatmul.mubr.bf16.gmra.mrb[0].mxu0 %v5761
      %v6043 = vpop.f32.mrb[0].mxu0
      %v6044 = vadd.f32 %v5883, %v6043
      %v6045 = vpop.f32.mrb[0].mxu0
      %v6046 = vpop.f32.mrb[0].mxu0
      %v6047 = vadd.f32 %v5886, %v6046
      %v6048 = vpop.f32.mrb[0].mxu0
      %6049 = vmatprep.mubr.bf16.mxu0 0
      %6050 = vmatmul.mubr.bf16.gmra.mrb[0].mxu0 %v5764
      %v6051 = vpop.f32.mrb[0].mxu0
      %v6052 = vadd.f32 %v5891, %v6051
      %v6053 = vpop.f32.mrb[0].mxu0
      %v6054 = vpop.f32.mrb[0].mxu0
      %v6055 = vadd.f32 %v5894, %v6054
      %v6056 = vpop.f32.mrb[0].mxu0
      %6057 = vmatprep.mubr.bf16.mxu0 0
      %6058 = vmatmul.mubr.bf16.gmra.mrb[0].mxu0 %v5767
      %v6059 = vpop.f32.mrb[0].mxu0
      %v6060 = vadd.f32 %v5899, %v6059
      %v6061 = vpop.f32.mrb[0].mxu0
      %v6062 = vpop.f32.mrb[0].mxu0
      %v6063 = vadd.f32 %v5902, %v6062
      %v6064 = vpop.f32.mrb[0].mxu0
      %6065 = vmatprep.mubr.bf16.mxu0 0
      %6066 = vmatmul.mubr.bf16.gmra.mrb[0].mxu0 %v5770
      %v6067 = vpop.f32.mrb[0].mxu0
      %v6068 = vadd.f32 %v5907, %v6067
      %v6069 = vpop.f32.mrb[0].mxu0
      %v6070 = vpop.f32.mrb[0].mxu0
      %v6071 = vadd.f32 %v5910, %v6070
      %v6072 = vpop.f32.mrb[0].mxu0
      %6073 = vmatprep.mubr.bf16.mxu0 0
      %6074 = vmatmul.mubr.bf16.gmra.mrb[0].mxu0 %v5773
      %v6075 = vpop.f32.mrb[0].mxu0
      %v6076 = vadd.f32 %v5915, %v6075
      %v6077 = vpop.f32.mrb[0].mxu0
      %v6078 = vpop.f32.mrb[0].mxu0
      %v6079 = vadd.f32 %v5918, %v6078
      %v6080 = vpop.f32.mrb[0].mxu0
      %6081 = vmatprep.mubr.bf16.mxu0 0
      %6082 = vmatmul.mubr.bf16.gmra.mrb[0].mxu0 %v5776
      %v6083 = vpop.f32.mrb[0].mxu0
      %v6084 = vadd.f32 %v5923, %v6083
      %v6085 = vpop.f32.mrb[0].mxu0
      %v6086 = vpop.f32.mrb[0].mxu0
      %v6087 = vadd.f32 %v5926, %v6086
      %v6088 = vpop.f32.mrb[0].mxu0
      %6089 = vmatprep.mubr.bf16.mxu0 0
      %6090 = vmatmul.mubr.bf16.gmra.mrb[0].mxu0 %v5779
      %v6091 = vpop.f32.mrb[0].mxu0
      %v6092 = vadd.f32 %v5931, %v6091
      %v6093 = vpop.f32.mrb[0].mxu0
      %v6094 = vpop.f32.mrb[0].mxu0
      %v6095 = vadd.f32 %v5934, %v6094
      %v6096 = vpop.f32.mrb[0].mxu0
      %6097 = vmatprep.mubr.bf16.mxu0 0
      %6098 = vmatmul.mubr.bf16.gmra.mrb[0].mxu0 %v5782
      %v6099 = vpop.f32.mrb[0].mxu0
      %v6100 = vadd.f32 %v5939, %v6099
      %v6101 = vpop.f32.mrb[0].mxu0
      %v6102 = vpop.f32.mrb[0].mxu0
      %v6103 = vadd.f32 %v5942, %v6102
      %v6104 = vpop.f32.mrb[0].mxu0
      %6105 = vdwg.mxu0
      %v6106 = vmax.f32 %v5980, 0.0
      %v6107 = vmax.f32 %v5983, 0.0
      %v6108 = vmax.f32 %v5988, 0.0
      %v6109 = vmax.f32 %v5991, 0.0
      %v6110 = vmax.f32 %v5996, 0.0
      %v6111 = vmax.f32 %v5999, 0.0
      %v6112 = vmax.f32 %v6004, 0.0
      %v6113 = vmax.f32 %v6007, 0.0
      %v6114 = vmax.f32 %v6012, 0.0
      %v6115 = vmax.f32 %v6015, 0.0
      %v6116 = vmax.f32 %v6020, 0.0
      %v6117 = vmax.f32 %v6023, 0.0
      %v6118 = vmax.f32 %v6028, 0.0
      %v6119 = vmax.f32 %v6031, 0.0
      %v6120 = vmax.f32 %v6036, 0.0
      %v6121 = vmax.f32 %v6039, 0.0
      %v6122 = vmax.f32 %v6044, 0.0
      %v6123 = vmax.f32 %v6047, 0.0
      %v6124 = vmax.f32 %v6052, 0.0
      %v6125 = vmax.f32 %v6055, 0.0
      %v6126 = vmax.f32 %v6060, 0.0
      %v6127 = vmax.f32 %v6063, 0.0
      %v6128 = vmax.f32 %v6068, 0.0
      %v6129 = vmax.f32 %v6071, 0.0
      %v6130 = vmax.f32 %v6076, 0.0
      %v6131 = vmax.f32 %v6079, 0.0
      %v6132 = vmax.f32 %v6084, 0.0
      %v6133 = vmax.f32 %v6087, 0.0
      %v6134 = vmax.f32 %v6092, 0.0
      %v6135 = vmax.f32 %v6095, 0.0
      %v6136 = vmax.f32 %v6100, 0.0
      %v6137 = vmax.f32 %v6103, 0.0
      %6138 = vst.msk [vmem:[%s476 + $0x1] sm:$0xff] %vm388, %v6106
      %6139 = vst.msk [vmem:[%s476 + $0x9] sm:$0xff] %vm388, %v6107
      %6140 = vst.msk [vmem:[%s476 + $0x19] sm:$0xff] %vm388, %v6108
      %6141 = vst.msk [vmem:[%s476 + $0x21] sm:$0xff] %vm388, %v6109
      %6142 = vst.msk [vmem:[%s476 + $0x31] sm:$0xff] %vm388, %v6110
      %6143 = vst.msk [vmem:[%s476 + $0x39] sm:$0xff] %vm388, %v6111
      %6144 = vst.msk [vmem:[%s476 + $0x49] sm:$0xff] %vm388, %v6112
      %6145 = vst.msk [vmem:[%s476 + $0x51] sm:$0xff] %vm388, %v6113
      %6146 = vst.msk [vmem:[%s476 + $0x61] sm:$0xff] %vm388, %v6114
      %6147 = vst.msk [vmem:[%s476 + $0x69] sm:$0xff] %vm388, %v6115
      %6148 = vst.msk [vmem:[%s476 + $0x79] sm:$0xff] %vm388, %v6116
      %6149 = vst.msk [vmem:[%s476 + $0x81] sm:$0xff] %vm388, %v6117
      %6150 = vst.msk [vmem:[%s476 + $0x91] sm:$0xff] %vm388, %v6118
      %6151 = vst.msk [vmem:[%s476 + $0x99] sm:$0xff] %vm388, %v6119
      %6152 = vst.msk [vmem:[%s476 + $0xa9] sm:$0xff] %vm388, %v6120
      %6153 = vst.msk [vmem:[%s476 + $0xb1] sm:$0xff] %vm388, %v6121
      %6154 = vst.msk [vmem:[%s476 + $0xc1] sm:$0xff] %vm388, %v6122
      %6155 = vst.msk [vmem:[%s476 + $0xc9] sm:$0xff] %vm388, %v6123
      %6156 = vst.msk [vmem:[%s476 + $0xd9] sm:$0xff] %vm388, %v6124
      %6157 = vst.msk [vmem:[%s476 + $0xe1] sm:$0xff] %vm388, %v6125
      %6158 = vst.msk [vmem:[%s476 + $0xf1] sm:$0xff] %vm388, %v6126
      %6159 = vst.msk [vmem:[%s476 + $0xf9] sm:$0xff] %vm388, %v6127
      %6160 = vst.msk [vmem:[%s476 + $0x109] sm:$0xff] %vm388, %v6128
      %6161 = vst.msk [vmem:[%s476 + $0x111] sm:$0xff] %vm388, %v6129
      %6162 = vst.msk [vmem:[%s476 + $0x121] sm:$0xff] %vm388, %v6130
      %6163 = vst.msk [vmem:[%s476 + $0x129] sm:$0xff] %vm388, %v6131
      %6164 = vst.msk [vmem:[%s476 + $0x139] sm:$0xff] %vm388, %v6132
      %6165 = vst.msk [vmem:[%s476 + $0x141] sm:$0xff] %vm388, %v6133
      %6166 = vst.msk [vmem:[%s476 + $0x151] sm:$0xff] %vm388, %v6134
      %6167 = vst.msk [vmem:[%s476 + $0x159] sm:$0xff] %vm388, %v6135
      %6168 = vst.msk [vmem:[%s476 + $0x169] sm:$0xff] %vm388, %v6136
      %6169 = vst.msk [vmem:[%s476 + $0x171] sm:$0xff] %vm388, %v6137
      %v6170 = vld [vmem:[#allocation2] sm:$0xff]
      %v6171 = vld [vmem:[#allocation2 + $0x8] sm:$0xff]
      %v6172 = vld [vmem:[#allocation2 + $0x18] sm:$0xff]
      %v6173 = vld [vmem:[#allocation2 + $0x20] sm:$0xff]
      %v6174 = vld [vmem:[#allocation2 + $0x30] sm:$0xff]
      %v6175 = vld [vmem:[#allocation2 + $0x38] sm:$0xff]
      %v6176 = vld [vmem:[#allocation2 + $0x48] sm:$0xff]
      %v6177 = vld [vmem:[#allocation2 + $0x50] sm:$0xff]
      %v6178 = vld [vmem:[#allocation2 + $0x60] sm:$0xff]
      %v6179 = vld [vmem:[#allocation2 + $0x68] sm:$0xff]
      %v6180 = vld [vmem:[#allocation2 + $0x78] sm:$0xff]
      %v6181 = vld [vmem:[#allocation2 + $0x80] sm:$0xff]
      %v6182 = vld [vmem:[#allocation2 + $0x90] sm:$0xff]
      %v6183 = vld [vmem:[#allocation2 + $0x98] sm:$0xff]
      %v6184 = vld [vmem:[#allocation2 + $0xa8] sm:$0xff]
      %v6185 = vld [vmem:[#allocation2 + $0xb0] sm:$0xff]
      %v6186 = vld [vmem:[#allocation2 + $0xc0] sm:$0xff]
      %v6187 = vld [vmem:[#allocation2 + $0xc8] sm:$0xff]
      %v6188 = vld [vmem:[#allocation2 + $0xd8] sm:$0xff]
      %v6189 = vld [vmem:[#allocation2 + $0xe0] sm:$0xff]
      %v6190 = vld [vmem:[#allocation2 + $0xf0] sm:$0xff]
      %v6191 = vld [vmem:[#allocation2 + $0xf8] sm:$0xff]
      %v6192 = vld [vmem:[#allocation2 + $0x108] sm:$0xff]
      %v6193 = vld [vmem:[#allocation2 + $0x110] sm:$0xff]
      %v6194 = vld [vmem:[#allocation2 + $0x120] sm:$0xff]
      %v6195 = vld [vmem:[#allocation2 + $0x128] sm:$0xff]
      %v6196 = vld [vmem:[#allocation2 + $0x138] sm:$0xff]
      %v6197 = vld [vmem:[#allocation2 + $0x140] sm:$0xff]
      %v6198 = vld [vmem:[#allocation2 + $0x150] sm:$0xff]
      %v6199 = vld [vmem:[#allocation2 + $0x158] sm:$0xff]
      %v6200 = vld [vmem:[#allocation2 + $0x168] sm:$0xff]
      %v6201 = vld [vmem:[#allocation2 + $0x170] sm:$0xff]
      %v6202 = vld [vmem:[#allocation2 + $0x1] sm:$0xff]
      %v6203 = vld [vmem:[#allocation2 + $0x9] sm:$0xff]
      %v6204 = vld [vmem:[#allocation2 + $0x19] sm:$0xff]
      %v6205 = vld [vmem:[#allocation2 + $0x21] sm:$0xff]
      %v6206 = vld [vmem:[#allocation2 + $0x31] sm:$0xff]
      %v6207 = vld [vmem:[#allocation2 + $0x39] sm:$0xff]
      %v6208 = vld [vmem:[#allocation2 + $0x49] sm:$0xff]
      %v6209 = vld [vmem:[#allocation2 + $0x51] sm:$0xff]
      %v6210 = vld [vmem:[#allocation2 + $0x61] sm:$0xff]
      %v6211 = vld [vmem:[#allocation2 + $0x69] sm:$0xff]
      %v6212 = vld [vmem:[#allocation2 + $0x79] sm:$0xff]
      %v6213 = vld [vmem:[#allocation2 + $0x81] sm:$0xff]
      %v6214 = vld [vmem:[#allocation2 + $0x91] sm:$0xff]
      %v6215 = vld [vmem:[#allocation2 + $0x99] sm:$0xff]
      %v6216 = vld [vmem:[#allocation2 + $0xa9] sm:$0xff]
      %v6217 = vld [vmem:[#allocation2 + $0xb1] sm:$0xff]
      %v6218 = vld [vmem:[#allocation2 + $0xc1] sm:$0xff]
      %v6219 = vld [vmem:[#allocation2 + $0xc9] sm:$0xff]
      %v6220 = vld [vmem:[#allocation2 + $0xd9] sm:$0xff]
      %v6221 = vld [vmem:[#allocation2 + $0xe1] sm:$0xff]
      %v6222 = vld [vmem:[#allocation2 + $0xf1] sm:$0xff]
      %v6223 = vld [vmem:[#allocation2 + $0xf9] sm:$0xff]
      %v6224 = vld [vmem:[#allocation2 + $0x109] sm:$0xff]
      %v6225 = vld [vmem:[#allocation2 + $0x111] sm:$0xff]
      %v6226 = vld [vmem:[#allocation2 + $0x121] sm:$0xff]
      %v6227 = vld [vmem:[#allocation2 + $0x129] sm:$0xff]
      %v6228 = vld [vmem:[#allocation2 + $0x139] sm:$0xff]
      %v6229 = vld [vmem:[#allocation2 + $0x141] sm:$0xff]
      %v6230 = vld [vmem:[#allocation2 + $0x151] sm:$0xff]
      %v6231 = vld [vmem:[#allocation2 + $0x159] sm:$0xff]
      %v6232 = vld [vmem:[#allocation2 + $0x169] sm:$0xff]
      %v6233 = vld [vmem:[#allocation2 + $0x171] sm:$0xff]
      %v6234 = vld [vmem:[#allocation2 + $0x2] sm:$0xff]
      %v6235 = vld [vmem:[#allocation2 + $0xa] sm:$0xff]
      %v6236 = vld [vmem:[#allocation2 + $0x1a] sm:$0xff]
      %v6237 = vld [vmem:[#allocation2 + $0x22] sm:$0xff]
      %v6238 = vld [vmem:[#allocation2 + $0x32] sm:$0xff]
      %v6239 = vld [vmem:[#allocation2 + $0x3a] sm:$0xff]
      %v6240 = vld [vmem:[#allocation2 + $0x4a] sm:$0xff]
      %v6241 = vld [vmem:[#allocation2 + $0x52] sm:$0xff]
      %v6242 = vld [vmem:[#allocation2 + $0x62] sm:$0xff]
      %v6243 = vld [vmem:[#allocation2 + $0x6a] sm:$0xff]
      %v6244 = vld [vmem:[#allocation2 + $0x7a] sm:$0xff]
      %v6245 = vld [vmem:[#allocation2 + $0x82] sm:$0xff]
      %v6246 = vld [vmem:[#allocation2 + $0x92] sm:$0xff]
      %v6247 = vld [vmem:[#allocation2 + $0x9a] sm:$0xff]
      %v6248 = vld [vmem:[#allocation2 + $0xaa] sm:$0xff]
      %v6249 = vld [vmem:[#allocation2 + $0xb2] sm:$0xff]
      %v6250 = vld [vmem:[#allocation2 + $0xc2] sm:$0xff]
      %v6251 = vld [vmem:[#allocation2 + $0xca] sm:$0xff]
      %v6252 = vld [vmem:[#allocation2 + $0xda] sm:$0xff]
      %v6253 = vld [vmem:[#allocation2 + $0xe2] sm:$0xff]
      %v6254 = vld [vmem:[#allocation2 + $0xf2] sm:$0xff]
      %v6255 = vld [vmem:[#allocation2 + $0xfa] sm:$0xff]
      %v6256 = vld [vmem:[#allocation2 + $0x10a] sm:$0xff]
      %v6257 = vld [vmem:[#allocation2 + $0x112] sm:$0xff]
      %v6258 = vld [vmem:[#allocation2 + $0x122] sm:$0xff]
      %v6259 = vld [vmem:[#allocation2 + $0x12a] sm:$0xff]
      %v6260 = vld [vmem:[#allocation2 + $0x13a] sm:$0xff]
      %v6261 = vld [vmem:[#allocation2 + $0x142] sm:$0xff]
      %v6262 = vld [vmem:[#allocation2 + $0x152] sm:$0xff]
      %v6263 = vld [vmem:[#allocation2 + $0x15a] sm:$0xff]
      %v6264 = vld [vmem:[#allocation2 + $0x16a] sm:$0xff]
      %v6265 = vld [vmem:[#allocation2 + $0x172] sm:$0xff]
      %v6266 = vld [vmem:[%s476] sm:$0xff]
      %v6267 = vld [vmem:[%s476 + $0x8] sm:$0xff]
      %v6268 = vld [vmem:[%s476 + $0x18] sm:$0xff]
      %v6269 = vld [vmem:[%s476 + $0x20] sm:$0xff]
      %v6270 = vld [vmem:[%s476 + $0x30] sm:$0xff]
      %v6271 = vld [vmem:[%s476 + $0x38] sm:$0xff]
      %v6272 = vld [vmem:[%s476 + $0x48] sm:$0xff]
      %v6273 = vld [vmem:[%s476 + $0x50] sm:$0xff]
      %v6274 = vld [vmem:[%s476 + $0x60] sm:$0xff]
      %v6275 = vld [vmem:[%s476 + $0x68] sm:$0xff]
      %v6276 = vld [vmem:[%s476 + $0x78] sm:$0xff]
      %v6277 = vld [vmem:[%s476 + $0x80] sm:$0xff]
      %v6278 = vld [vmem:[%s476 + $0x90] sm:$0xff]
      %v6279 = vld [vmem:[%s476 + $0x98] sm:$0xff]
      %v6280 = vld [vmem:[%s476 + $0xa8] sm:$0xff]
      %v6281 = vld [vmem:[%s476 + $0xb0] sm:$0xff]
      %v6282 = vld [vmem:[%s476 + $0xc0] sm:$0xff]
      %v6283 = vld [vmem:[%s476 + $0xc8] sm:$0xff]
      %v6284 = vld [vmem:[%s476 + $0xd8] sm:$0xff]
      %v6285 = vld [vmem:[%s476 + $0xe0] sm:$0xff]
      %v6286 = vld [vmem:[%s476 + $0xf0] sm:$0xff]
      %v6287 = vld [vmem:[%s476 + $0xf8] sm:$0xff]
      %v6288 = vld [vmem:[%s476 + $0x108] sm:$0xff]
      %v6289 = vld [vmem:[%s476 + $0x110] sm:$0xff]
      %v6290 = vld [vmem:[%s476 + $0x120] sm:$0xff]
      %v6291 = vld [vmem:[%s476 + $0x128] sm:$0xff]
      %v6292 = vld [vmem:[%s476 + $0x138] sm:$0xff]
      %v6293 = vld [vmem:[%s476 + $0x140] sm:$0xff]
      %v6294 = vld [vmem:[%s476 + $0x150] sm:$0xff]
      %v6295 = vld [vmem:[%s476 + $0x158] sm:$0xff]
      %v6296 = vld [vmem:[%s476 + $0x168] sm:$0xff]
      %v6297 = vld [vmem:[%s476 + $0x170] sm:$0xff]
      %v6298 = vld [vmem:[%s476 + $0x1] sm:$0xff]
      %v6299 = vld [vmem:[%s476 + $0x9] sm:$0xff]
      %v6300 = vld [vmem:[%s476 + $0x19] sm:$0xff]
      %v6301 = vld [vmem:[%s476 + $0x21] sm:$0xff]
      %v6302 = vld [vmem:[%s476 + $0x31] sm:$0xff]
      %v6303 = vld [vmem:[%s476 + $0x39] sm:$0xff]
      %v6304 = vld [vmem:[%s476 + $0x49] sm:$0xff]
      %v6305 = vld [vmem:[%s476 + $0x51] sm:$0xff]
      %v6306 = vld [vmem:[%s476 + $0x61] sm:$0xff]
      %v6307 = vld [vmem:[%s476 + $0x69] sm:$0xff]
      %v6308 = vld [vmem:[%s476 + $0x79] sm:$0xff]
      %v6309 = vld [vmem:[%s476 + $0x81] sm:$0xff]
      %v6310 = vld [vmem:[%s476 + $0x91] sm:$0xff]
      %v6311 = vld [vmem:[%s476 + $0x99] sm:$0xff]
      %v6312 = vld [vmem:[%s476 + $0xa9] sm:$0xff]
      %v6313 = vld [vmem:[%s476 + $0xb1] sm:$0xff]
      %v6314 = vld [vmem:[%s476 + $0xc1] sm:$0xff]
      %v6315 = vld [vmem:[%s476 + $0xc9] sm:$0xff]
      %v6316 = vld [vmem:[%s476 + $0xd9] sm:$0xff]
      %v6317 = vld [vmem:[%s476 + $0xe1] sm:$0xff]
      %v6318 = vld [vmem:[%s476 + $0xf1] sm:$0xff]
      %v6319 = vld [vmem:[%s476 + $0xf9] sm:$0xff]
      %v6320 = vld [vmem:[%s476 + $0x109] sm:$0xff]
      %v6321 = vld [vmem:[%s476 + $0x111] sm:$0xff]
      %v6322 = vld [vmem:[%s476 + $0x121] sm:$0xff]
      %v6323 = vld [vmem:[%s476 + $0x129] sm:$0xff]
      %v6324 = vld [vmem:[%s476 + $0x139] sm:$0xff]
      %v6325 = vld [vmem:[%s476 + $0x141] sm:$0xff]
      %v6326 = vld [vmem:[%s476 + $0x151] sm:$0xff]
      %v6327 = vld [vmem:[%s476 + $0x159] sm:$0xff]
      %v6328 = vld [vmem:[%s476 + $0x169] sm:$0xff]
      %v6329 = vld [vmem:[%s476 + $0x171] sm:$0xff]
      %v6330 = vld [vmem:[%s476 + $0x2] sm:$0xff]
      %v6331 = vld [vmem:[%s476 + $0xa] sm:$0xff]
      %v6332 = vld [vmem:[%s476 + $0x1a] sm:$0xff]
      %v6333 = vld [vmem:[%s476 + $0x22] sm:$0xff]
      %v6334 = vld [vmem:[%s476 + $0x32] sm:$0xff]
      %v6335 = vld [vmem:[%s476 + $0x3a] sm:$0xff]
      %v6336 = vld [vmem:[%s476 + $0x4a] sm:$0xff]
      %v6337 = vld [vmem:[%s476 + $0x52] sm:$0xff]
      %v6338 = vld [vmem:[%s476 + $0x62] sm:$0xff]
      %v6339 = vld [vmem:[%s476 + $0x6a] sm:$0xff]
      %v6340 = vld [vmem:[%s476 + $0x7a] sm:$0xff]
      %v6341 = vld [vmem:[%s476 + $0x82] sm:$0xff]
      %v6342 = vld [vmem:[%s476 + $0x92] sm:$0xff]
      %v6343 = vld [vmem:[%s476 + $0x9a] sm:$0xff]
      %v6344 = vld [vmem:[%s476 + $0xaa] sm:$0xff]
      %v6345 = vld [vmem:[%s476 + $0xb2] sm:$0xff]
      %v6346 = vld [vmem:[%s476 + $0xc2] sm:$0xff]
      %v6347 = vld [vmem:[%s476 + $0xca] sm:$0xff]
      %v6348 = vld [vmem:[%s476 + $0xda] sm:$0xff]
      %v6349 = vld [vmem:[%s476 + $0xe2] sm:$0xff]
      %v6350 = vld [vmem:[%s476 + $0xf2] sm:$0xff]
      %v6351 = vld [vmem:[%s476 + $0xfa] sm:$0xff]
      %v6352 = vld [vmem:[%s476 + $0x10a] sm:$0xff]
      %v6353 = vld [vmem:[%s476 + $0x112] sm:$0xff]
      %v6354 = vld [vmem:[%s476 + $0x122] sm:$0xff]
      %v6355 = vld [vmem:[%s476 + $0x12a] sm:$0xff]
      %v6356 = vld [vmem:[%s476 + $0x13a] sm:$0xff]
      %v6357 = vld [vmem:[%s476 + $0x142] sm:$0xff]
      %v6358 = vld [vmem:[%s476 + $0x152] sm:$0xff]
      %v6359 = vld [vmem:[%s476 + $0x15a] sm:$0xff]
      %v6360 = vld [vmem:[%s476 + $0x16a] sm:$0xff]
      %v6361 = vld [vmem:[%s476 + $0x172] sm:$0xff]
      %v6362 = vld [vmem:[%s702] sm:$0xff]
      %v6363 = vld [vmem:[%s702 + $0x8] sm:$0xff]
      %v6364 = vld [vmem:[%s702 + $0x18] sm:$0xff]
      %v6365 = vld [vmem:[%s702 + $0x20] sm:$0xff]
      %v6366 = vld [vmem:[%s702 + $0x30] sm:$0xff]
      %v6367 = vld [vmem:[%s702 + $0x38] sm:$0xff]
      %v6368 = vld [vmem:[%s702 + $0x48] sm:$0xff]
      %v6369 = vld [vmem:[%s702 + $0x50] sm:$0xff]
      %v6370 = vld [vmem:[%s702 + $0x60] sm:$0xff]
      %v6371 = vld [vmem:[%s702 + $0x68] sm:$0xff]
      %v6372 = vld [vmem:[%s702 + $0x78] sm:$0xff]
      %v6373 = vld [vmem:[%s702 + $0x80] sm:$0xff]
      %v6374 = vld [vmem:[%s702 + $0x90] sm:$0xff]
      %v6375 = vld [vmem:[%s702 + $0x98] sm:$0xff]
      %v6376 = vld [vmem:[%s702 + $0xa8] sm:$0xff]
      %v6377 = vld [vmem:[%s702 + $0xb0] sm:$0xff]
      %v6378 = vld [vmem:[%s702 + $0xc0] sm:$0xff]
      %v6379 = vld [vmem:[%s702 + $0xc8] sm:$0xff]
      %v6380 = vld [vmem:[%s702 + $0xd8] sm:$0xff]
      %v6381 = vld [vmem:[%s702 + $0xe0] sm:$0xff]
      %v6382 = vld [vmem:[%s702 + $0xf0] sm:$0xff]
      %v6383 = vld [vmem:[%s702 + $0xf8] sm:$0xff]
      %v6384 = vld [vmem:[%s702 + $0x108] sm:$0xff]
      %v6385 = vld [vmem:[%s702 + $0x110] sm:$0xff]
      %v6386 = vld [vmem:[%s702 + $0x120] sm:$0xff]
      %v6387 = vld [vmem:[%s702 + $0x128] sm:$0xff]
      %v6388 = vld [vmem:[%s702 + $0x138] sm:$0xff]
      %v6389 = vld [vmem:[%s702 + $0x140] sm:$0xff]
      %v6390 = vld [vmem:[%s702 + $0x150] sm:$0xff]
      %v6391 = vld [vmem:[%s702 + $0x158] sm:$0xff]
      %v6392 = vld [vmem:[%s702 + $0x168] sm:$0xff]
      %v6393 = vld [vmem:[%s702 + $0x170] sm:$0xff]
      %v6394 = vld [vmem:[%s702 + $0x1] sm:$0xff]
      %v6395 = vld [vmem:[%s702 + $0x9] sm:$0xff]
      %v6396 = vld [vmem:[%s702 + $0x19] sm:$0xff]
      %v6397 = vld [vmem:[%s702 + $0x21] sm:$0xff]
      %v6398 = vld [vmem:[%s702 + $0x31] sm:$0xff]
      %v6399 = vld [vmem:[%s702 + $0x39] sm:$0xff]
      %v6400 = vld [vmem:[%s702 + $0x49] sm:$0xff]
      %v6401 = vld [vmem:[%s702 + $0x51] sm:$0xff]
      %v6402 = vld [vmem:[%s702 + $0x61] sm:$0xff]
      %v6403 = vld [vmem:[%s702 + $0x69] sm:$0xff]
      %v6404 = vld [vmem:[%s702 + $0x79] sm:$0xff]
      %v6405 = vld [vmem:[%s702 + $0x81] sm:$0xff]
      %v6406 = vld [vmem:[%s702 + $0x91] sm:$0xff]
      %v6407 = vld [vmem:[%s702 + $0x99] sm:$0xff]
      %v6408 = vld [vmem:[%s702 + $0xa9] sm:$0xff]
      %v6409 = vld [vmem:[%s702 + $0xb1] sm:$0xff]
      %v6410 = vld [vmem:[%s702 + $0xc1] sm:$0xff]
      %v6411 = vld [vmem:[%s702 + $0xc9] sm:$0xff]
      %v6412 = vld [vmem:[%s702 + $0xd9] sm:$0xff]
      %v6413 = vld [vmem:[%s702 + $0xe1] sm:$0xff]
      %v6414 = vld [vmem:[%s702 + $0xf1] sm:$0xff]
      %v6415 = vld [vmem:[%s702 + $0xf9] sm:$0xff]
      %v6416 = vld [vmem:[%s702 + $0x109] sm:$0xff]
      %v6417 = vld [vmem:[%s702 + $0x111] sm:$0xff]
      %v6418 = vld [vmem:[%s702 + $0x121] sm:$0xff]
      %v6419 = vld [vmem:[%s702 + $0x129] sm:$0xff]
      %v6420 = vld [vmem:[%s702 + $0x139] sm:$0xff]
      %v6421 = vld [vmem:[%s702 + $0x141] sm:$0xff]
      %v6422 = vld [vmem:[%s702 + $0x151] sm:$0xff]
      %v6423 = vld [vmem:[%s702 + $0x159] sm:$0xff]
      %v6424 = vld [vmem:[%s702 + $0x169] sm:$0xff]
      %v6425 = vld [vmem:[%s702 + $0x171] sm:$0xff]
      %v6426 = vld [vmem:[%s702 + $0x2] sm:$0xff]
      %v6427 = vld [vmem:[%s702 + $0xa] sm:$0xff]
      %v6428 = vld [vmem:[%s702 + $0x1a] sm:$0xff]
      %v6429 = vld [vmem:[%s702 + $0x22] sm:$0xff]
      %v6430 = vld [vmem:[%s702 + $0x32] sm:$0xff]
      %v6431 = vld [vmem:[%s702 + $0x3a] sm:$0xff]
      %v6432 = vld [vmem:[%s702 + $0x4a] sm:$0xff]
      %v6433 = vld [vmem:[%s702 + $0x52] sm:$0xff]
      %v6434 = vld [vmem:[%s702 + $0x62] sm:$0xff]
      %v6435 = vld [vmem:[%s702 + $0x6a] sm:$0xff]
      %v6436 = vld [vmem:[%s702 + $0x7a] sm:$0xff]
      %v6437 = vld [vmem:[%s702 + $0x82] sm:$0xff]
      %v6438 = vld [vmem:[%s702 + $0x92] sm:$0xff]
      %v6439 = vld [vmem:[%s702 + $0x9a] sm:$0xff]
      %v6440 = vld [vmem:[%s702 + $0xaa] sm:$0xff]
      %v6441 = vld [vmem:[%s702 + $0xb2] sm:$0xff]
      %v6442 = vld [vmem:[%s702 + $0xc2] sm:$0xff]
      %v6443 = vld [vmem:[%s702 + $0xca] sm:$0xff]
      %v6444 = vld [vmem:[%s702 + $0xda] sm:$0xff]
      %v6445 = vld [vmem:[%s702 + $0xe2] sm:$0xff]
      %v6446 = vld [vmem:[%s702 + $0xf2] sm:$0xff]
      %v6447 = vld [vmem:[%s702 + $0xfa] sm:$0xff]
      %v6448 = vld [vmem:[%s702 + $0x10a] sm:$0xff]
      %v6449 = vld [vmem:[%s702 + $0x112] sm:$0xff]
      %v6450 = vld [vmem:[%s702 + $0x122] sm:$0xff]
      %v6451 = vld [vmem:[%s702 + $0x12a] sm:$0xff]
      %v6452 = vld [vmem:[%s702 + $0x13a] sm:$0xff]
      %v6453 = vld [vmem:[%s702 + $0x142] sm:$0xff]
      %v6454 = vld [vmem:[%s702 + $0x152] sm:$0xff]
      %v6455 = vld [vmem:[%s702 + $0x15a] sm:$0xff]
      %v6456 = vld [vmem:[%s702 + $0x16a] sm:$0xff]
      %v6457 = vld [vmem:[%s702 + $0x172] sm:$0xff]
      %6490 = vrot.lane.b32.xlu0 %v6202, 32
      %v6491 = vpop.permute.xlu0 %6490
      %6492 = vrot.lane.b32.xlu0 %v6203, 32
      %v6493 = vpop.permute.xlu0 %6492
      %6494 = vrot.lane.b32.xlu0 %v6204, 32
      %v6495 = vpop.permute.xlu0 %6494
      %6496 = vrot.lane.b32.xlu0 %v6205, 32
      %v6497 = vpop.permute.xlu0 %6496
      %6498 = vrot.lane.b32.xlu0 %v6206, 32
      %v6499 = vpop.permute.xlu0 %6498
      %6500 = vrot.lane.b32.xlu0 %v6207, 32
      %v6501 = vpop.permute.xlu0 %6500
      %6502 = vrot.lane.b32.xlu0 %v6208, 32
      %v6503 = vpop.permute.xlu0 %6502
      %6504 = vrot.lane.b32.xlu0 %v6209, 32
      %v6505 = vpop.permute.xlu0 %6504
      %6506 = vrot.lane.b32.xlu0 %v6210, 32
      %v6507 = vpop.permute.xlu0 %6506
      %6508 = vrot.lane.b32.xlu0 %v6211, 32
      %v6509 = vpop.permute.xlu0 %6508
      %6510 = vrot.lane.b32.xlu0 %v6212, 32
      %v6511 = vpop.permute.xlu0 %6510
      %6512 = vrot.lane.b32.xlu0 %v6213, 32
      %v6513 = vpop.permute.xlu0 %6512
      %6514 = vrot.lane.b32.xlu0 %v6214, 32
      %v6515 = vpop.permute.xlu0 %6514
      %6516 = vrot.lane.b32.xlu0 %v6215, 32
      %v6517 = vpop.permute.xlu0 %6516
      %6518 = vrot.lane.b32.xlu0 %v6216, 32
      %v6519 = vpop.permute.xlu0 %6518
      %6520 = vrot.lane.b32.xlu0 %v6217, 32
      %v6521 = vpop.permute.xlu0 %6520
      %6522 = vrot.lane.b32.xlu0 %v6218, 32
      %v6523 = vpop.permute.xlu0 %6522
      %6524 = vrot.lane.b32.xlu0 %v6219, 32
      %v6525 = vpop.permute.xlu0 %6524
      %6526 = vrot.lane.b32.xlu0 %v6220, 32
      %v6527 = vpop.permute.xlu0 %6526
      %6528 = vrot.lane.b32.xlu0 %v6221, 32
      %v6529 = vpop.permute.xlu0 %6528
      %6530 = vrot.lane.b32.xlu0 %v6222, 32
      %v6531 = vpop.permute.xlu0 %6530
      %6532 = vrot.lane.b32.xlu0 %v6223, 32
      %v6533 = vpop.permute.xlu0 %6532
      %6534 = vrot.lane.b32.xlu0 %v6224, 32
      %v6535 = vpop.permute.xlu0 %6534
      %6536 = vrot.lane.b32.xlu0 %v6225, 32
      %v6537 = vpop.permute.xlu0 %6536
      %6538 = vrot.lane.b32.xlu0 %v6226, 32
      %v6539 = vpop.permute.xlu0 %6538
      %6540 = vrot.lane.b32.xlu0 %v6227, 32
      %v6541 = vpop.permute.xlu0 %6540
      %6542 = vrot.lane.b32.xlu0 %v6228, 32
      %v6543 = vpop.permute.xlu0 %6542
      %6544 = vrot.lane.b32.xlu0 %v6229, 32
      %v6545 = vpop.permute.xlu0 %6544
      %6546 = vrot.lane.b32.xlu0 %v6230, 32
      %v6547 = vpop.permute.xlu0 %6546
      %6548 = vrot.lane.b32.xlu0 %v6231, 32
      %v6549 = vpop.permute.xlu0 %6548
      %6550 = vrot.lane.b32.xlu0 %v6232, 32
      %v6551 = vpop.permute.xlu0 %6550
      %6552 = vrot.lane.b32.xlu0 %v6233, 32
      %v6553 = vpop.permute.xlu0 %6552
      %6618 = vrot.lane.b32.xlu0 %v6234, 64
      %v6619 = vpop.permute.xlu0 %6618
      %6620 = vrot.lane.b32.xlu0 %v6235, 64
      %v6621 = vpop.permute.xlu0 %6620
      %6622 = vrot.lane.b32.xlu0 %v6236, 64
      %v6623 = vpop.permute.xlu0 %6622
      %6624 = vrot.lane.b32.xlu0 %v6237, 64
      %v6625 = vpop.permute.xlu0 %6624
      %6626 = vrot.lane.b32.xlu0 %v6238, 64
      %v6627 = vpop.permute.xlu0 %6626
      %6628 = vrot.lane.b32.xlu0 %v6239, 64
      %v6629 = vpop.permute.xlu0 %6628
      %6630 = vrot.lane.b32.xlu0 %v6240, 64
      %v6631 = vpop.permute.xlu0 %6630
      %6632 = vrot.lane.b32.xlu0 %v6241, 64
      %v6633 = vpop.permute.xlu0 %6632
      %6634 = vrot.lane.b32.xlu0 %v6242, 64
      %v6635 = vpop.permute.xlu0 %6634
      %6636 = vrot.lane.b32.xlu0 %v6243, 64
      %v6637 = vpop.permute.xlu0 %6636
      %6638 = vrot.lane.b32.xlu0 %v6244, 64
      %v6639 = vpop.permute.xlu0 %6638
      %6640 = vrot.lane.b32.xlu0 %v6245, 64
      %v6641 = vpop.permute.xlu0 %6640
      %6642 = vrot.lane.b32.xlu0 %v6246, 64
      %v6643 = vpop.permute.xlu0 %6642
      %6644 = vrot.lane.b32.xlu0 %v6247, 64
      %v6645 = vpop.permute.xlu0 %6644
      %6646 = vrot.lane.b32.xlu0 %v6248, 64
      %v6647 = vpop.permute.xlu0 %6646
      %6648 = vrot.lane.b32.xlu0 %v6249, 64
      %v6649 = vpop.permute.xlu0 %6648
      %6650 = vrot.lane.b32.xlu0 %v6250, 64
      %v6651 = vpop.permute.xlu0 %6650
      %6652 = vrot.lane.b32.xlu0 %v6251, 64
      %v6653 = vpop.permute.xlu0 %6652
      %6654 = vrot.lane.b32.xlu0 %v6252, 64
      %v6655 = vpop.permute.xlu0 %6654
      %6656 = vrot.lane.b32.xlu0 %v6253, 64
      %v6657 = vpop.permute.xlu0 %6656
      %6658 = vrot.lane.b32.xlu0 %v6254, 64
      %v6659 = vpop.permute.xlu0 %6658
      %6660 = vrot.lane.b32.xlu0 %v6255, 64
      %v6661 = vpop.permute.xlu0 %6660
      %6662 = vrot.lane.b32.xlu0 %v6256, 64
      %v6663 = vpop.permute.xlu0 %6662
      %6664 = vrot.lane.b32.xlu0 %v6257, 64
      %v6665 = vpop.permute.xlu0 %6664
      %6666 = vrot.lane.b32.xlu0 %v6258, 64
      %v6667 = vpop.permute.xlu0 %6666
      %6668 = vrot.lane.b32.xlu0 %v6259, 64
      %v6669 = vpop.permute.xlu0 %6668
      %6670 = vrot.lane.b32.xlu0 %v6260, 64
      %v6671 = vpop.permute.xlu0 %6670
      %6672 = vrot.lane.b32.xlu0 %v6261, 64
      %v6673 = vpop.permute.xlu0 %6672
      %6674 = vrot.lane.b32.xlu0 %v6262, 64
      %v6675 = vpop.permute.xlu0 %6674
      %6676 = vrot.lane.b32.xlu0 %v6263, 64
      %v6677 = vpop.permute.xlu0 %6676
      %6678 = vrot.lane.b32.xlu0 %v6264, 64
      %v6679 = vpop.permute.xlu0 %6678
      %6680 = vrot.lane.b32.xlu0 %v6265, 64
      %v6681 = vpop.permute.xlu0 %6680
      %6746 = vrot.lane.b32.xlu0 %v6266, 96
      %v6747 = vpop.permute.xlu0 %6746
      %6748 = vrot.lane.b32.xlu0 %v6267, 96
      %v6749 = vpop.permute.xlu0 %6748
      %6750 = vrot.lane.b32.xlu0 %v6268, 96
      %v6751 = vpop.permute.xlu0 %6750
      %6752 = vrot.lane.b32.xlu0 %v6269, 96
      %v6753 = vpop.permute.xlu0 %6752
      %6754 = vrot.lane.b32.xlu0 %v6270, 96
      %v6755 = vpop.permute.xlu0 %6754
      %6756 = vrot.lane.b32.xlu0 %v6271, 96
      %v6757 = vpop.permute.xlu0 %6756
      %6758 = vrot.lane.b32.xlu0 %v6272, 96
      %v6759 = vpop.permute.xlu0 %6758
      %6760 = vrot.lane.b32.xlu0 %v6273, 96
      %v6761 = vpop.permute.xlu0 %6760
      %6762 = vrot.lane.b32.xlu0 %v6274, 96
      %v6763 = vpop.permute.xlu0 %6762
      %6764 = vrot.lane.b32.xlu0 %v6275, 96
      %v6765 = vpop.permute.xlu0 %6764
      %6766 = vrot.lane.b32.xlu0 %v6276, 96
      %v6767 = vpop.permute.xlu0 %6766
      %6768 = vrot.lane.b32.xlu0 %v6277, 96
      %v6769 = vpop.permute.xlu0 %6768
      %6770 = vrot.lane.b32.xlu0 %v6278, 96
      %v6771 = vpop.permute.xlu0 %6770
      %6772 = vrot.lane.b32.xlu0 %v6279, 96
      %v6773 = vpop.permute.xlu0 %6772
      %6774 = vrot.lane.b32.xlu0 %v6280, 96
      %v6775 = vpop.permute.xlu0 %6774
      %6776 = vrot.lane.b32.xlu0 %v6281, 96
      %v6777 = vpop.permute.xlu0 %6776
      %6778 = vrot.lane.b32.xlu0 %v6282, 96
      %v6779 = vpop.permute.xlu0 %6778
      %6780 = vrot.lane.b32.xlu0 %v6283, 96
      %v6781 = vpop.permute.xlu0 %6780
      %6782 = vrot.lane.b32.xlu0 %v6284, 96
      %v6783 = vpop.permute.xlu0 %6782
      %6784 = vrot.lane.b32.xlu0 %v6285, 96
      %v6785 = vpop.permute.xlu0 %6784
      %6786 = vrot.lane.b32.xlu0 %v6286, 96
      %v6787 = vpop.permute.xlu0 %6786
      %6788 = vrot.lane.b32.xlu0 %v6287, 96
      %v6789 = vpop.permute.xlu0 %6788
      %6790 = vrot.lane.b32.xlu0 %v6288, 96
      %v6791 = vpop.permute.xlu0 %6790
      %6792 = vrot.lane.b32.xlu0 %v6289, 96
      %v6793 = vpop.permute.xlu0 %6792
      %6794 = vrot.lane.b32.xlu0 %v6290, 96
      %v6795 = vpop.permute.xlu0 %6794
      %6796 = vrot.lane.b32.xlu0 %v6291, 96
      %v6797 = vpop.permute.xlu0 %6796
      %6798 = vrot.lane.b32.xlu0 %v6292, 96
      %v6799 = vpop.permute.xlu0 %6798
      %6800 = vrot.lane.b32.xlu0 %v6293, 96
      %v6801 = vpop.permute.xlu0 %6800
      %6802 = vrot.lane.b32.xlu0 %v6294, 96
      %v6803 = vpop.permute.xlu0 %6802
      %6804 = vrot.lane.b32.xlu0 %v6295, 96
      %v6805 = vpop.permute.xlu0 %6804
      %6806 = vrot.lane.b32.xlu0 %v6296, 96
      %v6807 = vpop.permute.xlu0 %6806
      %6808 = vrot.lane.b32.xlu0 %v6297, 96
      %v6809 = vpop.permute.xlu0 %6808
      %6874 = vrot.lane.b32.xlu0 %v6330, 32
      %v6875 = vpop.permute.xlu0 %6874
      %6876 = vrot.lane.b32.xlu0 %v6331, 32
      %v6877 = vpop.permute.xlu0 %6876
      %6878 = vrot.lane.b32.xlu0 %v6332, 32
      %v6879 = vpop.permute.xlu0 %6878
      %6880 = vrot.lane.b32.xlu0 %v6333, 32
      %v6881 = vpop.permute.xlu0 %6880
      %6882 = vrot.lane.b32.xlu0 %v6334, 32
      %v6883 = vpop.permute.xlu0 %6882
      %6884 = vrot.lane.b32.xlu0 %v6335, 32
      %v6885 = vpop.permute.xlu0 %6884
      %6886 = vrot.lane.b32.xlu0 %v6336, 32
      %v6887 = vpop.permute.xlu0 %6886
      %6888 = vrot.lane.b32.xlu0 %v6337, 32
      %v6889 = vpop.permute.xlu0 %6888
      %6890 = vrot.lane.b32.xlu0 %v6338, 32
      %v6891 = vpop.permute.xlu0 %6890
      %6892 = vrot.lane.b32.xlu0 %v6339, 32
      %v6893 = vpop.permute.xlu0 %6892
      %6894 = vrot.lane.b32.xlu0 %v6340, 32
      %v6895 = vpop.permute.xlu0 %6894
      %6896 = vrot.lane.b32.xlu0 %v6341, 32
      %v6897 = vpop.permute.xlu0 %6896
      %6898 = vrot.lane.b32.xlu0 %v6342, 32
      %v6899 = vpop.permute.xlu0 %6898
      %6900 = vrot.lane.b32.xlu0 %v6343, 32
      %v6901 = vpop.permute.xlu0 %6900
      %6902 = vrot.lane.b32.xlu0 %v6344, 32
      %v6903 = vpop.permute.xlu0 %6902
      %6904 = vrot.lane.b32.xlu0 %v6345, 32
      %v6905 = vpop.permute.xlu0 %6904
      %6906 = vrot.lane.b32.xlu0 %v6346, 32
      %v6907 = vpop.permute.xlu0 %6906
      %6908 = vrot.lane.b32.xlu0 %v6347, 32
      %v6909 = vpop.permute.xlu0 %6908
      %6910 = vrot.lane.b32.xlu0 %v6348, 32
      %v6911 = vpop.permute.xlu0 %6910
      %6912 = vrot.lane.b32.xlu0 %v6349, 32
      %v6913 = vpop.permute.xlu0 %6912
      %6914 = vrot.lane.b32.xlu0 %v6350, 32
      %v6915 = vpop.permute.xlu0 %6914
      %6916 = vrot.lane.b32.xlu0 %v6351, 32
      %v6917 = vpop.permute.xlu0 %6916
      %6918 = vrot.lane.b32.xlu0 %v6352, 32
      %v6919 = vpop.permute.xlu0 %6918
      %6920 = vrot.lane.b32.xlu0 %v6353, 32
      %v6921 = vpop.permute.xlu0 %6920
      %6922 = vrot.lane.b32.xlu0 %v6354, 32
      %v6923 = vpop.permute.xlu0 %6922
      %6924 = vrot.lane.b32.xlu0 %v6355, 32
      %v6925 = vpop.permute.xlu0 %6924
      %6926 = vrot.lane.b32.xlu0 %v6356, 32
      %v6927 = vpop.permute.xlu0 %6926
      %6928 = vrot.lane.b32.xlu0 %v6357, 32
      %v6929 = vpop.permute.xlu0 %6928
      %6930 = vrot.lane.b32.xlu0 %v6358, 32
      %v6931 = vpop.permute.xlu0 %6930
      %6932 = vrot.lane.b32.xlu0 %v6359, 32
      %v6933 = vpop.permute.xlu0 %6932
      %6934 = vrot.lane.b32.xlu0 %v6360, 32
      %v6935 = vpop.permute.xlu0 %6934
      %6936 = vrot.lane.b32.xlu0 %v6361, 32
      %v6937 = vpop.permute.xlu0 %6936
      %7002 = vrot.lane.b32.xlu0 %v6362, 64
      %v7003 = vpop.permute.xlu0 %7002
      %7004 = vrot.lane.b32.xlu0 %v6363, 64
      %v7005 = vpop.permute.xlu0 %7004
      %7006 = vrot.lane.b32.xlu0 %v6364, 64
      %v7007 = vpop.permute.xlu0 %7006
      %7008 = vrot.lane.b32.xlu0 %v6365, 64
      %v7009 = vpop.permute.xlu0 %7008
      %7010 = vrot.lane.b32.xlu0 %v6366, 64
      %v7011 = vpop.permute.xlu0 %7010
      %7012 = vrot.lane.b32.xlu0 %v6367, 64
      %v7013 = vpop.permute.xlu0 %7012
      %7014 = vrot.lane.b32.xlu0 %v6368, 64
      %v7015 = vpop.permute.xlu0 %7014
      %7016 = vrot.lane.b32.xlu0 %v6369, 64
      %v7017 = vpop.permute.xlu0 %7016
      %7018 = vrot.lane.b32.xlu0 %v6370, 64
      %v7019 = vpop.permute.xlu0 %7018
      %7020 = vrot.lane.b32.xlu0 %v6371, 64
      %v7021 = vpop.permute.xlu0 %7020
      %7022 = vrot.lane.b32.xlu0 %v6372, 64
      %v7023 = vpop.permute.xlu0 %7022
      %7024 = vrot.lane.b32.xlu0 %v6373, 64
      %v7025 = vpop.permute.xlu0 %7024
      %7026 = vrot.lane.b32.xlu0 %v6374, 64
      %v7027 = vpop.permute.xlu0 %7026
      %7028 = vrot.lane.b32.xlu0 %v6375, 64
      %v7029 = vpop.permute.xlu0 %7028
      %7030 = vrot.lane.b32.xlu0 %v6376, 64
      %v7031 = vpop.permute.xlu0 %7030
      %7032 = vrot.lane.b32.xlu0 %v6377, 64
      %v7033 = vpop.permute.xlu0 %7032
      %7034 = vrot.lane.b32.xlu0 %v6378, 64
      %v7035 = vpop.permute.xlu0 %7034
      %7036 = vrot.lane.b32.xlu0 %v6379, 64
      %v7037 = vpop.permute.xlu0 %7036
      %7038 = vrot.lane.b32.xlu0 %v6380, 64
      %v7039 = vpop.permute.xlu0 %7038
      %7040 = vrot.lane.b32.xlu0 %v6381, 64
      %v7041 = vpop.permute.xlu0 %7040
      %7042 = vrot.lane.b32.xlu0 %v6382, 64
      %v7043 = vpop.permute.xlu0 %7042
      %7044 = vrot.lane.b32.xlu0 %v6383, 64
      %v7045 = vpop.permute.xlu0 %7044
      %7046 = vrot.lane.b32.xlu0 %v6384, 64
      %v7047 = vpop.permute.xlu0 %7046
      %7048 = vrot.lane.b32.xlu0 %v6385, 64
      %v7049 = vpop.permute.xlu0 %7048
      %7050 = vrot.lane.b32.xlu0 %v6386, 64
      %v7051 = vpop.permute.xlu0 %7050
      %7052 = vrot.lane.b32.xlu0 %v6387, 64
      %v7053 = vpop.permute.xlu0 %7052
      %7054 = vrot.lane.b32.xlu0 %v6388, 64
      %v7055 = vpop.permute.xlu0 %7054
      %7056 = vrot.lane.b32.xlu0 %v6389, 64
      %v7057 = vpop.permute.xlu0 %7056
      %7058 = vrot.lane.b32.xlu0 %v6390, 64
      %v7059 = vpop.permute.xlu0 %7058
      %7060 = vrot.lane.b32.xlu0 %v6391, 64
      %v7061 = vpop.permute.xlu0 %7060
      %7062 = vrot.lane.b32.xlu0 %v6392, 64
      %v7063 = vpop.permute.xlu0 %7062
      %7064 = vrot.lane.b32.xlu0 %v6393, 64
      %v7065 = vpop.permute.xlu0 %7064
      %7130 = vrot.lane.b32.xlu0 %v6394, 96
      %v7131 = vpop.permute.xlu0 %7130
      %7132 = vrot.lane.b32.xlu0 %v6395, 96
      %v7133 = vpop.permute.xlu0 %7132
      %7134 = vrot.lane.b32.xlu0 %v6396, 96
      %v7135 = vpop.permute.xlu0 %7134
      %7136 = vrot.lane.b32.xlu0 %v6397, 96
      %v7137 = vpop.permute.xlu0 %7136
      %7138 = vrot.lane.b32.xlu0 %v6398, 96
      %v7139 = vpop.permute.xlu0 %7138
      %7140 = vrot.lane.b32.xlu0 %v6399, 96
      %v7141 = vpop.permute.xlu0 %7140
      %7142 = vrot.lane.b32.xlu0 %v6400, 96
      %v7143 = vpop.permute.xlu0 %7142
      %7144 = vrot.lane.b32.xlu0 %v6401, 96
      %v7145 = vpop.permute.xlu0 %7144
      %7146 = vrot.lane.b32.xlu0 %v6402, 96
      %v7147 = vpop.permute.xlu0 %7146
      %7148 = vrot.lane.b32.xlu0 %v6403, 96
      %v7149 = vpop.permute.xlu0 %7148
      %7150 = vrot.lane.b32.xlu0 %v6404, 96
      %v7151 = vpop.permute.xlu0 %7150
      %7152 = vrot.lane.b32.xlu0 %v6405, 96
      %v7153 = vpop.permute.xlu0 %7152
      %7154 = vrot.lane.b32.xlu0 %v6406, 96
      %v7155 = vpop.permute.xlu0 %7154
      %7156 = vrot.lane.b32.xlu0 %v6407, 96
      %v7157 = vpop.permute.xlu0 %7156
      %7158 = vrot.lane.b32.xlu0 %v6408, 96
      %v7159 = vpop.permute.xlu0 %7158
      %7160 = vrot.lane.b32.xlu0 %v6409, 96
      %v7161 = vpop.permute.xlu0 %7160
      %7162 = vrot.lane.b32.xlu0 %v6410, 96
      %v7163 = vpop.permute.xlu0 %7162
      %7164 = vrot.lane.b32.xlu0 %v6411, 96
      %v7165 = vpop.permute.xlu0 %7164
      %7166 = vrot.lane.b32.xlu0 %v6412, 96
      %v7167 = vpop.permute.xlu0 %7166
      %7168 = vrot.lane.b32.xlu0 %v6413, 96
      %v7169 = vpop.permute.xlu0 %7168
      %7170 = vrot.lane.b32.xlu0 %v6414, 96
      %v7171 = vpop.permute.xlu0 %7170
      %7172 = vrot.lane.b32.xlu0 %v6415, 96
      %v7173 = vpop.permute.xlu0 %7172
      %7174 = vrot.lane.b32.xlu0 %v6416, 96
      %v7175 = vpop.permute.xlu0 %7174
      %7176 = vrot.lane.b32.xlu0 %v6417, 96
      %v7177 = vpop.permute.xlu0 %7176
      %7178 = vrot.lane.b32.xlu0 %v6418, 96
      %v7179 = vpop.permute.xlu0 %7178
      %7180 = vrot.lane.b32.xlu0 %v6419, 96
      %v7181 = vpop.permute.xlu0 %7180
      %7182 = vrot.lane.b32.xlu0 %v6420, 96
      %v7183 = vpop.permute.xlu0 %7182
      %7184 = vrot.lane.b32.xlu0 %v6421, 96
      %v7185 = vpop.permute.xlu0 %7184
      %7186 = vrot.lane.b32.xlu0 %v6422, 96
      %v7187 = vpop.permute.xlu0 %7186
      %7188 = vrot.lane.b32.xlu0 %v6423, 96
      %v7189 = vpop.permute.xlu0 %7188
      %7190 = vrot.lane.b32.xlu0 %v6424, 96
      %v7191 = vpop.permute.xlu0 %7190
      %7192 = vrot.lane.b32.xlu0 %v6425, 96
      %v7193 = vpop.permute.xlu0 %7192
      %v7226 = vsel %vm388, %v6170, %v6491
      %v7227 = vsel %vm388, %v6171, %v6493
      %v7228 = vsel %vm388, %v6172, %v6495
      %v7229 = vsel %vm388, %v6173, %v6497
      %v7230 = vsel %vm388, %v6174, %v6499
      %v7231 = vsel %vm388, %v6175, %v6501
      %v7232 = vsel %vm388, %v6176, %v6503
      %v7233 = vsel %vm388, %v6177, %v6505
      %v7234 = vsel %vm388, %v6178, %v6507
      %v7235 = vsel %vm388, %v6179, %v6509
      %v7236 = vsel %vm388, %v6180, %v6511
      %v7237 = vsel %vm388, %v6181, %v6513
      %v7238 = vsel %vm388, %v6182, %v6515
      %v7239 = vsel %vm388, %v6183, %v6517
      %v7240 = vsel %vm388, %v6184, %v6519
      %v7241 = vsel %vm388, %v6185, %v6521
      %v7242 = vsel %vm388, %v6186, %v6523
      %v7243 = vsel %vm388, %v6187, %v6525
      %v7244 = vsel %vm388, %v6188, %v6527
      %v7245 = vsel %vm388, %v6189, %v6529
      %v7246 = vsel %vm388, %v6190, %v6531
      %v7247 = vsel %vm388, %v6191, %v6533
      %v7248 = vsel %vm388, %v6192, %v6535
      %v7249 = vsel %vm388, %v6193, %v6537
      %v7250 = vsel %vm388, %v6194, %v6539
      %v7251 = vsel %vm388, %v6195, %v6541
      %v7252 = vsel %vm388, %v6196, %v6543
      %v7253 = vsel %vm388, %v6197, %v6545
      %v7254 = vsel %vm388, %v6198, %v6547
      %v7255 = vsel %vm388, %v6199, %v6549
      %v7256 = vsel %vm388, %v6200, %v6551
      %v7257 = vsel %vm388, %v6201, %v6553
      %v7258 = vsel %vm3494, %v7226, %v6619
      %v7259 = vsel %vm3494, %v7227, %v6621
      %v7260 = vsel %vm3494, %v7228, %v6623
      %v7261 = vsel %vm3494, %v7229, %v6625
      %v7262 = vsel %vm3494, %v7230, %v6627
      %v7263 = vsel %vm3494, %v7231, %v6629
      %v7264 = vsel %vm3494, %v7232, %v6631
      %v7265 = vsel %vm3494, %v7233, %v6633
      %v7266 = vsel %vm3494, %v7234, %v6635
      %v7267 = vsel %vm3494, %v7235, %v6637
      %v7268 = vsel %vm3494, %v7236, %v6639
      %v7269 = vsel %vm3494, %v7237, %v6641
      %v7270 = vsel %vm3494, %v7238, %v6643
      %v7271 = vsel %vm3494, %v7239, %v6645
      %v7272 = vsel %vm3494, %v7240, %v6647
      %v7273 = vsel %vm3494, %v7241, %v6649
      %v7274 = vsel %vm3494, %v7242, %v6651
      %v7275 = vsel %vm3494, %v7243, %v6653
      %v7276 = vsel %vm3494, %v7244, %v6655
      %v7277 = vsel %vm3494, %v7245, %v6657
      %v7278 = vsel %vm3494, %v7246, %v6659
      %v7279 = vsel %vm3494, %v7247, %v6661
      %v7280 = vsel %vm3494, %v7248, %v6663
      %v7281 = vsel %vm3494, %v7249, %v6665
      %v7282 = vsel %vm3494, %v7250, %v6667
      %v7283 = vsel %vm3494, %v7251, %v6669
      %v7284 = vsel %vm3494, %v7252, %v6671
      %v7285 = vsel %vm3494, %v7253, %v6673
      %v7286 = vsel %vm3494, %v7254, %v6675
      %v7287 = vsel %vm3494, %v7255, %v6677
      %v7288 = vsel %vm3494, %v7256, %v6679
      %v7289 = vsel %vm3494, %v7257, %v6681
      %v7290 = vsel %vm3527, %v7258, %v6747
      %v7291 = vsel %vm3527, %v7259, %v6749
      %v7292 = vsel %vm3527, %v7260, %v6751
      %v7293 = vsel %vm3527, %v7261, %v6753
      %v7294 = vsel %vm3527, %v7262, %v6755
      %v7295 = vsel %vm3527, %v7263, %v6757
      %v7296 = vsel %vm3527, %v7264, %v6759
      %v7297 = vsel %vm3527, %v7265, %v6761
      %v7298 = vsel %vm3527, %v7266, %v6763
      %v7299 = vsel %vm3527, %v7267, %v6765
      %v7300 = vsel %vm3527, %v7268, %v6767
      %v7301 = vsel %vm3527, %v7269, %v6769
      %v7302 = vsel %vm3527, %v7270, %v6771
      %v7303 = vsel %vm3527, %v7271, %v6773
      %v7304 = vsel %vm3527, %v7272, %v6775
      %v7305 = vsel %vm3527, %v7273, %v6777
      %v7306 = vsel %vm3527, %v7274, %v6779
      %v7307 = vsel %vm3527, %v7275, %v6781
      %v7308 = vsel %vm3527, %v7276, %v6783
      %v7309 = vsel %vm3527, %v7277, %v6785
      %v7310 = vsel %vm3527, %v7278, %v6787
      %v7311 = vsel %vm3527, %v7279, %v6789
      %v7312 = vsel %vm3527, %v7280, %v6791
      %v7313 = vsel %vm3527, %v7281, %v6793
      %v7314 = vsel %vm3527, %v7282, %v6795
      %v7315 = vsel %vm3527, %v7283, %v6797
      %v7316 = vsel %vm3527, %v7284, %v6799
      %v7317 = vsel %vm3527, %v7285, %v6801
      %v7318 = vsel %vm3527, %v7286, %v6803
      %v7319 = vsel %vm3527, %v7287, %v6805
      %v7320 = vsel %vm3527, %v7288, %v6807
      %v7321 = vsel %vm3527, %v7289, %v6809
      %v7322 = vsel %vm388, %v6298, %v6875
      %v7323 = vsel %vm388, %v6299, %v6877
      %v7324 = vsel %vm388, %v6300, %v6879
      %v7325 = vsel %vm388, %v6301, %v6881
      %v7326 = vsel %vm388, %v6302, %v6883
      %v7327 = vsel %vm388, %v6303, %v6885
      %v7328 = vsel %vm388, %v6304, %v6887
      %v7329 = vsel %vm388, %v6305, %v6889
      %v7330 = vsel %vm388, %v6306, %v6891
      %v7331 = vsel %vm388, %v6307, %v6893
      %v7332 = vsel %vm388, %v6308, %v6895
      %v7333 = vsel %vm388, %v6309, %v6897
      %v7334 = vsel %vm388, %v6310, %v6899
      %v7335 = vsel %vm388, %v6311, %v6901
      %v7336 = vsel %vm388, %v6312, %v6903
      %v7337 = vsel %vm388, %v6313, %v6905
      %v7338 = vsel %vm388, %v6314, %v6907
      %v7339 = vsel %vm388, %v6315, %v6909
      %v7340 = vsel %vm388, %v6316, %v6911
      %v7341 = vsel %vm388, %v6317, %v6913
      %v7342 = vsel %vm388, %v6318, %v6915
      %v7343 = vsel %vm388, %v6319, %v6917
      %v7344 = vsel %vm388, %v6320, %v6919
      %v7345 = vsel %vm388, %v6321, %v6921
      %v7346 = vsel %vm388, %v6322, %v6923
      %v7347 = vsel %vm388, %v6323, %v6925
      %v7348 = vsel %vm388, %v6324, %v6927
      %v7349 = vsel %vm388, %v6325, %v6929
      %v7350 = vsel %vm388, %v6326, %v6931
      %v7351 = vsel %vm388, %v6327, %v6933
      %v7352 = vsel %vm388, %v6328, %v6935
      %v7353 = vsel %vm388, %v6329, %v6937
      %v7354 = vsel %vm3494, %v7322, %v7003
      %v7355 = vsel %vm3494, %v7323, %v7005
      %v7356 = vsel %vm3494, %v7324, %v7007
      %v7357 = vsel %vm3494, %v7325, %v7009
      %v7358 = vsel %vm3494, %v7326, %v7011
      %v7359 = vsel %vm3494, %v7327, %v7013
      %v7360 = vsel %vm3494, %v7328, %v7015
      %v7361 = vsel %vm3494, %v7329, %v7017
      %v7362 = vsel %vm3494, %v7330, %v7019
      %v7363 = vsel %vm3494, %v7331, %v7021
      %v7364 = vsel %vm3494, %v7332, %v7023
      %v7365 = vsel %vm3494, %v7333, %v7025
      %v7366 = vsel %vm3494, %v7334, %v7027
      %v7367 = vsel %vm3494, %v7335, %v7029
      %v7368 = vsel %vm3494, %v7336, %v7031
      %v7369 = vsel %vm3494, %v7337, %v7033
      %v7370 = vsel %vm3494, %v7338, %v7035
      %v7371 = vsel %vm3494, %v7339, %v7037
      %v7372 = vsel %vm3494, %v7340, %v7039
      %v7373 = vsel %vm3494, %v7341, %v7041
      %v7374 = vsel %vm3494, %v7342, %v7043
      %v7375 = vsel %vm3494, %v7343, %v7045
      %v7376 = vsel %vm3494, %v7344, %v7047
      %v7377 = vsel %vm3494, %v7345, %v7049
      %v7378 = vsel %vm3494, %v7346, %v7051
      %v7379 = vsel %vm3494, %v7347, %v7053
      %v7380 = vsel %vm3494, %v7348, %v7055
      %v7381 = vsel %vm3494, %v7349, %v7057
      %v7382 = vsel %vm3494, %v7350, %v7059
      %v7383 = vsel %vm3494, %v7351, %v7061
      %v7384 = vsel %vm3494, %v7352, %v7063
      %v7385 = vsel %vm3494, %v7353, %v7065
      %v7386 = vsel %vm3527, %v7354, %v7131
      %v7387 = vsel %vm3527, %v7355, %v7133
      %v7388 = vsel %vm3527, %v7356, %v7135
      %v7389 = vsel %vm3527, %v7357, %v7137
      %v7390 = vsel %vm3527, %v7358, %v7139
      %v7391 = vsel %vm3527, %v7359, %v7141
      %v7392 = vsel %vm3527, %v7360, %v7143
      %v7393 = vsel %vm3527, %v7361, %v7145
      %v7394 = vsel %vm3527, %v7362, %v7147
      %v7395 = vsel %vm3527, %v7363, %v7149
      %v7396 = vsel %vm3527, %v7364, %v7151
      %v7397 = vsel %vm3527, %v7365, %v7153
      %v7398 = vsel %vm3527, %v7366, %v7155
      %v7399 = vsel %vm3527, %v7367, %v7157
      %v7400 = vsel %vm3527, %v7368, %v7159
      %v7401 = vsel %vm3527, %v7369, %v7161
      %v7402 = vsel %vm3527, %v7370, %v7163
      %v7403 = vsel %vm3527, %v7371, %v7165
      %v7404 = vsel %vm3527, %v7372, %v7167
      %v7405 = vsel %vm3527, %v7373, %v7169
      %v7406 = vsel %vm3527, %v7374, %v7171
      %v7407 = vsel %vm3527, %v7375, %v7173
      %v7408 = vsel %vm3527, %v7376, %v7175
      %v7409 = vsel %vm3527, %v7377, %v7177
      %v7410 = vsel %vm3527, %v7378, %v7179
      %v7411 = vsel %vm3527, %v7379, %v7181
      %v7412 = vsel %vm3527, %v7380, %v7183
      %v7413 = vsel %vm3527, %v7381, %v7185
      %v7414 = vsel %vm3527, %v7382, %v7187
      %v7415 = vsel %vm3527, %v7383, %v7189
      %v7416 = vsel %vm3527, %v7384, %v7191
      %v7417 = vsel %vm3527, %v7385, %v7193
      %v7418 = vpack.c.bf16 %v7291, %v7290
      %v7419 = vpack.c.bf16 %v7387, %v7386
      %v7420 = vpack.c.bf16 %v6427, %v6426
      %v7421 = vpack.c.bf16 %v7293, %v7292
      %v7422 = vpack.c.bf16 %v7389, %v7388
      %v7423 = vpack.c.bf16 %v6429, %v6428
      %v7424 = vpack.c.bf16 %v7295, %v7294
      %v7425 = vpack.c.bf16 %v7391, %v7390
      %v7426 = vpack.c.bf16 %v6431, %v6430
      %v7427 = vpack.c.bf16 %v7297, %v7296
      %v7428 = vpack.c.bf16 %v7393, %v7392
      %v7429 = vpack.c.bf16 %v6433, %v6432
      %v7430 = vpack.c.bf16 %v7299, %v7298
      %v7431 = vpack.c.bf16 %v7395, %v7394
      %v7432 = vpack.c.bf16 %v6435, %v6434
      %v7433 = vpack.c.bf16 %v7301, %v7300
      %v7434 = vpack.c.bf16 %v7397, %v7396
      %v7435 = vpack.c.bf16 %v6437, %v6436
      %v7436 = vpack.c.bf16 %v7303, %v7302
      %v7437 = vpack.c.bf16 %v7399, %v7398
      %v7438 = vpack.c.bf16 %v6439, %v6438
      %v7439 = vpack.c.bf16 %v7305, %v7304
      %v7440 = vpack.c.bf16 %v7401, %v7400
      %v7441 = vpack.c.bf16 %v6441, %v6440
      %v7442 = vpack.c.bf16 %v7307, %v7306
      %v7443 = vpack.c.bf16 %v7403, %v7402
      %v7444 = vpack.c.bf16 %v6443, %v6442
      %v7445 = vpack.c.bf16 %v7309, %v7308
      %v7446 = vpack.c.bf16 %v7405, %v7404
      %v7447 = vpack.c.bf16 %v6445, %v6444
      %v7448 = vpack.c.bf16 %v7311, %v7310
      %v7449 = vpack.c.bf16 %v7407, %v7406
      %v7450 = vpack.c.bf16 %v6447, %v6446
      %v7451 = vpack.c.bf16 %v7313, %v7312
      %v7452 = vpack.c.bf16 %v7409, %v7408
      %v7453 = vpack.c.bf16 %v6449, %v6448
      %v7454 = vpack.c.bf16 %v7315, %v7314
      %v7455 = vpack.c.bf16 %v7411, %v7410
      %v7456 = vpack.c.bf16 %v6451, %v6450
      %v7457 = vpack.c.bf16 %v7317, %v7316
      %v7458 = vpack.c.bf16 %v7413, %v7412
      %v7459 = vpack.c.bf16 %v6453, %v6452
      %v7460 = vpack.c.bf16 %v7319, %v7318
      %v7461 = vpack.c.bf16 %v7415, %v7414
      %v7462 = vpack.c.bf16 %v6455, %v6454
      %v7463 = vpack.c.bf16 %v7321, %v7320
      %v7464 = vpack.c.bf16 %v7417, %v7416
      %v7465 = vpack.c.bf16 %v6457, %v6456
      %v7466 = vld [vmem:[%s4] sm:$0xf]
      %v7467 = vld [vmem:[%s4 + $0x4] sm:$0xf]
      %v7468 = vld [vmem:[%s4 + $0x8] sm:$0xf]
      %v7469 = vld [vmem:[%s4 + $0xc] sm:$0xf]
      %v7470 = vld [vmem:[%s4 + $0x10] sm:$0xf]
      %v7471 = vld [vmem:[%s4 + $0x14] sm:$0xf]
      %v7472 = vld [vmem:[%s4 + $0x18] sm:$0xf]
      %v7473 = vld [vmem:[%s4 + $0x1c] sm:$0xf]
      %v7474 = vld [vmem:[%s4 + $0x20] sm:$0xf]
      %v7475 = vld [vmem:[%s4 + $0x24] sm:$0xf]
      %v7476 = vld [vmem:[%s4 + $0x28] sm:$0xf]
      %v7477 = vld [vmem:[%s4 + $0x2c] sm:$0xf]
      %v7478 = vld [vmem:[%s4 + $0x30] sm:$0xf]
      %v7479 = vld [vmem:[%s4 + $0x34] sm:$0xf]
      %v7480 = vld [vmem:[%s4 + $0x38] sm:$0xf]
      %v7481 = vld [vmem:[%s4 + $0x3c] sm:$0xf]
      %v7482 = vld [vmem:[%s4 + $0x40] sm:$0xf]
      %v7483 = vld [vmem:[%s4 + $0x44] sm:$0xf]
      %v7484 = vld [vmem:[%s4 + $0x48] sm:$0xf]
      %v7485 = vld [vmem:[%s4 + $0x4c] sm:$0xf]
      %v7486 = vld [vmem:[%s4 + $0x50] sm:$0xf]
      %v7487 = vld [vmem:[%s4 + $0x54] sm:$0xf]
      %v7488 = vld [vmem:[%s4 + $0x58] sm:$0xf]
      %v7489 = vld [vmem:[%s4 + $0x5c] sm:$0xf]
      %v7490 = vld [vmem:[%s4 + $0x60] sm:$0xf]
      %v7491 = vld [vmem:[%s4 + $0x64] sm:$0xf]
      %v7492 = vld [vmem:[%s4 + $0x68] sm:$0xf]
      %v7493 = vld [vmem:[%s4 + $0x6c] sm:$0xf]
      %v7494 = vld [vmem:[%s4 + $0x70] sm:$0xf]
      %v7495 = vld [vmem:[%s4 + $0x74] sm:$0xf]
      %v7496 = vld [vmem:[%s4 + $0x78] sm:$0xf]
      %v7497 = vld [vmem:[%s4 + $0x7c] sm:$0xf]
      %v7498 = vld [vmem:[%s4 + $0x80] sm:$0xf]
      %v7499 = vld [vmem:[%s4 + $0x84] sm:$0xf]
      %v7500 = vld [vmem:[%s4 + $0x88] sm:$0xf]
      %v7501 = vld [vmem:[%s4 + $0x8c] sm:$0xf]
      %v7502 = vld [vmem:[%s9] sm:$0x1]
      %v7504 = vlaneseq
      %v7505 = vshrl.u32 %v7504, 7
      %v7506 = vsub.s32 0, %v7505
      %v7507 = vrot.slane %v7502, %v7506
      %v7545 = vunpack.c.l.b16 %v7466
      %v7546 = vunpack.c.l.b16 %v7467
      %v7547 = vunpack.c.l.b16 %v7468
      %v7548 = vunpack.c.l.b16 %v7469
      %v7549 = vunpack.c.l.b16 %v7470
      %v7550 = vunpack.c.l.b16 %v7471
      %v7551 = vunpack.c.l.b16 %v7472
      %v7552 = vunpack.c.l.b16 %v7473
      %v7553 = vunpack.c.l.b16 %v7474
      %v7554 = vunpack.c.l.b16 %v7475
      %v7555 = vunpack.c.l.b16 %v7476
      %v7556 = vunpack.c.l.b16 %v7477
      %v7557 = vunpack.c.l.b16 %v7478
      %v7558 = vunpack.c.l.b16 %v7479
      %v7559 = vunpack.c.l.b16 %v7480
      %v7560 = vunpack.c.l.b16 %v7481
      %v7561 = vunpack.c.l.b16 %v7482
      %v7562 = vunpack.c.l.b16 %v7483
      %v7563 = vunpack.c.l.b16 %v7484
      %v7564 = vunpack.c.l.b16 %v7485
      %v7565 = vunpack.c.l.b16 %v7486
      %v7566 = vunpack.c.l.b16 %v7487
      %v7567 = vunpack.c.l.b16 %v7488
      %v7568 = vunpack.c.l.b16 %v7489
      %v7569 = vunpack.c.l.b16 %v7490
      %v7570 = vunpack.c.l.b16 %v7491
      %v7571 = vunpack.c.l.b16 %v7492
      %v7572 = vunpack.c.l.b16 %v7493
      %v7573 = vunpack.c.l.b16 %v7494
      %v7574 = vunpack.c.l.b16 %v7495
      %v7575 = vunpack.c.l.b16 %v7496
      %v7576 = vunpack.c.l.b16 %v7497
      %v7577 = vunpack.c.l.b16 %v7498
      %v7578 = vunpack.c.l.b16 %v7499
      %v7579 = vunpack.c.l.b16 %v7500
      %v7580 = vunpack.c.l.b16 %v7501
      %v7581 = vpack.c.b16 %v7546, %v7545
      %v7582 = vpack.c.b16 %v7548, %v7547
      %v7583 = vpack.c.b16 %v7550, %v7549
      %v7584 = vpack.c.b16 %v7552, %v7551
      %v7585 = vpack.c.b16 %v7554, %v7553
      %v7586 = vpack.c.b16 %v7556, %v7555
      %v7587 = vpack.c.b16 %v7558, %v7557
      %v7588 = vpack.c.b16 %v7560, %v7559
      %v7589 = vpack.c.b16 %v7562, %v7561
      %v7590 = vpack.c.b16 %v7564, %v7563
      %v7591 = vpack.c.b16 %v7566, %v7565
      %v7592 = vpack.c.b16 %v7568, %v7567
      %v7593 = vpack.c.b16 %v7570, %v7569
      %v7594 = vpack.c.b16 %v7572, %v7571
      %v7595 = vpack.c.b16 %v7574, %v7573
      %v7596 = vpack.c.b16 %v7576, %v7575
      %v7597 = vpack.c.b16 %v7578, %v7577
      %v7598 = vpack.c.b16 %v7580, %v7579
      %v7618 = vsel %vm388, %v7420, 0
      %v7621 = vsel %vm388, %v7423, 0
      %v7624 = vsel %vm388, %v7426, 0
      %v7627 = vsel %vm388, %v7429, 0
      %v7630 = vsel %vm388, %v7432, 0
      %v7633 = vsel %vm388, %v7435, 0
      %v7636 = vsel %vm388, %v7438, 0
      %v7639 = vsel %vm388, %v7441, 0
      %v7642 = vsel %vm388, %v7444, 0
      %v7645 = vsel %vm388, %v7447, 0
      %v7648 = vsel %vm388, %v7450, 0
      %v7651 = vsel %vm388, %v7453, 0
      %v7654 = vsel %vm388, %v7456, 0
      %v7657 = vsel %vm388, %v7459, 0
      %v7660 = vsel %vm388, %v7462, 0
      %v7663 = vsel %vm388, %v7465, 0
      %7665 = vmatprep.subr.bf16.mxu0 0
      %7666 = vmatpush1.bf16.msra.mxu0 %v7581
      %7667 = vmatprep.subr.bf16.mxu0 0
      %7668 = vmatpush1.bf16.msra.mxu0 %v7582
      %7669 = vmatprep.subr.bf16.mxu0 0
      %7670 = vmatpush1.bf16.msra.mxu0 %v7583
      %7671 = vmatprep.subr.bf16.mxu0 0
      %7672 = vmatpush1.bf16.msra.mxu0 %v7584
      %7673 = vmatprep.subr.bf16.mxu0 0
      %7674 = vmatpush1.bf16.msra.mxu0 %v7585
      %7675 = vmatprep.subr.bf16.mxu0 0
      %7676 = vmatpush1.bf16.msra.mxu0 %v7586
      %7677 = vmatprep.subr.bf16.mxu0 0
      %7678 = vmatpush1.bf16.msra.mxu0 %v7587
      %7679 = vmatprep.subr.bf16.mxu0 0
      %7680 = vmatpush1.bf16.msra.mxu0 %v7588
      %7681 = vmatprep.subr.bf16.mxu0 0
      %7682 = vmatpush1.bf16.msra.mxu0 %v7589
      %7683 = vmatprep.subr.bf16.mxu0 0
      %7684 = vmatpush1.bf16.msra.mxu0 %v7590
      %7685 = vmatprep.subr.bf16.mxu0 0
      %7686 = vmatpush1.bf16.msra.mxu0 %v7591
      %7687 = vmatprep.subr.bf16.mxu0 0
      %7688 = vmatpush1.bf16.msra.mxu0 %v7592
      %7689 = vmatprep.subr.bf16.mxu0 0
      %7690 = vmatpush1.bf16.msra.mxu0 %v7593
      %7691 = vmatprep.subr.bf16.mxu0 0
      %7692 = vmatpush1.bf16.msra.mxu0 %v7594
      %7693 = vmatprep.subr.bf16.mxu0 0
      %7694 = vmatpush1.bf16.msra.mxu0 %v7595
      %7695 = vmatprep.subr.bf16.mxu0 0
      %7696 = vmatpush1.bf16.msra.mxu0 %v7596
      %7697 = vmatprep.mubr.bf16.mxu0 %v7419
      %7698 = vmatmul.mubr.bf16.gmra.mrb[0].mxu0 %v7418
      %v7699 = vpop.f32.mrb[0].mxu0
      %v7700 = vadd.f32 %v7507, %v7699
      %v7701 = vpop.f32.mrb[0].mxu0
      %v7702 = vpop.f32.mrb[0].mxu0
      %v7703 = vadd.f32 %v7507, %v7702
      %v7704 = vpop.f32.mrb[0].mxu0
      %7705 = vmatprep.mubr.bf16.mxu0 %v7422
      %7706 = vmatmul.mubr.bf16.gmra.mrb[0].mxu0 %v7421
      %v7707 = vpop.f32.mrb[0].mxu0
      %v7708 = vadd.f32 %v7507, %v7707
      %v7709 = vpop.f32.mrb[0].mxu0
      %v7710 = vpop.f32.mrb[0].mxu0
      %v7711 = vadd.f32 %v7507, %v7710
      %v7712 = vpop.f32.mrb[0].mxu0
      %7713 = vmatprep.mubr.bf16.mxu0 %v7425
      %7714 = vmatmul.mubr.bf16.gmra.mrb[0].mxu0 %v7424
      %v7715 = vpop.f32.mrb[0].mxu0
      %v7716 = vadd.f32 %v7507, %v7715
      %v7717 = vpop.f32.mrb[0].mxu0
      %v7718 = vpop.f32.mrb[0].mxu0
      %v7719 = vadd.f32 %v7507, %v7718
      %v7720 = vpop.f32.mrb[0].mxu0
      %7721 = vmatprep.mubr.bf16.mxu0 %v7428
      %7722 = vmatmul.mubr.bf16.gmra.mrb[0].mxu0 %v7427
      %v7723 = vpop.f32.mrb[0].mxu0
      %v7724 = vadd.f32 %v7507, %v7723
      %v7725 = vpop.f32.mrb[0].mxu0
      %v7726 = vpop.f32.mrb[0].mxu0
      %v7727 = vadd.f32 %v7507, %v7726
      %v7728 = vpop.f32.mrb[0].mxu0
      %7729 = vmatprep.mubr.bf16.mxu0 %v7431
      %7730 = vmatmul.mubr.bf16.gmra.mrb[0].mxu0 %v7430
      %v7731 = vpop.f32.mrb[0].mxu0
      %v7732 = vadd.f32 %v7507, %v7731
      %v7733 = vpop.f32.mrb[0].mxu0
      %v7734 = vpop.f32.mrb[0].mxu0
      %v7735 = vadd.f32 %v7507, %v7734
      %v7736 = vpop.f32.mrb[0].mxu0
      %7737 = vmatprep.mubr.bf16.mxu0 %v7434
      %7738 = vmatmul.mubr.bf16.gmra.mrb[0].mxu0 %v7433
      %v7739 = vpop.f32.mrb[0].mxu0
      %v7740 = vadd.f32 %v7507, %v7739
      %v7741 = vpop.f32.mrb[0].mxu0
      %v7742 = vpop.f32.mrb[0].mxu0
      %v7743 = vadd.f32 %v7507, %v7742
      %v7744 = vpop.f32.mrb[0].mxu0
      %7745 = vmatprep.mubr.bf16.mxu0 %v7437
      %7746 = vmatmul.mubr.bf16.gmra.mrb[0].mxu0 %v7436
      %v7747 = vpop.f32.mrb[0].mxu0
      %v7748 = vadd.f32 %v7507, %v7747
      %v7749 = vpop.f32.mrb[0].mxu0
      %v7750 = vpop.f32.mrb[0].mxu0
      %v7751 = vadd.f32 %v7507, %v7750
      %v7752 = vpop.f32.mrb[0].mxu0
      %7753 = vmatprep.mubr.bf16.mxu0 %v7440
      %7754 = vmatmul.mubr.bf16.gmra.mrb[0].mxu0 %v7439
      %v7755 = vpop.f32.mrb[0].mxu0
      %v7756 = vadd.f32 %v7507, %v7755
      %v7757 = vpop.f32.mrb[0].mxu0
      %v7758 = vpop.f32.mrb[0].mxu0
      %v7759 = vadd.f32 %v7507, %v7758
      %v7760 = vpop.f32.mrb[0].mxu0
      %7761 = vmatprep.mubr.bf16.mxu0 %v7443
      %7762 = vmatmul.mubr.bf16.gmra.mrb[0].mxu0 %v7442
      %v7763 = vpop.f32.mrb[0].mxu0
      %v7764 = vadd.f32 %v7507, %v7763
      %v7765 = vpop.f32.mrb[0].mxu0
      %v7766 = vpop.f32.mrb[0].mxu0
      %v7767 = vadd.f32 %v7507, %v7766
      %v7768 = vpop.f32.mrb[0].mxu0
      %7769 = vmatprep.mubr.bf16.mxu0 %v7446
      %7770 = vmatmul.mubr.bf16.gmra.mrb[0].mxu0 %v7445
      %v7771 = vpop.f32.mrb[0].mxu0
      %v7772 = vadd.f32 %v7507, %v7771
      %v7773 = vpop.f32.mrb[0].mxu0
      %v7774 = vpop.f32.mrb[0].mxu0
      %v7775 = vadd.f32 %v7507, %v7774
      %v7776 = vpop.f32.mrb[0].mxu0
      %7777 = vmatprep.mubr.bf16.mxu0 %v7449
      %7778 = vmatmul.mubr.bf16.gmra.mrb[0].mxu0 %v7448
      %v7779 = vpop.f32.mrb[0].mxu0
      %v7780 = vadd.f32 %v7507, %v7779
      %v7781 = vpop.f32.mrb[0].mxu0
      %v7782 = vpop.f32.mrb[0].mxu0
      %v7783 = vadd.f32 %v7507, %v7782
      %v7784 = vpop.f32.mrb[0].mxu0
      %7785 = vmatprep.mubr.bf16.mxu0 %v7452
      %7786 = vmatmul.mubr.bf16.gmra.mrb[0].mxu0 %v7451
      %v7787 = vpop.f32.mrb[0].mxu0
      %v7788 = vadd.f32 %v7507, %v7787
      %v7789 = vpop.f32.mrb[0].mxu0
      %v7790 = vpop.f32.mrb[0].mxu0
      %v7791 = vadd.f32 %v7507, %v7790
      %v7792 = vpop.f32.mrb[0].mxu0
      %7793 = vmatprep.mubr.bf16.mxu0 %v7455
      %7794 = vmatmul.mubr.bf16.gmra.mrb[0].mxu0 %v7454
      %v7795 = vpop.f32.mrb[0].mxu0
      %v7796 = vadd.f32 %v7507, %v7795
      %v7797 = vpop.f32.mrb[0].mxu0
      %v7798 = vpop.f32.mrb[0].mxu0
      %v7799 = vadd.f32 %v7507, %v7798
      %v7800 = vpop.f32.mrb[0].mxu0
      %7801 = vmatprep.mubr.bf16.mxu0 %v7458
      %7802 = vmatmul.mubr.bf16.gmra.mrb[0].mxu0 %v7457
      %v7803 = vpop.f32.mrb[0].mxu0
      %v7804 = vadd.f32 %v7507, %v7803
      %v7805 = vpop.f32.mrb[0].mxu0
      %v7806 = vpop.f32.mrb[0].mxu0
      %v7807 = vadd.f32 %v7507, %v7806
      %v7808 = vpop.f32.mrb[0].mxu0
      %7809 = vmatprep.mubr.bf16.mxu0 %v7461
      %7810 = vmatmul.mubr.bf16.gmra.mrb[0].mxu0 %v7460
      %v7811 = vpop.f32.mrb[0].mxu0
      %v7812 = vadd.f32 %v7507, %v7811
      %v7813 = vpop.f32.mrb[0].mxu0
      %v7814 = vpop.f32.mrb[0].mxu0
      %v7815 = vadd.f32 %v7507, %v7814
      %v7816 = vpop.f32.mrb[0].mxu0
      %7817 = vmatprep.mubr.bf16.mxu0 %v7464
      %7818 = vmatmul.mubr.bf16.gmra.mrb[0].mxu0 %v7463
      %v7819 = vpop.f32.mrb[0].mxu0
      %v7820 = vadd.f32 %v7507, %v7819
      %v7821 = vpop.f32.mrb[0].mxu0
      %v7822 = vpop.f32.mrb[0].mxu0
      %v7823 = vadd.f32 %v7507, %v7822
      %v7824 = vpop.f32.mrb[0].mxu0
      %7825 = vdwg.mxu0
      %7826 = vmatprep.subr.bf16.mxu0 0
      %7827 = vmatpush1.bf16.msra.mxu0 %v7597
      %7828 = vmatprep.subr.bf16.mxu0 0
      %7829 = vmatpush1.bf16.msra.mxu0 %v7598
      %7830 = vmatprep.subr.bf16.mxu0 0
      %7831 = vmatpush1.bf16.msra.mxu0 0
      %7832 = vmatprep.subr.bf16.mxu0 0
      %7833 = vmatpush1.bf16.msra.mxu0 0
      %7834 = vmatprep.subr.bf16.mxu0 0
      %7835 = vmatpush1.bf16.msra.mxu0 0
      %7836 = vmatprep.subr.bf16.mxu0 0
      %7837 = vmatpush1.bf16.msra.mxu0 0
      %7838 = vmatprep.subr.bf16.mxu0 0
      %7839 = vmatpush1.bf16.msra.mxu0 0
      %7840 = vmatprep.subr.bf16.mxu0 0
      %7841 = vmatpush1.bf16.msra.mxu0 0
      %7842 = vmatprep.subr.bf16.mxu0 0
      %7843 = vmatpush1.bf16.msra.mxu0 0
      %7844 = vmatprep.subr.bf16.mxu0 0
      %7845 = vmatpush1.bf16.msra.mxu0 0
      %7846 = vmatprep.subr.bf16.mxu0 0
      %7847 = vmatpush1.bf16.msra.mxu0 0
      %7848 = vmatprep.subr.bf16.mxu0 0
      %7849 = vmatpush1.bf16.msra.mxu0 0
      %7850 = vmatprep.subr.bf16.mxu0 0
      %7851 = vmatpush1.bf16.msra.mxu0 0
      %7852 = vmatprep.subr.bf16.mxu0 0
      %7853 = vmatpush1.bf16.msra.mxu0 0
      %7854 = vmatprep.subr.bf16.mxu0 0
      %7855 = vmatpush1.bf16.msra.mxu0 0
      %7856 = vmatprep.subr.bf16.mxu0 0
      %7857 = vmatpush1.bf16.msra.mxu0 0
      %7858 = vmatprep.mubr.bf16.mxu0 0
      %7859 = vmatmul.mubr.bf16.gmra.mrb[0].mxu0 %v7618
      %v7860 = vpop.f32.mrb[0].mxu0
      %v7861 = vadd.f32 %v7700, %v7860
      %v7862 = vpop.f32.mrb[0].mxu0
      %v7863 = vpop.f32.mrb[0].mxu0
      %v7864 = vadd.f32 %v7703, %v7863
      %v7865 = vpop.f32.mrb[0].mxu0
      %7866 = vmatprep.mubr.bf16.mxu0 0
      %7867 = vmatmul.mubr.bf16.gmra.mrb[0].mxu0 %v7621
      %v7868 = vpop.f32.mrb[0].mxu0
      %v7869 = vadd.f32 %v7708, %v7868
      %v7870 = vpop.f32.mrb[0].mxu0
      %v7871 = vpop.f32.mrb[0].mxu0
      %v7872 = vadd.f32 %v7711, %v7871
      %v7873 = vpop.f32.mrb[0].mxu0
      %7874 = vmatprep.mubr.bf16.mxu0 0
      %7875 = vmatmul.mubr.bf16.gmra.mrb[0].mxu0 %v7624
      %v7876 = vpop.f32.mrb[0].mxu0
      %v7877 = vadd.f32 %v7716, %v7876
      %v7878 = vpop.f32.mrb[0].mxu0
      %v7879 = vpop.f32.mrb[0].mxu0
      %v7880 = vadd.f32 %v7719, %v7879
      %v7881 = vpop.f32.mrb[0].mxu0
      %7882 = vmatprep.mubr.bf16.mxu0 0
      %7883 = vmatmul.mubr.bf16.gmra.mrb[0].mxu0 %v7627
      %v7884 = vpop.f32.mrb[0].mxu0
      %v7885 = vadd.f32 %v7724, %v7884
      %v7886 = vpop.f32.mrb[0].mxu0
      %v7887 = vpop.f32.mrb[0].mxu0
      %v7888 = vadd.f32 %v7727, %v7887
      %v7889 = vpop.f32.mrb[0].mxu0
      %7890 = vmatprep.mubr.bf16.mxu0 0
      %7891 = vmatmul.mubr.bf16.gmra.mrb[0].mxu0 %v7630
      %v7892 = vpop.f32.mrb[0].mxu0
      %v7893 = vadd.f32 %v7732, %v7892
      %v7894 = vpop.f32.mrb[0].mxu0
      %v7895 = vpop.f32.mrb[0].mxu0
      %v7896 = vadd.f32 %v7735, %v7895
      %v7897 = vpop.f32.mrb[0].mxu0
      %7898 = vmatprep.mubr.bf16.mxu0 0
      %7899 = vmatmul.mubr.bf16.gmra.mrb[0].mxu0 %v7633
      %v7900 = vpop.f32.mrb[0].mxu0
      %v7901 = vadd.f32 %v7740, %v7900
      %v7902 = vpop.f32.mrb[0].mxu0
      %v7903 = vpop.f32.mrb[0].mxu0
      %v7904 = vadd.f32 %v7743, %v7903
      %v7905 = vpop.f32.mrb[0].mxu0
      %7906 = vmatprep.mubr.bf16.mxu0 0
      %7907 = vmatmul.mubr.bf16.gmra.mrb[0].mxu0 %v7636
      %v7908 = vpop.f32.mrb[0].mxu0
      %v7909 = vadd.f32 %v7748, %v7908
      %v7910 = vpop.f32.mrb[0].mxu0
      %v7911 = vpop.f32.mrb[0].mxu0
      %v7912 = vadd.f32 %v7751, %v7911
      %v7913 = vpop.f32.mrb[0].mxu0
      %7914 = vmatprep.mubr.bf16.mxu0 0
      %7915 = vmatmul.mubr.bf16.gmra.mrb[0].mxu0 %v7639
      %v7916 = vpop.f32.mrb[0].mxu0
      %v7917 = vadd.f32 %v7756, %v7916
      %v7918 = vpop.f32.mrb[0].mxu0
      %v7919 = vpop.f32.mrb[0].mxu0
      %v7920 = vadd.f32 %v7759, %v7919
      %v7921 = vpop.f32.mrb[0].mxu0
      %7922 = vmatprep.mubr.bf16.mxu0 0
      %7923 = vmatmul.mubr.bf16.gmra.mrb[0].mxu0 %v7642
      %v7924 = vpop.f32.mrb[0].mxu0
      %v7925 = vadd.f32 %v7764, %v7924
      %v7926 = vpop.f32.mrb[0].mxu0
      %v7927 = vpop.f32.mrb[0].mxu0
      %v7928 = vadd.f32 %v7767, %v7927
      %v7929 = vpop.f32.mrb[0].mxu0
      %7930 = vmatprep.mubr.bf16.mxu0 0
      %7931 = vmatmul.mubr.bf16.gmra.mrb[0].mxu0 %v7645
      %v7932 = vpop.f32.mrb[0].mxu0
      %v7933 = vadd.f32 %v7772, %v7932
      %v7934 = vpop.f32.mrb[0].mxu0
      %v7935 = vpop.f32.mrb[0].mxu0
      %v7936 = vadd.f32 %v7775, %v7935
      %v7937 = vpop.f32.mrb[0].mxu0
      %7938 = vmatprep.mubr.bf16.mxu0 0
      %7939 = vmatmul.mubr.bf16.gmra.mrb[0].mxu0 %v7648
      %v7940 = vpop.f32.mrb[0].mxu0
      %v7941 = vadd.f32 %v7780, %v7940
      %v7942 = vpop.f32.mrb[0].mxu0
      %v7943 = vpop.f32.mrb[0].mxu0
      %v7944 = vadd.f32 %v7783, %v7943
      %v7945 = vpop.f32.mrb[0].mxu0
      %7946 = vmatprep.mubr.bf16.mxu0 0
      %7947 = vmatmul.mubr.bf16.gmra.mrb[0].mxu0 %v7651
      %v7948 = vpop.f32.mrb[0].mxu0
      %v7949 = vadd.f32 %v7788, %v7948
      %v7950 = vpop.f32.mrb[0].mxu0
      %v7951 = vpop.f32.mrb[0].mxu0
      %v7952 = vadd.f32 %v7791, %v7951
      %v7953 = vpop.f32.mrb[0].mxu0
      %7954 = vmatprep.mubr.bf16.mxu0 0
      %7955 = vmatmul.mubr.bf16.gmra.mrb[0].mxu0 %v7654
      %v7956 = vpop.f32.mrb[0].mxu0
      %v7957 = vadd.f32 %v7796, %v7956
      %v7958 = vpop.f32.mrb[0].mxu0
      %v7959 = vpop.f32.mrb[0].mxu0
      %v7960 = vadd.f32 %v7799, %v7959
      %v7961 = vpop.f32.mrb[0].mxu0
      %7962 = vmatprep.mubr.bf16.mxu0 0
      %7963 = vmatmul.mubr.bf16.gmra.mrb[0].mxu0 %v7657
      %v7964 = vpop.f32.mrb[0].mxu0
      %v7965 = vadd.f32 %v7804, %v7964
      %v7966 = vpop.f32.mrb[0].mxu0
      %v7967 = vpop.f32.mrb[0].mxu0
      %v7968 = vadd.f32 %v7807, %v7967
      %v7969 = vpop.f32.mrb[0].mxu0
      %7970 = vmatprep.mubr.bf16.mxu0 0
      %7971 = vmatmul.mubr.bf16.gmra.mrb[0].mxu0 %v7660
      %v7972 = vpop.f32.mrb[0].mxu0
      %v7973 = vadd.f32 %v7812, %v7972
      %v7974 = vpop.f32.mrb[0].mxu0
      %v7975 = vpop.f32.mrb[0].mxu0
      %v7976 = vadd.f32 %v7815, %v7975
      %v7977 = vpop.f32.mrb[0].mxu0
      %7978 = vmatprep.mubr.bf16.mxu0 0
      %7979 = vmatmul.mubr.bf16.gmra.mrb[0].mxu0 %v7663
      %v7980 = vpop.f32.mrb[0].mxu0
      %v7981 = vadd.f32 %v7820, %v7980
      %v7982 = vpop.f32.mrb[0].mxu0
      %v7983 = vpop.f32.mrb[0].mxu0
      %v7984 = vadd.f32 %v7823, %v7983
      %v7985 = vpop.f32.mrb[0].mxu0
      %7986 = vdwg.mxu0
      %v7987 = vmax.f32 %v7861, 0.0
      %v7988 = vmax.f32 %v7864, 0.0
      %v7989 = vmax.f32 %v7869, 0.0
      %v7990 = vmax.f32 %v7872, 0.0
      %v7991 = vmax.f32 %v7877, 0.0
      %v7992 = vmax.f32 %v7880, 0.0
      %v7993 = vmax.f32 %v7885, 0.0
      %v7994 = vmax.f32 %v7888, 0.0
      %v7995 = vmax.f32 %v7893, 0.0
      %v7996 = vmax.f32 %v7896, 0.0
      %v7997 = vmax.f32 %v7901, 0.0
      %v7998 = vmax.f32 %v7904, 0.0
      %v7999 = vmax.f32 %v7909, 0.0
      %v8000 = vmax.f32 %v7912, 0.0
      %v8001 = vmax.f32 %v7917, 0.0
      %v8002 = vmax.f32 %v7920, 0.0
      %v8003 = vmax.f32 %v7925, 0.0
      %v8004 = vmax.f32 %v7928, 0.0
      %v8005 = vmax.f32 %v7933, 0.0
      %v8006 = vmax.f32 %v7936, 0.0
      %v8007 = vmax.f32 %v7941, 0.0
      %v8008 = vmax.f32 %v7944, 0.0
      %v8009 = vmax.f32 %v7949, 0.0
      %v8010 = vmax.f32 %v7952, 0.0
      %v8011 = vmax.f32 %v7957, 0.0
      %v8012 = vmax.f32 %v7960, 0.0
      %v8013 = vmax.f32 %v7965, 0.0
      %v8014 = vmax.f32 %v7968, 0.0
      %v8015 = vmax.f32 %v7973, 0.0
      %v8016 = vmax.f32 %v7976, 0.0
      %v8017 = vmax.f32 %v7981, 0.0
      %v8018 = vmax.f32 %v7984, 0.0
      %8019 = vst.msk [vmem:[%s476 + $0x1] sm:$0xff] %vm388, %v7987
      %8020 = vst.msk [vmem:[%s476 + $0x9] sm:$0xff] %vm388, %v7988
      %8021 = vst.msk [vmem:[%s476 + $0x19] sm:$0xff] %vm388, %v7989
      %8022 = vst.msk [vmem:[%s476 + $0x21] sm:$0xff] %vm388, %v7990
      %8023 = vst.msk [vmem:[%s476 + $0x31] sm:$0xff] %vm388, %v7991
      %8024 = vst.msk [vmem:[%s476 + $0x39] sm:$0xff] %vm388, %v7992
      %8025 = vst.msk [vmem:[%s476 + $0x49] sm:$0xff] %vm388, %v7993
      %8026 = vst.msk [vmem:[%s476 + $0x51] sm:$0xff] %vm388, %v7994
      %8027 = vst.msk [vmem:[%s476 + $0x61] sm:$0xff] %vm388, %v7995
      %8028 = vst.msk [vmem:[%s476 + $0x69] sm:$0xff] %vm388, %v7996
      %8029 = vst.msk [vmem:[%s476 + $0x79] sm:$0xff] %vm388, %v7997
      %8030 = vst.msk [vmem:[%s476 + $0x81] sm:$0xff] %vm388, %v7998
      %8031 = vst.msk [vmem:[%s476 + $0x91] sm:$0xff] %vm388, %v7999
      %8032 = vst.msk [vmem:[%s476 + $0x99] sm:$0xff] %vm388, %v8000
      %8033 = vst.msk [vmem:[%s476 + $0xa9] sm:$0xff] %vm388, %v8001
      %8034 = vst.msk [vmem:[%s476 + $0xb1] sm:$0xff] %vm388, %v8002
      %8035 = vst.msk [vmem:[%s476 + $0xc1] sm:$0xff] %vm388, %v8003
      %8036 = vst.msk [vmem:[%s476 + $0xc9] sm:$0xff] %vm388, %v8004
      %8037 = vst.msk [vmem:[%s476 + $0xd9] sm:$0xff] %vm388, %v8005
      %8038 = vst.msk [vmem:[%s476 + $0xe1] sm:$0xff] %vm388, %v8006
      %8039 = vst.msk [vmem:[%s476 + $0xf1] sm:$0xff] %vm388, %v8007
      %8040 = vst.msk [vmem:[%s476 + $0xf9] sm:$0xff] %vm388, %v8008
      %8041 = vst.msk [vmem:[%s476 + $0x109] sm:$0xff] %vm388, %v8009
      %8042 = vst.msk [vmem:[%s476 + $0x111] sm:$0xff] %vm388, %v8010
      %8043 = vst.msk [vmem:[%s476 + $0x121] sm:$0xff] %vm388, %v8011
      %8044 = vst.msk [vmem:[%s476 + $0x129] sm:$0xff] %vm388, %v8012
      %8045 = vst.msk [vmem:[%s476 + $0x139] sm:$0xff] %vm388, %v8013
      %8046 = vst.msk [vmem:[%s476 + $0x141] sm:$0xff] %vm388, %v8014
      %8047 = vst.msk [vmem:[%s476 + $0x151] sm:$0xff] %vm388, %v8015
      %8048 = vst.msk [vmem:[%s476 + $0x159] sm:$0xff] %vm388, %v8016
      %8049 = vst.msk [vmem:[%s476 + $0x169] sm:$0xff] %vm388, %v8017
      %8050 = vst.msk [vmem:[%s476 + $0x171] sm:$0xff] %vm388, %v8018
      %v8051 = vld [vmem:[#allocation2] sm:$0xff]
      %v8052 = vld [vmem:[#allocation2 + $0x8] sm:$0xff]
      %v8053 = vld [vmem:[#allocation2 + $0x18] sm:$0xff]
      %v8054 = vld [vmem:[#allocation2 + $0x20] sm:$0xff]
      %v8055 = vld [vmem:[#allocation2 + $0x30] sm:$0xff]
      %v8056 = vld [vmem:[#allocation2 + $0x38] sm:$0xff]
      %v8057 = vld [vmem:[#allocation2 + $0x48] sm:$0xff]
      %v8058 = vld [vmem:[#allocation2 + $0x50] sm:$0xff]
      %v8059 = vld [vmem:[#allocation2 + $0x60] sm:$0xff]
      %v8060 = vld [vmem:[#allocation2 + $0x68] sm:$0xff]
      %v8061 = vld [vmem:[#allocation2 + $0x78] sm:$0xff]
      %v8062 = vld [vmem:[#allocation2 + $0x80] sm:$0xff]
      %v8063 = vld [vmem:[#allocation2 + $0x90] sm:$0xff]
      %v8064 = vld [vmem:[#allocation2 + $0x98] sm:$0xff]
      %v8065 = vld [vmem:[#allocation2 + $0xa8] sm:$0xff]
      %v8066 = vld [vmem:[#allocation2 + $0xb0] sm:$0xff]
      %v8067 = vld [vmem:[#allocation2 + $0xc0] sm:$0xff]
      %v8068 = vld [vmem:[#allocation2 + $0xc8] sm:$0xff]
      %v8069 = vld [vmem:[#allocation2 + $0xd8] sm:$0xff]
      %v8070 = vld [vmem:[#allocation2 + $0xe0] sm:$0xff]
      %v8071 = vld [vmem:[#allocation2 + $0xf0] sm:$0xff]
      %v8072 = vld [vmem:[#allocation2 + $0xf8] sm:$0xff]
      %v8073 = vld [vmem:[#allocation2 + $0x108] sm:$0xff]
      %v8074 = vld [vmem:[#allocation2 + $0x110] sm:$0xff]
      %v8075 = vld [vmem:[#allocation2 + $0x120] sm:$0xff]
      %v8076 = vld [vmem:[#allocation2 + $0x128] sm:$0xff]
      %v8077 = vld [vmem:[#allocation2 + $0x138] sm:$0xff]
      %v8078 = vld [vmem:[#allocation2 + $0x140] sm:$0xff]
      %v8079 = vld [vmem:[#allocation2 + $0x150] sm:$0xff]
      %v8080 = vld [vmem:[#allocation2 + $0x158] sm:$0xff]
      %v8081 = vld [vmem:[#allocation2 + $0x168] sm:$0xff]
      %v8082 = vld [vmem:[#allocation2 + $0x170] sm:$0xff]
      %v8083 = vld [vmem:[#allocation2 + $0x1] sm:$0xff]
      %v8084 = vld [vmem:[#allocation2 + $0x9] sm:$0xff]
      %v8085 = vld [vmem:[#allocation2 + $0x19] sm:$0xff]
      %v8086 = vld [vmem:[#allocation2 + $0x21] sm:$0xff]
      %v8087 = vld [vmem:[#allocation2 + $0x31] sm:$0xff]
      %v8088 = vld [vmem:[#allocation2 + $0x39] sm:$0xff]
      %v8089 = vld [vmem:[#allocation2 + $0x49] sm:$0xff]
      %v8090 = vld [vmem:[#allocation2 + $0x51] sm:$0xff]
      %v8091 = vld [vmem:[#allocation2 + $0x61] sm:$0xff]
      %v8092 = vld [vmem:[#allocation2 + $0x69] sm:$0xff]
      %v8093 = vld [vmem:[#allocation2 + $0x79] sm:$0xff]
      %v8094 = vld [vmem:[#allocation2 + $0x81] sm:$0xff]
      %v8095 = vld [vmem:[#allocation2 + $0x91] sm:$0xff]
      %v8096 = vld [vmem:[#allocation2 + $0x99] sm:$0xff]
      %v8097 = vld [vmem:[#allocation2 + $0xa9] sm:$0xff]
      %v8098 = vld [vmem:[#allocation2 + $0xb1] sm:$0xff]
      %v8099 = vld [vmem:[#allocation2 + $0xc1] sm:$0xff]
      %v8100 = vld [vmem:[#allocation2 + $0xc9] sm:$0xff]
      %v8101 = vld [vmem:[#allocation2 + $0xd9] sm:$0xff]
      %v8102 = vld [vmem:[#allocation2 + $0xe1] sm:$0xff]
      %v8103 = vld [vmem:[#allocation2 + $0xf1] sm:$0xff]
      %v8104 = vld [vmem:[#allocation2 + $0xf9] sm:$0xff]
      %v8105 = vld [vmem:[#allocation2 + $0x109] sm:$0xff]
      %v8106 = vld [vmem:[#allocation2 + $0x111] sm:$0xff]
      %v8107 = vld [vmem:[#allocation2 + $0x121] sm:$0xff]
      %v8108 = vld [vmem:[#allocation2 + $0x129] sm:$0xff]
      %v8109 = vld [vmem:[#allocation2 + $0x139] sm:$0xff]
      %v8110 = vld [vmem:[#allocation2 + $0x141] sm:$0xff]
      %v8111 = vld [vmem:[#allocation2 + $0x151] sm:$0xff]
      %v8112 = vld [vmem:[#allocation2 + $0x159] sm:$0xff]
      %v8113 = vld [vmem:[#allocation2 + $0x169] sm:$0xff]
      %v8114 = vld [vmem:[#allocation2 + $0x171] sm:$0xff]
      %v8115 = vld [vmem:[#allocation2 + $0x2] sm:$0xff]
      %v8116 = vld [vmem:[#allocation2 + $0xa] sm:$0xff]
      %v8117 = vld [vmem:[#allocation2 + $0x1a] sm:$0xff]
      %v8118 = vld [vmem:[#allocation2 + $0x22] sm:$0xff]
      %v8119 = vld [vmem:[#allocation2 + $0x32] sm:$0xff]
      %v8120 = vld [vmem:[#allocation2 + $0x3a] sm:$0xff]
      %v8121 = vld [vmem:[#allocation2 + $0x4a] sm:$0xff]
      %v8122 = vld [vmem:[#allocation2 + $0x52] sm:$0xff]
      %v8123 = vld [vmem:[#allocation2 + $0x62] sm:$0xff]
      %v8124 = vld [vmem:[#allocation2 + $0x6a] sm:$0xff]
      %v8125 = vld [vmem:[#allocation2 + $0x7a] sm:$0xff]
      %v8126 = vld [vmem:[#allocation2 + $0x82] sm:$0xff]
      %v8127 = vld [vmem:[#allocation2 + $0x92] sm:$0xff]
      %v8128 = vld [vmem:[#allocation2 + $0x9a] sm:$0xff]
      %v8129 = vld [vmem:[#allocation2 + $0xaa] sm:$0xff]
      %v8130 = vld [vmem:[#allocation2 + $0xb2] sm:$0xff]
      %v8131 = vld [vmem:[#allocation2 + $0xc2] sm:$0xff]
      %v8132 = vld [vmem:[#allocation2 + $0xca] sm:$0xff]
      %v8133 = vld [vmem:[#allocation2 + $0xda] sm:$0xff]
      %v8134 = vld [vmem:[#allocation2 + $0xe2] sm:$0xff]
      %v8135 = vld [vmem:[#allocation2 + $0xf2] sm:$0xff]
      %v8136 = vld [vmem:[#allocation2 + $0xfa] sm:$0xff]
      %v8137 = vld [vmem:[#allocation2 + $0x10a] sm:$0xff]
      %v8138 = vld [vmem:[#allocation2 + $0x112] sm:$0xff]
      %v8139 = vld [vmem:[#allocation2 + $0x122] sm:$0xff]
      %v8140 = vld [vmem:[#allocation2 + $0x12a] sm:$0xff]
      %v8141 = vld [vmem:[#allocation2 + $0x13a] sm:$0xff]
      %v8142 = vld [vmem:[#allocation2 + $0x142] sm:$0xff]
      %v8143 = vld [vmem:[#allocation2 + $0x152] sm:$0xff]
      %v8144 = vld [vmem:[#allocation2 + $0x15a] sm:$0xff]
      %v8145 = vld [vmem:[#allocation2 + $0x16a] sm:$0xff]
      %v8146 = vld [vmem:[#allocation2 + $0x172] sm:$0xff]
      %v8147 = vld [vmem:[%s476] sm:$0xff]
      %v8148 = vld [vmem:[%s476 + $0x8] sm:$0xff]
      %v8149 = vld [vmem:[%s476 + $0x18] sm:$0xff]
      %v8150 = vld [vmem:[%s476 + $0x20] sm:$0xff]
      %v8151 = vld [vmem:[%s476 + $0x30] sm:$0xff]
      %v8152 = vld [vmem:[%s476 + $0x38] sm:$0xff]
      %v8153 = vld [vmem:[%s476 + $0x48] sm:$0xff]
      %v8154 = vld [vmem:[%s476 + $0x50] sm:$0xff]
      %v8155 = vld [vmem:[%s476 + $0x60] sm:$0xff]
      %v8156 = vld [vmem:[%s476 + $0x68] sm:$0xff]
      %v8157 = vld [vmem:[%s476 + $0x78] sm:$0xff]
      %v8158 = vld [vmem:[%s476 + $0x80] sm:$0xff]
      %v8159 = vld [vmem:[%s476 + $0x90] sm:$0xff]
      %v8160 = vld [vmem:[%s476 + $0x98] sm:$0xff]
      %v8161 = vld [vmem:[%s476 + $0xa8] sm:$0xff]
      %v8162 = vld [vmem:[%s476 + $0xb0] sm:$0xff]
      %v8163 = vld [vmem:[%s476 + $0xc0] sm:$0xff]
      %v8164 = vld [vmem:[%s476 + $0xc8] sm:$0xff]
      %v8165 = vld [vmem:[%s476 + $0xd8] sm:$0xff]
      %v8166 = vld [vmem:[%s476 + $0xe0] sm:$0xff]
      %v8167 = vld [vmem:[%s476 + $0xf0] sm:$0xff]
      %v8168 = vld [vmem:[%s476 + $0xf8] sm:$0xff]
      %v8169 = vld [vmem:[%s476 + $0x108] sm:$0xff]
      %v8170 = vld [vmem:[%s476 + $0x110] sm:$0xff]
      %v8171 = vld [vmem:[%s476 + $0x120] sm:$0xff]
      %v8172 = vld [vmem:[%s476 + $0x128] sm:$0xff]
      %v8173 = vld [vmem:[%s476 + $0x138] sm:$0xff]
      %v8174 = vld [vmem:[%s476 + $0x140] sm:$0xff]
      %v8175 = vld [vmem:[%s476 + $0x150] sm:$0xff]
      %v8176 = vld [vmem:[%s476 + $0x158] sm:$0xff]
      %v8177 = vld [vmem:[%s476 + $0x168] sm:$0xff]
      %v8178 = vld [vmem:[%s476 + $0x170] sm:$0xff]
      %v8179 = vld [vmem:[%s476 + $0x1] sm:$0xff]
      %v8180 = vld [vmem:[%s476 + $0x9] sm:$0xff]
      %v8181 = vld [vmem:[%s476 + $0x19] sm:$0xff]
      %v8182 = vld [vmem:[%s476 + $0x21] sm:$0xff]
      %v8183 = vld [vmem:[%s476 + $0x31] sm:$0xff]
      %v8184 = vld [vmem:[%s476 + $0x39] sm:$0xff]
      %v8185 = vld [vmem:[%s476 + $0x49] sm:$0xff]
      %v8186 = vld [vmem:[%s476 + $0x51] sm:$0xff]
      %v8187 = vld [vmem:[%s476 + $0x61] sm:$0xff]
      %v8188 = vld [vmem:[%s476 + $0x69] sm:$0xff]
      %v8189 = vld [vmem:[%s476 + $0x79] sm:$0xff]
      %v8190 = vld [vmem:[%s476 + $0x81] sm:$0xff]
      %v8191 = vld [vmem:[%s476 + $0x91] sm:$0xff]
      %v8192 = vld [vmem:[%s476 + $0x99] sm:$0xff]
      %v8193 = vld [vmem:[%s476 + $0xa9] sm:$0xff]
      %v8194 = vld [vmem:[%s476 + $0xb1] sm:$0xff]
      %v8195 = vld [vmem:[%s476 + $0xc1] sm:$0xff]
      %v8196 = vld [vmem:[%s476 + $0xc9] sm:$0xff]
      %v8197 = vld [vmem:[%s476 + $0xd9] sm:$0xff]
      %v8198 = vld [vmem:[%s476 + $0xe1] sm:$0xff]
      %v8199 = vld [vmem:[%s476 + $0xf1] sm:$0xff]
      %v8200 = vld [vmem:[%s476 + $0xf9] sm:$0xff]
      %v8201 = vld [vmem:[%s476 + $0x109] sm:$0xff]
      %v8202 = vld [vmem:[%s476 + $0x111] sm:$0xff]
      %v8203 = vld [vmem:[%s476 + $0x121] sm:$0xff]
      %v8204 = vld [vmem:[%s476 + $0x129] sm:$0xff]
      %v8205 = vld [vmem:[%s476 + $0x139] sm:$0xff]
      %v8206 = vld [vmem:[%s476 + $0x141] sm:$0xff]
      %v8207 = vld [vmem:[%s476 + $0x151] sm:$0xff]
      %v8208 = vld [vmem:[%s476 + $0x159] sm:$0xff]
      %v8209 = vld [vmem:[%s476 + $0x169] sm:$0xff]
      %v8210 = vld [vmem:[%s476 + $0x171] sm:$0xff]
      %v8211 = vld [vmem:[%s476 + $0x2] sm:$0xff]
      %v8212 = vld [vmem:[%s476 + $0xa] sm:$0xff]
      %v8213 = vld [vmem:[%s476 + $0x1a] sm:$0xff]
      %v8214 = vld [vmem:[%s476 + $0x22] sm:$0xff]
      %v8215 = vld [vmem:[%s476 + $0x32] sm:$0xff]
      %v8216 = vld [vmem:[%s476 + $0x3a] sm:$0xff]
      %v8217 = vld [vmem:[%s476 + $0x4a] sm:$0xff]
      %v8218 = vld [vmem:[%s476 + $0x52] sm:$0xff]
      %v8219 = vld [vmem:[%s476 + $0x62] sm:$0xff]
      %v8220 = vld [vmem:[%s476 + $0x6a] sm:$0xff]
      %v8221 = vld [vmem:[%s476 + $0x7a] sm:$0xff]
      %v8222 = vld [vmem:[%s476 + $0x82] sm:$0xff]
      %v8223 = vld [vmem:[%s476 + $0x92] sm:$0xff]
      %v8224 = vld [vmem:[%s476 + $0x9a] sm:$0xff]
      %v8225 = vld [vmem:[%s476 + $0xaa] sm:$0xff]
      %v8226 = vld [vmem:[%s476 + $0xb2] sm:$0xff]
      %v8227 = vld [vmem:[%s476 + $0xc2] sm:$0xff]
      %v8228 = vld [vmem:[%s476 + $0xca] sm:$0xff]
      %v8229 = vld [vmem:[%s476 + $0xda] sm:$0xff]
      %v8230 = vld [vmem:[%s476 + $0xe2] sm:$0xff]
      %v8231 = vld [vmem:[%s476 + $0xf2] sm:$0xff]
      %v8232 = vld [vmem:[%s476 + $0xfa] sm:$0xff]
      %v8233 = vld [vmem:[%s476 + $0x10a] sm:$0xff]
      %v8234 = vld [vmem:[%s476 + $0x112] sm:$0xff]
      %v8235 = vld [vmem:[%s476 + $0x122] sm:$0xff]
      %v8236 = vld [vmem:[%s476 + $0x12a] sm:$0xff]
      %v8237 = vld [vmem:[%s476 + $0x13a] sm:$0xff]
      %v8238 = vld [vmem:[%s476 + $0x142] sm:$0xff]
      %v8239 = vld [vmem:[%s476 + $0x152] sm:$0xff]
      %v8240 = vld [vmem:[%s476 + $0x15a] sm:$0xff]
      %v8241 = vld [vmem:[%s476 + $0x16a] sm:$0xff]
      %v8242 = vld [vmem:[%s476 + $0x172] sm:$0xff]
      %v8243 = vld [vmem:[%s702] sm:$0xff]
      %v8244 = vld [vmem:[%s702 + $0x8] sm:$0xff]
      %v8245 = vld [vmem:[%s702 + $0x18] sm:$0xff]
      %v8246 = vld [vmem:[%s702 + $0x20] sm:$0xff]
      %v8247 = vld [vmem:[%s702 + $0x30] sm:$0xff]
      %v8248 = vld [vmem:[%s702 + $0x38] sm:$0xff]
      %v8249 = vld [vmem:[%s702 + $0x48] sm:$0xff]
      %v8250 = vld [vmem:[%s702 + $0x50] sm:$0xff]
      %v8251 = vld [vmem:[%s702 + $0x60] sm:$0xff]
      %v8252 = vld [vmem:[%s702 + $0x68] sm:$0xff]
      %v8253 = vld [vmem:[%s702 + $0x78] sm:$0xff]
      %v8254 = vld [vmem:[%s702 + $0x80] sm:$0xff]
      %v8255 = vld [vmem:[%s702 + $0x90] sm:$0xff]
      %v8256 = vld [vmem:[%s702 + $0x98] sm:$0xff]
      %v8257 = vld [vmem:[%s702 + $0xa8] sm:$0xff]
      %v8258 = vld [vmem:[%s702 + $0xb0] sm:$0xff]
      %v8259 = vld [vmem:[%s702 + $0xc0] sm:$0xff]
      %v8260 = vld [vmem:[%s702 + $0xc8] sm:$0xff]
      %v8261 = vld [vmem:[%s702 + $0xd8] sm:$0xff]
      %v8262 = vld [vmem:[%s702 + $0xe0] sm:$0xff]
      %v8263 = vld [vmem:[%s702 + $0xf0] sm:$0xff]
      %v8264 = vld [vmem:[%s702 + $0xf8] sm:$0xff]
      %v8265 = vld [vmem:[%s702 + $0x108] sm:$0xff]
      %v8266 = vld [vmem:[%s702 + $0x110] sm:$0xff]
      %v8267 = vld [vmem:[%s702 + $0x120] sm:$0xff]
      %v8268 = vld [vmem:[%s702 + $0x128] sm:$0xff]
      %v8269 = vld [vmem:[%s702 + $0x138] sm:$0xff]
      %v8270 = vld [vmem:[%s702 + $0x140] sm:$0xff]
      %v8271 = vld [vmem:[%s702 + $0x150] sm:$0xff]
      %v8272 = vld [vmem:[%s702 + $0x158] sm:$0xff]
      %v8273 = vld [vmem:[%s702 + $0x168] sm:$0xff]
      %v8274 = vld [vmem:[%s702 + $0x170] sm:$0xff]
      %v8275 = vld [vmem:[%s702 + $0x1] sm:$0xff]
      %v8276 = vld [vmem:[%s702 + $0x9] sm:$0xff]
      %v8277 = vld [vmem:[%s702 + $0x19] sm:$0xff]
      %v8278 = vld [vmem:[%s702 + $0x21] sm:$0xff]
      %v8279 = vld [vmem:[%s702 + $0x31] sm:$0xff]
      %v8280 = vld [vmem:[%s702 + $0x39] sm:$0xff]
      %v8281 = vld [vmem:[%s702 + $0x49] sm:$0xff]
      %v8282 = vld [vmem:[%s702 + $0x51] sm:$0xff]
      %v8283 = vld [vmem:[%s702 + $0x61] sm:$0xff]
      %v8284 = vld [vmem:[%s702 + $0x69] sm:$0xff]
      %v8285 = vld [vmem:[%s702 + $0x79] sm:$0xff]
      %v8286 = vld [vmem:[%s702 + $0x81] sm:$0xff]
      %v8287 = vld [vmem:[%s702 + $0x91] sm:$0xff]
      %v8288 = vld [vmem:[%s702 + $0x99] sm:$0xff]
      %v8289 = vld [vmem:[%s702 + $0xa9] sm:$0xff]
      %v8290 = vld [vmem:[%s702 + $0xb1] sm:$0xff]
      %v8291 = vld [vmem:[%s702 + $0xc1] sm:$0xff]
      %v8292 = vld [vmem:[%s702 + $0xc9] sm:$0xff]
      %v8293 = vld [vmem:[%s702 + $0xd9] sm:$0xff]
      %v8294 = vld [vmem:[%s702 + $0xe1] sm:$0xff]
      %v8295 = vld [vmem:[%s702 + $0xf1] sm:$0xff]
      %v8296 = vld [vmem:[%s702 + $0xf9] sm:$0xff]
      %v8297 = vld [vmem:[%s702 + $0x109] sm:$0xff]
      %v8298 = vld [vmem:[%s702 + $0x111] sm:$0xff]
      %v8299 = vld [vmem:[%s702 + $0x121] sm:$0xff]
      %v8300 = vld [vmem:[%s702 + $0x129] sm:$0xff]
      %v8301 = vld [vmem:[%s702 + $0x139] sm:$0xff]
      %v8302 = vld [vmem:[%s702 + $0x141] sm:$0xff]
      %v8303 = vld [vmem:[%s702 + $0x151] sm:$0xff]
      %v8304 = vld [vmem:[%s702 + $0x159] sm:$0xff]
      %v8305 = vld [vmem:[%s702 + $0x169] sm:$0xff]
      %v8306 = vld [vmem:[%s702 + $0x171] sm:$0xff]
      %v8307 = vld [vmem:[%s702 + $0x2] sm:$0xff]
      %v8308 = vld [vmem:[%s702 + $0xa] sm:$0xff]
      %v8309 = vld [vmem:[%s702 + $0x1a] sm:$0xff]
      %v8310 = vld [vmem:[%s702 + $0x22] sm:$0xff]
      %v8311 = vld [vmem:[%s702 + $0x32] sm:$0xff]
      %v8312 = vld [vmem:[%s702 + $0x3a] sm:$0xff]
      %v8313 = vld [vmem:[%s702 + $0x4a] sm:$0xff]
      %v8314 = vld [vmem:[%s702 + $0x52] sm:$0xff]
      %v8315 = vld [vmem:[%s702 + $0x62] sm:$0xff]
      %v8316 = vld [vmem:[%s702 + $0x6a] sm:$0xff]
      %v8317 = vld [vmem:[%s702 + $0x7a] sm:$0xff]
      %v8318 = vld [vmem:[%s702 + $0x82] sm:$0xff]
      %v8319 = vld [vmem:[%s702 + $0x92] sm:$0xff]
      %v8320 = vld [vmem:[%s702 + $0x9a] sm:$0xff]
      %v8321 = vld [vmem:[%s702 + $0xaa] sm:$0xff]
      %v8322 = vld [vmem:[%s702 + $0xb2] sm:$0xff]
      %v8323 = vld [vmem:[%s702 + $0xc2] sm:$0xff]
      %v8324 = vld [vmem:[%s702 + $0xca] sm:$0xff]
      %v8325 = vld [vmem:[%s702 + $0xda] sm:$0xff]
      %v8326 = vld [vmem:[%s702 + $0xe2] sm:$0xff]
      %v8327 = vld [vmem:[%s702 + $0xf2] sm:$0xff]
      %v8328 = vld [vmem:[%s702 + $0xfa] sm:$0xff]
      %v8329 = vld [vmem:[%s702 + $0x10a] sm:$0xff]
      %v8330 = vld [vmem:[%s702 + $0x112] sm:$0xff]
      %v8331 = vld [vmem:[%s702 + $0x122] sm:$0xff]
      %v8332 = vld [vmem:[%s702 + $0x12a] sm:$0xff]
      %v8333 = vld [vmem:[%s702 + $0x13a] sm:$0xff]
      %v8334 = vld [vmem:[%s702 + $0x142] sm:$0xff]
      %v8335 = vld [vmem:[%s702 + $0x152] sm:$0xff]
      %v8336 = vld [vmem:[%s702 + $0x15a] sm:$0xff]
      %v8337 = vld [vmem:[%s702 + $0x16a] sm:$0xff]
      %v8338 = vld [vmem:[%s702 + $0x172] sm:$0xff]
      %8371 = vrot.lane.b32.xlu0 %v8083, 32
      %v8372 = vpop.permute.xlu0 %8371
      %8373 = vrot.lane.b32.xlu0 %v8084, 32
      %v8374 = vpop.permute.xlu0 %8373
      %8375 = vrot.lane.b32.xlu0 %v8085, 32
      %v8376 = vpop.permute.xlu0 %8375
      %8377 = vrot.lane.b32.xlu0 %v8086, 32
      %v8378 = vpop.permute.xlu0 %8377
      %8379 = vrot.lane.b32.xlu0 %v8087, 32
      %v8380 = vpop.permute.xlu0 %8379
      %8381 = vrot.lane.b32.xlu0 %v8088, 32
      %v8382 = vpop.permute.xlu0 %8381
      %8383 = vrot.lane.b32.xlu0 %v8089, 32
      %v8384 = vpop.permute.xlu0 %8383
      %8385 = vrot.lane.b32.xlu0 %v8090, 32
      %v8386 = vpop.permute.xlu0 %8385
      %8387 = vrot.lane.b32.xlu0 %v8091, 32
      %v8388 = vpop.permute.xlu0 %8387
      %8389 = vrot.lane.b32.xlu0 %v8092, 32
      %v8390 = vpop.permute.xlu0 %8389
      %8391 = vrot.lane.b32.xlu0 %v8093, 32
      %v8392 = vpop.permute.xlu0 %8391
      %8393 = vrot.lane.b32.xlu0 %v8094, 32
      %v8394 = vpop.permute.xlu0 %8393
      %8395 = vrot.lane.b32.xlu0 %v8095, 32
      %v8396 = vpop.permute.xlu0 %8395
      %8397 = vrot.lane.b32.xlu0 %v8096, 32
      %v8398 = vpop.permute.xlu0 %8397
      %8399 = vrot.lane.b32.xlu0 %v8097, 32
      %v8400 = vpop.permute.xlu0 %8399
      %8401 = vrot.lane.b32.xlu0 %v8098, 32
      %v8402 = vpop.permute.xlu0 %8401
      %8403 = vrot.lane.b32.xlu0 %v8099, 32
      %v8404 = vpop.permute.xlu0 %8403
      %8405 = vrot.lane.b32.xlu0 %v8100, 32
      %v8406 = vpop.permute.xlu0 %8405
      %8407 = vrot.lane.b32.xlu0 %v8101, 32
      %v8408 = vpop.permute.xlu0 %8407
      %8409 = vrot.lane.b32.xlu0 %v8102, 32
      %v8410 = vpop.permute.xlu0 %8409
      %8411 = vrot.lane.b32.xlu0 %v8103, 32
      %v8412 = vpop.permute.xlu0 %8411
      %8413 = vrot.lane.b32.xlu0 %v8104, 32
      %v8414 = vpop.permute.xlu0 %8413
      %8415 = vrot.lane.b32.xlu0 %v8105, 32
      %v8416 = vpop.permute.xlu0 %8415
      %8417 = vrot.lane.b32.xlu0 %v8106, 32
      %v8418 = vpop.permute.xlu0 %8417
      %8419 = vrot.lane.b32.xlu0 %v8107, 32
      %v8420 = vpop.permute.xlu0 %8419
      %8421 = vrot.lane.b32.xlu0 %v8108, 32
      %v8422 = vpop.permute.xlu0 %8421
      %8423 = vrot.lane.b32.xlu0 %v8109, 32
      %v8424 = vpop.permute.xlu0 %8423
      %8425 = vrot.lane.b32.xlu0 %v8110, 32
      %v8426 = vpop.permute.xlu0 %8425
      %8427 = vrot.lane.b32.xlu0 %v8111, 32
      %v8428 = vpop.permute.xlu0 %8427
      %8429 = vrot.lane.b32.xlu0 %v8112, 32
      %v8430 = vpop.permute.xlu0 %8429
      %8431 = vrot.lane.b32.xlu0 %v8113, 32
      %v8432 = vpop.permute.xlu0 %8431
      %8433 = vrot.lane.b32.xlu0 %v8114, 32
      %v8434 = vpop.permute.xlu0 %8433
      %8499 = vrot.lane.b32.xlu0 %v8115, 64
      %v8500 = vpop.permute.xlu0 %8499
      %8501 = vrot.lane.b32.xlu0 %v8116, 64
      %v8502 = vpop.permute.xlu0 %8501
      %8503 = vrot.lane.b32.xlu0 %v8117, 64
      %v8504 = vpop.permute.xlu0 %8503
      %8505 = vrot.lane.b32.xlu0 %v8118, 64
      %v8506 = vpop.permute.xlu0 %8505
      %8507 = vrot.lane.b32.xlu0 %v8119, 64
      %v8508 = vpop.permute.xlu0 %8507
      %8509 = vrot.lane.b32.xlu0 %v8120, 64
      %v8510 = vpop.permute.xlu0 %8509
      %8511 = vrot.lane.b32.xlu0 %v8121, 64
      %v8512 = vpop.permute.xlu0 %8511
      %8513 = vrot.lane.b32.xlu0 %v8122, 64
      %v8514 = vpop.permute.xlu0 %8513
      %8515 = vrot.lane.b32.xlu0 %v8123, 64
      %v8516 = vpop.permute.xlu0 %8515
      %8517 = vrot.lane.b32.xlu0 %v8124, 64
      %v8518 = vpop.permute.xlu0 %8517
      %8519 = vrot.lane.b32.xlu0 %v8125, 64
      %v8520 = vpop.permute.xlu0 %8519
      %8521 = vrot.lane.b32.xlu0 %v8126, 64
      %v8522 = vpop.permute.xlu0 %8521
      %8523 = vrot.lane.b32.xlu0 %v8127, 64
      %v8524 = vpop.permute.xlu0 %8523
      %8525 = vrot.lane.b32.xlu0 %v8128, 64
      %v8526 = vpop.permute.xlu0 %8525
      %8527 = vrot.lane.b32.xlu0 %v8129, 64
      %v8528 = vpop.permute.xlu0 %8527
      %8529 = vrot.lane.b32.xlu0 %v8130, 64
      %v8530 = vpop.permute.xlu0 %8529
      %8531 = vrot.lane.b32.xlu0 %v8131, 64
      %v8532 = vpop.permute.xlu0 %8531
      %8533 = vrot.lane.b32.xlu0 %v8132, 64
      %v8534 = vpop.permute.xlu0 %8533
      %8535 = vrot.lane.b32.xlu0 %v8133, 64
      %v8536 = vpop.permute.xlu0 %8535
      %8537 = vrot.lane.b32.xlu0 %v8134, 64
      %v8538 = vpop.permute.xlu0 %8537
      %8539 = vrot.lane.b32.xlu0 %v8135, 64
      %v8540 = vpop.permute.xlu0 %8539
      %8541 = vrot.lane.b32.xlu0 %v8136, 64
      %v8542 = vpop.permute.xlu0 %8541
      %8543 = vrot.lane.b32.xlu0 %v8137, 64
      %v8544 = vpop.permute.xlu0 %8543
      %8545 = vrot.lane.b32.xlu0 %v8138, 64
      %v8546 = vpop.permute.xlu0 %8545
      %8547 = vrot.lane.b32.xlu0 %v8139, 64
      %v8548 = vpop.permute.xlu0 %8547
      %8549 = vrot.lane.b32.xlu0 %v8140, 64
      %v8550 = vpop.permute.xlu0 %8549
      %8551 = vrot.lane.b32.xlu0 %v8141, 64
      %v8552 = vpop.permute.xlu0 %8551
      %8553 = vrot.lane.b32.xlu0 %v8142, 64
      %v8554 = vpop.permute.xlu0 %8553
      %8555 = vrot.lane.b32.xlu0 %v8143, 64
      %v8556 = vpop.permute.xlu0 %8555
      %8557 = vrot.lane.b32.xlu0 %v8144, 64
      %v8558 = vpop.permute.xlu0 %8557
      %8559 = vrot.lane.b32.xlu0 %v8145, 64
      %v8560 = vpop.permute.xlu0 %8559
      %8561 = vrot.lane.b32.xlu0 %v8146, 64
      %v8562 = vpop.permute.xlu0 %8561
      %8627 = vrot.lane.b32.xlu0 %v8147, 96
      %v8628 = vpop.permute.xlu0 %8627
      %8629 = vrot.lane.b32.xlu0 %v8148, 96
      %v8630 = vpop.permute.xlu0 %8629
      %8631 = vrot.lane.b32.xlu0 %v8149, 96
      %v8632 = vpop.permute.xlu0 %8631
      %8633 = vrot.lane.b32.xlu0 %v8150, 96
      %v8634 = vpop.permute.xlu0 %8633
      %8635 = vrot.lane.b32.xlu0 %v8151, 96
      %v8636 = vpop.permute.xlu0 %8635
      %8637 = vrot.lane.b32.xlu0 %v8152, 96
      %v8638 = vpop.permute.xlu0 %8637
      %8639 = vrot.lane.b32.xlu0 %v8153, 96
      %v8640 = vpop.permute.xlu0 %8639
      %8641 = vrot.lane.b32.xlu0 %v8154, 96
      %v8642 = vpop.permute.xlu0 %8641
      %8643 = vrot.lane.b32.xlu0 %v8155, 96
      %v8644 = vpop.permute.xlu0 %8643
      %8645 = vrot.lane.b32.xlu0 %v8156, 96
      %v8646 = vpop.permute.xlu0 %8645
      %8647 = vrot.lane.b32.xlu0 %v8157, 96
      %v8648 = vpop.permute.xlu0 %8647
      %8649 = vrot.lane.b32.xlu0 %v8158, 96
      %v8650 = vpop.permute.xlu0 %8649
      %8651 = vrot.lane.b32.xlu0 %v8159, 96
      %v8652 = vpop.permute.xlu0 %8651
      %8653 = vrot.lane.b32.xlu0 %v8160, 96
      %v8654 = vpop.permute.xlu0 %8653
      %8655 = vrot.lane.b32.xlu0 %v8161, 96
      %v8656 = vpop.permute.xlu0 %8655
      %8657 = vrot.lane.b32.xlu0 %v8162, 96
      %v8658 = vpop.permute.xlu0 %8657
      %8659 = vrot.lane.b32.xlu0 %v8163, 96
      %v8660 = vpop.permute.xlu0 %8659
      %8661 = vrot.lane.b32.xlu0 %v8164, 96
      %v8662 = vpop.permute.xlu0 %8661
      %8663 = vrot.lane.b32.xlu0 %v8165, 96
      %v8664 = vpop.permute.xlu0 %8663
      %8665 = vrot.lane.b32.xlu0 %v8166, 96
      %v8666 = vpop.permute.xlu0 %8665
      %8667 = vrot.lane.b32.xlu0 %v8167, 96
      %v8668 = vpop.permute.xlu0 %8667
      %8669 = vrot.lane.b32.xlu0 %v8168, 96
      %v8670 = vpop.permute.xlu0 %8669
      %8671 = vrot.lane.b32.xlu0 %v8169, 96
      %v8672 = vpop.permute.xlu0 %8671
      %8673 = vrot.lane.b32.xlu0 %v8170, 96
      %v8674 = vpop.permute.xlu0 %8673
      %8675 = vrot.lane.b32.xlu0 %v8171, 96
      %v8676 = vpop.permute.xlu0 %8675
      %8677 = vrot.lane.b32.xlu0 %v8172, 96
      %v8678 = vpop.permute.xlu0 %8677
      %8679 = vrot.lane.b32.xlu0 %v8173, 96
      %v8680 = vpop.permute.xlu0 %8679
      %8681 = vrot.lane.b32.xlu0 %v8174, 96
      %v8682 = vpop.permute.xlu0 %8681
      %8683 = vrot.lane.b32.xlu0 %v8175, 96
      %v8684 = vpop.permute.xlu0 %8683
      %8685 = vrot.lane.b32.xlu0 %v8176, 96
      %v8686 = vpop.permute.xlu0 %8685
      %8687 = vrot.lane.b32.xlu0 %v8177, 96
      %v8688 = vpop.permute.xlu0 %8687
      %8689 = vrot.lane.b32.xlu0 %v8178, 96
      %v8690 = vpop.permute.xlu0 %8689
      %8755 = vrot.lane.b32.xlu0 %v8211, 32
      %v8756 = vpop.permute.xlu0 %8755
      %8757 = vrot.lane.b32.xlu0 %v8212, 32
      %v8758 = vpop.permute.xlu0 %8757
      %8759 = vrot.lane.b32.xlu0 %v8213, 32
      %v8760 = vpop.permute.xlu0 %8759
      %8761 = vrot.lane.b32.xlu0 %v8214, 32
      %v8762 = vpop.permute.xlu0 %8761
      %8763 = vrot.lane.b32.xlu0 %v8215, 32
      %v8764 = vpop.permute.xlu0 %8763
      %8765 = vrot.lane.b32.xlu0 %v8216, 32
      %v8766 = vpop.permute.xlu0 %8765
      %8767 = vrot.lane.b32.xlu0 %v8217, 32
      %v8768 = vpop.permute.xlu0 %8767
      %8769 = vrot.lane.b32.xlu0 %v8218, 32
      %v8770 = vpop.permute.xlu0 %8769
      %8771 = vrot.lane.b32.xlu0 %v8219, 32
      %v8772 = vpop.permute.xlu0 %8771
      %8773 = vrot.lane.b32.xlu0 %v8220, 32
      %v8774 = vpop.permute.xlu0 %8773
      %8775 = vrot.lane.b32.xlu0 %v8221, 32
      %v8776 = vpop.permute.xlu0 %8775
      %8777 = vrot.lane.b32.xlu0 %v8222, 32
      %v8778 = vpop.permute.xlu0 %8777
      %8779 = vrot.lane.b32.xlu0 %v8223, 32
      %v8780 = vpop.permute.xlu0 %8779
      %8781 = vrot.lane.b32.xlu0 %v8224, 32
      %v8782 = vpop.permute.xlu0 %8781
      %8783 = vrot.lane.b32.xlu0 %v8225, 32
      %v8784 = vpop.permute.xlu0 %8783
      %8785 = vrot.lane.b32.xlu0 %v8226, 32
      %v8786 = vpop.permute.xlu0 %8785
      %8787 = vrot.lane.b32.xlu0 %v8227, 32
      %v8788 = vpop.permute.xlu0 %8787
      %8789 = vrot.lane.b32.xlu0 %v8228, 32
      %v8790 = vpop.permute.xlu0 %8789
      %8791 = vrot.lane.b32.xlu0 %v8229, 32
      %v8792 = vpop.permute.xlu0 %8791
      %8793 = vrot.lane.b32.xlu0 %v8230, 32
      %v8794 = vpop.permute.xlu0 %8793
      %8795 = vrot.lane.b32.xlu0 %v8231, 32
      %v8796 = vpop.permute.xlu0 %8795
      %8797 = vrot.lane.b32.xlu0 %v8232, 32
      %v8798 = vpop.permute.xlu0 %8797
      %8799 = vrot.lane.b32.xlu0 %v8233, 32
      %v8800 = vpop.permute.xlu0 %8799
      %8801 = vrot.lane.b32.xlu0 %v8234, 32
      %v8802 = vpop.permute.xlu0 %8801
      %8803 = vrot.lane.b32.xlu0 %v8235, 32
      %v8804 = vpop.permute.xlu0 %8803
      %8805 = vrot.lane.b32.xlu0 %v8236, 32
      %v8806 = vpop.permute.xlu0 %8805
      %8807 = vrot.lane.b32.xlu0 %v8237, 32
      %v8808 = vpop.permute.xlu0 %8807
      %8809 = vrot.lane.b32.xlu0 %v8238, 32
      %v8810 = vpop.permute.xlu0 %8809
      %8811 = vrot.lane.b32.xlu0 %v8239, 32
      %v8812 = vpop.permute.xlu0 %8811
      %8813 = vrot.lane.b32.xlu0 %v8240, 32
      %v8814 = vpop.permute.xlu0 %8813
      %8815 = vrot.lane.b32.xlu0 %v8241, 32
      %v8816 = vpop.permute.xlu0 %8815
      %8817 = vrot.lane.b32.xlu0 %v8242, 32
      %v8818 = vpop.permute.xlu0 %8817
      %8883 = vrot.lane.b32.xlu0 %v8243, 64
      %v8884 = vpop.permute.xlu0 %8883
      %8885 = vrot.lane.b32.xlu0 %v8244, 64
      %v8886 = vpop.permute.xlu0 %8885
      %8887 = vrot.lane.b32.xlu0 %v8245, 64
      %v8888 = vpop.permute.xlu0 %8887
      %8889 = vrot.lane.b32.xlu0 %v8246, 64
      %v8890 = vpop.permute.xlu0 %8889
      %8891 = vrot.lane.b32.xlu0 %v8247, 64
      %v8892 = vpop.permute.xlu0 %8891
      %8893 = vrot.lane.b32.xlu0 %v8248, 64
      %v8894 = vpop.permute.xlu0 %8893
      %8895 = vrot.lane.b32.xlu0 %v8249, 64
      %v8896 = vpop.permute.xlu0 %8895
      %8897 = vrot.lane.b32.xlu0 %v8250, 64
      %v8898 = vpop.permute.xlu0 %8897
      %8899 = vrot.lane.b32.xlu0 %v8251, 64
      %v8900 = vpop.permute.xlu0 %8899
      %8901 = vrot.lane.b32.xlu0 %v8252, 64
      %v8902 = vpop.permute.xlu0 %8901
      %8903 = vrot.lane.b32.xlu0 %v8253, 64
      %v8904 = vpop.permute.xlu0 %8903
      %8905 = vrot.lane.b32.xlu0 %v8254, 64
      %v8906 = vpop.permute.xlu0 %8905
      %8907 = vrot.lane.b32.xlu0 %v8255, 64
      %v8908 = vpop.permute.xlu0 %8907
      %8909 = vrot.lane.b32.xlu0 %v8256, 64
      %v8910 = vpop.permute.xlu0 %8909
      %8911 = vrot.lane.b32.xlu0 %v8257, 64
      %v8912 = vpop.permute.xlu0 %8911
      %8913 = vrot.lane.b32.xlu0 %v8258, 64
      %v8914 = vpop.permute.xlu0 %8913
      %8915 = vrot.lane.b32.xlu0 %v8259, 64
      %v8916 = vpop.permute.xlu0 %8915
      %8917 = vrot.lane.b32.xlu0 %v8260, 64
      %v8918 = vpop.permute.xlu0 %8917
      %8919 = vrot.lane.b32.xlu0 %v8261, 64
      %v8920 = vpop.permute.xlu0 %8919
      %8921 = vrot.lane.b32.xlu0 %v8262, 64
      %v8922 = vpop.permute.xlu0 %8921
      %8923 = vrot.lane.b32.xlu0 %v8263, 64
      %v8924 = vpop.permute.xlu0 %8923
      %8925 = vrot.lane.b32.xlu0 %v8264, 64
      %v8926 = vpop.permute.xlu0 %8925
      %8927 = vrot.lane.b32.xlu0 %v8265, 64
      %v8928 = vpop.permute.xlu0 %8927
      %8929 = vrot.lane.b32.xlu0 %v8266, 64
      %v8930 = vpop.permute.xlu0 %8929
      %8931 = vrot.lane.b32.xlu0 %v8267, 64
      %v8932 = vpop.permute.xlu0 %8931
      %8933 = vrot.lane.b32.xlu0 %v8268, 64
      %v8934 = vpop.permute.xlu0 %8933
      %8935 = vrot.lane.b32.xlu0 %v8269, 64
      %v8936 = vpop.permute.xlu0 %8935
      %8937 = vrot.lane.b32.xlu0 %v8270, 64
      %v8938 = vpop.permute.xlu0 %8937
      %8939 = vrot.lane.b32.xlu0 %v8271, 64
      %v8940 = vpop.permute.xlu0 %8939
      %8941 = vrot.lane.b32.xlu0 %v8272, 64
      %v8942 = vpop.permute.xlu0 %8941
      %8943 = vrot.lane.b32.xlu0 %v8273, 64
      %v8944 = vpop.permute.xlu0 %8943
      %8945 = vrot.lane.b32.xlu0 %v8274, 64
      %v8946 = vpop.permute.xlu0 %8945
      %9011 = vrot.lane.b32.xlu0 %v8275, 96
      %v9012 = vpop.permute.xlu0 %9011
      %9013 = vrot.lane.b32.xlu0 %v8276, 96
      %v9014 = vpop.permute.xlu0 %9013
      %9015 = vrot.lane.b32.xlu0 %v8277, 96
      %v9016 = vpop.permute.xlu0 %9015
      %9017 = vrot.lane.b32.xlu0 %v8278, 96
      %v9018 = vpop.permute.xlu0 %9017
      %9019 = vrot.lane.b32.xlu0 %v8279, 96
      %v9020 = vpop.permute.xlu0 %9019
      %9021 = vrot.lane.b32.xlu0 %v8280, 96
      %v9022 = vpop.permute.xlu0 %9021
      %9023 = vrot.lane.b32.xlu0 %v8281, 96
      %v9024 = vpop.permute.xlu0 %9023
      %9025 = vrot.lane.b32.xlu0 %v8282, 96
      %v9026 = vpop.permute.xlu0 %9025
      %9027 = vrot.lane.b32.xlu0 %v8283, 96
      %v9028 = vpop.permute.xlu0 %9027
      %9029 = vrot.lane.b32.xlu0 %v8284, 96
      %v9030 = vpop.permute.xlu0 %9029
      %9031 = vrot.lane.b32.xlu0 %v8285, 96
      %v9032 = vpop.permute.xlu0 %9031
      %9033 = vrot.lane.b32.xlu0 %v8286, 96
      %v9034 = vpop.permute.xlu0 %9033
      %9035 = vrot.lane.b32.xlu0 %v8287, 96
      %v9036 = vpop.permute.xlu0 %9035
      %9037 = vrot.lane.b32.xlu0 %v8288, 96
      %v9038 = vpop.permute.xlu0 %9037
      %9039 = vrot.lane.b32.xlu0 %v8289, 96
      %v9040 = vpop.permute.xlu0 %9039
      %9041 = vrot.lane.b32.xlu0 %v8290, 96
      %v9042 = vpop.permute.xlu0 %9041
      %9043 = vrot.lane.b32.xlu0 %v8291, 96
      %v9044 = vpop.permute.xlu0 %9043
      %9045 = vrot.lane.b32.xlu0 %v8292, 96
      %v9046 = vpop.permute.xlu0 %9045
      %9047 = vrot.lane.b32.xlu0 %v8293, 96
      %v9048 = vpop.permute.xlu0 %9047
      %9049 = vrot.lane.b32.xlu0 %v8294, 96
      %v9050 = vpop.permute.xlu0 %9049
      %9051 = vrot.lane.b32.xlu0 %v8295, 96
      %v9052 = vpop.permute.xlu0 %9051
      %9053 = vrot.lane.b32.xlu0 %v8296, 96
      %v9054 = vpop.permute.xlu0 %9053
      %9055 = vrot.lane.b32.xlu0 %v8297, 96
      %v9056 = vpop.permute.xlu0 %9055
      %9057 = vrot.lane.b32.xlu0 %v8298, 96
      %v9058 = vpop.permute.xlu0 %9057
      %9059 = vrot.lane.b32.xlu0 %v8299, 96
      %v9060 = vpop.permute.xlu0 %9059
      %9061 = vrot.lane.b32.xlu0 %v8300, 96
      %v9062 = vpop.permute.xlu0 %9061
      %9063 = vrot.lane.b32.xlu0 %v8301, 96
      %v9064 = vpop.permute.xlu0 %9063
      %9065 = vrot.lane.b32.xlu0 %v8302, 96
      %v9066 = vpop.permute.xlu0 %9065
      %9067 = vrot.lane.b32.xlu0 %v8303, 96
      %v9068 = vpop.permute.xlu0 %9067
      %9069 = vrot.lane.b32.xlu0 %v8304, 96
      %v9070 = vpop.permute.xlu0 %9069
      %9071 = vrot.lane.b32.xlu0 %v8305, 96
      %v9072 = vpop.permute.xlu0 %9071
      %9073 = vrot.lane.b32.xlu0 %v8306, 96
      %v9074 = vpop.permute.xlu0 %9073
      %v9107 = vsel %vm388, %v8051, %v8372
      %v9108 = vsel %vm388, %v8052, %v8374
      %v9109 = vsel %vm388, %v8053, %v8376
      %v9110 = vsel %vm388, %v8054, %v8378
      %v9111 = vsel %vm388, %v8055, %v8380
      %v9112 = vsel %vm388, %v8056, %v8382
      %v9113 = vsel %vm388, %v8057, %v8384
      %v9114 = vsel %vm388, %v8058, %v8386
      %v9115 = vsel %vm388, %v8059, %v8388
      %v9116 = vsel %vm388, %v8060, %v8390
      %v9117 = vsel %vm388, %v8061, %v8392
      %v9118 = vsel %vm388, %v8062, %v8394
      %v9119 = vsel %vm388, %v8063, %v8396
      %v9120 = vsel %vm388, %v8064, %v8398
      %v9121 = vsel %vm388, %v8065, %v8400
      %v9122 = vsel %vm388, %v8066, %v8402
      %v9123 = vsel %vm388, %v8067, %v8404
      %v9124 = vsel %vm388, %v8068, %v8406
      %v9125 = vsel %vm388, %v8069, %v8408
      %v9126 = vsel %vm388, %v8070, %v8410
      %v9127 = vsel %vm388, %v8071, %v8412
      %v9128 = vsel %vm388, %v8072, %v8414
      %v9129 = vsel %vm388, %v8073, %v8416
      %v9130 = vsel %vm388, %v8074, %v8418
      %v9131 = vsel %vm388, %v8075, %v8420
      %v9132 = vsel %vm388, %v8076, %v8422
      %v9133 = vsel %vm388, %v8077, %v8424
      %v9134 = vsel %vm388, %v8078, %v8426
      %v9135 = vsel %vm388, %v8079, %v8428
      %v9136 = vsel %vm388, %v8080, %v8430
      %v9137 = vsel %vm388, %v8081, %v8432
      %v9138 = vsel %vm388, %v8082, %v8434
      %v9139 = vsel %vm3494, %v9107, %v8500
      %v9140 = vsel %vm3494, %v9108, %v8502
      %v9141 = vsel %vm3494, %v9109, %v8504
      %v9142 = vsel %vm3494, %v9110, %v8506
      %v9143 = vsel %vm3494, %v9111, %v8508
      %v9144 = vsel %vm3494, %v9112, %v8510
      %v9145 = vsel %vm3494, %v9113, %v8512
      %v9146 = vsel %vm3494, %v9114, %v8514
      %v9147 = vsel %vm3494, %v9115, %v8516
      %v9148 = vsel %vm3494, %v9116, %v8518
      %v9149 = vsel %vm3494, %v9117, %v8520
      %v9150 = vsel %vm3494, %v9118, %v8522
      %v9151 = vsel %vm3494, %v9119, %v8524
      %v9152 = vsel %vm3494, %v9120, %v8526
      %v9153 = vsel %vm3494, %v9121, %v8528
      %v9154 = vsel %vm3494, %v9122, %v8530
      %v9155 = vsel %vm3494, %v9123, %v8532
      %v9156 = vsel %vm3494, %v9124, %v8534
      %v9157 = vsel %vm3494, %v9125, %v8536
      %v9158 = vsel %vm3494, %v9126, %v8538
      %v9159 = vsel %vm3494, %v9127, %v8540
      %v9160 = vsel %vm3494, %v9128, %v8542
      %v9161 = vsel %vm3494, %v9129, %v8544
      %v9162 = vsel %vm3494, %v9130, %v8546
      %v9163 = vsel %vm3494, %v9131, %v8548
      %v9164 = vsel %vm3494, %v9132, %v8550
      %v9165 = vsel %vm3494, %v9133, %v8552
      %v9166 = vsel %vm3494, %v9134, %v8554
      %v9167 = vsel %vm3494, %v9135, %v8556
      %v9168 = vsel %vm3494, %v9136, %v8558
      %v9169 = vsel %vm3494, %v9137, %v8560
      %v9170 = vsel %vm3494, %v9138, %v8562
      %v9171 = vsel %vm3527, %v9139, %v8628
      %v9172 = vsel %vm3527, %v9140, %v8630
      %v9173 = vsel %vm3527, %v9141, %v8632
      %v9174 = vsel %vm3527, %v9142, %v8634
      %v9175 = vsel %vm3527, %v9143, %v8636
      %v9176 = vsel %vm3527, %v9144, %v8638
      %v9177 = vsel %vm3527, %v9145, %v8640
      %v9178 = vsel %vm3527, %v9146, %v8642
      %v9179 = vsel %vm3527, %v9147, %v8644
      %v9180 = vsel %vm3527, %v9148, %v8646
      %v9181 = vsel %vm3527, %v9149, %v8648
      %v9182 = vsel %vm3527, %v9150, %v8650
      %v9183 = vsel %vm3527, %v9151, %v8652
      %v9184 = vsel %vm3527, %v9152, %v8654
      %v9185 = vsel %vm3527, %v9153, %v8656
      %v9186 = vsel %vm3527, %v9154, %v8658
      %v9187 = vsel %vm3527, %v9155, %v8660
      %v9188 = vsel %vm3527, %v9156, %v8662
      %v9189 = vsel %vm3527, %v9157, %v8664
      %v9190 = vsel %vm3527, %v9158, %v8666
      %v9191 = vsel %vm3527, %v9159, %v8668
      %v9192 = vsel %vm3527, %v9160, %v8670
      %v9193 = vsel %vm3527, %v9161, %v8672
      %v9194 = vsel %vm3527, %v9162, %v8674
      %v9195 = vsel %vm3527, %v9163, %v8676
      %v9196 = vsel %vm3527, %v9164, %v8678
      %v9197 = vsel %vm3527, %v9165, %v8680
      %v9198 = vsel %vm3527, %v9166, %v8682
      %v9199 = vsel %vm3527, %v9167, %v8684
      %v9200 = vsel %vm3527, %v9168, %v8686
      %v9201 = vsel %vm3527, %v9169, %v8688
      %v9202 = vsel %vm3527, %v9170, %v8690
      %v9203 = vsel %vm388, %v8179, %v8756
      %v9204 = vsel %vm388, %v8180, %v8758
      %v9205 = vsel %vm388, %v8181, %v8760
      %v9206 = vsel %vm388, %v8182, %v8762
      %v9207 = vsel %vm388, %v8183, %v8764
      %v9208 = vsel %vm388, %v8184, %v8766
      %v9209 = vsel %vm388, %v8185, %v8768
      %v9210 = vsel %vm388, %v8186, %v8770
      %v9211 = vsel %vm388, %v8187, %v8772
      %v9212 = vsel %vm388, %v8188, %v8774
      %v9213 = vsel %vm388, %v8189, %v8776
      %v9214 = vsel %vm388, %v8190, %v8778
      %v9215 = vsel %vm388, %v8191, %v8780
      %v9216 = vsel %vm388, %v8192, %v8782
      %v9217 = vsel %vm388, %v8193, %v8784
      %v9218 = vsel %vm388, %v8194, %v8786
      %v9219 = vsel %vm388, %v8195, %v8788
      %v9220 = vsel %vm388, %v8196, %v8790
      %v9221 = vsel %vm388, %v8197, %v8792
      %v9222 = vsel %vm388, %v8198, %v8794
      %v9223 = vsel %vm388, %v8199, %v8796
      %v9224 = vsel %vm388, %v8200, %v8798
      %v9225 = vsel %vm388, %v8201, %v8800
      %v9226 = vsel %vm388, %v8202, %v8802
      %v9227 = vsel %vm388, %v8203, %v8804
      %v9228 = vsel %vm388, %v8204, %v8806
      %v9229 = vsel %vm388, %v8205, %v8808
      %v9230 = vsel %vm388, %v8206, %v8810
      %v9231 = vsel %vm388, %v8207, %v8812
      %v9232 = vsel %vm388, %v8208, %v8814
      %v9233 = vsel %vm388, %v8209, %v8816
      %v9234 = vsel %vm388, %v8210, %v8818
      %v9235 = vsel %vm3494, %v9203, %v8884
      %v9236 = vsel %vm3494, %v9204, %v8886
      %v9237 = vsel %vm3494, %v9205, %v8888
      %v9238 = vsel %vm3494, %v9206, %v8890
      %v9239 = vsel %vm3494, %v9207, %v8892
      %v9240 = vsel %vm3494, %v9208, %v8894
      %v9241 = vsel %vm3494, %v9209, %v8896
      %v9242 = vsel %vm3494, %v9210, %v8898
      %v9243 = vsel %vm3494, %v9211, %v8900
      %v9244 = vsel %vm3494, %v9212, %v8902
      %v9245 = vsel %vm3494, %v9213, %v8904
      %v9246 = vsel %vm3494, %v9214, %v8906
      %v9247 = vsel %vm3494, %v9215, %v8908
      %v9248 = vsel %vm3494, %v9216, %v8910
      %v9249 = vsel %vm3494, %v9217, %v8912
      %v9250 = vsel %vm3494, %v9218, %v8914
      %v9251 = vsel %vm3494, %v9219, %v8916
      %v9252 = vsel %vm3494, %v9220, %v8918
      %v9253 = vsel %vm3494, %v9221, %v8920
      %v9254 = vsel %vm3494, %v9222, %v8922
      %v9255 = vsel %vm3494, %v9223, %v8924
      %v9256 = vsel %vm3494, %v9224, %v8926
      %v9257 = vsel %vm3494, %v9225, %v8928
      %v9258 = vsel %vm3494, %v9226, %v8930
      %v9259 = vsel %vm3494, %v9227, %v8932
      %v9260 = vsel %vm3494, %v9228, %v8934
      %v9261 = vsel %vm3494, %v9229, %v8936
      %v9262 = vsel %vm3494, %v9230, %v8938
      %v9263 = vsel %vm3494, %v9231, %v8940
      %v9264 = vsel %vm3494, %v9232, %v8942
      %v9265 = vsel %vm3494, %v9233, %v8944
      %v9266 = vsel %vm3494, %v9234, %v8946
      %v9267 = vsel %vm3527, %v9235, %v9012
      %v9268 = vsel %vm3527, %v9236, %v9014
      %v9269 = vsel %vm3527, %v9237, %v9016
      %v9270 = vsel %vm3527, %v9238, %v9018
      %v9271 = vsel %vm3527, %v9239, %v9020
      %v9272 = vsel %vm3527, %v9240, %v9022
      %v9273 = vsel %vm3527, %v9241, %v9024
      %v9274 = vsel %vm3527, %v9242, %v9026
      %v9275 = vsel %vm3527, %v9243, %v9028
      %v9276 = vsel %vm3527, %v9244, %v9030
      %v9277 = vsel %vm3527, %v9245, %v9032
      %v9278 = vsel %vm3527, %v9246, %v9034
      %v9279 = vsel %vm3527, %v9247, %v9036
      %v9280 = vsel %vm3527, %v9248, %v9038
      %v9281 = vsel %vm3527, %v9249, %v9040
      %v9282 = vsel %vm3527, %v9250, %v9042
      %v9283 = vsel %vm3527, %v9251, %v9044
      %v9284 = vsel %vm3527, %v9252, %v9046
      %v9285 = vsel %vm3527, %v9253, %v9048
      %v9286 = vsel %vm3527, %v9254, %v9050
      %v9287 = vsel %vm3527, %v9255, %v9052
      %v9288 = vsel %vm3527, %v9256, %v9054
      %v9289 = vsel %vm3527, %v9257, %v9056
      %v9290 = vsel %vm3527, %v9258, %v9058
      %v9291 = vsel %vm3527, %v9259, %v9060
      %v9292 = vsel %vm3527, %v9260, %v9062
      %v9293 = vsel %vm3527, %v9261, %v9064
      %v9294 = vsel %vm3527, %v9262, %v9066
      %v9295 = vsel %vm3527, %v9263, %v9068
      %v9296 = vsel %vm3527, %v9264, %v9070
      %v9297 = vsel %vm3527, %v9265, %v9072
      %v9298 = vsel %vm3527, %v9266, %v9074
      %v9299 = vpack.c.bf16 %v9172, %v9171
      %v9300 = vpack.c.bf16 %v9268, %v9267
      %v9301 = vpack.c.bf16 %v8308, %v8307
      %v9302 = vpack.c.bf16 %v9174, %v9173
      %v9303 = vpack.c.bf16 %v9270, %v9269
      %v9304 = vpack.c.bf16 %v8310, %v8309
      %v9305 = vpack.c.bf16 %v9176, %v9175
      %v9306 = vpack.c.bf16 %v9272, %v9271
      %v9307 = vpack.c.bf16 %v8312, %v8311
      %v9308 = vpack.c.bf16 %v9178, %v9177
      %v9309 = vpack.c.bf16 %v9274, %v9273
      %v9310 = vpack.c.bf16 %v8314, %v8313
      %v9311 = vpack.c.bf16 %v9180, %v9179
      %v9312 = vpack.c.bf16 %v9276, %v9275
      %v9313 = vpack.c.bf16 %v8316, %v8315
      %v9314 = vpack.c.bf16 %v9182, %v9181
      %v9315 = vpack.c.bf16 %v9278, %v9277
      %v9316 = vpack.c.bf16 %v8318, %v8317
      %v9317 = vpack.c.bf16 %v9184, %v9183
      %v9318 = vpack.c.bf16 %v9280, %v9279
      %v9319 = vpack.c.bf16 %v8320, %v8319
      %v9320 = vpack.c.bf16 %v9186, %v9185
      %v9321 = vpack.c.bf16 %v9282, %v9281
      %v9322 = vpack.c.bf16 %v8322, %v8321
      %v9323 = vpack.c.bf16 %v9188, %v9187
      %v9324 = vpack.c.bf16 %v9284, %v9283
      %v9325 = vpack.c.bf16 %v8324, %v8323
      %v9326 = vpack.c.bf16 %v9190, %v9189
      %v9327 = vpack.c.bf16 %v9286, %v9285
      %v9328 = vpack.c.bf16 %v8326, %v8325
      %v9329 = vpack.c.bf16 %v9192, %v9191
      %v9330 = vpack.c.bf16 %v9288, %v9287
      %v9331 = vpack.c.bf16 %v8328, %v8327
      %v9332 = vpack.c.bf16 %v9194, %v9193
      %v9333 = vpack.c.bf16 %v9290, %v9289
      %v9334 = vpack.c.bf16 %v8330, %v8329
      %v9335 = vpack.c.bf16 %v9196, %v9195
      %v9336 = vpack.c.bf16 %v9292, %v9291
      %v9337 = vpack.c.bf16 %v8332, %v8331
      %v9338 = vpack.c.bf16 %v9198, %v9197
      %v9339 = vpack.c.bf16 %v9294, %v9293
      %v9340 = vpack.c.bf16 %v8334, %v8333
      %v9341 = vpack.c.bf16 %v9200, %v9199
      %v9342 = vpack.c.bf16 %v9296, %v9295
      %v9343 = vpack.c.bf16 %v8336, %v8335
      %v9344 = vpack.c.bf16 %v9202, %v9201
      %v9345 = vpack.c.bf16 %v9298, %v9297
      %v9346 = vpack.c.bf16 %v8338, %v8337
      %v9347 = vld [vmem:[%s5] sm:$0xf]
      %v9348 = vld [vmem:[%s5 + $0x4] sm:$0xf]
      %v9349 = vld [vmem:[%s5 + $0x8] sm:$0xf]
      %v9350 = vld [vmem:[%s5 + $0xc] sm:$0xf]
      %v9351 = vld [vmem:[%s5 + $0x10] sm:$0xf]
      %v9352 = vld [vmem:[%s5 + $0x14] sm:$0xf]
      %v9353 = vld [vmem:[%s5 + $0x18] sm:$0xf]
      %v9354 = vld [vmem:[%s5 + $0x1c] sm:$0xf]
      %v9355 = vld [vmem:[%s5 + $0x20] sm:$0xf]
      %v9356 = vld [vmem:[%s5 + $0x24] sm:$0xf]
      %v9357 = vld [vmem:[%s5 + $0x28] sm:$0xf]
      %v9358 = vld [vmem:[%s5 + $0x2c] sm:$0xf]
      %v9359 = vld [vmem:[%s5 + $0x30] sm:$0xf]
      %v9360 = vld [vmem:[%s5 + $0x34] sm:$0xf]
      %v9361 = vld [vmem:[%s5 + $0x38] sm:$0xf]
      %v9362 = vld [vmem:[%s5 + $0x3c] sm:$0xf]
      %v9363 = vld [vmem:[%s5 + $0x40] sm:$0xf]
      %v9364 = vld [vmem:[%s5 + $0x44] sm:$0xf]
      %v9365 = vld [vmem:[%s5 + $0x48] sm:$0xf]
      %v9366 = vld [vmem:[%s5 + $0x4c] sm:$0xf]
      %v9367 = vld [vmem:[%s5 + $0x50] sm:$0xf]
      %v9368 = vld [vmem:[%s5 + $0x54] sm:$0xf]
      %v9369 = vld [vmem:[%s5 + $0x58] sm:$0xf]
      %v9370 = vld [vmem:[%s5 + $0x5c] sm:$0xf]
      %v9371 = vld [vmem:[%s5 + $0x60] sm:$0xf]
      %v9372 = vld [vmem:[%s5 + $0x64] sm:$0xf]
      %v9373 = vld [vmem:[%s5 + $0x68] sm:$0xf]
      %v9374 = vld [vmem:[%s5 + $0x6c] sm:$0xf]
      %v9375 = vld [vmem:[%s5 + $0x70] sm:$0xf]
      %v9376 = vld [vmem:[%s5 + $0x74] sm:$0xf]
      %v9377 = vld [vmem:[%s5 + $0x78] sm:$0xf]
      %v9378 = vld [vmem:[%s5 + $0x7c] sm:$0xf]
      %v9379 = vld [vmem:[%s5 + $0x80] sm:$0xf]
      %v9380 = vld [vmem:[%s5 + $0x84] sm:$0xf]
      %v9381 = vld [vmem:[%s5 + $0x88] sm:$0xf]
      %v9382 = vld [vmem:[%s5 + $0x8c] sm:$0xf]
      %v9383 = vld [vmem:[%s10] sm:$0x1]
      %v9385 = vlaneseq
      %v9386 = vshrl.u32 %v9385, 7
      %v9387 = vsub.s32 0, %v9386
      %v9388 = vrot.slane %v9383, %v9387
      %v9426 = vunpack.c.l.b16 %v9347
      %v9427 = vunpack.c.l.b16 %v9348
      %v9428 = vunpack.c.l.b16 %v9349
      %v9429 = vunpack.c.l.b16 %v9350
      %v9430 = vunpack.c.l.b16 %v9351
      %v9431 = vunpack.c.l.b16 %v9352
      %v9432 = vunpack.c.l.b16 %v9353
      %v9433 = vunpack.c.l.b16 %v9354
      %v9434 = vunpack.c.l.b16 %v9355
      %v9435 = vunpack.c.l.b16 %v9356
      %v9436 = vunpack.c.l.b16 %v9357
      %v9437 = vunpack.c.l.b16 %v9358
      %v9438 = vunpack.c.l.b16 %v9359
      %v9439 = vunpack.c.l.b16 %v9360
      %v9440 = vunpack.c.l.b16 %v9361
      %v9441 = vunpack.c.l.b16 %v9362
      %v9442 = vunpack.c.l.b16 %v9363
      %v9443 = vunpack.c.l.b16 %v9364
      %v9444 = vunpack.c.l.b16 %v9365
      %v9445 = vunpack.c.l.b16 %v9366
      %v9446 = vunpack.c.l.b16 %v9367
      %v9447 = vunpack.c.l.b16 %v9368
      %v9448 = vunpack.c.l.b16 %v9369
      %v9449 = vunpack.c.l.b16 %v9370
      %v9450 = vunpack.c.l.b16 %v9371
      %v9451 = vunpack.c.l.b16 %v9372
      %v9452 = vunpack.c.l.b16 %v9373
      %v9453 = vunpack.c.l.b16 %v9374
      %v9454 = vunpack.c.l.b16 %v9375
      %v9455 = vunpack.c.l.b16 %v9376
      %v9456 = vunpack.c.l.b16 %v9377
      %v9457 = vunpack.c.l.b16 %v9378
      %v9458 = vunpack.c.l.b16 %v9379
      %v9459 = vunpack.c.l.b16 %v9380
      %v9460 = vunpack.c.l.b16 %v9381
      %v9461 = vunpack.c.l.b16 %v9382
      %v9462 = vpack.c.b16 %v9427, %v9426
      %v9463 = vpack.c.b16 %v9429, %v9428
      %v9464 = vpack.c.b16 %v9431, %v9430
      %v9465 = vpack.c.b16 %v9433, %v9432
      %v9466 = vpack.c.b16 %v9435, %v9434
      %v9467 = vpack.c.b16 %v9437, %v9436
      %v9468 = vpack.c.b16 %v9439, %v9438
      %v9469 = vpack.c.b16 %v9441, %v9440
      %v9470 = vpack.c.b16 %v9443, %v9442
      %v9471 = vpack.c.b16 %v9445, %v9444
      %v9472 = vpack.c.b16 %v9447, %v9446
      %v9473 = vpack.c.b16 %v9449, %v9448
      %v9474 = vpack.c.b16 %v9451, %v9450
      %v9475 = vpack.c.b16 %v9453, %v9452
      %v9476 = vpack.c.b16 %v9455, %v9454
      %v9477 = vpack.c.b16 %v9457, %v9456
      %v9478 = vpack.c.b16 %v9459, %v9458
      %v9479 = vpack.c.b16 %v9461, %v9460
      %v9499 = vsel %vm388, %v9301, 0
      %v9502 = vsel %vm388, %v9304, 0
      %v9505 = vsel %vm388, %v9307, 0
      %v9508 = vsel %vm388, %v9310, 0
      %v9511 = vsel %vm388, %v9313, 0
      %v9514 = vsel %vm388, %v9316, 0
      %v9517 = vsel %vm388, %v9319, 0
      %v9520 = vsel %vm388, %v9322, 0
      %v9523 = vsel %vm388, %v9325, 0
      %v9526 = vsel %vm388, %v9328, 0
      %v9529 = vsel %vm388, %v9331, 0
      %v9532 = vsel %vm388, %v9334, 0
      %v9535 = vsel %vm388, %v9337, 0
      %v9538 = vsel %vm388, %v9340, 0
      %v9541 = vsel %vm388, %v9343, 0
      %v9544 = vsel %vm388, %v9346, 0
      %9546 = vmatprep.subr.bf16.mxu0 0
      %9547 = vmatpush1.bf16.msra.mxu0 %v9462
      %9548 = vmatprep.subr.bf16.mxu0 0
      %9549 = vmatpush1.bf16.msra.mxu0 %v9463
      %9550 = vmatprep.subr.bf16.mxu0 0
      %9551 = vmatpush1.bf16.msra.mxu0 %v9464
      %9552 = vmatprep.subr.bf16.mxu0 0
      %9553 = vmatpush1.bf16.msra.mxu0 %v9465
      %9554 = vmatprep.subr.bf16.mxu0 0
      %9555 = vmatpush1.bf16.msra.mxu0 %v9466
      %9556 = vmatprep.subr.bf16.mxu0 0
      %9557 = vmatpush1.bf16.msra.mxu0 %v9467
      %9558 = vmatprep.subr.bf16.mxu0 0
      %9559 = vmatpush1.bf16.msra.mxu0 %v9468
      %9560 = vmatprep.subr.bf16.mxu0 0
      %9561 = vmatpush1.bf16.msra.mxu0 %v9469
      %9562 = vmatprep.subr.bf16.mxu0 0
      %9563 = vmatpush1.bf16.msra.mxu0 %v9470
      %9564 = vmatprep.subr.bf16.mxu0 0
      %9565 = vmatpush1.bf16.msra.mxu0 %v9471
      %9566 = vmatprep.subr.bf16.mxu0 0
      %9567 = vmatpush1.bf16.msra.mxu0 %v9472
      %9568 = vmatprep.subr.bf16.mxu0 0
      %9569 = vmatpush1.bf16.msra.mxu0 %v9473
      %9570 = vmatprep.subr.bf16.mxu0 0
      %9571 = vmatpush1.bf16.msra.mxu0 %v9474
      %9572 = vmatprep.subr.bf16.mxu0 0
      %9573 = vmatpush1.bf16.msra.mxu0 %v9475
      %9574 = vmatprep.subr.bf16.mxu0 0
      %9575 = vmatpush1.bf16.msra.mxu0 %v9476
      %9576 = vmatprep.subr.bf16.mxu0 0
      %9577 = vmatpush1.bf16.msra.mxu0 %v9477
      %9578 = vmatprep.mubr.bf16.mxu0 %v9300
      %9579 = vmatmul.mubr.bf16.gmra.mrb[0].mxu0 %v9299
      %v9580 = vpop.f32.mrb[0].mxu0
      %v9581 = vadd.f32 %v9388, %v9580
      %v9582 = vpop.f32.mrb[0].mxu0
      %v9583 = vpop.f32.mrb[0].mxu0
      %v9584 = vadd.f32 %v9388, %v9583
      %v9585 = vpop.f32.mrb[0].mxu0
      %9586 = vmatprep.mubr.bf16.mxu0 %v9303
      %9587 = vmatmul.mubr.bf16.gmra.mrb[0].mxu0 %v9302
      %v9588 = vpop.f32.mrb[0].mxu0
      %v9589 = vadd.f32 %v9388, %v9588
      %v9590 = vpop.f32.mrb[0].mxu0
      %v9591 = vpop.f32.mrb[0].mxu0
      %v9592 = vadd.f32 %v9388, %v9591
      %v9593 = vpop.f32.mrb[0].mxu0
      %9594 = vmatprep.mubr.bf16.mxu0 %v9306
      %9595 = vmatmul.mubr.bf16.gmra.mrb[0].mxu0 %v9305
      %v9596 = vpop.f32.mrb[0].mxu0
      %v9597 = vadd.f32 %v9388, %v9596
      %v9598 = vpop.f32.mrb[0].mxu0
      %v9599 = vpop.f32.mrb[0].mxu0
      %v9600 = vadd.f32 %v9388, %v9599
      %v9601 = vpop.f32.mrb[0].mxu0
      %9602 = vmatprep.mubr.bf16.mxu0 %v9309
      %9603 = vmatmul.mubr.bf16.gmra.mrb[0].mxu0 %v9308
      %v9604 = vpop.f32.mrb[0].mxu0
      %v9605 = vadd.f32 %v9388, %v9604
      %v9606 = vpop.f32.mrb[0].mxu0
      %v9607 = vpop.f32.mrb[0].mxu0
      %v9608 = vadd.f32 %v9388, %v9607
      %v9609 = vpop.f32.mrb[0].mxu0
      %9610 = vmatprep.mubr.bf16.mxu0 %v9312
      %9611 = vmatmul.mubr.bf16.gmra.mrb[0].mxu0 %v9311
      %v9612 = vpop.f32.mrb[0].mxu0
      %v9613 = vadd.f32 %v9388, %v9612
      %v9614 = vpop.f32.mrb[0].mxu0
      %v9615 = vpop.f32.mrb[0].mxu0
      %v9616 = vadd.f32 %v9388, %v9615
      %v9617 = vpop.f32.mrb[0].mxu0
      %9618 = vmatprep.mubr.bf16.mxu0 %v9315
      %9619 = vmatmul.mubr.bf16.gmra.mrb[0].mxu0 %v9314
      %v9620 = vpop.f32.mrb[0].mxu0
      %v9621 = vadd.f32 %v9388, %v9620
      %v9622 = vpop.f32.mrb[0].mxu0
      %v9623 = vpop.f32.mrb[0].mxu0
      %v9624 = vadd.f32 %v9388, %v9623
      %v9625 = vpop.f32.mrb[0].mxu0
      %9626 = vmatprep.mubr.bf16.mxu0 %v9318
      %9627 = vmatmul.mubr.bf16.gmra.mrb[0].mxu0 %v9317
      %v9628 = vpop.f32.mrb[0].mxu0
      %v9629 = vadd.f32 %v9388, %v9628
      %v9630 = vpop.f32.mrb[0].mxu0
      %v9631 = vpop.f32.mrb[0].mxu0
      %v9632 = vadd.f32 %v9388, %v9631
      %v9633 = vpop.f32.mrb[0].mxu0
      %9634 = vmatprep.mubr.bf16.mxu0 %v9321
      %9635 = vmatmul.mubr.bf16.gmra.mrb[0].mxu0 %v9320
      %v9636 = vpop.f32.mrb[0].mxu0
      %v9637 = vadd.f32 %v9388, %v9636
      %v9638 = vpop.f32.mrb[0].mxu0
      %v9639 = vpop.f32.mrb[0].mxu0
      %v9640 = vadd.f32 %v9388, %v9639
      %v9641 = vpop.f32.mrb[0].mxu0
      %9642 = vmatprep.mubr.bf16.mxu0 %v9324
      %9643 = vmatmul.mubr.bf16.gmra.mrb[0].mxu0 %v9323
      %v9644 = vpop.f32.mrb[0].mxu0
      %v9645 = vadd.f32 %v9388, %v9644
      %v9646 = vpop.f32.mrb[0].mxu0
      %v9647 = vpop.f32.mrb[0].mxu0
      %v9648 = vadd.f32 %v9388, %v9647
      %v9649 = vpop.f32.mrb[0].mxu0
      %9650 = vmatprep.mubr.bf16.mxu0 %v9327
      %9651 = vmatmul.mubr.bf16.gmra.mrb[0].mxu0 %v9326
      %v9652 = vpop.f32.mrb[0].mxu0
      %v9653 = vadd.f32 %v9388, %v9652
      %v9654 = vpop.f32.mrb[0].mxu0
      %v9655 = vpop.f32.mrb[0].mxu0
      %v9656 = vadd.f32 %v9388, %v9655
      %v9657 = vpop.f32.mrb[0].mxu0
      %9658 = vmatprep.mubr.bf16.mxu0 %v9330
      %9659 = vmatmul.mubr.bf16.gmra.mrb[0].mxu0 %v9329
      %v9660 = vpop.f32.mrb[0].mxu0
      %v9661 = vadd.f32 %v9388, %v9660
      %v9662 = vpop.f32.mrb[0].mxu0
      %v9663 = vpop.f32.mrb[0].mxu0
      %v9664 = vadd.f32 %v9388, %v9663
      %v9665 = vpop.f32.mrb[0].mxu0
      %9666 = vmatprep.mubr.bf16.mxu0 %v9333
      %9667 = vmatmul.mubr.bf16.gmra.mrb[0].mxu0 %v9332
      %v9668 = vpop.f32.mrb[0].mxu0
      %v9669 = vadd.f32 %v9388, %v9668
      %v9670 = vpop.f32.mrb[0].mxu0
      %v9671 = vpop.f32.mrb[0].mxu0
      %v9672 = vadd.f32 %v9388, %v9671
      %v9673 = vpop.f32.mrb[0].mxu0
      %9674 = vmatprep.mubr.bf16.mxu0 %v9336
      %9675 = vmatmul.mubr.bf16.gmra.mrb[0].mxu0 %v9335
      %v9676 = vpop.f32.mrb[0].mxu0
      %v9677 = vadd.f32 %v9388, %v9676
      %v9678 = vpop.f32.mrb[0].mxu0
      %v9679 = vpop.f32.mrb[0].mxu0
      %v9680 = vadd.f32 %v9388, %v9679
      %v9681 = vpop.f32.mrb[0].mxu0
      %9682 = vmatprep.mubr.bf16.mxu0 %v9339
      %9683 = vmatmul.mubr.bf16.gmra.mrb[0].mxu0 %v9338
      %v9684 = vpop.f32.mrb[0].mxu0
      %v9685 = vadd.f32 %v9388, %v9684
      %v9686 = vpop.f32.mrb[0].mxu0
      %v9687 = vpop.f32.mrb[0].mxu0
      %v9688 = vadd.f32 %v9388, %v9687
      %v9689 = vpop.f32.mrb[0].mxu0
      %9690 = vmatprep.mubr.bf16.mxu0 %v9342
      %9691 = vmatmul.mubr.bf16.gmra.mrb[0].mxu0 %v9341
      %v9692 = vpop.f32.mrb[0].mxu0
      %v9693 = vadd.f32 %v9388, %v9692
      %v9694 = vpop.f32.mrb[0].mxu0
      %v9695 = vpop.f32.mrb[0].mxu0
      %v9696 = vadd.f32 %v9388, %v9695
      %v9697 = vpop.f32.mrb[0].mxu0
      %9698 = vmatprep.mubr.bf16.mxu0 %v9345
      %9699 = vmatmul.mubr.bf16.gmra.mrb[0].mxu0 %v9344
      %v9700 = vpop.f32.mrb[0].mxu0
      %v9701 = vadd.f32 %v9388, %v9700
      %v9702 = vpop.f32.mrb[0].mxu0
      %v9703 = vpop.f32.mrb[0].mxu0
      %v9704 = vadd.f32 %v9388, %v9703
      %v9705 = vpop.f32.mrb[0].mxu0
      %9706 = vdwg.mxu0
      %9707 = vmatprep.subr.bf16.mxu0 0
      %9708 = vmatpush1.bf16.msra.mxu0 %v9478
      %9709 = vmatprep.subr.bf16.mxu0 0
      %9710 = vmatpush1.bf16.msra.mxu0 %v9479
      %9711 = vmatprep.subr.bf16.mxu0 0
      %9712 = vmatpush1.bf16.msra.mxu0 0
      %9713 = vmatprep.subr.bf16.mxu0 0
      %9714 = vmatpush1.bf16.msra.mxu0 0
      %9715 = vmatprep.subr.bf16.mxu0 0
      %9716 = vmatpush1.bf16.msra.mxu0 0
      %9717 = vmatprep.subr.bf16.mxu0 0
      %9718 = vmatpush1.bf16.msra.mxu0 0
      %9719 = vmatprep.subr.bf16.mxu0 0
      %9720 = vmatpush1.bf16.msra.mxu0 0
      %9721 = vmatprep.subr.bf16.mxu0 0
      %9722 = vmatpush1.bf16.msra.mxu0 0
      %9723 = vmatprep.subr.bf16.mxu0 0
      %9724 = vmatpush1.bf16.msra.mxu0 0
      %9725 = vmatprep.subr.bf16.mxu0 0
      %9726 = vmatpush1.bf16.msra.mxu0 0
      %9727 = vmatprep.subr.bf16.mxu0 0
      %9728 = vmatpush1.bf16.msra.mxu0 0
      %9729 = vmatprep.subr.bf16.mxu0 0
      %9730 = vmatpush1.bf16.msra.mxu0 0
      %9731 = vmatprep.subr.bf16.mxu0 0
      %9732 = vmatpush1.bf16.msra.mxu0 0
      %9733 = vmatprep.subr.bf16.mxu0 0
      %9734 = vmatpush1.bf16.msra.mxu0 0
      %9735 = vmatprep.subr.bf16.mxu0 0
      %9736 = vmatpush1.bf16.msra.mxu0 0
      %9737 = vmatprep.subr.bf16.mxu0 0
      %9738 = vmatpush1.bf16.msra.mxu0 0
      %9739 = vmatprep.mubr.bf16.mxu0 0
      %9740 = vmatmul.mubr.bf16.gmra.mrb[0].mxu0 %v9499
      %v9741 = vpop.f32.mrb[0].mxu0
      %v9742 = vadd.f32 %v9581, %v9741
      %v9743 = vpop.f32.mrb[0].mxu0
      %v9744 = vpop.f32.mrb[0].mxu0
      %v9745 = vadd.f32 %v9584, %v9744
      %v9746 = vpop.f32.mrb[0].mxu0
      %9747 = vmatprep.mubr.bf16.mxu0 0
      %9748 = vmatmul.mubr.bf16.gmra.mrb[0].mxu0 %v9502
      %v9749 = vpop.f32.mrb[0].mxu0
      %v9750 = vadd.f32 %v9589, %v9749
      %v9751 = vpop.f32.mrb[0].mxu0
      %v9752 = vpop.f32.mrb[0].mxu0
      %v9753 = vadd.f32 %v9592, %v9752
      %v9754 = vpop.f32.mrb[0].mxu0
      %9755 = vmatprep.mubr.bf16.mxu0 0
      %9756 = vmatmul.mubr.bf16.gmra.mrb[0].mxu0 %v9505
      %v9757 = vpop.f32.mrb[0].mxu0
      %v9758 = vadd.f32 %v9597, %v9757
      %v9759 = vpop.f32.mrb[0].mxu0
      %v9760 = vpop.f32.mrb[0].mxu0
      %v9761 = vadd.f32 %v9600, %v9760
      %v9762 = vpop.f32.mrb[0].mxu0
      %9763 = vmatprep.mubr.bf16.mxu0 0
      %9764 = vmatmul.mubr.bf16.gmra.mrb[0].mxu0 %v9508
      %v9765 = vpop.f32.mrb[0].mxu0
      %v9766 = vadd.f32 %v9605, %v9765
      %v9767 = vpop.f32.mrb[0].mxu0
      %v9768 = vpop.f32.mrb[0].mxu0
      %v9769 = vadd.f32 %v9608, %v9768
      %v9770 = vpop.f32.mrb[0].mxu0
      %9771 = vmatprep.mubr.bf16.mxu0 0
      %9772 = vmatmul.mubr.bf16.gmra.mrb[0].mxu0 %v9511
      %v9773 = vpop.f32.mrb[0].mxu0
      %v9774 = vadd.f32 %v9613, %v9773
      %v9775 = vpop.f32.mrb[0].mxu0
      %v9776 = vpop.f32.mrb[0].mxu0
      %v9777 = vadd.f32 %v9616, %v9776
      %v9778 = vpop.f32.mrb[0].mxu0
      %9779 = vmatprep.mubr.bf16.mxu0 0
      %9780 = vmatmul.mubr.bf16.gmra.mrb[0].mxu0 %v9514
      %v9781 = vpop.f32.mrb[0].mxu0
      %v9782 = vadd.f32 %v9621, %v9781
      %v9783 = vpop.f32.mrb[0].mxu0
      %v9784 = vpop.f32.mrb[0].mxu0
      %v9785 = vadd.f32 %v9624, %v9784
      %v9786 = vpop.f32.mrb[0].mxu0
      %9787 = vmatprep.mubr.bf16.mxu0 0
      %9788 = vmatmul.mubr.bf16.gmra.mrb[0].mxu0 %v9517
      %v9789 = vpop.f32.mrb[0].mxu0
      %v9790 = vadd.f32 %v9629, %v9789
      %v9791 = vpop.f32.mrb[0].mxu0
      %v9792 = vpop.f32.mrb[0].mxu0
      %v9793 = vadd.f32 %v9632, %v9792
      %v9794 = vpop.f32.mrb[0].mxu0
      %9795 = vmatprep.mubr.bf16.mxu0 0
      %9796 = vmatmul.mubr.bf16.gmra.mrb[0].mxu0 %v9520
      %v9797 = vpop.f32.mrb[0].mxu0
      %v9798 = vadd.f32 %v9637, %v9797
      %v9799 = vpop.f32.mrb[0].mxu0
      %v9800 = vpop.f32.mrb[0].mxu0
      %v9801 = vadd.f32 %v9640, %v9800
      %v9802 = vpop.f32.mrb[0].mxu0
      %9803 = vmatprep.mubr.bf16.mxu0 0
      %9804 = vmatmul.mubr.bf16.gmra.mrb[0].mxu0 %v9523
      %v9805 = vpop.f32.mrb[0].mxu0
      %v9806 = vadd.f32 %v9645, %v9805
      %v9807 = vpop.f32.mrb[0].mxu0
      %v9808 = vpop.f32.mrb[0].mxu0
      %v9809 = vadd.f32 %v9648, %v9808
      %v9810 = vpop.f32.mrb[0].mxu0
      %9811 = vmatprep.mubr.bf16.mxu0 0
      %9812 = vmatmul.mubr.bf16.gmra.mrb[0].mxu0 %v9526
      %v9813 = vpop.f32.mrb[0].mxu0
      %v9814 = vadd.f32 %v9653, %v9813
      %v9815 = vpop.f32.mrb[0].mxu0
      %v9816 = vpop.f32.mrb[0].mxu0
      %v9817 = vadd.f32 %v9656, %v9816
      %v9818 = vpop.f32.mrb[0].mxu0
      %9819 = vmatprep.mubr.bf16.mxu0 0
      %9820 = vmatmul.mubr.bf16.gmra.mrb[0].mxu0 %v9529
      %v9821 = vpop.f32.mrb[0].mxu0
      %v9822 = vadd.f32 %v9661, %v9821
      %v9823 = vpop.f32.mrb[0].mxu0
      %v9824 = vpop.f32.mrb[0].mxu0
      %v9825 = vadd.f32 %v9664, %v9824
      %v9826 = vpop.f32.mrb[0].mxu0
      %9827 = vmatprep.mubr.bf16.mxu0 0
      %9828 = vmatmul.mubr.bf16.gmra.mrb[0].mxu0 %v9532
      %v9829 = vpop.f32.mrb[0].mxu0
      %v9830 = vadd.f32 %v9669, %v9829
      %v9831 = vpop.f32.mrb[0].mxu0
      %v9832 = vpop.f32.mrb[0].mxu0
      %v9833 = vadd.f32 %v9672, %v9832
      %v9834 = vpop.f32.mrb[0].mxu0
      %9835 = vmatprep.mubr.bf16.mxu0 0
      %9836 = vmatmul.mubr.bf16.gmra.mrb[0].mxu0 %v9535
      %v9837 = vpop.f32.mrb[0].mxu0
      %v9838 = vadd.f32 %v9677, %v9837
      %v9839 = vpop.f32.mrb[0].mxu0
      %v9840 = vpop.f32.mrb[0].mxu0
      %v9841 = vadd.f32 %v9680, %v9840
      %v9842 = vpop.f32.mrb[0].mxu0
      %9843 = vmatprep.mubr.bf16.mxu0 0
      %9844 = vmatmul.mubr.bf16.gmra.mrb[0].mxu0 %v9538
      %v9845 = vpop.f32.mrb[0].mxu0
      %v9846 = vadd.f32 %v9685, %v9845
      %v9847 = vpop.f32.mrb[0].mxu0
      %v9848 = vpop.f32.mrb[0].mxu0
      %v9849 = vadd.f32 %v9688, %v9848
      %v9850 = vpop.f32.mrb[0].mxu0
      %9851 = vmatprep.mubr.bf16.mxu0 0
      %9852 = vmatmul.mubr.bf16.gmra.mrb[0].mxu0 %v9541
      %v9853 = vpop.f32.mrb[0].mxu0
      %v9854 = vadd.f32 %v9693, %v9853
      %v9855 = vpop.f32.mrb[0].mxu0
      %v9856 = vpop.f32.mrb[0].mxu0
      %v9857 = vadd.f32 %v9696, %v9856
      %v9858 = vpop.f32.mrb[0].mxu0
      %9859 = vmatprep.mubr.bf16.mxu0 0
      %9860 = vmatmul.mubr.bf16.gmra.mrb[0].mxu0 %v9544
      %v9861 = vpop.f32.mrb[0].mxu0
      %v9862 = vadd.f32 %v9701, %v9861
      %v9863 = vpop.f32.mrb[0].mxu0
      %v9864 = vpop.f32.mrb[0].mxu0
      %v9865 = vadd.f32 %v9704, %v9864
      %v9866 = vpop.f32.mrb[0].mxu0
      %9867 = vdwg.mxu0
      %vm9868 = vcmask 72704
      %9869 = vst.msk [vmem:[%s386] sm:$0xff] %vm9868, %v9742
      %9870 = vst.msk [vmem:[%s386 + $0x8] sm:$0xff] %vm9868, %v9745
      %9871 = vst.msk [vmem:[%s386 + $0x10] sm:$0xff] %vm9868, %v9750
      %9872 = vst.msk [vmem:[%s386 + $0x18] sm:$0xff] %vm9868, %v9753
      %9873 = vst.msk [vmem:[%s386 + $0x20] sm:$0xff] %vm9868, %v9758
      %9874 = vst.msk [vmem:[%s386 + $0x28] sm:$0xff] %vm9868, %v9761
      %9875 = vst.msk [vmem:[%s386 + $0x30] sm:$0xff] %vm9868, %v9766
      %9876 = vst.msk [vmem:[%s386 + $0x38] sm:$0xff] %vm9868, %v9769
      %9877 = vst.msk [vmem:[%s386 + $0x40] sm:$0xff] %vm9868, %v9774
      %9878 = vst.msk [vmem:[%s386 + $0x48] sm:$0xff] %vm9868, %v9777
      %9879 = vst.msk [vmem:[%s386 + $0x50] sm:$0xff] %vm9868, %v9782
      %9880 = vst.msk [vmem:[%s386 + $0x58] sm:$0xff] %vm9868, %v9785
      %9881 = vst.msk [vmem:[%s386 + $0x60] sm:$0xff] %vm9868, %v9790
      %9882 = vst.msk [vmem:[%s386 + $0x68] sm:$0xff] %vm9868, %v9793
      %9883 = vst.msk [vmem:[%s386 + $0x70] sm:$0xff] %vm9868, %v9798
      %9884 = vst.msk [vmem:[%s386 + $0x78] sm:$0xff] %vm9868, %v9801
      %9885 = vst.msk [vmem:[%s386 + $0x80] sm:$0xff] %vm9868, %v9806
      %9886 = vst.msk [vmem:[%s386 + $0x88] sm:$0xff] %vm9868, %v9809
      %9887 = vst.msk [vmem:[%s386 + $0x90] sm:$0xff] %vm9868, %v9814
      %9888 = vst.msk [vmem:[%s386 + $0x98] sm:$0xff] %vm9868, %v9817
      %9889 = vst.msk [vmem:[%s386 + $0xa0] sm:$0xff] %vm9868, %v9822
      %9890 = vst.msk [vmem:[%s386 + $0xa8] sm:$0xff] %vm9868, %v9825
      %9891 = vst.msk [vmem:[%s386 + $0xb0] sm:$0xff] %vm9868, %v9830
      %9892 = vst.msk [vmem:[%s386 + $0xb8] sm:$0xff] %vm9868, %v9833
      %9893 = vst.msk [vmem:[%s386 + $0xc0] sm:$0xff] %vm9868, %v9838
      %9894 = vst.msk [vmem:[%s386 + $0xc8] sm:$0xff] %vm9868, %v9841
      %9895 = vst.msk [vmem:[%s386 + $0xd0] sm:$0xff] %vm9868, %v9846
      %9896 = vst.msk [vmem:[%s386 + $0xd8] sm:$0xff] %vm9868, %v9849
      %9897 = vst.msk [vmem:[%s386 + $0xe0] sm:$0xff] %vm9868, %v9854
      %9898 = vst.msk [vmem:[%s386 + $0xe8] sm:$0xff] %vm9868, %v9857
      %9899 = vst.msk [vmem:[%s386 + $0xf0] sm:$0xff] %vm9868, %v9862
      %9900 = vst.msk [vmem:[%s386 + $0xf8] sm:$0xff] %vm9868, %v9865
      %p9901 = scmp.lt.s32.totalorder %s22, 1
      %s9902 = scalar_select %p9901, %s22, 1
      %s9903 = smul.addr %s9902, 32
      %s9904 = smul.addr %s9903, 8
      %s9905 = scalar_lea.vmem %s11, %s9904
      // Predicated region
      $region65: #{tpu_custom_call.1} parent=63 // pred_check
        %p9906 = pneg %p276
      $region66: #{tpu_custom_call.1} parent=63 // pred_check_branch
        %9908 = sbr.rel (%p9906) target = $region68
      $region67: #{tpu_custom_call.1} parent=63 // pred_region
        _
      $region68: #{tpu_custom_call.1} parent=63 // pred_fallthru
        _
    $region64: #{tpu_custom_call.1} parent=5 // pred_fallthru
      _
    %p9909 = scmp.le.s32.totalorder 2, %s17
    // Predicated region
    $region69: #{tpu_custom_call.1} parent=5 // pred_check
      %p9910 = pneg %p9909
    $region70: #{tpu_custom_call.1} parent=5 // pred_check_branch
      %9912 = sbr.rel (%p9910) target = $region72
    $region71: #{tpu_custom_call.1} parent=5 // pred_region
      %s9913 = ssub.s32 %s17, 2
      // Predicated region
      $region73: #{tpu_custom_call.1} parent=71 // pred_check
        %p9914 = pneg %p282
      $region74: #{tpu_custom_call.1} parent=71 // pred_check_branch
        %9916 = sbr.rel (%p9914) target = $region76
      $region75: #{tpu_custom_call.1} parent=71 // pred_region
        %p9917 = scmp.lt.s32.totalorder %s23, 1
        %s9918 = scalar_select %p9917, %s23, 1
        %s9919 = smul.addr %s9918, 32
        %s9920 = smul.addr %s9919, 8
        %s9921 = scalar_lea.vmem %s11, %s9920
      $region76: #{tpu_custom_call.1} parent=71 // pred_fallthru
        _
    $region72: #{tpu_custom_call.1} parent=5 // pred_fallthru
      _
  $region6: #{tpu_custom_call.1} parent=0 // loop_footer
    %s21 = sadd.s32 1, %s17
  $region7: #{tpu_custom_call.1} parent=0 // loop_footer_branch
    %16 = sbr.rel target = $region3
  $region8: #{tpu_custom_call.1} parent=0 // loop_exit
    _

</llo_original>
